<compile_context>
chip_gen: v7x
topology: tpu7x:2x2x1
jax: 0.10.0
libtpu: 0.0.40
codegen_flags: <defaults>
</compile_context>

<pallas_src>
import functools

import numpy as np
import jax
import jax.numpy as jnp
from jax import lax
from jax.experimental import pallas as pl
from jax.experimental.pallas import tpu as pltpu


def _conv_out(n):
    return (n - 3) // 2 + 1


def _rup(n, m):
    return ((n + m - 1) // m) * m


# ---------------------------------------------------------------------------
# Fused forward kernel: conv1/2/3 (k=3, s=2, VALID, ReLU) + fc1(ReLU) + heads
# ---------------------------------------------------------------------------
def _im2col_conv(read_tap, w_ref, b_ref, m, ci):
    """One conv layer as a single fused-K MXU dot over an im2col lhs (m, 9*ci)."""
    taps = [read_tap(i, j).reshape(m, ci) for i in range(3) for j in range(3)]
    lhs = jnp.concatenate(taps, axis=-1)                      # (m, 9*ci)
    acc = jnp.dot(lhs, w_ref[...], preferred_element_type=jnp.float32)
    return jnp.maximum(acc + b_ref[...], 0.0)                 # bias (1, co) broadcasts


def _forward_kernel(x_ref, w1_ref, b1_ref, w2_ref, b2_ref, w3_ref, b3_ref,
                    fc1w_ref, fc1b_ref, hw_ref, hb_ref,
                    out_ref, a1_ref, a2_ref, *, dims):
    bt, c_in, h1, p1c, p1a, h2, p2c, p2a, h3, p3, co = dims

    # conv1: (bt, H, Wp, c_in) -> (bt, h1, p1c, co); zero-fill alloc cols [p1c, p1a)
    y1 = _im2col_conv(
        lambda i, j: x_ref[:, pl.ds(i, h1, 2), pl.ds(j, p1c, 2), :],
        w1_ref, b1_ref, bt * h1 * p1c, c_in)
    a1_ref[:, :, 0:p1c, :] = y1.reshape(bt, h1, p1c, co)
    if p1a > p1c:
        a1_ref[:, :, p1c:p1a, :] = jnp.zeros((bt, h1, p1a - p1c, co), jnp.float32)

    # conv2: (bt, h1, p1a, co) -> (bt, h2, p2c, co); zero-fill alloc cols [p2c, p2a)
    y2 = _im2col_conv(
        lambda i, j: a1_ref[:, pl.ds(i, h2, 2), pl.ds(j, p2c, 2), :],
        w2_ref, b2_ref, bt * h2 * p2c, co)
    a2_ref[:, :, 0:p2c, :] = y2.reshape(bt, h2, p2c, co)
    if p2a > p2c:
        a2_ref[:, :, p2c:p2a, :] = jnp.zeros((bt, h2, p2a - p2c, co), jnp.float32)

    # conv3: (bt, h2, p2a, co) -> (bt*h3*p3, co)
    y3 = _im2col_conv(
        lambda i, j: a2_ref[:, pl.ds(i, h3, 2), pl.ds(j, p3, 2), :],
        w3_ref, b3_ref, bt * h3 * p3, co)

    # Flatten to one lane-dense (bt, h3*p3*co) feature row per image via lane
    # concatenation (layout-safe sublane->lane fold).  Padded-width columns are
    # finite garbage and are killed by zero rows of the permuted fc1 weight.
    y3r = y3.reshape(bt, h3 * p3, co)
    feats = jnp.concatenate([y3r[:, s, :] for s in range(h3 * p3)], axis=-1)

    # fc1 + ReLU, then fused actor/critic heads (output padded to 128 lanes).
    hid = jnp.dot(feats, fc1w_ref[...], preferred_element_type=jnp.float32)
    hid = jnp.maximum(hid + fc1b_ref[...], 0.0)
    y = jnp.dot(hid, hw_ref[...], preferred_element_type=jnp.float32)
    out_ref[...] = y + hb_ref[...]


# ---------------------------------------------------------------------------
# Hoisted (one-time) parameter preparation
# ---------------------------------------------------------------------------
def _permute_fc1_rows(fc1_w, co, h3, w3, p3):
    """Torch (c, h, w) flatten order -> kernel (h, w_padded, c) order; zero rows
    on the padded-width positions."""
    pos = np.arange(h3 * p3 * co)
    c = pos % co
    wq = (pos // co) % p3
    hq = pos // (co * p3)
    valid = (wq < w3).astype(np.float32)
    orig = c * (h3 * w3) + hq * w3 + np.minimum(wq, w3 - 1)
    wp = jnp.take(fc1_w, jnp.asarray(orig, dtype=jnp.int32), axis=0)
    return wp * jnp.asarray(valid)[:, None]


def prepare_params(params, input_hw):
    """Data-independent parameter prep, run once and reused for every forward."""
    H, W = input_hw
    c_in, co = params["conv1_w"].shape[2], params["conv1_w"].shape[3]
    h3 = _conv_out(_conv_out(_conv_out(H)))
    w3 = _conv_out(_conv_out(_conv_out(W)))
    p3 = _rup(w3, 8)

    head_w = jnp.concatenate([params["fc_actions_w"], params["fc_states_w"]], axis=1)
    head_b = jnp.concatenate([params["fc_actions_b"], params["fc_states_b"]], axis=0)
    n_head = head_w.shape[1]
    n_out = _rup(max(n_head, 128), 128)

    return {
        "w1": params["conv1_w"].reshape(9 * c_in, co),
        "b1": params["conv1_b"].reshape(1, co),
        "w2": params["conv2_w"].reshape(9 * co, co),
        "b2": params["conv2_b"].reshape(1, co),
        "w3": params["conv3_w"].reshape(9 * co, co),
        "b3": params["conv3_b"].reshape(1, co),
        "fc1_w": _permute_fc1_rows(params["fc1_w"], co, h3, w3, p3),
        "fc1_b": params["fc1_b"].reshape(1, -1),
        "head_w": jnp.pad(head_w, ((0, 0), (0, n_out - n_head))),
        "head_b": jnp.pad(head_b, (0, n_out - n_head)).reshape(1, n_out),
    }


# ---------------------------------------------------------------------------
# Network forward (matches the PyTorch module's forward semantics)
# ---------------------------------------------------------------------------
def network_forward(prep, state, action_size, batch_tile=None):
    n, c_in, H, W = state.shape
    co = prep["b1"].shape[1]
    hidden = prep["fc1_w"].shape[1]
    n_out = prep["head_w"].shape[1]

    h1, w1 = _conv_out(H), _conv_out(W)
    h2, w2 = _conv_out(h1), _conv_out(w1)
    h3, w3 = _conv_out(h2), _conv_out(w2)

    # Computed GEMM widths (multiples of 8) vs allocation widths required so the
    # next layer's stride-2 tap reads stay in-bounds (extra cols zero-filled).
    p3 = _rup(w3, 8)
    p2c = _rup(w2, 8)
    p1c = _rup(w1, 8)
    p2a = _rup(max(p2c, 2 * p3 + 1), 8)
    p1a = _rup(max(p1c, 2 * p2c + 1), 8)
    wpad = _rup(max(W, 2 * p1c + 1), 8)

    k1 = h3 * p3 * co
    assert prep["fc1_w"].shape[0] == k1

    if batch_tile is None:
        batch_tile = 1 if n <= 2 else 2        # keep grid length even for v7x's 2 TCs
    bt = batch_tile
    n_pad = _rup(n, bt)
    grid_n = n_pad // bt

    # NCHW -> NHWC with minimal width pad (64 -> 72 for this input size).
    x = jnp.transpose(state, (0, 2, 3, 1))
    x = jnp.pad(x, ((0, n_pad - n), (0, 0), (0, wpad - W), (0, 0)))

    dims = (bt, c_in, h1, p1c, p1a, h2, p2c, p2a, h3, p3, co)

    y = pl.pallas_call(
        functools.partial(_forward_kernel, dims=dims),
        out_shape=jax.ShapeDtypeStruct((grid_n, bt, n_out), jnp.float32),
        grid=(grid_n,),
        in_specs=[
            pl.BlockSpec((bt, H, wpad, c_in), lambda b: (b, 0, 0, 0)),
            pl.BlockSpec((9 * c_in, co), lambda b: (0, 0)),
            pl.BlockSpec((1, co), lambda b: (0, 0)),
            pl.BlockSpec((9 * co, co), lambda b: (0, 0)),
            pl.BlockSpec((1, co), lambda b: (0, 0)),
            pl.BlockSpec((9 * co, co), lambda b: (0, 0)),
            pl.BlockSpec((1, co), lambda b: (0, 0)),
            pl.BlockSpec((k1, hidden), lambda b: (0, 0)),
            pl.BlockSpec((1, hidden), lambda b: (0, 0)),
            pl.BlockSpec((hidden, n_out), lambda b: (0, 0)),
            pl.BlockSpec((1, n_out), lambda b: (0, 0)),
        ],
        out_specs=pl.BlockSpec((None, bt, n_out), lambda b: (b, 0, 0)),
        scratch_shapes=[
            pltpu.VMEM((bt, h1, p1a, co), jnp.float32),
            pltpu.VMEM((bt, h2, p2a, co), jnp.float32),
        ],
        compiler_params=pltpu.CompilerParams(dimension_semantics=("parallel",)),
    )(x, prep["w1"], prep["b1"], prep["w2"], prep["b2"], prep["w3"], prep["b3"],
      prep["fc1_w"], prep["fc1_b"], prep["head_w"], prep["head_b"])

    y = y.reshape(n_pad, n_out)[:n]
    action_value = y[:, :action_size]
    state_value = y[:, action_size]                # == fc_states(x).squeeze(-1)
    return action_value, state_value


# ---------------------------------------------------------------------------
# Pure-JAX reference (default precision, same as the kernel)
# ---------------------------------------------------------------------------
def reference_forward(params, state):
    x = jnp.transpose(state, (0, 2, 3, 1))
    dn = ("NHWC", "HWIO", "NHWC")
    for wk, bk in (("conv1_w", "conv1_b"), ("conv2_w", "conv2_b"), ("conv3_w", "conv3_b")):
        x = lax.conv_general_dilated(x, params[wk], (2, 2), "VALID", dimension_numbers=dn)
        x = jax.nn.relu(x + params[bk])
    n, ho, wo, co = x.shape
    x = jnp.transpose(x, (0, 3, 1, 2)).reshape(n, co * ho * wo)   # torch flatten order
    x = jax.nn.relu(jnp.dot(x, params["fc1_w"]) + params["fc1_b"])
    av = jnp.dot(x, params["fc_actions_w"]) + params["fc_actions_b"]
    sv = (jnp.dot(x, params["fc_states_w"]) + params["fc_states_b"])[:, 0]
    return av, sv


# ---------------------------------------------------------------------------
# Deterministic synthetic parameter init, PyTorch-style fan-in uniform bounds
# ---------------------------------------------------------------------------
def init_params(key, in_channels, H, W, action_size, hidden=128):
    def uniform(k, shape, fan_in):
        bound = 1.0 / np.sqrt(fan_in)
        return jax.random.uniform(k, shape, jnp.float32, -bound, bound)

    ks = jax.random.split(key, 12)
    params = {}
    params["conv1_w"] = uniform(ks[0], (3, 3, in_channels, 32), 3 * 3 * in_channels)
    params["conv1_b"] = uniform(ks[1], (32,), 3 * 3 * in_channels)
    params["conv2_w"] = uniform(ks[2], (3, 3, 32, 32), 3 * 3 * 32)
    params["conv2_b"] = uniform(ks[3], (32,), 3 * 3 * 32)
    params["conv3_w"] = uniform(ks[4], (3, 3, 32, 32), 3 * 3 * 32)
    params["conv3_b"] = uniform(ks[5], (32,), 3 * 3 * 32)

    h3 = _conv_out(_conv_out(_conv_out(H)))
    w3 = _conv_out(_conv_out(_conv_out(W)))
    fc_in = 32 * h3 * w3
    params["fc1_w"] = uniform(ks[6], (fc_in, hidden), fc_in)
    params["fc1_b"] = uniform(ks[7], (hidden,), fc_in)
    params["fc_actions_w"] = uniform(ks[8], (hidden, action_size), hidden)
    params["fc_actions_b"] = uniform(ks[9], (action_size,), hidden)
    params["fc_states_w"] = uniform(ks[10], (hidden, 1), hidden)
    params["fc_states_b"] = uniform(ks[11], (1,), hidden)
    return params


if __name__ == "__main__":
    # Module spec: 8 stacked grayscale frames at 64x64, NCHW input.
    batch, in_channels, H, W = 2, 8, 64, 64
    action_size = 14

    key = jax.random.PRNGKey(0)
    k_params, k_x = jax.random.split(key)
    params = init_params(k_params, in_channels, H, W, action_size)
    state = jax.random.uniform(k_x, (batch, in_channels, H, W), jnp.float32)

    prep = prepare_params(params, (H, W))          # hoisted, one-time prep

    fwd = jax.jit(functools.partial(network_forward, action_size=action_size))
    action_value, state_value = fwd(prep, state)
    jax.block_until_ready((action_value, state_value))

    av_ref, sv_ref = jax.jit(reference_forward)(params, state)
    jax.block_until_ready((av_ref, sv_ref))

    # Tolerances account for DEFAULT (bf16-MXU) precision in both paths.
    np.testing.assert_allclose(np.asarray(action_value), np.asarray(av_ref),
                               rtol=5e-2, atol=5e-2)
    np.testing.assert_allclose(np.asarray(state_value), np.asarray(sv_ref),
                               rtol=5e-2, atol=5e-2)

    assert action_value.shape == (batch, action_size)
    assert state_value.shape == (batch,)
    print("KERNEL_OK")
</pallas_src>

<mosaic_0001>
module attributes {stable_mosaic.version = 11 : i64} {
  func.func @_forward_kernel(%arg0: i32, %arg1: memref<1x64x72x8xf32, #tpu.memory_space<vmem>>, %arg2: memref<72x32xf32, #tpu.memory_space<vmem>>, %arg3: memref<1x32xf32, #tpu.memory_space<vmem>>, %arg4: memref<288x32xf32, #tpu.memory_space<vmem>>, %arg5: memref<1x32xf32, #tpu.memory_space<vmem>>, %arg6: memref<288x32xf32, #tpu.memory_space<vmem>>, %arg7: memref<1x32xf32, #tpu.memory_space<vmem>>, %arg8: memref<1792x128xf32, #tpu.memory_space<vmem>>, %arg9: memref<1x128xf32, #tpu.memory_space<vmem>>, %arg10: memref<128x128xf32, #tpu.memory_space<vmem>>, %arg11: memref<1x128xf32, #tpu.memory_space<vmem>>, %arg12: memref<1x1x128xf32, #tpu.memory_space<vmem>>, %arg13: memref<1x31x40x32xf32, #tpu.memory_space<vmem>>, %arg14: memref<1x15x24x32xf32, #tpu.memory_space<vmem>>) attributes {dimension_semantics = [#tpu.dimension_semantics<parallel>], iteration_bounds = array<i64: 2>, scalar_prefetch = 0 : i64, scratch_operands = 2 : i64, tpu.core_type = #tpu.core_type<tc>, window_params = [{transform_indices = @transform_0, window_bounds = array<i64: 1, 64, 72, 8>}, {pipeline_mode = #tpu.pipeline_mode<synchronous>, transform_indices = @transform_1, window_bounds = array<i64: 72, 32>}, {pipeline_mode = #tpu.pipeline_mode<synchronous>, transform_indices = @transform_2, window_bounds = array<i64: 1, 32>}, {pipeline_mode = #tpu.pipeline_mode<synchronous>, transform_indices = @transform_3, window_bounds = array<i64: 288, 32>}, {pipeline_mode = #tpu.pipeline_mode<synchronous>, transform_indices = @transform_4, window_bounds = array<i64: 1, 32>}, {pipeline_mode = #tpu.pipeline_mode<synchronous>, transform_indices = @transform_5, window_bounds = array<i64: 288, 32>}, {pipeline_mode = #tpu.pipeline_mode<synchronous>, transform_indices = @transform_6, window_bounds = array<i64: 1, 32>}, {pipeline_mode = #tpu.pipeline_mode<synchronous>, transform_indices = @transform_7, window_bounds = array<i64: 1792, 128>}, {pipeline_mode = #tpu.pipeline_mode<synchronous>, transform_indices = @transform_8, window_bounds = array<i64: 1, 128>}, {pipeline_mode = #tpu.pipeline_mode<synchronous>, transform_indices = @transform_9, window_bounds = array<i64: 128, 128>}, {pipeline_mode = #tpu.pipeline_mode<synchronous>, transform_indices = @transform_10, window_bounds = array<i64: 1, 128>}, {transform_indices = @transform_11, window_bounds = array<i64: 1, 1, 128>}]} {
    %c0 = arith.constant 0 : index
    %c0_0 = arith.constant 0 : index
    %c0_1 = arith.constant 0 : index
    %c0_2 = arith.constant 0 : index
    %0 = tpu.strided_load %arg1[%c0, %c0_0, %c0_1, %c0_2] {strides = array<i32: 1, 2, 2, 1>} : memref<1x64x72x8xf32, #tpu.memory_space<vmem>>, vector<1x31x32x8xf32>
    %1 = vector.shape_cast %0 : vector<1x31x32x8xf32> to vector<992x8xf32>
    %c0_3 = arith.constant 0 : index
    %c0_4 = arith.constant 0 : index
    %c1 = arith.constant 1 : index
    %c0_5 = arith.constant 0 : index
    %2 = tpu.strided_load %arg1[%c0_3, %c0_4, %c1, %c0_5] {strides = array<i32: 1, 2, 2, 1>} : memref<1x64x72x8xf32, #tpu.memory_space<vmem>>, vector<1x31x32x8xf32>
    %3 = vector.shape_cast %2 : vector<1x31x32x8xf32> to vector<992x8xf32>
    %c0_6 = arith.constant 0 : index
    %c0_7 = arith.constant 0 : index
    %c2 = arith.constant 2 : index
    %c0_8 = arith.constant 0 : index
    %4 = tpu.strided_load %arg1[%c0_6, %c0_7, %c2, %c0_8] {strides = array<i32: 1, 2, 2, 1>} : memref<1x64x72x8xf32, #tpu.memory_space<vmem>>, vector<1x31x32x8xf32>
    %5 = vector.shape_cast %4 : vector<1x31x32x8xf32> to vector<992x8xf32>
    %c0_9 = arith.constant 0 : index
    %c1_10 = arith.constant 1 : index
    %c0_11 = arith.constant 0 : index
    %c0_12 = arith.constant 0 : index
    %6 = tpu.strided_load %arg1[%c0_9, %c1_10, %c0_11, %c0_12] {strides = array<i32: 1, 2, 2, 1>} : memref<1x64x72x8xf32, #tpu.memory_space<vmem>>, vector<1x31x32x8xf32>
    %7 = vector.shape_cast %6 : vector<1x31x32x8xf32> to vector<992x8xf32>
    %c0_13 = arith.constant 0 : index
    %c1_14 = arith.constant 1 : index
    %c1_15 = arith.constant 1 : index
    %c0_16 = arith.constant 0 : index
    %8 = tpu.strided_load %arg1[%c0_13, %c1_14, %c1_15, %c0_16] {strides = array<i32: 1, 2, 2, 1>} : memref<1x64x72x8xf32, #tpu.memory_space<vmem>>, vector<1x31x32x8xf32>
    %9 = vector.shape_cast %8 : vector<1x31x32x8xf32> to vector<992x8xf32>
    %c0_17 = arith.constant 0 : index
    %c1_18 = arith.constant 1 : index
    %c2_19 = arith.constant 2 : index
    %c0_20 = arith.constant 0 : index
    %10 = tpu.strided_load %arg1[%c0_17, %c1_18, %c2_19, %c0_20] {strides = array<i32: 1, 2, 2, 1>} : memref<1x64x72x8xf32, #tpu.memory_space<vmem>>, vector<1x31x32x8xf32>
    %11 = vector.shape_cast %10 : vector<1x31x32x8xf32> to vector<992x8xf32>
    %c0_21 = arith.constant 0 : index
    %c2_22 = arith.constant 2 : index
    %c0_23 = arith.constant 0 : index
    %c0_24 = arith.constant 0 : index
    %12 = tpu.strided_load %arg1[%c0_21, %c2_22, %c0_23, %c0_24] {strides = array<i32: 1, 2, 2, 1>} : memref<1x64x72x8xf32, #tpu.memory_space<vmem>>, vector<1x31x32x8xf32>
    %13 = vector.shape_cast %12 : vector<1x31x32x8xf32> to vector<992x8xf32>
    %c0_25 = arith.constant 0 : index
    %c2_26 = arith.constant 2 : index
    %c1_27 = arith.constant 1 : index
    %c0_28 = arith.constant 0 : index
    %14 = tpu.strided_load %arg1[%c0_25, %c2_26, %c1_27, %c0_28] {strides = array<i32: 1, 2, 2, 1>} : memref<1x64x72x8xf32, #tpu.memory_space<vmem>>, vector<1x31x32x8xf32>
    %15 = vector.shape_cast %14 : vector<1x31x32x8xf32> to vector<992x8xf32>
    %c0_29 = arith.constant 0 : index
    %c2_30 = arith.constant 2 : index
    %c2_31 = arith.constant 2 : index
    %c0_32 = arith.constant 0 : index
    %16 = tpu.strided_load %arg1[%c0_29, %c2_30, %c2_31, %c0_32] {strides = array<i32: 1, 2, 2, 1>} : memref<1x64x72x8xf32, #tpu.memory_space<vmem>>, vector<1x31x32x8xf32>
    %17 = vector.shape_cast %16 : vector<1x31x32x8xf32> to vector<992x8xf32>
    %18 = tpu.concatenate %1, %3, %5, %7, %9, %11, %13, %15, %17 in 1 : vector<992x8xf32>, vector<992x8xf32>, vector<992x8xf32>, vector<992x8xf32>, vector<992x8xf32>, vector<992x8xf32>, vector<992x8xf32>, vector<992x8xf32>, vector<992x8xf32> -> vector<992x72xf32>
    %c0_33 = arith.constant 0 : index
    %c0_34 = arith.constant 0 : index
    %19 = vector.load %arg2[%c0_33, %c0_34] : memref<72x32xf32, #tpu.memory_space<vmem>>, vector<72x32xf32>
    %cst = arith.constant dense<0.000000e+00> : vector<992x32xf32>
    %20 = tpu.matmul %18, %19, %cst {dimension_numbers = #tpu.dot_dimension_numbers<[1], [0], [0], [1], [0, 0, 1, 1], [], []>} : vector<992x72xf32>, vector<72x32xf32>, vector<992x32xf32> -> vector<992x32xf32>
    %c0_35 = arith.constant 0 : index
    %c0_36 = arith.constant 0 : index
    %21 = vector.load %arg3[%c0_35, %c0_36] : memref<1x32xf32, #tpu.memory_space<vmem>>, vector<1x32xf32>
    %22 = vector.broadcast %21 : vector<1x32xf32> to vector<992x32xf32>
    %23 = arith.addf %20, %22 : vector<992x32xf32>
    %cst_37 = arith.constant 0.000000e+00 : f32
    %24 = vector.broadcast %cst_37 : f32 to vector<992x32xf32>
    %25 = arith.maximumf %23, %24 : vector<992x32xf32>
    %26 = vector.shape_cast %25 : vector<992x32xf32> to vector<1x31x32x32xf32>
    %c0_38 = arith.constant 0 : index
    %c0_39 = arith.constant 0 : index
    %c0_40 = arith.constant 0 : index
    %c0_41 = arith.constant 0 : index
    %27 = vector.load %arg13[%c0_38, %c0_39, %c0_40, %c0_41] : memref<1x31x40x32xf32, #tpu.memory_space<vmem>>, vector<1x31x32x32xf32>
    tpu.vector_store %arg13[%c0_38, %c0_39, %c0_40, %c0_41], %26 {strides = array<i32>} : memref<1x31x40x32xf32, #tpu.memory_space<vmem>>, vector<1x31x32x32xf32>,
    %cst_42 = arith.constant 0.000000e+00 : f32
    %28 = vector.broadcast %cst_42 : f32 to vector<1x31x8x32xf32>
    %c0_43 = arith.constant 0 : index
    %c0_44 = arith.constant 0 : index
    %c32 = arith.constant 32 : index
    %c0_45 = arith.constant 0 : index
    %29 = vector.load %arg13[%c0_43, %c0_44, %c32, %c0_45] : memref<1x31x40x32xf32, #tpu.memory_space<vmem>>, vector<1x31x8x32xf32>
    tpu.vector_store %arg13[%c0_43, %c0_44, %c32, %c0_45], %28 {strides = array<i32>} : memref<1x31x40x32xf32, #tpu.memory_space<vmem>>, vector<1x31x8x32xf32>,
    %c0_46 = arith.constant 0 : index
    %c0_47 = arith.constant 0 : index
    %c0_48 = arith.constant 0 : index
    %c0_49 = arith.constant 0 : index
    %30 = tpu.strided_load %arg13[%c0_46, %c0_47, %c0_48, %c0_49] {strides = array<i32: 1, 2, 2, 1>} : memref<1x31x40x32xf32, #tpu.memory_space<vmem>>, vector<1x15x16x32xf32>
    %31 = vector.shape_cast %30 : vector<1x15x16x32xf32> to vector<240x32xf32>
    %c0_50 = arith.constant 0 : index
    %c0_51 = arith.constant 0 : index
    %c1_52 = arith.constant 1 : index
    %c0_53 = arith.constant 0 : index
    %32 = tpu.strided_load %arg13[%c0_50, %c0_51, %c1_52, %c0_53] {strides = array<i32: 1, 2, 2, 1>} : memref<1x31x40x32xf32, #tpu.memory_space<vmem>>, vector<1x15x16x32xf32>
    %33 = vector.shape_cast %32 : vector<1x15x16x32xf32> to vector<240x32xf32>
    %c0_54 = arith.constant 0 : index
    %c0_55 = arith.constant 0 : index
    %c2_56 = arith.constant 2 : index
    %c0_57 = arith.constant 0 : index
    %34 = tpu.strided_load %arg13[%c0_54, %c0_55, %c2_56, %c0_57] {strides = array<i32: 1, 2, 2, 1>} : memref<1x31x40x32xf32, #tpu.memory_space<vmem>>, vector<1x15x16x32xf32>
    %35 = vector.shape_cast %34 : vector<1x15x16x32xf32> to vector<240x32xf32>
    %c0_58 = arith.constant 0 : index
    %c1_59 = arith.constant 1 : index
    %c0_60 = arith.constant 0 : index
    %c0_61 = arith.constant 0 : index
    %36 = tpu.strided_load %arg13[%c0_58, %c1_59, %c0_60, %c0_61] {strides = array<i32: 1, 2, 2, 1>} : memref<1x31x40x32xf32, #tpu.memory_space<vmem>>, vector<1x15x16x32xf32>
    %37 = vector.shape_cast %36 : vector<1x15x16x32xf32> to vector<240x32xf32>
    %c0_62 = arith.constant 0 : index
    %c1_63 = arith.constant 1 : index
    %c1_64 = arith.constant 1 : index
    %c0_65 = arith.constant 0 : index
    %38 = tpu.strided_load %arg13[%c0_62, %c1_63, %c1_64, %c0_65] {strides = array<i32: 1, 2, 2, 1>} : memref<1x31x40x32xf32, #tpu.memory_space<vmem>>, vector<1x15x16x32xf32>
    %39 = vector.shape_cast %38 : vector<1x15x16x32xf32> to vector<240x32xf32>
    %c0_66 = arith.constant 0 : index
    %c1_67 = arith.constant 1 : index
    %c2_68 = arith.constant 2 : index
    %c0_69 = arith.constant 0 : index
    %40 = tpu.strided_load %arg13[%c0_66, %c1_67, %c2_68, %c0_69] {strides = array<i32: 1, 2, 2, 1>} : memref<1x31x40x32xf32, #tpu.memory_space<vmem>>, vector<1x15x16x32xf32>
    %41 = vector.shape_cast %40 : vector<1x15x16x32xf32> to vector<240x32xf32>
    %c0_70 = arith.constant 0 : index
    %c2_71 = arith.constant 2 : index
    %c0_72 = arith.constant 0 : index
    %c0_73 = arith.constant 0 : index
    %42 = tpu.strided_load %arg13[%c0_70, %c2_71, %c0_72, %c0_73] {strides = array<i32: 1, 2, 2, 1>} : memref<1x31x40x32xf32, #tpu.memory_space<vmem>>, vector<1x15x16x32xf32>
    %43 = vector.shape_cast %42 : vector<1x15x16x32xf32> to vector<240x32xf32>
    %c0_74 = arith.constant 0 : index
    %c2_75 = arith.constant 2 : index
    %c1_76 = arith.constant 1 : index
    %c0_77 = arith.constant 0 : index
    %44 = tpu.strided_load %arg13[%c0_74, %c2_75, %c1_76, %c0_77] {strides = array<i32: 1, 2, 2, 1>} : memref<1x31x40x32xf32, #tpu.memory_space<vmem>>, vector<1x15x16x32xf32>
    %45 = vector.shape_cast %44 : vector<1x15x16x32xf32> to vector<240x32xf32>
    %c0_78 = arith.constant 0 : index
    %c2_79 = arith.constant 2 : index
    %c2_80 = arith.constant 2 : index
    %c0_81 = arith.constant 0 : index
    %46 = tpu.strided_load %arg13[%c0_78, %c2_79, %c2_80, %c0_81] {strides = array<i32: 1, 2, 2, 1>} : memref<1x31x40x32xf32, #tpu.memory_space<vmem>>, vector<1x15x16x32xf32>
    %47 = vector.shape_cast %46 : vector<1x15x16x32xf32> to vector<240x32xf32>
    %48 = tpu.concatenate %31, %33, %35, %37, %39, %41, %43, %45, %47 in 1 : vector<240x32xf32>, vector<240x32xf32>, vector<240x32xf32>, vector<240x32xf32>, vector<240x32xf32>, vector<240x32xf32>, vector<240x32xf32>, vector<240x32xf32>, vector<240x32xf32> -> vector<240x288xf32>
    %c0_82 = arith.constant 0 : index
    %c0_83 = arith.constant 0 : index
    %49 = vector.load %arg4[%c0_82, %c0_83] : memref<288x32xf32, #tpu.memory_space<vmem>>, vector<288x32xf32>
    %cst_84 = arith.constant dense<0.000000e+00> : vector<240x32xf32>
    %50 = tpu.matmul %48, %49, %cst_84 {dimension_numbers = #tpu.dot_dimension_numbers<[1], [0], [0], [1], [0, 0, 1, 1], [], []>} : vector<240x288xf32>, vector<288x32xf32>, vector<240x32xf32> -> vector<240x32xf32>
    %c0_85 = arith.constant 0 : index
    %c0_86 = arith.constant 0 : index
    %51 = vector.load %arg5[%c0_85, %c0_86] : memref<1x32xf32, #tpu.memory_space<vmem>>, vector<1x32xf32>
    %52 = vector.broadcast %51 : vector<1x32xf32> to vector<240x32xf32>
    %53 = arith.addf %50, %52 : vector<240x32xf32>
    %cst_87 = arith.constant 0.000000e+00 : f32
    %54 = vector.broadcast %cst_87 : f32 to vector<240x32xf32>
    %55 = arith.maximumf %53, %54 : vector<240x32xf32>
    %56 = vector.shape_cast %55 : vector<240x32xf32> to vector<1x15x16x32xf32>
    %c0_88 = arith.constant 0 : index
    %c0_89 = arith.constant 0 : index
    %c0_90 = arith.constant 0 : index
    %c0_91 = arith.constant 0 : index
    %57 = vector.load %arg14[%c0_88, %c0_89, %c0_90, %c0_91] : memref<1x15x24x32xf32, #tpu.memory_space<vmem>>, vector<1x15x16x32xf32>
    tpu.vector_store %arg14[%c0_88, %c0_89, %c0_90, %c0_91], %56 {strides = array<i32>} : memref<1x15x24x32xf32, #tpu.memory_space<vmem>>, vector<1x15x16x32xf32>,
    %cst_92 = arith.constant 0.000000e+00 : f32
    %58 = vector.broadcast %cst_92 : f32 to vector<1x15x8x32xf32>
    %c0_93 = arith.constant 0 : index
    %c0_94 = arith.constant 0 : index
    %c16 = arith.constant 16 : index
    %c0_95 = arith.constant 0 : index
    %59 = vector.load %arg14[%c0_93, %c0_94, %c16, %c0_95] : memref<1x15x24x32xf32, #tpu.memory_space<vmem>>, vector<1x15x8x32xf32>
    tpu.vector_store %arg14[%c0_93, %c0_94, %c16, %c0_95], %58 {strides = array<i32>} : memref<1x15x24x32xf32, #tpu.memory_space<vmem>>, vector<1x15x8x32xf32>,
    %c0_96 = arith.constant 0 : index
    %c0_97 = arith.constant 0 : index
    %c0_98 = arith.constant 0 : index
    %c0_99 = arith.constant 0 : index
    %60 = tpu.strided_load %arg14[%c0_96, %c0_97, %c0_98, %c0_99] {strides = array<i32: 1, 2, 2, 1>} : memref<1x15x24x32xf32, #tpu.memory_space<vmem>>, vector<1x7x8x32xf32>
    %61 = vector.shape_cast %60 : vector<1x7x8x32xf32> to vector<56x32xf32>
    %c0_100 = arith.constant 0 : index
    %c0_101 = arith.constant 0 : index
    %c1_102 = arith.constant 1 : index
    %c0_103 = arith.constant 0 : index
    %62 = tpu.strided_load %arg14[%c0_100, %c0_101, %c1_102, %c0_103] {strides = array<i32: 1, 2, 2, 1>} : memref<1x15x24x32xf32, #tpu.memory_space<vmem>>, vector<1x7x8x32xf32>
    %63 = vector.shape_cast %62 : vector<1x7x8x32xf32> to vector<56x32xf32>
    %c0_104 = arith.constant 0 : index
    %c0_105 = arith.constant 0 : index
    %c2_106 = arith.constant 2 : index
    %c0_107 = arith.constant 0 : index
    %64 = tpu.strided_load %arg14[%c0_104, %c0_105, %c2_106, %c0_107] {strides = array<i32: 1, 2, 2, 1>} : memref<1x15x24x32xf32, #tpu.memory_space<vmem>>, vector<1x7x8x32xf32>
    %65 = vector.shape_cast %64 : vector<1x7x8x32xf32> to vector<56x32xf32>
    %c0_108 = arith.constant 0 : index
    %c1_109 = arith.constant 1 : index
    %c0_110 = arith.constant 0 : index
    %c0_111 = arith.constant 0 : index
    %66 = tpu.strided_load %arg14[%c0_108, %c1_109, %c0_110, %c0_111] {strides = array<i32: 1, 2, 2, 1>} : memref<1x15x24x32xf32, #tpu.memory_space<vmem>>, vector<1x7x8x32xf32>
    %67 = vector.shape_cast %66 : vector<1x7x8x32xf32> to vector<56x32xf32>
    %c0_112 = arith.constant 0 : index
    %c1_113 = arith.constant 1 : index
    %c1_114 = arith.constant 1 : index
    %c0_115 = arith.constant 0 : index
    %68 = tpu.strided_load %arg14[%c0_112, %c1_113, %c1_114, %c0_115] {strides = array<i32: 1, 2, 2, 1>} : memref<1x15x24x32xf32, #tpu.memory_space<vmem>>, vector<1x7x8x32xf32>
    %69 = vector.shape_cast %68 : vector<1x7x8x32xf32> to vector<56x32xf32>
    %c0_116 = arith.constant 0 : index
    %c1_117 = arith.constant 1 : index
    %c2_118 = arith.constant 2 : index
    %c0_119 = arith.constant 0 : index
    %70 = tpu.strided_load %arg14[%c0_116, %c1_117, %c2_118, %c0_119] {strides = array<i32: 1, 2, 2, 1>} : memref<1x15x24x32xf32, #tpu.memory_space<vmem>>, vector<1x7x8x32xf32>
    %71 = vector.shape_cast %70 : vector<1x7x8x32xf32> to vector<56x32xf32>
    %c0_120 = arith.constant 0 : index
    %c2_121 = arith.constant 2 : index
    %c0_122 = arith.constant 0 : index
    %c0_123 = arith.constant 0 : index
    %72 = tpu.strided_load %arg14[%c0_120, %c2_121, %c0_122, %c0_123] {strides = array<i32: 1, 2, 2, 1>} : memref<1x15x24x32xf32, #tpu.memory_space<vmem>>, vector<1x7x8x32xf32>
    %73 = vector.shape_cast %72 : vector<1x7x8x32xf32> to vector<56x32xf32>
    %c0_124 = arith.constant 0 : index
    %c2_125 = arith.constant 2 : index
    %c1_126 = arith.constant 1 : index
    %c0_127 = arith.constant 0 : index
    %74 = tpu.strided_load %arg14[%c0_124, %c2_125, %c1_126, %c0_127] {strides = array<i32: 1, 2, 2, 1>} : memref<1x15x24x32xf32, #tpu.memory_space<vmem>>, vector<1x7x8x32xf32>
    %75 = vector.shape_cast %74 : vector<1x7x8x32xf32> to vector<56x32xf32>
    %c0_128 = arith.constant 0 : index
    %c2_129 = arith.constant 2 : index
    %c2_130 = arith.constant 2 : index
    %c0_131 = arith.constant 0 : index
    %76 = tpu.strided_load %arg14[%c0_128, %c2_129, %c2_130, %c0_131] {strides = array<i32: 1, 2, 2, 1>} : memref<1x15x24x32xf32, #tpu.memory_space<vmem>>, vector<1x7x8x32xf32>
    %77 = vector.shape_cast %76 : vector<1x7x8x32xf32> to vector<56x32xf32>
    %78 = tpu.concatenate %61, %63, %65, %67, %69, %71, %73, %75, %77 in 1 : vector<56x32xf32>, vector<56x32xf32>, vector<56x32xf32>, vector<56x32xf32>, vector<56x32xf32>, vector<56x32xf32>, vector<56x32xf32>, vector<56x32xf32>, vector<56x32xf32> -> vector<56x288xf32>
    %c0_132 = arith.constant 0 : index
    %c0_133 = arith.constant 0 : index
    %79 = vector.load %arg6[%c0_132, %c0_133] : memref<288x32xf32, #tpu.memory_space<vmem>>, vector<288x32xf32>
    %cst_134 = arith.constant dense<0.000000e+00> : vector<56x32xf32>
    %80 = tpu.matmul %78, %79, %cst_134 {dimension_numbers = #tpu.dot_dimension_numbers<[1], [0], [0], [1], [0, 0, 1, 1], [], []>} : vector<56x288xf32>, vector<288x32xf32>, vector<56x32xf32> -> vector<56x32xf32>
    %c0_135 = arith.constant 0 : index
    %c0_136 = arith.constant 0 : index
    %81 = vector.load %arg7[%c0_135, %c0_136] : memref<1x32xf32, #tpu.memory_space<vmem>>, vector<1x32xf32>
    %82 = vector.broadcast %81 : vector<1x32xf32> to vector<56x32xf32>
    %83 = arith.addf %80, %82 : vector<56x32xf32>
    %cst_137 = arith.constant 0.000000e+00 : f32
    %84 = vector.broadcast %cst_137 : f32 to vector<56x32xf32>
    %85 = arith.maximumf %83, %84 : vector<56x32xf32>
    %86 = vector.shape_cast %85 : vector<56x32xf32> to vector<1x56x32xf32>
    %87 = vector.extract_strided_slice %86 {offsets = [0, 0, 0], sizes = [1, 1, 32], strides = [1, 1, 1]} : vector<1x56x32xf32> to vector<1x1x32xf32>
    %88 = vector.shape_cast %87 : vector<1x1x32xf32> to vector<1x32xf32>
    %89 = vector.extract_strided_slice %86 {offsets = [0, 1, 0], sizes = [1, 1, 32], strides = [1, 1, 1]} : vector<1x56x32xf32> to vector<1x1x32xf32>
    %90 = vector.shape_cast %89 : vector<1x1x32xf32> to vector<1x32xf32>
    %91 = vector.extract_strided_slice %86 {offsets = [0, 2, 0], sizes = [1, 1, 32], strides = [1, 1, 1]} : vector<1x56x32xf32> to vector<1x1x32xf32>
    %92 = vector.shape_cast %91 : vector<1x1x32xf32> to vector<1x32xf32>
    %93 = vector.extract_strided_slice %86 {offsets = [0, 3, 0], sizes = [1, 1, 32], strides = [1, 1, 1]} : vector<1x56x32xf32> to vector<1x1x32xf32>
    %94 = vector.shape_cast %93 : vector<1x1x32xf32> to vector<1x32xf32>
    %95 = vector.extract_strided_slice %86 {offsets = [0, 4, 0], sizes = [1, 1, 32], strides = [1, 1, 1]} : vector<1x56x32xf32> to vector<1x1x32xf32>
    %96 = vector.shape_cast %95 : vector<1x1x32xf32> to vector<1x32xf32>
    %97 = vector.extract_strided_slice %86 {offsets = [0, 5, 0], sizes = [1, 1, 32], strides = [1, 1, 1]} : vector<1x56x32xf32> to vector<1x1x32xf32>
    %98 = vector.shape_cast %97 : vector<1x1x32xf32> to vector<1x32xf32>
    %99 = vector.extract_strided_slice %86 {offsets = [0, 6, 0], sizes = [1, 1, 32], strides = [1, 1, 1]} : vector<1x56x32xf32> to vector<1x1x32xf32>
    %100 = vector.shape_cast %99 : vector<1x1x32xf32> to vector<1x32xf32>
    %101 = vector.extract_strided_slice %86 {offsets = [0, 7, 0], sizes = [1, 1, 32], strides = [1, 1, 1]} : vector<1x56x32xf32> to vector<1x1x32xf32>
    %102 = vector.shape_cast %101 : vector<1x1x32xf32> to vector<1x32xf32>
    %103 = vector.extract_strided_slice %86 {offsets = [0, 8, 0], sizes = [1, 1, 32], strides = [1, 1, 1]} : vector<1x56x32xf32> to vector<1x1x32xf32>
    %104 = vector.shape_cast %103 : vector<1x1x32xf32> to vector<1x32xf32>
    %105 = vector.extract_strided_slice %86 {offsets = [0, 9, 0], sizes = [1, 1, 32], strides = [1, 1, 1]} : vector<1x56x32xf32> to vector<1x1x32xf32>
    %106 = vector.shape_cast %105 : vector<1x1x32xf32> to vector<1x32xf32>
    %107 = vector.extract_strided_slice %86 {offsets = [0, 10, 0], sizes = [1, 1, 32], strides = [1, 1, 1]} : vector<1x56x32xf32> to vector<1x1x32xf32>
    %108 = vector.shape_cast %107 : vector<1x1x32xf32> to vector<1x32xf32>
    %109 = vector.extract_strided_slice %86 {offsets = [0, 11, 0], sizes = [1, 1, 32], strides = [1, 1, 1]} : vector<1x56x32xf32> to vector<1x1x32xf32>
    %110 = vector.shape_cast %109 : vector<1x1x32xf32> to vector<1x32xf32>
    %111 = vector.extract_strided_slice %86 {offsets = [0, 12, 0], sizes = [1, 1, 32], strides = [1, 1, 1]} : vector<1x56x32xf32> to vector<1x1x32xf32>
    %112 = vector.shape_cast %111 : vector<1x1x32xf32> to vector<1x32xf32>
    %113 = vector.extract_strided_slice %86 {offsets = [0, 13, 0], sizes = [1, 1, 32], strides = [1, 1, 1]} : vector<1x56x32xf32> to vector<1x1x32xf32>
    %114 = vector.shape_cast %113 : vector<1x1x32xf32> to vector<1x32xf32>
    %115 = vector.extract_strided_slice %86 {offsets = [0, 14, 0], sizes = [1, 1, 32], strides = [1, 1, 1]} : vector<1x56x32xf32> to vector<1x1x32xf32>
    %116 = vector.shape_cast %115 : vector<1x1x32xf32> to vector<1x32xf32>
    %117 = vector.extract_strided_slice %86 {offsets = [0, 15, 0], sizes = [1, 1, 32], strides = [1, 1, 1]} : vector<1x56x32xf32> to vector<1x1x32xf32>
    %118 = vector.shape_cast %117 : vector<1x1x32xf32> to vector<1x32xf32>
    %119 = vector.extract_strided_slice %86 {offsets = [0, 16, 0], sizes = [1, 1, 32], strides = [1, 1, 1]} : vector<1x56x32xf32> to vector<1x1x32xf32>
    %120 = vector.shape_cast %119 : vector<1x1x32xf32> to vector<1x32xf32>
    %121 = vector.extract_strided_slice %86 {offsets = [0, 17, 0], sizes = [1, 1, 32], strides = [1, 1, 1]} : vector<1x56x32xf32> to vector<1x1x32xf32>
    %122 = vector.shape_cast %121 : vector<1x1x32xf32> to vector<1x32xf32>
    %123 = vector.extract_strided_slice %86 {offsets = [0, 18, 0], sizes = [1, 1, 32], strides = [1, 1, 1]} : vector<1x56x32xf32> to vector<1x1x32xf32>
    %124 = vector.shape_cast %123 : vector<1x1x32xf32> to vector<1x32xf32>
    %125 = vector.extract_strided_slice %86 {offsets = [0, 19, 0], sizes = [1, 1, 32], strides = [1, 1, 1]} : vector<1x56x32xf32> to vector<1x1x32xf32>
    %126 = vector.shape_cast %125 : vector<1x1x32xf32> to vector<1x32xf32>
    %127 = vector.extract_strided_slice %86 {offsets = [0, 20, 0], sizes = [1, 1, 32], strides = [1, 1, 1]} : vector<1x56x32xf32> to vector<1x1x32xf32>
    %128 = vector.shape_cast %127 : vector<1x1x32xf32> to vector<1x32xf32>
    %129 = vector.extract_strided_slice %86 {offsets = [0, 21, 0], sizes = [1, 1, 32], strides = [1, 1, 1]} : vector<1x56x32xf32> to vector<1x1x32xf32>
    %130 = vector.shape_cast %129 : vector<1x1x32xf32> to vector<1x32xf32>
    %131 = vector.extract_strided_slice %86 {offsets = [0, 22, 0], sizes = [1, 1, 32], strides = [1, 1, 1]} : vector<1x56x32xf32> to vector<1x1x32xf32>
    %132 = vector.shape_cast %131 : vector<1x1x32xf32> to vector<1x32xf32>
    %133 = vector.extract_strided_slice %86 {offsets = [0, 23, 0], sizes = [1, 1, 32], strides = [1, 1, 1]} : vector<1x56x32xf32> to vector<1x1x32xf32>
    %134 = vector.shape_cast %133 : vector<1x1x32xf32> to vector<1x32xf32>
    %135 = vector.extract_strided_slice %86 {offsets = [0, 24, 0], sizes = [1, 1, 32], strides = [1, 1, 1]} : vector<1x56x32xf32> to vector<1x1x32xf32>
    %136 = vector.shape_cast %135 : vector<1x1x32xf32> to vector<1x32xf32>
    %137 = vector.extract_strided_slice %86 {offsets = [0, 25, 0], sizes = [1, 1, 32], strides = [1, 1, 1]} : vector<1x56x32xf32> to vector<1x1x32xf32>
    %138 = vector.shape_cast %137 : vector<1x1x32xf32> to vector<1x32xf32>
    %139 = vector.extract_strided_slice %86 {offsets = [0, 26, 0], sizes = [1, 1, 32], strides = [1, 1, 1]} : vector<1x56x32xf32> to vector<1x1x32xf32>
    %140 = vector.shape_cast %139 : vector<1x1x32xf32> to vector<1x32xf32>
    %141 = vector.extract_strided_slice %86 {offsets = [0, 27, 0], sizes = [1, 1, 32], strides = [1, 1, 1]} : vector<1x56x32xf32> to vector<1x1x32xf32>
    %142 = vector.shape_cast %141 : vector<1x1x32xf32> to vector<1x32xf32>
    %143 = vector.extract_strided_slice %86 {offsets = [0, 28, 0], sizes = [1, 1, 32], strides = [1, 1, 1]} : vector<1x56x32xf32> to vector<1x1x32xf32>
    %144 = vector.shape_cast %143 : vector<1x1x32xf32> to vector<1x32xf32>
    %145 = vector.extract_strided_slice %86 {offsets = [0, 29, 0], sizes = [1, 1, 32], strides = [1, 1, 1]} : vector<1x56x32xf32> to vector<1x1x32xf32>
    %146 = vector.shape_cast %145 : vector<1x1x32xf32> to vector<1x32xf32>
    %147 = vector.extract_strided_slice %86 {offsets = [0, 30, 0], sizes = [1, 1, 32], strides = [1, 1, 1]} : vector<1x56x32xf32> to vector<1x1x32xf32>
    %148 = vector.shape_cast %147 : vector<1x1x32xf32> to vector<1x32xf32>
    %149 = vector.extract_strided_slice %86 {offsets = [0, 31, 0], sizes = [1, 1, 32], strides = [1, 1, 1]} : vector<1x56x32xf32> to vector<1x1x32xf32>
    %150 = vector.shape_cast %149 : vector<1x1x32xf32> to vector<1x32xf32>
    %151 = vector.extract_strided_slice %86 {offsets = [0, 32, 0], sizes = [1, 1, 32], strides = [1, 1, 1]} : vector<1x56x32xf32> to vector<1x1x32xf32>
    %152 = vector.shape_cast %151 : vector<1x1x32xf32> to vector<1x32xf32>
    %153 = vector.extract_strided_slice %86 {offsets = [0, 33, 0], sizes = [1, 1, 32], strides = [1, 1, 1]} : vector<1x56x32xf32> to vector<1x1x32xf32>
    %154 = vector.shape_cast %153 : vector<1x1x32xf32> to vector<1x32xf32>
    %155 = vector.extract_strided_slice %86 {offsets = [0, 34, 0], sizes = [1, 1, 32], strides = [1, 1, 1]} : vector<1x56x32xf32> to vector<1x1x32xf32>
    %156 = vector.shape_cast %155 : vector<1x1x32xf32> to vector<1x32xf32>
    %157 = vector.extract_strided_slice %86 {offsets = [0, 35, 0], sizes = [1, 1, 32], strides = [1, 1, 1]} : vector<1x56x32xf32> to vector<1x1x32xf32>
    %158 = vector.shape_cast %157 : vector<1x1x32xf32> to vector<1x32xf32>
    %159 = vector.extract_strided_slice %86 {offsets = [0, 36, 0], sizes = [1, 1, 32], strides = [1, 1, 1]} : vector<1x56x32xf32> to vector<1x1x32xf32>
    %160 = vector.shape_cast %159 : vector<1x1x32xf32> to vector<1x32xf32>
    %161 = vector.extract_strided_slice %86 {offsets = [0, 37, 0], sizes = [1, 1, 32], strides = [1, 1, 1]} : vector<1x56x32xf32> to vector<1x1x32xf32>
    %162 = vector.shape_cast %161 : vector<1x1x32xf32> to vector<1x32xf32>
    %163 = vector.extract_strided_slice %86 {offsets = [0, 38, 0], sizes = [1, 1, 32], strides = [1, 1, 1]} : vector<1x56x32xf32> to vector<1x1x32xf32>
    %164 = vector.shape_cast %163 : vector<1x1x32xf32> to vector<1x32xf32>
    %165 = vector.extract_strided_slice %86 {offsets = [0, 39, 0], sizes = [1, 1, 32], strides = [1, 1, 1]} : vector<1x56x32xf32> to vector<1x1x32xf32>
    %166 = vector.shape_cast %165 : vector<1x1x32xf32> to vector<1x32xf32>
    %167 = vector.extract_strided_slice %86 {offsets = [0, 40, 0], sizes = [1, 1, 32], strides = [1, 1, 1]} : vector<1x56x32xf32> to vector<1x1x32xf32>
    %168 = vector.shape_cast %167 : vector<1x1x32xf32> to vector<1x32xf32>
    %169 = vector.extract_strided_slice %86 {offsets = [0, 41, 0], sizes = [1, 1, 32], strides = [1, 1, 1]} : vector<1x56x32xf32> to vector<1x1x32xf32>
    %170 = vector.shape_cast %169 : vector<1x1x32xf32> to vector<1x32xf32>
    %171 = vector.extract_strided_slice %86 {offsets = [0, 42, 0], sizes = [1, 1, 32], strides = [1, 1, 1]} : vector<1x56x32xf32> to vector<1x1x32xf32>
    %172 = vector.shape_cast %171 : vector<1x1x32xf32> to vector<1x32xf32>
    %173 = vector.extract_strided_slice %86 {offsets = [0, 43, 0], sizes = [1, 1, 32], strides = [1, 1, 1]} : vector<1x56x32xf32> to vector<1x1x32xf32>
    %174 = vector.shape_cast %173 : vector<1x1x32xf32> to vector<1x32xf32>
    %175 = vector.extract_strided_slice %86 {offsets = [0, 44, 0], sizes = [1, 1, 32], strides = [1, 1, 1]} : vector<1x56x32xf32> to vector<1x1x32xf32>
    %176 = vector.shape_cast %175 : vector<1x1x32xf32> to vector<1x32xf32>
    %177 = vector.extract_strided_slice %86 {offsets = [0, 45, 0], sizes = [1, 1, 32], strides = [1, 1, 1]} : vector<1x56x32xf32> to vector<1x1x32xf32>
    %178 = vector.shape_cast %177 : vector<1x1x32xf32> to vector<1x32xf32>
    %179 = vector.extract_strided_slice %86 {offsets = [0, 46, 0], sizes = [1, 1, 32], strides = [1, 1, 1]} : vector<1x56x32xf32> to vector<1x1x32xf32>
    %180 = vector.shape_cast %179 : vector<1x1x32xf32> to vector<1x32xf32>
    %181 = vector.extract_strided_slice %86 {offsets = [0, 47, 0], sizes = [1, 1, 32], strides = [1, 1, 1]} : vector<1x56x32xf32> to vector<1x1x32xf32>
    %182 = vector.shape_cast %181 : vector<1x1x32xf32> to vector<1x32xf32>
    %183 = vector.extract_strided_slice %86 {offsets = [0, 48, 0], sizes = [1, 1, 32], strides = [1, 1, 1]} : vector<1x56x32xf32> to vector<1x1x32xf32>
    %184 = vector.shape_cast %183 : vector<1x1x32xf32> to vector<1x32xf32>
    %185 = vector.extract_strided_slice %86 {offsets = [0, 49, 0], sizes = [1, 1, 32], strides = [1, 1, 1]} : vector<1x56x32xf32> to vector<1x1x32xf32>
    %186 = vector.shape_cast %185 : vector<1x1x32xf32> to vector<1x32xf32>
    %187 = vector.extract_strided_slice %86 {offsets = [0, 50, 0], sizes = [1, 1, 32], strides = [1, 1, 1]} : vector<1x56x32xf32> to vector<1x1x32xf32>
    %188 = vector.shape_cast %187 : vector<1x1x32xf32> to vector<1x32xf32>
    %189 = vector.extract_strided_slice %86 {offsets = [0, 51, 0], sizes = [1, 1, 32], strides = [1, 1, 1]} : vector<1x56x32xf32> to vector<1x1x32xf32>
    %190 = vector.shape_cast %189 : vector<1x1x32xf32> to vector<1x32xf32>
    %191 = vector.extract_strided_slice %86 {offsets = [0, 52, 0], sizes = [1, 1, 32], strides = [1, 1, 1]} : vector<1x56x32xf32> to vector<1x1x32xf32>
    %192 = vector.shape_cast %191 : vector<1x1x32xf32> to vector<1x32xf32>
    %193 = vector.extract_strided_slice %86 {offsets = [0, 53, 0], sizes = [1, 1, 32], strides = [1, 1, 1]} : vector<1x56x32xf32> to vector<1x1x32xf32>
    %194 = vector.shape_cast %193 : vector<1x1x32xf32> to vector<1x32xf32>
    %195 = vector.extract_strided_slice %86 {offsets = [0, 54, 0], sizes = [1, 1, 32], strides = [1, 1, 1]} : vector<1x56x32xf32> to vector<1x1x32xf32>
    %196 = vector.shape_cast %195 : vector<1x1x32xf32> to vector<1x32xf32>
    %197 = vector.extract_strided_slice %86 {offsets = [0, 55, 0], sizes = [1, 1, 32], strides = [1, 1, 1]} : vector<1x56x32xf32> to vector<1x1x32xf32>
    %198 = vector.shape_cast %197 : vector<1x1x32xf32> to vector<1x32xf32>
    %199 = tpu.concatenate %88, %90, %92, %94, %96, %98, %100, %102, %104, %106, %108, %110, %112, %114, %116, %118 in 1 : vector<1x32xf32>, vector<1x32xf32>, vector<1x32xf32>, vector<1x32xf32>, vector<1x32xf32>, vector<1x32xf32>, vector<1x32xf32>, vector<1x32xf32>, vector<1x32xf32>, vector<1x32xf32>, vector<1x32xf32>, vector<1x32xf32>, vector<1x32xf32>, vector<1x32xf32>, vector<1x32xf32>, vector<1x32xf32> -> vector<1x512xf32>
    %200 = tpu.concatenate %120, %122, %124, %126, %128, %130, %132, %134, %136, %138, %140, %142, %144, %146, %148, %150 in 1 : vector<1x32xf32>, vector<1x32xf32>, vector<1x32xf32>, vector<1x32xf32>, vector<1x32xf32>, vector<1x32xf32>, vector<1x32xf32>, vector<1x32xf32>, vector<1x32xf32>, vector<1x32xf32>, vector<1x32xf32>, vector<1x32xf32>, vector<1x32xf32>, vector<1x32xf32>, vector<1x32xf32>, vector<1x32xf32> -> vector<1x512xf32>
    %201 = tpu.concatenate %152, %154, %156, %158, %160, %162, %164, %166, %168, %170, %172, %174, %176, %178, %180, %182 in 1 : vector<1x32xf32>, vector<1x32xf32>, vector<1x32xf32>, vector<1x32xf32>, vector<1x32xf32>, vector<1x32xf32>, vector<1x32xf32>, vector<1x32xf32>, vector<1x32xf32>, vector<1x32xf32>, vector<1x32xf32>, vector<1x32xf32>, vector<1x32xf32>, vector<1x32xf32>, vector<1x32xf32>, vector<1x32xf32> -> vector<1x512xf32>
    %202 = tpu.concatenate %184, %186, %188, %190, %192, %194, %196, %198 in 1 : vector<1x32xf32>, vector<1x32xf32>, vector<1x32xf32>, vector<1x32xf32>, vector<1x32xf32>, vector<1x32xf32>, vector<1x32xf32>, vector<1x32xf32> -> vector<1x256xf32>
    %203 = tpu.concatenate %199, %200, %201, %202 in 1 : vector<1x512xf32>, vector<1x512xf32>, vector<1x512xf32>, vector<1x256xf32> -> vector<1x1792xf32>
    %c0_138 = arith.constant 0 : index
    %c0_139 = arith.constant 0 : index
    %204 = vector.load %arg8[%c0_138, %c0_139] : memref<1792x128xf32, #tpu.memory_space<vmem>>, vector<1792x128xf32>
    %cst_140 = arith.constant dense<0.000000e+00> : vector<1x128xf32>
    %205 = tpu.matmul %203, %204, %cst_140 {dimension_numbers = #tpu.dot_dimension_numbers<[1], [0], [0], [1], [0, 0, 1, 1], [], []>} : vector<1x1792xf32>, vector<1792x128xf32>, vector<1x128xf32> -> vector<1x128xf32>
    %c0_141 = arith.constant 0 : index
    %c0_142 = arith.constant 0 : index
    %206 = vector.load %arg9[%c0_141, %c0_142] : memref<1x128xf32, #tpu.memory_space<vmem>>, vector<1x128xf32>
    %207 = arith.addf %205, %206 : vector<1x128xf32>
    %cst_143 = arith.constant 0.000000e+00 : f32
    %208 = vector.broadcast %cst_143 : f32 to vector<1x128xf32>
    %209 = arith.maximumf %207, %208 : vector<1x128xf32>
    %c0_144 = arith.constant 0 : index
    %c0_145 = arith.constant 0 : index
    %210 = vector.load %arg10[%c0_144, %c0_145] : memref<128x128xf32, #tpu.memory_space<vmem>>, vector<128x128xf32>
    %cst_146 = arith.constant dense<0.000000e+00> : vector<1x128xf32>
    %211 = tpu.matmul %209, %210, %cst_146 {dimension_numbers = #tpu.dot_dimension_numbers<[1], [0], [0], [1], [0, 0, 1, 1], [], []>} : vector<1x128xf32>, vector<128x128xf32>, vector<1x128xf32> -> vector<1x128xf32>
    %c0_147 = arith.constant 0 : index
    %c0_148 = arith.constant 0 : index
    %212 = vector.load %arg11[%c0_147, %c0_148] : memref<1x128xf32, #tpu.memory_space<vmem>>, vector<1x128xf32>
    %213 = arith.addf %211, %212 : vector<1x128xf32>
    %c0_149 = arith.constant 0 : index
    %c0_150 = arith.constant 0 : index
    %c0_151 = arith.constant 0 : index
    %214 = vector.load %arg12[%c0_149, %c0_150, %c0_151] : memref<1x1x128xf32, #tpu.memory_space<vmem>>, vector<1x1x128xf32>
    %215 = vector.shape_cast %214 : vector<1x1x128xf32> to vector<1x128xf32>
    %216 = vector.shape_cast %213 : vector<1x128xf32> to vector<1x1x128xf32>
    tpu.vector_store %arg12[%c0_149, %c0_150, %c0_151], %216 {strides = array<i32>} : memref<1x1x128xf32, #tpu.memory_space<vmem>>, vector<1x1x128xf32>,
    return
  }
  func.func @transform_0(%arg0: i32) -> (i32, i32, i32, i32) {
    %c0_i32 = arith.constant 0 : i32
    %c0_i32_0 = arith.constant 0 : i32
    %c0_i32_1 = arith.constant 0 : i32
    %c0_i32_2 = arith.constant 0 : i32
    return %arg0, %c0_i32, %c0_i32_0, %c0_i32_1 : i32, i32, i32, i32
  }
  func.func @transform_1(%arg0: i32) -> (i32, i32) {
    %c0_i32 = arith.constant 0 : i32
    %c0_i32_0 = arith.constant 0 : i32
    %c0_i32_1 = arith.constant 0 : i32
    return %c0_i32, %c0_i32_0 : i32, i32
  }
  func.func @transform_2(%arg0: i32) -> (i32, i32) {
    %c0_i32 = arith.constant 0 : i32
    %c0_i32_0 = arith.constant 0 : i32
    %c0_i32_1 = arith.constant 0 : i32
    return %c0_i32, %c0_i32_0 : i32, i32
  }
  func.func @transform_3(%arg0: i32) -> (i32, i32) {
    %c0_i32 = arith.constant 0 : i32
    %c0_i32_0 = arith.constant 0 : i32
    %c0_i32_1 = arith.constant 0 : i32
    return %c0_i32, %c0_i32_0 : i32, i32
  }
  func.func @transform_4(%arg0: i32) -> (i32, i32) {
    %c0_i32 = arith.constant 0 : i32
    %c0_i32_0 = arith.constant 0 : i32
    %c0_i32_1 = arith.constant 0 : i32
    return %c0_i32, %c0_i32_0 : i32, i32
  }
  func.func @transform_5(%arg0: i32) -> (i32, i32) {
    %c0_i32 = arith.constant 0 : i32
    %c0_i32_0 = arith.constant 0 : i32
    %c0_i32_1 = arith.constant 0 : i32
    return %c0_i32, %c0_i32_0 : i32, i32
  }
  func.func @transform_6(%arg0: i32) -> (i32, i32) {
    %c0_i32 = arith.constant 0 : i32
    %c0_i32_0 = arith.constant 0 : i32
    %c0_i32_1 = arith.constant 0 : i32
    return %c0_i32, %c0_i32_0 : i32, i32
  }
  func.func @transform_7(%arg0: i32) -> (i32, i32) {
    %c0_i32 = arith.constant 0 : i32
    %c0_i32_0 = arith.constant 0 : i32
    %c0_i32_1 = arith.constant 0 : i32
    return %c0_i32, %c0_i32_0 : i32, i32
  }
  func.func @transform_8(%arg0: i32) -> (i32, i32) {
    %c0_i32 = arith.constant 0 : i32
    %c0_i32_0 = arith.constant 0 : i32
    %c0_i32_1 = arith.constant 0 : i32
    return %c0_i32, %c0_i32_0 : i32, i32
  }
  func.func @transform_9(%arg0: i32) -> (i32, i32) {
    %c0_i32 = arith.constant 0 : i32
    %c0_i32_0 = arith.constant 0 : i32
    %c0_i32_1 = arith.constant 0 : i32
    return %c0_i32, %c0_i32_0 : i32, i32
  }
  func.func @transform_10(%arg0: i32) -> (i32, i32) {
    %c0_i32 = arith.constant 0 : i32
    %c0_i32_0 = arith.constant 0 : i32
    %c0_i32_1 = arith.constant 0 : i32
    return %c0_i32, %c0_i32_0 : i32, i32
  }
  func.func @transform_11(%arg0: i32) -> (i32, i32, i32) {
    %c0_i32 = arith.constant 0 : i32
    %c0_i32_0 = arith.constant 0 : i32
    %c0_i32_1 = arith.constant 0 : i32
    return %arg0, %c0_i32, %c0_i32_0 : i32, i32, i32
  }
}

</mosaic_0001>

<llo_original>
// kernel: network_forward.1
$region0: #{network_forward.1}
  #allocation0 [shape = 'u32[]', space=smem, size = 0x4, offset = 0x4, fixed_abs, tag = 'smem constant byte address 0x4 - core index']
  #allocation1 [shape = 'u32[144,128]{1,0:T(1,128)}', space=vmem, size = 0x12000, scoped, tag = 'internal scratch']
  #allocation2 [shape = 'f32[1,31,40,32]{3,2,1,0:T(8,128)}', space=vmem, size = 0x9b000, scoped, tag = 'scratch operand']
  #allocation3 [shape = 'f32[1,15,24,32]{3,2,1,0:T(8,128)}', space=vmem, size = 0x2d000, scoped, tag = 'scratch operand']
  %s0 = inlined_call_operand.vmem [shape: f32[2,64,72,8], index: 0, kind: input, shape index: {}]
  %s1 = inlined_call_operand.vmem [shape: f32[72,32], index: 1, kind: input, shape index: {}]
  %s2 = inlined_call_operand.vmem [shape: f32[1,32], index: 2, kind: input, shape index: {}]
  %s3 = inlined_call_operand.vmem [shape: f32[288,32], index: 3, kind: input, shape index: {}]
  %s4 = inlined_call_operand.vmem [shape: f32[1,32], index: 4, kind: input, shape index: {}]
  %s5 = inlined_call_operand.vmem [shape: f32[288,32], index: 5, kind: input, shape index: {}]
  %s6 = inlined_call_operand.vmem [shape: f32[1,32], index: 6, kind: input, shape index: {}]
  %s7 = inlined_call_operand.vmem [shape: f32[1792,128], index: 7, kind: input, shape index: {}]
  %s8 = inlined_call_operand.vmem [shape: f32[1,128], index: 8, kind: input, shape index: {}]
  %s9 = inlined_call_operand.vmem [shape: f32[128,128], index: 9, kind: input, shape index: {}]
  %s10 = inlined_call_operand.vmem [shape: f32[1,128], index: 10, kind: input, shape index: {}]
  %s11 = inlined_call_operand.vmem [shape: f32[2,1,128], index: 11, kind: output, shape index: {}]
  %s12 = sld [smem:[#allocation0]]
  $region77: #{network_forward.1} parent=0
    _
  %s14 = ssub.s32 1, %s12
  %s15 = scalar_select 0, %s14, %s12
  loop: start=0, step=1, limit=4
  $region2: #{network_forward.1} parent=0 // loop_pre_header
    _
  $region3: #{network_forward.1} parent=0 // loop_header
    %s17 = sphi 0, %s21
    %p18 = scmp.ge.s32.totalorder %s17, 4
    %s27 = sphi 0, %s29
    %s30 = sphi 0, %s27
    %s31 = sphi 0, %s30
    %s47 = sphi 0, %s31
    %s51 = sphi 0, %s51
    %s53 = sphi 0, %s51
    %s54 = sphi 0, %s53
    %s68 = sphi 0, %s54
    %s72 = sphi 0, %s72
    %s74 = sphi 0, %s72
    %s75 = sphi 0, %s74
    %s89 = sphi 0, %s75
    %s93 = sphi 0, %s93
    %s95 = sphi 0, %s93
    %s96 = sphi 0, %s95
    %s110 = sphi 0, %s96
    %s114 = sphi 0, %s114
    %s116 = sphi 0, %s114
    %s117 = sphi 0, %s116
    %s131 = sphi 0, %s117
    %s135 = sphi 0, %s135
    %s137 = sphi 0, %s135
    %s138 = sphi 0, %s137
    %s152 = sphi 0, %s138
    %s156 = sphi 0, %s156
    %s158 = sphi 0, %s156
    %s159 = sphi 0, %s158
    %s173 = sphi 0, %s159
    %s177 = sphi 0, %s177
    %s179 = sphi 0, %s177
    %s180 = sphi 0, %s179
    %s194 = sphi 0, %s180
    %s198 = sphi 0, %s198
    %s200 = sphi 0, %s198
    %s201 = sphi 0, %s200
    %s215 = sphi 0, %s201
    %s219 = sphi 0, %s219
    %s221 = sphi 0, %s219
    %s222 = sphi 0, %s221
    %s236 = sphi 0, %s222
    %s240 = sphi 0, %s240
    %s242 = sphi 0, %s240
    %s243 = sphi 0, %s242
    %s257 = sphi 0, %s243
    %s263 = sphi 0, %s265
    %s266 = sphi 0, %s263
    %s267 = sphi 0, %s266
    %s283 = sphi 0, %s267
  $region4: #{network_forward.1} parent=0 // loop_header_branch
    %20 = sbr.rel (%p18) target = $region8
  $region5: #{network_forward.1} parent=0 // loop_body
    %s22 = ssub.s32 %s17, 1
    %s23 = ssub.s32 %s17, 2
    %s24 = sadd.s32 %s17, 1
    %s25 = ssub.s32 %s17, %s24
    %p26 = scmp.eq.s32.totalorder %s25, 0
    %s28 = sadd.s32 %s27, 1
    %s29 = scalar_select %p26, %s27, %s28
    %p32 = pneg %p26
    %p33 = scmp.eq.s32.totalorder %s17, 1
    %p34 = por %p32, %p33
    %p35 = scmp.ne.s32.totalorder %s27, %s30
    %p36 = scmp.eq.s32.totalorder %s17, 0
    %p37 = por %p35, %p36
    %p38 = scmp.ne.s32.totalorder %s27, %s30
    %p39 = scmp.eq.s32.totalorder %s22, 1
    %p40 = por %p38, %p39
    %p41 = scmp.ne.s32.totalorder %s30, %s31
    %p42 = scmp.eq.s32.totalorder %s22, 0
    %p43 = por %p41, %p42
    %p44 = scmp.ne.s32.totalorder %s30, %s31
    %p45 = scmp.eq.s32.totalorder %s23, 1
    %p46 = por %p44, %p45
    %p48 = scmp.ne.s32.totalorder %s31, %s47
    %p49 = scmp.eq.s32.totalorder %s23, 0
    %p50 = por %p48, %p49
    %s52 = sadd.s32 %s51, 1
    %p55 = scmp.eq.s32.totalorder %s17, 1
    %p56 = scmp.ne.s32.totalorder %s51, %s53
    %p57 = scmp.eq.s32.totalorder %s17, 0
    %p58 = por %p56, %p57
    %p59 = scmp.ne.s32.totalorder %s51, %s53
    %p60 = scmp.eq.s32.totalorder %s22, 1
    %p61 = por %p59, %p60
    %p62 = scmp.ne.s32.totalorder %s53, %s54
    %p63 = scmp.eq.s32.totalorder %s22, 0
    %p64 = por %p62, %p63
    %p65 = scmp.ne.s32.totalorder %s53, %s54
    %p66 = scmp.eq.s32.totalorder %s23, 1
    %p67 = por %p65, %p66
    %p69 = scmp.ne.s32.totalorder %s54, %s68
    %p70 = scmp.eq.s32.totalorder %s23, 0
    %p71 = por %p69, %p70
    %s73 = sadd.s32 %s72, 1
    %p76 = scmp.eq.s32.totalorder %s17, 1
    %p77 = scmp.ne.s32.totalorder %s72, %s74
    %p78 = scmp.eq.s32.totalorder %s17, 0
    %p79 = por %p77, %p78
    %p80 = scmp.ne.s32.totalorder %s72, %s74
    %p81 = scmp.eq.s32.totalorder %s22, 1
    %p82 = por %p80, %p81
    %p83 = scmp.ne.s32.totalorder %s74, %s75
    %p84 = scmp.eq.s32.totalorder %s22, 0
    %p85 = por %p83, %p84
    %p86 = scmp.ne.s32.totalorder %s74, %s75
    %p87 = scmp.eq.s32.totalorder %s23, 1
    %p88 = por %p86, %p87
    %p90 = scmp.ne.s32.totalorder %s75, %s89
    %p91 = scmp.eq.s32.totalorder %s23, 0
    %p92 = por %p90, %p91
    %s94 = sadd.s32 %s93, 1
    %p97 = scmp.eq.s32.totalorder %s17, 1
    %p98 = scmp.ne.s32.totalorder %s93, %s95
    %p99 = scmp.eq.s32.totalorder %s17, 0
    %p100 = por %p98, %p99
    %p101 = scmp.ne.s32.totalorder %s93, %s95
    %p102 = scmp.eq.s32.totalorder %s22, 1
    %p103 = por %p101, %p102
    %p104 = scmp.ne.s32.totalorder %s95, %s96
    %p105 = scmp.eq.s32.totalorder %s22, 0
    %p106 = por %p104, %p105
    %p107 = scmp.ne.s32.totalorder %s95, %s96
    %p108 = scmp.eq.s32.totalorder %s23, 1
    %p109 = por %p107, %p108
    %p111 = scmp.ne.s32.totalorder %s96, %s110
    %p112 = scmp.eq.s32.totalorder %s23, 0
    %p113 = por %p111, %p112
    %s115 = sadd.s32 %s114, 1
    %p118 = scmp.eq.s32.totalorder %s17, 1
    %p119 = scmp.ne.s32.totalorder %s114, %s116
    %p120 = scmp.eq.s32.totalorder %s17, 0
    %p121 = por %p119, %p120
    %p122 = scmp.ne.s32.totalorder %s114, %s116
    %p123 = scmp.eq.s32.totalorder %s22, 1
    %p124 = por %p122, %p123
    %p125 = scmp.ne.s32.totalorder %s116, %s117
    %p126 = scmp.eq.s32.totalorder %s22, 0
    %p127 = por %p125, %p126
    %p128 = scmp.ne.s32.totalorder %s116, %s117
    %p129 = scmp.eq.s32.totalorder %s23, 1
    %p130 = por %p128, %p129
    %p132 = scmp.ne.s32.totalorder %s117, %s131
    %p133 = scmp.eq.s32.totalorder %s23, 0
    %p134 = por %p132, %p133
    %s136 = sadd.s32 %s135, 1
    %p139 = scmp.eq.s32.totalorder %s17, 1
    %p140 = scmp.ne.s32.totalorder %s135, %s137
    %p141 = scmp.eq.s32.totalorder %s17, 0
    %p142 = por %p140, %p141
    %p143 = scmp.ne.s32.totalorder %s135, %s137
    %p144 = scmp.eq.s32.totalorder %s22, 1
    %p145 = por %p143, %p144
    %p146 = scmp.ne.s32.totalorder %s137, %s138
    %p147 = scmp.eq.s32.totalorder %s22, 0
    %p148 = por %p146, %p147
    %p149 = scmp.ne.s32.totalorder %s137, %s138
    %p150 = scmp.eq.s32.totalorder %s23, 1
    %p151 = por %p149, %p150
    %p153 = scmp.ne.s32.totalorder %s138, %s152
    %p154 = scmp.eq.s32.totalorder %s23, 0
    %p155 = por %p153, %p154
    %s157 = sadd.s32 %s156, 1
    %p160 = scmp.eq.s32.totalorder %s17, 1
    %p161 = scmp.ne.s32.totalorder %s156, %s158
    %p162 = scmp.eq.s32.totalorder %s17, 0
    %p163 = por %p161, %p162
    %p164 = scmp.ne.s32.totalorder %s156, %s158
    %p165 = scmp.eq.s32.totalorder %s22, 1
    %p166 = por %p164, %p165
    %p167 = scmp.ne.s32.totalorder %s158, %s159
    %p168 = scmp.eq.s32.totalorder %s22, 0
    %p169 = por %p167, %p168
    %p170 = scmp.ne.s32.totalorder %s158, %s159
    %p171 = scmp.eq.s32.totalorder %s23, 1
    %p172 = por %p170, %p171
    %p174 = scmp.ne.s32.totalorder %s159, %s173
    %p175 = scmp.eq.s32.totalorder %s23, 0
    %p176 = por %p174, %p175
    %s178 = sadd.s32 %s177, 1
    %p181 = scmp.eq.s32.totalorder %s17, 1
    %p182 = scmp.ne.s32.totalorder %s177, %s179
    %p183 = scmp.eq.s32.totalorder %s17, 0
    %p184 = por %p182, %p183
    %p185 = scmp.ne.s32.totalorder %s177, %s179
    %p186 = scmp.eq.s32.totalorder %s22, 1
    %p187 = por %p185, %p186
    %p188 = scmp.ne.s32.totalorder %s179, %s180
    %p189 = scmp.eq.s32.totalorder %s22, 0
    %p190 = por %p188, %p189
    %p191 = scmp.ne.s32.totalorder %s179, %s180
    %p192 = scmp.eq.s32.totalorder %s23, 1
    %p193 = por %p191, %p192
    %p195 = scmp.ne.s32.totalorder %s180, %s194
    %p196 = scmp.eq.s32.totalorder %s23, 0
    %p197 = por %p195, %p196
    %s199 = sadd.s32 %s198, 1
    %p202 = scmp.eq.s32.totalorder %s17, 1
    %p203 = scmp.ne.s32.totalorder %s198, %s200
    %p204 = scmp.eq.s32.totalorder %s17, 0
    %p205 = por %p203, %p204
    %p206 = scmp.ne.s32.totalorder %s198, %s200
    %p207 = scmp.eq.s32.totalorder %s22, 1
    %p208 = por %p206, %p207
    %p209 = scmp.ne.s32.totalorder %s200, %s201
    %p210 = scmp.eq.s32.totalorder %s22, 0
    %p211 = por %p209, %p210
    %p212 = scmp.ne.s32.totalorder %s200, %s201
    %p213 = scmp.eq.s32.totalorder %s23, 1
    %p214 = por %p212, %p213
    %p216 = scmp.ne.s32.totalorder %s201, %s215
    %p217 = scmp.eq.s32.totalorder %s23, 0
    %p218 = por %p216, %p217
    %s220 = sadd.s32 %s219, 1
    %p223 = scmp.eq.s32.totalorder %s17, 1
    %p224 = scmp.ne.s32.totalorder %s219, %s221
    %p225 = scmp.eq.s32.totalorder %s17, 0
    %p226 = por %p224, %p225
    %p227 = scmp.ne.s32.totalorder %s219, %s221
    %p228 = scmp.eq.s32.totalorder %s22, 1
    %p229 = por %p227, %p228
    %p230 = scmp.ne.s32.totalorder %s221, %s222
    %p231 = scmp.eq.s32.totalorder %s22, 0
    %p232 = por %p230, %p231
    %p233 = scmp.ne.s32.totalorder %s221, %s222
    %p234 = scmp.eq.s32.totalorder %s23, 1
    %p235 = por %p233, %p234
    %p237 = scmp.ne.s32.totalorder %s222, %s236
    %p238 = scmp.eq.s32.totalorder %s23, 0
    %p239 = por %p237, %p238
    %s241 = sadd.s32 %s240, 1
    %p244 = scmp.eq.s32.totalorder %s17, 1
    %p245 = scmp.ne.s32.totalorder %s240, %s242
    %p246 = scmp.eq.s32.totalorder %s17, 0
    %p247 = por %p245, %p246
    %p248 = scmp.ne.s32.totalorder %s240, %s242
    %p249 = scmp.eq.s32.totalorder %s22, 1
    %p250 = por %p248, %p249
    %p251 = scmp.ne.s32.totalorder %s242, %s243
    %p252 = scmp.eq.s32.totalorder %s22, 0
    %p253 = por %p251, %p252
    %p254 = scmp.ne.s32.totalorder %s242, %s243
    %p255 = scmp.eq.s32.totalorder %s23, 1
    %p256 = por %p254, %p255
    %p258 = scmp.ne.s32.totalorder %s243, %s257
    %p259 = scmp.eq.s32.totalorder %s23, 0
    %p260 = por %p258, %p259
    %s261 = ssub.s32 %s17, %s24
    %p262 = scmp.eq.s32.totalorder %s261, 0
    %s264 = sadd.s32 %s263, 1
    %s265 = scalar_select %p262, %s263, %s264
    %p268 = pneg %p262
    %p269 = scmp.eq.s32.totalorder %s17, 1
    %p270 = por %p268, %p269
    %p271 = scmp.ne.s32.totalorder %s263, %s266
    %p272 = scmp.eq.s32.totalorder %s17, 0
    %p273 = por %p271, %p272
    %p274 = scmp.ne.s32.totalorder %s263, %s266
    %p275 = scmp.eq.s32.totalorder %s22, 1
    %p276 = por %p274, %p275
    %p277 = scmp.ne.s32.totalorder %s266, %s267
    %p278 = scmp.eq.s32.totalorder %s22, 0
    %p279 = por %p277, %p278
    %p280 = scmp.ne.s32.totalorder %s266, %s267
    %p281 = scmp.eq.s32.totalorder %s23, 1
    %p282 = por %p280, %p281
    %p284 = scmp.ne.s32.totalorder %s267, %s283
    %p285 = scmp.eq.s32.totalorder %s23, 0
    %p286 = por %p284, %p285
    %p287 = scmp.le.s32.totalorder 1, %s17
    %p288 = scmp.lt.s32.totalorder %s17, 3
    %p289 = pnand %p287, %p288
    %p290 = pneg %p289
    // Predicated region
    $region9: #{network_forward.1} parent=5 // pred_check
      _
    $region10: #{network_forward.1} parent=5 // pred_check_branch
      %292 = sbr.rel (%p289) target = $region12
    $region11: #{network_forward.1} parent=5 // pred_region
      %s293 = ssub.s32 %s17, 1
      // Predicated region
      $region13: #{network_forward.1} parent=11 // pred_check
        %p294 = pneg %p64
      $region14: #{network_forward.1} parent=11 // pred_check_branch
        %296 = sbr.rel (%p294) target = $region16
      $region15: #{network_forward.1} parent=11 // pred_region
        _
      $region16: #{network_forward.1} parent=11 // pred_fallthru
        _
      // Predicated region
      $region17: #{network_forward.1} parent=11 // pred_check
        %p297 = pneg %p85
      $region18: #{network_forward.1} parent=11 // pred_check_branch
        %299 = sbr.rel (%p297) target = $region20
      $region19: #{network_forward.1} parent=11 // pred_region
        _
      $region20: #{network_forward.1} parent=11 // pred_fallthru
        _
      // Predicated region
      $region21: #{network_forward.1} parent=11 // pred_check
        %p300 = pneg %p106
      $region22: #{network_forward.1} parent=11 // pred_check_branch
        %302 = sbr.rel (%p300) target = $region24
      $region23: #{network_forward.1} parent=11 // pred_region
        _
      $region24: #{network_forward.1} parent=11 // pred_fallthru
        _
      // Predicated region
      $region25: #{network_forward.1} parent=11 // pred_check
        %p303 = pneg %p127
      $region26: #{network_forward.1} parent=11 // pred_check_branch
        %305 = sbr.rel (%p303) target = $region28
      $region27: #{network_forward.1} parent=11 // pred_region
        _
      $region28: #{network_forward.1} parent=11 // pred_fallthru
        _
      // Predicated region
      $region29: #{network_forward.1} parent=11 // pred_check
        %p306 = pneg %p148
      $region30: #{network_forward.1} parent=11 // pred_check_branch
        %308 = sbr.rel (%p306) target = $region32
      $region31: #{network_forward.1} parent=11 // pred_region
        _
      $region32: #{network_forward.1} parent=11 // pred_fallthru
        _
      // Predicated region
      $region33: #{network_forward.1} parent=11 // pred_check
        %p309 = pneg %p169
      $region34: #{network_forward.1} parent=11 // pred_check_branch
        %311 = sbr.rel (%p309) target = $region36
      $region35: #{network_forward.1} parent=11 // pred_region
        _
      $region36: #{network_forward.1} parent=11 // pred_fallthru
        _
      // Predicated region
      $region37: #{network_forward.1} parent=11 // pred_check
        %p312 = pneg %p190
      $region38: #{network_forward.1} parent=11 // pred_check_branch
        %314 = sbr.rel (%p312) target = $region40
      $region39: #{network_forward.1} parent=11 // pred_region
        _
      $region40: #{network_forward.1} parent=11 // pred_fallthru
        _
      // Predicated region
      $region41: #{network_forward.1} parent=11 // pred_check
        %p315 = pneg %p211
      $region42: #{network_forward.1} parent=11 // pred_check_branch
        %317 = sbr.rel (%p315) target = $region44
      $region43: #{network_forward.1} parent=11 // pred_region
        _
      $region44: #{network_forward.1} parent=11 // pred_fallthru
        _
      // Predicated region
      $region45: #{network_forward.1} parent=11 // pred_check
        %p318 = pneg %p232
      $region46: #{network_forward.1} parent=11 // pred_check_branch
        %320 = sbr.rel (%p318) target = $region48
      $region47: #{network_forward.1} parent=11 // pred_region
        _
      $region48: #{network_forward.1} parent=11 // pred_fallthru
        _
      // Predicated region
      $region49: #{network_forward.1} parent=11 // pred_check
        %p321 = pneg %p253
      $region50: #{network_forward.1} parent=11 // pred_check_branch
        %323 = sbr.rel (%p321) target = $region52
      $region51: #{network_forward.1} parent=11 // pred_region
        _
      $region52: #{network_forward.1} parent=11 // pred_fallthru
        _
    $region12: #{network_forward.1} parent=5 // pred_fallthru
      _
    %p324 = scmp.lt.s32.totalorder %s17, 2
    // Predicated region
    $region53: #{network_forward.1} parent=5 // pred_check
      %p325 = pneg %p324
    $region54: #{network_forward.1} parent=5 // pred_check_branch
      %327 = sbr.rel (%p325) target = $region56
    $region55: #{network_forward.1} parent=5 // pred_region
      // Predicated region
      $region57: #{network_forward.1} parent=55 // pred_check
        %p328 = pneg %p37
      $region58: #{network_forward.1} parent=55 // pred_check_branch
        %330 = sbr.rel (%p328) target = $region60
      $region59: #{network_forward.1} parent=55 // pred_region
        %p331 = scmp.lt.s32.totalorder %s17, 1
        %s332 = scalar_select %p331, %s17, 1
        %s333 = smul.addr %s332, 576
        %s334 = smul.addr %s333, 8
        %s335 = scalar_lea.vmem %s0, %s334
      $region60: #{network_forward.1} parent=55 // pred_fallthru
        _
    $region56: #{network_forward.1} parent=5 // pred_fallthru
      _
    %p336 = scmp.le.s32.totalorder 1, %s17
    %p337 = scmp.lt.s32.totalorder %s17, 3
    %p338 = pnand %p336, %p337
    %p339 = pneg %p338
    // Predicated region
    $region61: #{network_forward.1} parent=5 // pred_check
      _
    $region62: #{network_forward.1} parent=5 // pred_check_branch
      %341 = sbr.rel (%p338) target = $region64
    $region63: #{network_forward.1} parent=5 // pred_region
      %s342 = ssub.s32 %s17, 1
      %p343 = scmp.lt.s32.totalorder %s22, 1
      %s344 = scalar_select %p343, %s22, 1
      %s345 = smul.addr %s344, 576
      %s346 = smul.addr %s345, 8
      %s347 = scalar_lea.vmem %s0, %s346
      %p348 = pneg %p43
      %p349 = pneg %p40
      %p350 = pneg %p64
      %p351 = pneg %p61
      %p352 = pneg %p85
      %p353 = pneg %p82
      %p354 = pneg %p106
      %p355 = pneg %p103
      %p356 = pneg %p127
      %p357 = pneg %p124
      %p358 = pneg %p148
      %p359 = pneg %p145
      %p360 = pneg %p169
      %p361 = pneg %p166
      %p362 = pneg %p190
      %p363 = pneg %p187
      %p364 = pneg %p211
      %p365 = pneg %p208
      %p366 = pneg %p232
      %p367 = pneg %p229
      %p368 = pneg %p253
      %p369 = pneg %p250
      %p370 = pneg %p279
      %p371 = pneg %p276
      %p372 = scmp.lt.s32.totalorder %s22, 1
      %s373 = scalar_select %p372, %s22, 1
      %s374 = scalar_lea.vmem %s11, %s373
      %p375 = scmp.lt.s32.totalorder %s22, 1
      %s376 = scalar_select %p375, %s22, 1
      %s377 = smul.addr %s376, 576
      %s378 = smul.addr %s377, 8
      %s379 = scalar_lea.vmem %s0, %s378
      %p380 = scmp.lt.s32.totalorder %s22, 1
      %s381 = scalar_select %p380, %s22, 1
      %s382 = scalar_lea.vmem %s11, %s381
      %v383 = vld [vmem:[%s379] ss:$2 sm:$0xff]
      %s384 = scalar_lea.vmem %s379, 16
      %v385 = vld [vmem:[%s384] ss:$2 sm:$0xff]
      %s386 = scalar_lea.vmem %s379, 32
      %v387 = vld [vmem:[%s386] ss:$2 sm:$0xff]
      %s388 = scalar_lea.vmem %s379, 48
      %v389 = vld [vmem:[%s388] ss:$2 sm:$0xff]
      %s390 = scalar_lea.vmem %s379, 144
      %v391 = vld [vmem:[%s390] ss:$2 sm:$0xff]
      %s392 = scalar_lea.vmem %s379, 160
      %v393 = vld [vmem:[%s392] ss:$2 sm:$0xff]
      %s394 = scalar_lea.vmem %s379, 176
      %v395 = vld [vmem:[%s394] ss:$2 sm:$0xff]
      %s396 = scalar_lea.vmem %s379, 192
      %v397 = vld [vmem:[%s396] ss:$2 sm:$0xff]
      %s398 = scalar_lea.vmem %s379, 288
      %v399 = vld [vmem:[%s398] ss:$2 sm:$0xff]
      %s400 = scalar_lea.vmem %s379, 304
      %v401 = vld [vmem:[%s400] ss:$2 sm:$0xff]
      %s402 = scalar_lea.vmem %s379, 320
      %v403 = vld [vmem:[%s402] ss:$2 sm:$0xff]
      %s404 = scalar_lea.vmem %s379, 336
      %v405 = vld [vmem:[%s404] ss:$2 sm:$0xff]
      %s406 = scalar_lea.vmem %s379, 432
      %v407 = vld [vmem:[%s406] ss:$2 sm:$0xff]
      %s408 = scalar_lea.vmem %s379, 448
      %v409 = vld [vmem:[%s408] ss:$2 sm:$0xff]
      %s410 = scalar_lea.vmem %s379, 464
      %v411 = vld [vmem:[%s410] ss:$2 sm:$0xff]
      %s412 = scalar_lea.vmem %s379, 480
      %v413 = vld [vmem:[%s412] ss:$2 sm:$0xff]
      %s414 = scalar_lea.vmem %s379, 576
      %v415 = vld [vmem:[%s414] ss:$2 sm:$0xff]
      %s416 = scalar_lea.vmem %s379, 592
      %v417 = vld [vmem:[%s416] ss:$2 sm:$0xff]
      %s418 = scalar_lea.vmem %s379, 608
      %v419 = vld [vmem:[%s418] ss:$2 sm:$0xff]
      %s420 = scalar_lea.vmem %s379, 624
      %v421 = vld [vmem:[%s420] ss:$2 sm:$0xff]
      %s422 = scalar_lea.vmem %s379, 720
      %v423 = vld [vmem:[%s422] ss:$2 sm:$0xff]
      %s424 = scalar_lea.vmem %s379, 736
      %v425 = vld [vmem:[%s424] ss:$2 sm:$0xff]
      %s426 = scalar_lea.vmem %s379, 752
      %v427 = vld [vmem:[%s426] ss:$2 sm:$0xff]
      %s428 = scalar_lea.vmem %s379, 768
      %v429 = vld [vmem:[%s428] ss:$2 sm:$0xff]
      %s430 = scalar_lea.vmem %s379, 864
      %v431 = vld [vmem:[%s430] ss:$2 sm:$0xff]
      %s432 = scalar_lea.vmem %s379, 880
      %v433 = vld [vmem:[%s432] ss:$2 sm:$0xff]
      %s434 = scalar_lea.vmem %s379, 896
      %v435 = vld [vmem:[%s434] ss:$2 sm:$0xff]
      %s436 = scalar_lea.vmem %s379, 912
      %v437 = vld [vmem:[%s436] ss:$2 sm:$0xff]
      %s438 = scalar_lea.vmem %s379, 1008
      %v439 = vld [vmem:[%s438] ss:$2 sm:$0xff]
      %s440 = scalar_lea.vmem %s379, 1024
      %v441 = vld [vmem:[%s440] ss:$2 sm:$0xff]
      %s442 = scalar_lea.vmem %s379, 1040
      %v443 = vld [vmem:[%s442] ss:$2 sm:$0xff]
      %s444 = scalar_lea.vmem %s379, 1056
      %v445 = vld [vmem:[%s444] ss:$2 sm:$0xff]
      %s446 = scalar_lea.vmem %s379, 1152
      %v447 = vld [vmem:[%s446] ss:$2 sm:$0xff]
      %s448 = scalar_lea.vmem %s379, 1168
      %v449 = vld [vmem:[%s448] ss:$2 sm:$0xff]
      %s450 = scalar_lea.vmem %s379, 1184
      %v451 = vld [vmem:[%s450] ss:$2 sm:$0xff]
      %s452 = scalar_lea.vmem %s379, 1200
      %v453 = vld [vmem:[%s452] ss:$2 sm:$0xff]
      %s454 = scalar_lea.vmem %s379, 1296
      %v455 = vld [vmem:[%s454] ss:$2 sm:$0xff]
      %s456 = scalar_lea.vmem %s379, 1312
      %v457 = vld [vmem:[%s456] ss:$2 sm:$0xff]
      %s458 = scalar_lea.vmem %s379, 1328
      %v459 = vld [vmem:[%s458] ss:$2 sm:$0xff]
      %s460 = scalar_lea.vmem %s379, 1344
      %v461 = vld [vmem:[%s460] ss:$2 sm:$0xff]
      %s462 = scalar_lea.vmem %s379, 1440
      %v463 = vld [vmem:[%s462] ss:$2 sm:$0xff]
      %s464 = scalar_lea.vmem %s379, 1456
      %v465 = vld [vmem:[%s464] ss:$2 sm:$0xff]
      %s466 = scalar_lea.vmem %s379, 1472
      %v467 = vld [vmem:[%s466] ss:$2 sm:$0xff]
      %s468 = scalar_lea.vmem %s379, 1488
      %v469 = vld [vmem:[%s468] ss:$2 sm:$0xff]
      %s470 = scalar_lea.vmem %s379, 1584
      %v471 = vld [vmem:[%s470] ss:$2 sm:$0xff]
      %s472 = scalar_lea.vmem %s379, 1600
      %v473 = vld [vmem:[%s472] ss:$2 sm:$0xff]
      %s474 = scalar_lea.vmem %s379, 1616
      %v475 = vld [vmem:[%s474] ss:$2 sm:$0xff]
      %s476 = scalar_lea.vmem %s379, 1632
      %v477 = vld [vmem:[%s476] ss:$2 sm:$0xff]
      %s478 = scalar_lea.vmem %s379, 1728
      %v479 = vld [vmem:[%s478] ss:$2 sm:$0xff]
      %s480 = scalar_lea.vmem %s379, 1744
      %v481 = vld [vmem:[%s480] ss:$2 sm:$0xff]
      %s482 = scalar_lea.vmem %s379, 1760
      %v483 = vld [vmem:[%s482] ss:$2 sm:$0xff]
      %s484 = scalar_lea.vmem %s379, 1776
      %v485 = vld [vmem:[%s484] ss:$2 sm:$0xff]
      %s486 = scalar_lea.vmem %s379, 1872
      %v487 = vld [vmem:[%s486] ss:$2 sm:$0xff]
      %s488 = scalar_lea.vmem %s379, 1888
      %v489 = vld [vmem:[%s488] ss:$2 sm:$0xff]
      %s490 = scalar_lea.vmem %s379, 1904
      %v491 = vld [vmem:[%s490] ss:$2 sm:$0xff]
      %s492 = scalar_lea.vmem %s379, 1920
      %v493 = vld [vmem:[%s492] ss:$2 sm:$0xff]
      %s494 = scalar_lea.vmem %s379, 2016
      %v495 = vld [vmem:[%s494] ss:$2 sm:$0xff]
      %s496 = scalar_lea.vmem %s379, 2032
      %v497 = vld [vmem:[%s496] ss:$2 sm:$0xff]
      %s498 = scalar_lea.vmem %s379, 2048
      %v499 = vld [vmem:[%s498] ss:$2 sm:$0xff]
      %s500 = scalar_lea.vmem %s379, 2064
      %v501 = vld [vmem:[%s500] ss:$2 sm:$0xff]
      %s502 = scalar_lea.vmem %s379, 2160
      %v503 = vld [vmem:[%s502] ss:$2 sm:$0xff]
      %s504 = scalar_lea.vmem %s379, 2176
      %v505 = vld [vmem:[%s504] ss:$2 sm:$0xff]
      %s506 = scalar_lea.vmem %s379, 2192
      %v507 = vld [vmem:[%s506] ss:$2 sm:$0xff]
      %s508 = scalar_lea.vmem %s379, 2208
      %v509 = vld [vmem:[%s508] ss:$2 sm:$0xff]
      %s510 = scalar_lea.vmem %s379, 2304
      %v511 = vld [vmem:[%s510] ss:$2 sm:$0xff]
      %s512 = scalar_lea.vmem %s379, 2320
      %v513 = vld [vmem:[%s512] ss:$2 sm:$0xff]
      %s514 = scalar_lea.vmem %s379, 2336
      %v515 = vld [vmem:[%s514] ss:$2 sm:$0xff]
      %s516 = scalar_lea.vmem %s379, 2352
      %v517 = vld [vmem:[%s516] ss:$2 sm:$0xff]
      %s518 = scalar_lea.vmem %s379, 2448
      %v519 = vld [vmem:[%s518] ss:$2 sm:$0xff]
      %s520 = scalar_lea.vmem %s379, 2464
      %v521 = vld [vmem:[%s520] ss:$2 sm:$0xff]
      %s522 = scalar_lea.vmem %s379, 2480
      %v523 = vld [vmem:[%s522] ss:$2 sm:$0xff]
      %s524 = scalar_lea.vmem %s379, 2496
      %v525 = vld [vmem:[%s524] ss:$2 sm:$0xff]
      %s526 = scalar_lea.vmem %s379, 2592
      %v527 = vld [vmem:[%s526] ss:$2 sm:$0xff]
      %s528 = scalar_lea.vmem %s379, 2608
      %v529 = vld [vmem:[%s528] ss:$2 sm:$0xff]
      %s530 = scalar_lea.vmem %s379, 2624
      %v531 = vld [vmem:[%s530] ss:$2 sm:$0xff]
      %s532 = scalar_lea.vmem %s379, 2640
      %v533 = vld [vmem:[%s532] ss:$2 sm:$0xff]
      %s534 = scalar_lea.vmem %s379, 2736
      %v535 = vld [vmem:[%s534] ss:$2 sm:$0xff]
      %s536 = scalar_lea.vmem %s379, 2752
      %v537 = vld [vmem:[%s536] ss:$2 sm:$0xff]
      %s538 = scalar_lea.vmem %s379, 2768
      %v539 = vld [vmem:[%s538] ss:$2 sm:$0xff]
      %s540 = scalar_lea.vmem %s379, 2784
      %v541 = vld [vmem:[%s540] ss:$2 sm:$0xff]
      %s542 = scalar_lea.vmem %s379, 2880
      %v543 = vld [vmem:[%s542] ss:$2 sm:$0xff]
      %s544 = scalar_lea.vmem %s379, 2896
      %v545 = vld [vmem:[%s544] ss:$2 sm:$0xff]
      %s546 = scalar_lea.vmem %s379, 2912
      %v547 = vld [vmem:[%s546] ss:$2 sm:$0xff]
      %s548 = scalar_lea.vmem %s379, 2928
      %v549 = vld [vmem:[%s548] ss:$2 sm:$0xff]
      %s550 = scalar_lea.vmem %s379, 3024
      %v551 = vld [vmem:[%s550] ss:$2 sm:$0xff]
      %s552 = scalar_lea.vmem %s379, 3040
      %v553 = vld [vmem:[%s552] ss:$2 sm:$0xff]
      %s554 = scalar_lea.vmem %s379, 3056
      %v555 = vld [vmem:[%s554] ss:$2 sm:$0xff]
      %s556 = scalar_lea.vmem %s379, 3072
      %v557 = vld [vmem:[%s556] ss:$2 sm:$0xff]
      %s558 = scalar_lea.vmem %s379, 3168
      %v559 = vld [vmem:[%s558] ss:$2 sm:$0xff]
      %s560 = scalar_lea.vmem %s379, 3184
      %v561 = vld [vmem:[%s560] ss:$2 sm:$0xff]
      %s562 = scalar_lea.vmem %s379, 3200
      %v563 = vld [vmem:[%s562] ss:$2 sm:$0xff]
      %s564 = scalar_lea.vmem %s379, 3216
      %v565 = vld [vmem:[%s564] ss:$2 sm:$0xff]
      %s566 = scalar_lea.vmem %s379, 3312
      %v567 = vld [vmem:[%s566] ss:$2 sm:$0xff]
      %s568 = scalar_lea.vmem %s379, 3328
      %v569 = vld [vmem:[%s568] ss:$2 sm:$0xff]
      %s570 = scalar_lea.vmem %s379, 3344
      %v571 = vld [vmem:[%s570] ss:$2 sm:$0xff]
      %s572 = scalar_lea.vmem %s379, 3360
      %v573 = vld [vmem:[%s572] ss:$2 sm:$0xff]
      %s574 = scalar_lea.vmem %s379, 3456
      %v575 = vld [vmem:[%s574] ss:$2 sm:$0xff]
      %s576 = scalar_lea.vmem %s379, 3472
      %v577 = vld [vmem:[%s576] ss:$2 sm:$0xff]
      %s578 = scalar_lea.vmem %s379, 3488
      %v579 = vld [vmem:[%s578] ss:$2 sm:$0xff]
      %s580 = scalar_lea.vmem %s379, 3504
      %v581 = vld [vmem:[%s580] ss:$2 sm:$0xff]
      %s582 = scalar_lea.vmem %s379, 3600
      %v583 = vld [vmem:[%s582] ss:$2 sm:$0xff]
      %s584 = scalar_lea.vmem %s379, 3616
      %v585 = vld [vmem:[%s584] ss:$2 sm:$0xff]
      %s586 = scalar_lea.vmem %s379, 3632
      %v587 = vld [vmem:[%s586] ss:$2 sm:$0xff]
      %s588 = scalar_lea.vmem %s379, 3648
      %v589 = vld [vmem:[%s588] ss:$2 sm:$0xff]
      %s590 = scalar_lea.vmem %s379, 3744
      %v591 = vld [vmem:[%s590] ss:$2 sm:$0xff]
      %s592 = scalar_lea.vmem %s379, 3760
      %v593 = vld [vmem:[%s592] ss:$2 sm:$0xff]
      %s594 = scalar_lea.vmem %s379, 3776
      %v595 = vld [vmem:[%s594] ss:$2 sm:$0xff]
      %s596 = scalar_lea.vmem %s379, 3792
      %v597 = vld [vmem:[%s596] ss:$2 sm:$0xff]
      %s598 = scalar_lea.vmem %s379, 3888
      %v599 = vld [vmem:[%s598] ss:$2 sm:$0xff]
      %s600 = scalar_lea.vmem %s379, 3904
      %v601 = vld [vmem:[%s600] ss:$2 sm:$0xff]
      %s602 = scalar_lea.vmem %s379, 3920
      %v603 = vld [vmem:[%s602] ss:$2 sm:$0xff]
      %s604 = scalar_lea.vmem %s379, 3936
      %v605 = vld [vmem:[%s604] ss:$2 sm:$0xff]
      %s606 = scalar_lea.vmem %s379, 4032
      %v607 = vld [vmem:[%s606] ss:$2 sm:$0xff]
      %s608 = scalar_lea.vmem %s379, 4048
      %v609 = vld [vmem:[%s608] ss:$2 sm:$0xff]
      %s610 = scalar_lea.vmem %s379, 4064
      %v611 = vld [vmem:[%s610] ss:$2 sm:$0xff]
      %s612 = scalar_lea.vmem %s379, 4080
      %v613 = vld [vmem:[%s612] ss:$2 sm:$0xff]
      %s614 = scalar_lea.vmem %s379, 4176
      %v615 = vld [vmem:[%s614] ss:$2 sm:$0xff]
      %s616 = scalar_lea.vmem %s379, 4192
      %v617 = vld [vmem:[%s616] ss:$2 sm:$0xff]
      %s618 = scalar_lea.vmem %s379, 4208
      %v619 = vld [vmem:[%s618] ss:$2 sm:$0xff]
      %s620 = scalar_lea.vmem %s379, 4224
      %v621 = vld [vmem:[%s620] ss:$2 sm:$0xff]
      %s622 = scalar_lea.vmem %s379, 4320
      %v623 = vld [vmem:[%s622] ss:$2 sm:$0xff]
      %s624 = scalar_lea.vmem %s379, 4336
      %v625 = vld [vmem:[%s624] ss:$2 sm:$0xff]
      %s626 = scalar_lea.vmem %s379, 4352
      %v627 = vld [vmem:[%s626] ss:$2 sm:$0xff]
      %s628 = scalar_lea.vmem %s379, 4368
      %v629 = vld [vmem:[%s628] ss:$2 sm:$0xff]
      %s630 = scalar_lea.vmem %s379, 1
      %v631 = vld [vmem:[%s630] ss:$2 sm:$0xff]
      %s632 = scalar_lea.vmem %s379, 17
      %v633 = vld [vmem:[%s632] ss:$2 sm:$0xff]
      %s634 = scalar_lea.vmem %s379, 33
      %v635 = vld [vmem:[%s634] ss:$2 sm:$0xff]
      %s636 = scalar_lea.vmem %s379, 49
      %v637 = vld [vmem:[%s636] ss:$2 sm:$0xff]
      %s638 = scalar_lea.vmem %s379, 145
      %v639 = vld [vmem:[%s638] ss:$2 sm:$0xff]
      %s640 = scalar_lea.vmem %s379, 161
      %v641 = vld [vmem:[%s640] ss:$2 sm:$0xff]
      %s642 = scalar_lea.vmem %s379, 177
      %v643 = vld [vmem:[%s642] ss:$2 sm:$0xff]
      %s644 = scalar_lea.vmem %s379, 193
      %v645 = vld [vmem:[%s644] ss:$2 sm:$0xff]
      %s646 = scalar_lea.vmem %s379, 289
      %v647 = vld [vmem:[%s646] ss:$2 sm:$0xff]
      %s648 = scalar_lea.vmem %s379, 305
      %v649 = vld [vmem:[%s648] ss:$2 sm:$0xff]
      %s650 = scalar_lea.vmem %s379, 321
      %v651 = vld [vmem:[%s650] ss:$2 sm:$0xff]
      %s652 = scalar_lea.vmem %s379, 337
      %v653 = vld [vmem:[%s652] ss:$2 sm:$0xff]
      %s654 = scalar_lea.vmem %s379, 433
      %v655 = vld [vmem:[%s654] ss:$2 sm:$0xff]
      %s656 = scalar_lea.vmem %s379, 449
      %v657 = vld [vmem:[%s656] ss:$2 sm:$0xff]
      %s658 = scalar_lea.vmem %s379, 465
      %v659 = vld [vmem:[%s658] ss:$2 sm:$0xff]
      %s660 = scalar_lea.vmem %s379, 481
      %v661 = vld [vmem:[%s660] ss:$2 sm:$0xff]
      %s662 = scalar_lea.vmem %s379, 577
      %v663 = vld [vmem:[%s662] ss:$2 sm:$0xff]
      %s664 = scalar_lea.vmem %s379, 593
      %v665 = vld [vmem:[%s664] ss:$2 sm:$0xff]
      %s666 = scalar_lea.vmem %s379, 609
      %v667 = vld [vmem:[%s666] ss:$2 sm:$0xff]
      %s668 = scalar_lea.vmem %s379, 625
      %v669 = vld [vmem:[%s668] ss:$2 sm:$0xff]
      %s670 = scalar_lea.vmem %s379, 721
      %v671 = vld [vmem:[%s670] ss:$2 sm:$0xff]
      %s672 = scalar_lea.vmem %s379, 737
      %v673 = vld [vmem:[%s672] ss:$2 sm:$0xff]
      %s674 = scalar_lea.vmem %s379, 753
      %v675 = vld [vmem:[%s674] ss:$2 sm:$0xff]
      %s676 = scalar_lea.vmem %s379, 769
      %v677 = vld [vmem:[%s676] ss:$2 sm:$0xff]
      %s678 = scalar_lea.vmem %s379, 865
      %v679 = vld [vmem:[%s678] ss:$2 sm:$0xff]
      %s680 = scalar_lea.vmem %s379, 881
      %v681 = vld [vmem:[%s680] ss:$2 sm:$0xff]
      %s682 = scalar_lea.vmem %s379, 897
      %v683 = vld [vmem:[%s682] ss:$2 sm:$0xff]
      %s684 = scalar_lea.vmem %s379, 913
      %v685 = vld [vmem:[%s684] ss:$2 sm:$0xff]
      %s686 = scalar_lea.vmem %s379, 1009
      %v687 = vld [vmem:[%s686] ss:$2 sm:$0xff]
      %s688 = scalar_lea.vmem %s379, 1025
      %v689 = vld [vmem:[%s688] ss:$2 sm:$0xff]
      %s690 = scalar_lea.vmem %s379, 1041
      %v691 = vld [vmem:[%s690] ss:$2 sm:$0xff]
      %s692 = scalar_lea.vmem %s379, 1057
      %v693 = vld [vmem:[%s692] ss:$2 sm:$0xff]
      %s694 = scalar_lea.vmem %s379, 1153
      %v695 = vld [vmem:[%s694] ss:$2 sm:$0xff]
      %s696 = scalar_lea.vmem %s379, 1169
      %v697 = vld [vmem:[%s696] ss:$2 sm:$0xff]
      %s698 = scalar_lea.vmem %s379, 1185
      %v699 = vld [vmem:[%s698] ss:$2 sm:$0xff]
      %s700 = scalar_lea.vmem %s379, 1201
      %v701 = vld [vmem:[%s700] ss:$2 sm:$0xff]
      %s702 = scalar_lea.vmem %s379, 1297
      %v703 = vld [vmem:[%s702] ss:$2 sm:$0xff]
      %s704 = scalar_lea.vmem %s379, 1313
      %v705 = vld [vmem:[%s704] ss:$2 sm:$0xff]
      %s706 = scalar_lea.vmem %s379, 1329
      %v707 = vld [vmem:[%s706] ss:$2 sm:$0xff]
      %s708 = scalar_lea.vmem %s379, 1345
      %v709 = vld [vmem:[%s708] ss:$2 sm:$0xff]
      %s710 = scalar_lea.vmem %s379, 1441
      %v711 = vld [vmem:[%s710] ss:$2 sm:$0xff]
      %s712 = scalar_lea.vmem %s379, 1457
      %v713 = vld [vmem:[%s712] ss:$2 sm:$0xff]
      %s714 = scalar_lea.vmem %s379, 1473
      %v715 = vld [vmem:[%s714] ss:$2 sm:$0xff]
      %s716 = scalar_lea.vmem %s379, 1489
      %v717 = vld [vmem:[%s716] ss:$2 sm:$0xff]
      %s718 = scalar_lea.vmem %s379, 1585
      %v719 = vld [vmem:[%s718] ss:$2 sm:$0xff]
      %s720 = scalar_lea.vmem %s379, 1601
      %v721 = vld [vmem:[%s720] ss:$2 sm:$0xff]
      %s722 = scalar_lea.vmem %s379, 1617
      %v723 = vld [vmem:[%s722] ss:$2 sm:$0xff]
      %s724 = scalar_lea.vmem %s379, 1633
      %v725 = vld [vmem:[%s724] ss:$2 sm:$0xff]
      %s726 = scalar_lea.vmem %s379, 1729
      %v727 = vld [vmem:[%s726] ss:$2 sm:$0xff]
      %s728 = scalar_lea.vmem %s379, 1745
      %v729 = vld [vmem:[%s728] ss:$2 sm:$0xff]
      %s730 = scalar_lea.vmem %s379, 1761
      %v731 = vld [vmem:[%s730] ss:$2 sm:$0xff]
      %s732 = scalar_lea.vmem %s379, 1777
      %v733 = vld [vmem:[%s732] ss:$2 sm:$0xff]
      %s734 = scalar_lea.vmem %s379, 1873
      %v735 = vld [vmem:[%s734] ss:$2 sm:$0xff]
      %s736 = scalar_lea.vmem %s379, 1889
      %v737 = vld [vmem:[%s736] ss:$2 sm:$0xff]
      %s738 = scalar_lea.vmem %s379, 1905
      %v739 = vld [vmem:[%s738] ss:$2 sm:$0xff]
      %s740 = scalar_lea.vmem %s379, 1921
      %v741 = vld [vmem:[%s740] ss:$2 sm:$0xff]
      %s742 = scalar_lea.vmem %s379, 2017
      %v743 = vld [vmem:[%s742] ss:$2 sm:$0xff]
      %s744 = scalar_lea.vmem %s379, 2033
      %v745 = vld [vmem:[%s744] ss:$2 sm:$0xff]
      %s746 = scalar_lea.vmem %s379, 2049
      %v747 = vld [vmem:[%s746] ss:$2 sm:$0xff]
      %s748 = scalar_lea.vmem %s379, 2065
      %v749 = vld [vmem:[%s748] ss:$2 sm:$0xff]
      %s750 = scalar_lea.vmem %s379, 2161
      %v751 = vld [vmem:[%s750] ss:$2 sm:$0xff]
      %s752 = scalar_lea.vmem %s379, 2177
      %v753 = vld [vmem:[%s752] ss:$2 sm:$0xff]
      %s754 = scalar_lea.vmem %s379, 2193
      %v755 = vld [vmem:[%s754] ss:$2 sm:$0xff]
      %s756 = scalar_lea.vmem %s379, 2209
      %v757 = vld [vmem:[%s756] ss:$2 sm:$0xff]
      %s758 = scalar_lea.vmem %s379, 2305
      %v759 = vld [vmem:[%s758] ss:$2 sm:$0xff]
      %s760 = scalar_lea.vmem %s379, 2321
      %v761 = vld [vmem:[%s760] ss:$2 sm:$0xff]
      %s762 = scalar_lea.vmem %s379, 2337
      %v763 = vld [vmem:[%s762] ss:$2 sm:$0xff]
      %s764 = scalar_lea.vmem %s379, 2353
      %v765 = vld [vmem:[%s764] ss:$2 sm:$0xff]
      %s766 = scalar_lea.vmem %s379, 2449
      %v767 = vld [vmem:[%s766] ss:$2 sm:$0xff]
      %s768 = scalar_lea.vmem %s379, 2465
      %v769 = vld [vmem:[%s768] ss:$2 sm:$0xff]
      %s770 = scalar_lea.vmem %s379, 2481
      %v771 = vld [vmem:[%s770] ss:$2 sm:$0xff]
      %s772 = scalar_lea.vmem %s379, 2497
      %v773 = vld [vmem:[%s772] ss:$2 sm:$0xff]
      %s774 = scalar_lea.vmem %s379, 2593
      %v775 = vld [vmem:[%s774] ss:$2 sm:$0xff]
      %s776 = scalar_lea.vmem %s379, 2609
      %v777 = vld [vmem:[%s776] ss:$2 sm:$0xff]
      %s778 = scalar_lea.vmem %s379, 2625
      %v779 = vld [vmem:[%s778] ss:$2 sm:$0xff]
      %s780 = scalar_lea.vmem %s379, 2641
      %v781 = vld [vmem:[%s780] ss:$2 sm:$0xff]
      %s782 = scalar_lea.vmem %s379, 2737
      %v783 = vld [vmem:[%s782] ss:$2 sm:$0xff]
      %s784 = scalar_lea.vmem %s379, 2753
      %v785 = vld [vmem:[%s784] ss:$2 sm:$0xff]
      %s786 = scalar_lea.vmem %s379, 2769
      %v787 = vld [vmem:[%s786] ss:$2 sm:$0xff]
      %s788 = scalar_lea.vmem %s379, 2785
      %v789 = vld [vmem:[%s788] ss:$2 sm:$0xff]
      %s790 = scalar_lea.vmem %s379, 2881
      %v791 = vld [vmem:[%s790] ss:$2 sm:$0xff]
      %s792 = scalar_lea.vmem %s379, 2897
      %v793 = vld [vmem:[%s792] ss:$2 sm:$0xff]
      %s794 = scalar_lea.vmem %s379, 2913
      %v795 = vld [vmem:[%s794] ss:$2 sm:$0xff]
      %s796 = scalar_lea.vmem %s379, 2929
      %v797 = vld [vmem:[%s796] ss:$2 sm:$0xff]
      %s798 = scalar_lea.vmem %s379, 3025
      %v799 = vld [vmem:[%s798] ss:$2 sm:$0xff]
      %s800 = scalar_lea.vmem %s379, 3041
      %v801 = vld [vmem:[%s800] ss:$2 sm:$0xff]
      %s802 = scalar_lea.vmem %s379, 3057
      %v803 = vld [vmem:[%s802] ss:$2 sm:$0xff]
      %s804 = scalar_lea.vmem %s379, 3073
      %v805 = vld [vmem:[%s804] ss:$2 sm:$0xff]
      %s806 = scalar_lea.vmem %s379, 3169
      %v807 = vld [vmem:[%s806] ss:$2 sm:$0xff]
      %s808 = scalar_lea.vmem %s379, 3185
      %v809 = vld [vmem:[%s808] ss:$2 sm:$0xff]
      %s810 = scalar_lea.vmem %s379, 3201
      %v811 = vld [vmem:[%s810] ss:$2 sm:$0xff]
      %s812 = scalar_lea.vmem %s379, 3217
      %v813 = vld [vmem:[%s812] ss:$2 sm:$0xff]
      %s814 = scalar_lea.vmem %s379, 3313
      %v815 = vld [vmem:[%s814] ss:$2 sm:$0xff]
      %s816 = scalar_lea.vmem %s379, 3329
      %v817 = vld [vmem:[%s816] ss:$2 sm:$0xff]
      %s818 = scalar_lea.vmem %s379, 3345
      %v819 = vld [vmem:[%s818] ss:$2 sm:$0xff]
      %s820 = scalar_lea.vmem %s379, 3361
      %v821 = vld [vmem:[%s820] ss:$2 sm:$0xff]
      %s822 = scalar_lea.vmem %s379, 3457
      %v823 = vld [vmem:[%s822] ss:$2 sm:$0xff]
      %s824 = scalar_lea.vmem %s379, 3473
      %v825 = vld [vmem:[%s824] ss:$2 sm:$0xff]
      %s826 = scalar_lea.vmem %s379, 3489
      %v827 = vld [vmem:[%s826] ss:$2 sm:$0xff]
      %s828 = scalar_lea.vmem %s379, 3505
      %v829 = vld [vmem:[%s828] ss:$2 sm:$0xff]
      %s830 = scalar_lea.vmem %s379, 3601
      %v831 = vld [vmem:[%s830] ss:$2 sm:$0xff]
      %s832 = scalar_lea.vmem %s379, 3617
      %v833 = vld [vmem:[%s832] ss:$2 sm:$0xff]
      %s834 = scalar_lea.vmem %s379, 3633
      %v835 = vld [vmem:[%s834] ss:$2 sm:$0xff]
      %s836 = scalar_lea.vmem %s379, 3649
      %v837 = vld [vmem:[%s836] ss:$2 sm:$0xff]
      %s838 = scalar_lea.vmem %s379, 3745
      %v839 = vld [vmem:[%s838] ss:$2 sm:$0xff]
      %s840 = scalar_lea.vmem %s379, 3761
      %v841 = vld [vmem:[%s840] ss:$2 sm:$0xff]
      %s842 = scalar_lea.vmem %s379, 3777
      %v843 = vld [vmem:[%s842] ss:$2 sm:$0xff]
      %s844 = scalar_lea.vmem %s379, 3793
      %v845 = vld [vmem:[%s844] ss:$2 sm:$0xff]
      %s846 = scalar_lea.vmem %s379, 3889
      %v847 = vld [vmem:[%s846] ss:$2 sm:$0xff]
      %s848 = scalar_lea.vmem %s379, 3905
      %v849 = vld [vmem:[%s848] ss:$2 sm:$0xff]
      %s850 = scalar_lea.vmem %s379, 3921
      %v851 = vld [vmem:[%s850] ss:$2 sm:$0xff]
      %s852 = scalar_lea.vmem %s379, 3937
      %v853 = vld [vmem:[%s852] ss:$2 sm:$0xff]
      %s854 = scalar_lea.vmem %s379, 4033
      %v855 = vld [vmem:[%s854] ss:$2 sm:$0xff]
      %s856 = scalar_lea.vmem %s379, 4049
      %v857 = vld [vmem:[%s856] ss:$2 sm:$0xff]
      %s858 = scalar_lea.vmem %s379, 4065
      %v859 = vld [vmem:[%s858] ss:$2 sm:$0xff]
      %s860 = scalar_lea.vmem %s379, 4081
      %v861 = vld [vmem:[%s860] ss:$2 sm:$0xff]
      %s862 = scalar_lea.vmem %s379, 4177
      %v863 = vld [vmem:[%s862] ss:$2 sm:$0xff]
      %s864 = scalar_lea.vmem %s379, 4193
      %v865 = vld [vmem:[%s864] ss:$2 sm:$0xff]
      %s866 = scalar_lea.vmem %s379, 4209
      %v867 = vld [vmem:[%s866] ss:$2 sm:$0xff]
      %s868 = scalar_lea.vmem %s379, 4225
      %v869 = vld [vmem:[%s868] ss:$2 sm:$0xff]
      %s870 = scalar_lea.vmem %s379, 4321
      %v871 = vld [vmem:[%s870] ss:$2 sm:$0xff]
      %s872 = scalar_lea.vmem %s379, 4337
      %v873 = vld [vmem:[%s872] ss:$2 sm:$0xff]
      %s874 = scalar_lea.vmem %s379, 4353
      %v875 = vld [vmem:[%s874] ss:$2 sm:$0xff]
      %s876 = scalar_lea.vmem %s379, 4369
      %v877 = vld [vmem:[%s876] ss:$2 sm:$0xff]
      %s878 = scalar_lea.vmem %s379, 2
      %v879 = vld [vmem:[%s878] ss:$2 sm:$0xff]
      %s880 = scalar_lea.vmem %s379, 18
      %v881 = vld [vmem:[%s880] ss:$2 sm:$0xff]
      %s882 = scalar_lea.vmem %s379, 34
      %v883 = vld [vmem:[%s882] ss:$2 sm:$0xff]
      %s884 = scalar_lea.vmem %s379, 50
      %v885 = vld [vmem:[%s884] ss:$2 sm:$0xff]
      %s886 = scalar_lea.vmem %s379, 146
      %v887 = vld [vmem:[%s886] ss:$2 sm:$0xff]
      %s888 = scalar_lea.vmem %s379, 162
      %v889 = vld [vmem:[%s888] ss:$2 sm:$0xff]
      %s890 = scalar_lea.vmem %s379, 178
      %v891 = vld [vmem:[%s890] ss:$2 sm:$0xff]
      %s892 = scalar_lea.vmem %s379, 194
      %v893 = vld [vmem:[%s892] ss:$2 sm:$0xff]
      %s894 = scalar_lea.vmem %s379, 290
      %v895 = vld [vmem:[%s894] ss:$2 sm:$0xff]
      %s896 = scalar_lea.vmem %s379, 306
      %v897 = vld [vmem:[%s896] ss:$2 sm:$0xff]
      %s898 = scalar_lea.vmem %s379, 322
      %v899 = vld [vmem:[%s898] ss:$2 sm:$0xff]
      %s900 = scalar_lea.vmem %s379, 338
      %v901 = vld [vmem:[%s900] ss:$2 sm:$0xff]
      %s902 = scalar_lea.vmem %s379, 434
      %v903 = vld [vmem:[%s902] ss:$2 sm:$0xff]
      %s904 = scalar_lea.vmem %s379, 450
      %v905 = vld [vmem:[%s904] ss:$2 sm:$0xff]
      %s906 = scalar_lea.vmem %s379, 466
      %v907 = vld [vmem:[%s906] ss:$2 sm:$0xff]
      %s908 = scalar_lea.vmem %s379, 482
      %v909 = vld [vmem:[%s908] ss:$2 sm:$0xff]
      %s910 = scalar_lea.vmem %s379, 578
      %v911 = vld [vmem:[%s910] ss:$2 sm:$0xff]
      %s912 = scalar_lea.vmem %s379, 594
      %v913 = vld [vmem:[%s912] ss:$2 sm:$0xff]
      %s914 = scalar_lea.vmem %s379, 610
      %v915 = vld [vmem:[%s914] ss:$2 sm:$0xff]
      %s916 = scalar_lea.vmem %s379, 626
      %v917 = vld [vmem:[%s916] ss:$2 sm:$0xff]
      %s918 = scalar_lea.vmem %s379, 722
      %v919 = vld [vmem:[%s918] ss:$2 sm:$0xff]
      %s920 = scalar_lea.vmem %s379, 738
      %v921 = vld [vmem:[%s920] ss:$2 sm:$0xff]
      %s922 = scalar_lea.vmem %s379, 754
      %v923 = vld [vmem:[%s922] ss:$2 sm:$0xff]
      %s924 = scalar_lea.vmem %s379, 770
      %v925 = vld [vmem:[%s924] ss:$2 sm:$0xff]
      %s926 = scalar_lea.vmem %s379, 866
      %v927 = vld [vmem:[%s926] ss:$2 sm:$0xff]
      %s928 = scalar_lea.vmem %s379, 882
      %v929 = vld [vmem:[%s928] ss:$2 sm:$0xff]
      %s930 = scalar_lea.vmem %s379, 898
      %v931 = vld [vmem:[%s930] ss:$2 sm:$0xff]
      %s932 = scalar_lea.vmem %s379, 914
      %v933 = vld [vmem:[%s932] ss:$2 sm:$0xff]
      %s934 = scalar_lea.vmem %s379, 1010
      %v935 = vld [vmem:[%s934] ss:$2 sm:$0xff]
      %s936 = scalar_lea.vmem %s379, 1026
      %v937 = vld [vmem:[%s936] ss:$2 sm:$0xff]
      %s938 = scalar_lea.vmem %s379, 1042
      %v939 = vld [vmem:[%s938] ss:$2 sm:$0xff]
      %s940 = scalar_lea.vmem %s379, 1058
      %v941 = vld [vmem:[%s940] ss:$2 sm:$0xff]
      %s942 = scalar_lea.vmem %s379, 1154
      %v943 = vld [vmem:[%s942] ss:$2 sm:$0xff]
      %s944 = scalar_lea.vmem %s379, 1170
      %v945 = vld [vmem:[%s944] ss:$2 sm:$0xff]
      %s946 = scalar_lea.vmem %s379, 1186
      %v947 = vld [vmem:[%s946] ss:$2 sm:$0xff]
      %s948 = scalar_lea.vmem %s379, 1202
      %v949 = vld [vmem:[%s948] ss:$2 sm:$0xff]
      %s950 = scalar_lea.vmem %s379, 1298
      %v951 = vld [vmem:[%s950] ss:$2 sm:$0xff]
      %s952 = scalar_lea.vmem %s379, 1314
      %v953 = vld [vmem:[%s952] ss:$2 sm:$0xff]
      %s954 = scalar_lea.vmem %s379, 1330
      %v955 = vld [vmem:[%s954] ss:$2 sm:$0xff]
      %s956 = scalar_lea.vmem %s379, 1346
      %v957 = vld [vmem:[%s956] ss:$2 sm:$0xff]
      %s958 = scalar_lea.vmem %s379, 1442
      %v959 = vld [vmem:[%s958] ss:$2 sm:$0xff]
      %s960 = scalar_lea.vmem %s379, 1458
      %v961 = vld [vmem:[%s960] ss:$2 sm:$0xff]
      %s962 = scalar_lea.vmem %s379, 1474
      %v963 = vld [vmem:[%s962] ss:$2 sm:$0xff]
      %s964 = scalar_lea.vmem %s379, 1490
      %v965 = vld [vmem:[%s964] ss:$2 sm:$0xff]
      %s966 = scalar_lea.vmem %s379, 1586
      %v967 = vld [vmem:[%s966] ss:$2 sm:$0xff]
      %s968 = scalar_lea.vmem %s379, 1602
      %v969 = vld [vmem:[%s968] ss:$2 sm:$0xff]
      %s970 = scalar_lea.vmem %s379, 1618
      %v971 = vld [vmem:[%s970] ss:$2 sm:$0xff]
      %s972 = scalar_lea.vmem %s379, 1634
      %v973 = vld [vmem:[%s972] ss:$2 sm:$0xff]
      %s974 = scalar_lea.vmem %s379, 1730
      %v975 = vld [vmem:[%s974] ss:$2 sm:$0xff]
      %s976 = scalar_lea.vmem %s379, 1746
      %v977 = vld [vmem:[%s976] ss:$2 sm:$0xff]
      %s978 = scalar_lea.vmem %s379, 1762
      %v979 = vld [vmem:[%s978] ss:$2 sm:$0xff]
      %s980 = scalar_lea.vmem %s379, 1778
      %v981 = vld [vmem:[%s980] ss:$2 sm:$0xff]
      %s982 = scalar_lea.vmem %s379, 1874
      %v983 = vld [vmem:[%s982] ss:$2 sm:$0xff]
      %s984 = scalar_lea.vmem %s379, 1890
      %v985 = vld [vmem:[%s984] ss:$2 sm:$0xff]
      %s986 = scalar_lea.vmem %s379, 1906
      %v987 = vld [vmem:[%s986] ss:$2 sm:$0xff]
      %s988 = scalar_lea.vmem %s379, 1922
      %v989 = vld [vmem:[%s988] ss:$2 sm:$0xff]
      %s990 = scalar_lea.vmem %s379, 2018
      %v991 = vld [vmem:[%s990] ss:$2 sm:$0xff]
      %s992 = scalar_lea.vmem %s379, 2034
      %v993 = vld [vmem:[%s992] ss:$2 sm:$0xff]
      %s994 = scalar_lea.vmem %s379, 2050
      %v995 = vld [vmem:[%s994] ss:$2 sm:$0xff]
      %s996 = scalar_lea.vmem %s379, 2066
      %v997 = vld [vmem:[%s996] ss:$2 sm:$0xff]
      %s998 = scalar_lea.vmem %s379, 2162
      %v999 = vld [vmem:[%s998] ss:$2 sm:$0xff]
      %s1000 = scalar_lea.vmem %s379, 2178
      %v1001 = vld [vmem:[%s1000] ss:$2 sm:$0xff]
      %s1002 = scalar_lea.vmem %s379, 2194
      %v1003 = vld [vmem:[%s1002] ss:$2 sm:$0xff]
      %s1004 = scalar_lea.vmem %s379, 2210
      %v1005 = vld [vmem:[%s1004] ss:$2 sm:$0xff]
      %s1006 = scalar_lea.vmem %s379, 2306
      %v1007 = vld [vmem:[%s1006] ss:$2 sm:$0xff]
      %s1008 = scalar_lea.vmem %s379, 2322
      %v1009 = vld [vmem:[%s1008] ss:$2 sm:$0xff]
      %s1010 = scalar_lea.vmem %s379, 2338
      %v1011 = vld [vmem:[%s1010] ss:$2 sm:$0xff]
      %s1012 = scalar_lea.vmem %s379, 2354
      %v1013 = vld [vmem:[%s1012] ss:$2 sm:$0xff]
      %s1014 = scalar_lea.vmem %s379, 2450
      %v1015 = vld [vmem:[%s1014] ss:$2 sm:$0xff]
      %s1016 = scalar_lea.vmem %s379, 2466
      %v1017 = vld [vmem:[%s1016] ss:$2 sm:$0xff]
      %s1018 = scalar_lea.vmem %s379, 2482
      %v1019 = vld [vmem:[%s1018] ss:$2 sm:$0xff]
      %s1020 = scalar_lea.vmem %s379, 2498
      %v1021 = vld [vmem:[%s1020] ss:$2 sm:$0xff]
      %s1022 = scalar_lea.vmem %s379, 2594
      %v1023 = vld [vmem:[%s1022] ss:$2 sm:$0xff]
      %s1024 = scalar_lea.vmem %s379, 2610
      %v1025 = vld [vmem:[%s1024] ss:$2 sm:$0xff]
      %s1026 = scalar_lea.vmem %s379, 2626
      %v1027 = vld [vmem:[%s1026] ss:$2 sm:$0xff]
      %s1028 = scalar_lea.vmem %s379, 2642
      %v1029 = vld [vmem:[%s1028] ss:$2 sm:$0xff]
      %s1030 = scalar_lea.vmem %s379, 2738
      %v1031 = vld [vmem:[%s1030] ss:$2 sm:$0xff]
      %s1032 = scalar_lea.vmem %s379, 2754
      %v1033 = vld [vmem:[%s1032] ss:$2 sm:$0xff]
      %s1034 = scalar_lea.vmem %s379, 2770
      %v1035 = vld [vmem:[%s1034] ss:$2 sm:$0xff]
      %s1036 = scalar_lea.vmem %s379, 2786
      %v1037 = vld [vmem:[%s1036] ss:$2 sm:$0xff]
      %s1038 = scalar_lea.vmem %s379, 2882
      %v1039 = vld [vmem:[%s1038] ss:$2 sm:$0xff]
      %s1040 = scalar_lea.vmem %s379, 2898
      %v1041 = vld [vmem:[%s1040] ss:$2 sm:$0xff]
      %s1042 = scalar_lea.vmem %s379, 2914
      %v1043 = vld [vmem:[%s1042] ss:$2 sm:$0xff]
      %s1044 = scalar_lea.vmem %s379, 2930
      %v1045 = vld [vmem:[%s1044] ss:$2 sm:$0xff]
      %s1046 = scalar_lea.vmem %s379, 3026
      %v1047 = vld [vmem:[%s1046] ss:$2 sm:$0xff]
      %s1048 = scalar_lea.vmem %s379, 3042
      %v1049 = vld [vmem:[%s1048] ss:$2 sm:$0xff]
      %s1050 = scalar_lea.vmem %s379, 3058
      %v1051 = vld [vmem:[%s1050] ss:$2 sm:$0xff]
      %s1052 = scalar_lea.vmem %s379, 3074
      %v1053 = vld [vmem:[%s1052] ss:$2 sm:$0xff]
      %s1054 = scalar_lea.vmem %s379, 3170
      %v1055 = vld [vmem:[%s1054] ss:$2 sm:$0xff]
      %s1056 = scalar_lea.vmem %s379, 3186
      %v1057 = vld [vmem:[%s1056] ss:$2 sm:$0xff]
      %s1058 = scalar_lea.vmem %s379, 3202
      %v1059 = vld [vmem:[%s1058] ss:$2 sm:$0xff]
      %s1060 = scalar_lea.vmem %s379, 3218
      %v1061 = vld [vmem:[%s1060] ss:$2 sm:$0xff]
      %s1062 = scalar_lea.vmem %s379, 3314
      %v1063 = vld [vmem:[%s1062] ss:$2 sm:$0xff]
      %s1064 = scalar_lea.vmem %s379, 3330
      %v1065 = vld [vmem:[%s1064] ss:$2 sm:$0xff]
      %s1066 = scalar_lea.vmem %s379, 3346
      %v1067 = vld [vmem:[%s1066] ss:$2 sm:$0xff]
      %s1068 = scalar_lea.vmem %s379, 3362
      %v1069 = vld [vmem:[%s1068] ss:$2 sm:$0xff]
      %s1070 = scalar_lea.vmem %s379, 3458
      %v1071 = vld [vmem:[%s1070] ss:$2 sm:$0xff]
      %s1072 = scalar_lea.vmem %s379, 3474
      %v1073 = vld [vmem:[%s1072] ss:$2 sm:$0xff]
      %s1074 = scalar_lea.vmem %s379, 3490
      %v1075 = vld [vmem:[%s1074] ss:$2 sm:$0xff]
      %s1076 = scalar_lea.vmem %s379, 3506
      %v1077 = vld [vmem:[%s1076] ss:$2 sm:$0xff]
      %s1078 = scalar_lea.vmem %s379, 3602
      %v1079 = vld [vmem:[%s1078] ss:$2 sm:$0xff]
      %s1080 = scalar_lea.vmem %s379, 3618
      %v1081 = vld [vmem:[%s1080] ss:$2 sm:$0xff]
      %s1082 = scalar_lea.vmem %s379, 3634
      %v1083 = vld [vmem:[%s1082] ss:$2 sm:$0xff]
      %s1084 = scalar_lea.vmem %s379, 3650
      %v1085 = vld [vmem:[%s1084] ss:$2 sm:$0xff]
      %s1086 = scalar_lea.vmem %s379, 3746
      %v1087 = vld [vmem:[%s1086] ss:$2 sm:$0xff]
      %s1088 = scalar_lea.vmem %s379, 3762
      %v1089 = vld [vmem:[%s1088] ss:$2 sm:$0xff]
      %s1090 = scalar_lea.vmem %s379, 3778
      %v1091 = vld [vmem:[%s1090] ss:$2 sm:$0xff]
      %s1092 = scalar_lea.vmem %s379, 3794
      %v1093 = vld [vmem:[%s1092] ss:$2 sm:$0xff]
      %s1094 = scalar_lea.vmem %s379, 3890
      %v1095 = vld [vmem:[%s1094] ss:$2 sm:$0xff]
      %s1096 = scalar_lea.vmem %s379, 3906
      %v1097 = vld [vmem:[%s1096] ss:$2 sm:$0xff]
      %s1098 = scalar_lea.vmem %s379, 3922
      %v1099 = vld [vmem:[%s1098] ss:$2 sm:$0xff]
      %s1100 = scalar_lea.vmem %s379, 3938
      %v1101 = vld [vmem:[%s1100] ss:$2 sm:$0xff]
      %s1102 = scalar_lea.vmem %s379, 4034
      %v1103 = vld [vmem:[%s1102] ss:$2 sm:$0xff]
      %s1104 = scalar_lea.vmem %s379, 4050
      %v1105 = vld [vmem:[%s1104] ss:$2 sm:$0xff]
      %s1106 = scalar_lea.vmem %s379, 4066
      %v1107 = vld [vmem:[%s1106] ss:$2 sm:$0xff]
      %s1108 = scalar_lea.vmem %s379, 4082
      %v1109 = vld [vmem:[%s1108] ss:$2 sm:$0xff]
      %s1110 = scalar_lea.vmem %s379, 4178
      %v1111 = vld [vmem:[%s1110] ss:$2 sm:$0xff]
      %s1112 = scalar_lea.vmem %s379, 4194
      %v1113 = vld [vmem:[%s1112] ss:$2 sm:$0xff]
      %s1114 = scalar_lea.vmem %s379, 4210
      %v1115 = vld [vmem:[%s1114] ss:$2 sm:$0xff]
      %s1116 = scalar_lea.vmem %s379, 4226
      %v1117 = vld [vmem:[%s1116] ss:$2 sm:$0xff]
      %s1118 = scalar_lea.vmem %s379, 4322
      %v1119 = vld [vmem:[%s1118] ss:$2 sm:$0xff]
      %s1120 = scalar_lea.vmem %s379, 4338
      %v1121 = vld [vmem:[%s1120] ss:$2 sm:$0xff]
      %s1122 = scalar_lea.vmem %s379, 4354
      %v1123 = vld [vmem:[%s1122] ss:$2 sm:$0xff]
      %s1124 = scalar_lea.vmem %s379, 4370
      %v1125 = vld [vmem:[%s1124] ss:$2 sm:$0xff]
      %s1126 = scalar_lea.vmem %s379, 72
      %v1127 = vld [vmem:[%s1126] ss:$2 sm:$0xff]
      %s1128 = scalar_lea.vmem %s1126, 16
      %v1129 = vld [vmem:[%s1128] ss:$2 sm:$0xff]
      %s1130 = scalar_lea.vmem %s1126, 32
      %v1131 = vld [vmem:[%s1130] ss:$2 sm:$0xff]
      %s1132 = scalar_lea.vmem %s1126, 48
      %v1133 = vld [vmem:[%s1132] ss:$2 sm:$0xff]
      %s1134 = scalar_lea.vmem %s1126, 144
      %v1135 = vld [vmem:[%s1134] ss:$2 sm:$0xff]
      %s1136 = scalar_lea.vmem %s1126, 160
      %v1137 = vld [vmem:[%s1136] ss:$2 sm:$0xff]
      %s1138 = scalar_lea.vmem %s1126, 176
      %v1139 = vld [vmem:[%s1138] ss:$2 sm:$0xff]
      %s1140 = scalar_lea.vmem %s1126, 192
      %v1141 = vld [vmem:[%s1140] ss:$2 sm:$0xff]
      %s1142 = scalar_lea.vmem %s1126, 288
      %v1143 = vld [vmem:[%s1142] ss:$2 sm:$0xff]
      %s1144 = scalar_lea.vmem %s1126, 304
      %v1145 = vld [vmem:[%s1144] ss:$2 sm:$0xff]
      %s1146 = scalar_lea.vmem %s1126, 320
      %v1147 = vld [vmem:[%s1146] ss:$2 sm:$0xff]
      %s1148 = scalar_lea.vmem %s1126, 336
      %v1149 = vld [vmem:[%s1148] ss:$2 sm:$0xff]
      %s1150 = scalar_lea.vmem %s1126, 432
      %v1151 = vld [vmem:[%s1150] ss:$2 sm:$0xff]
      %s1152 = scalar_lea.vmem %s1126, 448
      %v1153 = vld [vmem:[%s1152] ss:$2 sm:$0xff]
      %s1154 = scalar_lea.vmem %s1126, 464
      %v1155 = vld [vmem:[%s1154] ss:$2 sm:$0xff]
      %s1156 = scalar_lea.vmem %s1126, 480
      %v1157 = vld [vmem:[%s1156] ss:$2 sm:$0xff]
      %s1158 = scalar_lea.vmem %s1126, 576
      %v1159 = vld [vmem:[%s1158] ss:$2 sm:$0xff]
      %s1160 = scalar_lea.vmem %s1126, 592
      %v1161 = vld [vmem:[%s1160] ss:$2 sm:$0xff]
      %s1162 = scalar_lea.vmem %s1126, 608
      %v1163 = vld [vmem:[%s1162] ss:$2 sm:$0xff]
      %s1164 = scalar_lea.vmem %s1126, 624
      %v1165 = vld [vmem:[%s1164] ss:$2 sm:$0xff]
      %s1166 = scalar_lea.vmem %s1126, 720
      %v1167 = vld [vmem:[%s1166] ss:$2 sm:$0xff]
      %s1168 = scalar_lea.vmem %s1126, 736
      %v1169 = vld [vmem:[%s1168] ss:$2 sm:$0xff]
      %s1170 = scalar_lea.vmem %s1126, 752
      %v1171 = vld [vmem:[%s1170] ss:$2 sm:$0xff]
      %s1172 = scalar_lea.vmem %s1126, 768
      %v1173 = vld [vmem:[%s1172] ss:$2 sm:$0xff]
      %s1174 = scalar_lea.vmem %s1126, 864
      %v1175 = vld [vmem:[%s1174] ss:$2 sm:$0xff]
      %s1176 = scalar_lea.vmem %s1126, 880
      %v1177 = vld [vmem:[%s1176] ss:$2 sm:$0xff]
      %s1178 = scalar_lea.vmem %s1126, 896
      %v1179 = vld [vmem:[%s1178] ss:$2 sm:$0xff]
      %s1180 = scalar_lea.vmem %s1126, 912
      %v1181 = vld [vmem:[%s1180] ss:$2 sm:$0xff]
      %s1182 = scalar_lea.vmem %s1126, 1008
      %v1183 = vld [vmem:[%s1182] ss:$2 sm:$0xff]
      %s1184 = scalar_lea.vmem %s1126, 1024
      %v1185 = vld [vmem:[%s1184] ss:$2 sm:$0xff]
      %s1186 = scalar_lea.vmem %s1126, 1040
      %v1187 = vld [vmem:[%s1186] ss:$2 sm:$0xff]
      %s1188 = scalar_lea.vmem %s1126, 1056
      %v1189 = vld [vmem:[%s1188] ss:$2 sm:$0xff]
      %s1190 = scalar_lea.vmem %s1126, 1152
      %v1191 = vld [vmem:[%s1190] ss:$2 sm:$0xff]
      %s1192 = scalar_lea.vmem %s1126, 1168
      %v1193 = vld [vmem:[%s1192] ss:$2 sm:$0xff]
      %s1194 = scalar_lea.vmem %s1126, 1184
      %v1195 = vld [vmem:[%s1194] ss:$2 sm:$0xff]
      %s1196 = scalar_lea.vmem %s1126, 1200
      %v1197 = vld [vmem:[%s1196] ss:$2 sm:$0xff]
      %s1198 = scalar_lea.vmem %s1126, 1296
      %v1199 = vld [vmem:[%s1198] ss:$2 sm:$0xff]
      %s1200 = scalar_lea.vmem %s1126, 1312
      %v1201 = vld [vmem:[%s1200] ss:$2 sm:$0xff]
      %s1202 = scalar_lea.vmem %s1126, 1328
      %v1203 = vld [vmem:[%s1202] ss:$2 sm:$0xff]
      %s1204 = scalar_lea.vmem %s1126, 1344
      %v1205 = vld [vmem:[%s1204] ss:$2 sm:$0xff]
      %s1206 = scalar_lea.vmem %s1126, 1440
      %v1207 = vld [vmem:[%s1206] ss:$2 sm:$0xff]
      %s1208 = scalar_lea.vmem %s1126, 1456
      %v1209 = vld [vmem:[%s1208] ss:$2 sm:$0xff]
      %s1210 = scalar_lea.vmem %s1126, 1472
      %v1211 = vld [vmem:[%s1210] ss:$2 sm:$0xff]
      %s1212 = scalar_lea.vmem %s1126, 1488
      %v1213 = vld [vmem:[%s1212] ss:$2 sm:$0xff]
      %s1214 = scalar_lea.vmem %s1126, 1584
      %v1215 = vld [vmem:[%s1214] ss:$2 sm:$0xff]
      %s1216 = scalar_lea.vmem %s1126, 1600
      %v1217 = vld [vmem:[%s1216] ss:$2 sm:$0xff]
      %s1218 = scalar_lea.vmem %s1126, 1616
      %v1219 = vld [vmem:[%s1218] ss:$2 sm:$0xff]
      %s1220 = scalar_lea.vmem %s1126, 1632
      %v1221 = vld [vmem:[%s1220] ss:$2 sm:$0xff]
      %s1222 = scalar_lea.vmem %s1126, 1728
      %v1223 = vld [vmem:[%s1222] ss:$2 sm:$0xff]
      %s1224 = scalar_lea.vmem %s1126, 1744
      %v1225 = vld [vmem:[%s1224] ss:$2 sm:$0xff]
      %s1226 = scalar_lea.vmem %s1126, 1760
      %v1227 = vld [vmem:[%s1226] ss:$2 sm:$0xff]
      %s1228 = scalar_lea.vmem %s1126, 1776
      %v1229 = vld [vmem:[%s1228] ss:$2 sm:$0xff]
      %s1230 = scalar_lea.vmem %s1126, 1872
      %v1231 = vld [vmem:[%s1230] ss:$2 sm:$0xff]
      %s1232 = scalar_lea.vmem %s1126, 1888
      %v1233 = vld [vmem:[%s1232] ss:$2 sm:$0xff]
      %s1234 = scalar_lea.vmem %s1126, 1904
      %v1235 = vld [vmem:[%s1234] ss:$2 sm:$0xff]
      %s1236 = scalar_lea.vmem %s1126, 1920
      %v1237 = vld [vmem:[%s1236] ss:$2 sm:$0xff]
      %s1238 = scalar_lea.vmem %s1126, 2016
      %v1239 = vld [vmem:[%s1238] ss:$2 sm:$0xff]
      %s1240 = scalar_lea.vmem %s1126, 2032
      %v1241 = vld [vmem:[%s1240] ss:$2 sm:$0xff]
      %s1242 = scalar_lea.vmem %s1126, 2048
      %v1243 = vld [vmem:[%s1242] ss:$2 sm:$0xff]
      %s1244 = scalar_lea.vmem %s1126, 2064
      %v1245 = vld [vmem:[%s1244] ss:$2 sm:$0xff]
      %s1246 = scalar_lea.vmem %s1126, 2160
      %v1247 = vld [vmem:[%s1246] ss:$2 sm:$0xff]
      %s1248 = scalar_lea.vmem %s1126, 2176
      %v1249 = vld [vmem:[%s1248] ss:$2 sm:$0xff]
      %s1250 = scalar_lea.vmem %s1126, 2192
      %v1251 = vld [vmem:[%s1250] ss:$2 sm:$0xff]
      %s1252 = scalar_lea.vmem %s1126, 2208
      %v1253 = vld [vmem:[%s1252] ss:$2 sm:$0xff]
      %s1254 = scalar_lea.vmem %s1126, 2304
      %v1255 = vld [vmem:[%s1254] ss:$2 sm:$0xff]
      %s1256 = scalar_lea.vmem %s1126, 2320
      %v1257 = vld [vmem:[%s1256] ss:$2 sm:$0xff]
      %s1258 = scalar_lea.vmem %s1126, 2336
      %v1259 = vld [vmem:[%s1258] ss:$2 sm:$0xff]
      %s1260 = scalar_lea.vmem %s1126, 2352
      %v1261 = vld [vmem:[%s1260] ss:$2 sm:$0xff]
      %s1262 = scalar_lea.vmem %s1126, 2448
      %v1263 = vld [vmem:[%s1262] ss:$2 sm:$0xff]
      %s1264 = scalar_lea.vmem %s1126, 2464
      %v1265 = vld [vmem:[%s1264] ss:$2 sm:$0xff]
      %s1266 = scalar_lea.vmem %s1126, 2480
      %v1267 = vld [vmem:[%s1266] ss:$2 sm:$0xff]
      %s1268 = scalar_lea.vmem %s1126, 2496
      %v1269 = vld [vmem:[%s1268] ss:$2 sm:$0xff]
      %s1270 = scalar_lea.vmem %s1126, 2592
      %v1271 = vld [vmem:[%s1270] ss:$2 sm:$0xff]
      %s1272 = scalar_lea.vmem %s1126, 2608
      %v1273 = vld [vmem:[%s1272] ss:$2 sm:$0xff]
      %s1274 = scalar_lea.vmem %s1126, 2624
      %v1275 = vld [vmem:[%s1274] ss:$2 sm:$0xff]
      %s1276 = scalar_lea.vmem %s1126, 2640
      %v1277 = vld [vmem:[%s1276] ss:$2 sm:$0xff]
      %s1278 = scalar_lea.vmem %s1126, 2736
      %v1279 = vld [vmem:[%s1278] ss:$2 sm:$0xff]
      %s1280 = scalar_lea.vmem %s1126, 2752
      %v1281 = vld [vmem:[%s1280] ss:$2 sm:$0xff]
      %s1282 = scalar_lea.vmem %s1126, 2768
      %v1283 = vld [vmem:[%s1282] ss:$2 sm:$0xff]
      %s1284 = scalar_lea.vmem %s1126, 2784
      %v1285 = vld [vmem:[%s1284] ss:$2 sm:$0xff]
      %s1286 = scalar_lea.vmem %s1126, 2880
      %v1287 = vld [vmem:[%s1286] ss:$2 sm:$0xff]
      %s1288 = scalar_lea.vmem %s1126, 2896
      %v1289 = vld [vmem:[%s1288] ss:$2 sm:$0xff]
      %s1290 = scalar_lea.vmem %s1126, 2912
      %v1291 = vld [vmem:[%s1290] ss:$2 sm:$0xff]
      %s1292 = scalar_lea.vmem %s1126, 2928
      %v1293 = vld [vmem:[%s1292] ss:$2 sm:$0xff]
      %s1294 = scalar_lea.vmem %s1126, 3024
      %v1295 = vld [vmem:[%s1294] ss:$2 sm:$0xff]
      %s1296 = scalar_lea.vmem %s1126, 3040
      %v1297 = vld [vmem:[%s1296] ss:$2 sm:$0xff]
      %s1298 = scalar_lea.vmem %s1126, 3056
      %v1299 = vld [vmem:[%s1298] ss:$2 sm:$0xff]
      %s1300 = scalar_lea.vmem %s1126, 3072
      %v1301 = vld [vmem:[%s1300] ss:$2 sm:$0xff]
      %s1302 = scalar_lea.vmem %s1126, 3168
      %v1303 = vld [vmem:[%s1302] ss:$2 sm:$0xff]
      %s1304 = scalar_lea.vmem %s1126, 3184
      %v1305 = vld [vmem:[%s1304] ss:$2 sm:$0xff]
      %s1306 = scalar_lea.vmem %s1126, 3200
      %v1307 = vld [vmem:[%s1306] ss:$2 sm:$0xff]
      %s1308 = scalar_lea.vmem %s1126, 3216
      %v1309 = vld [vmem:[%s1308] ss:$2 sm:$0xff]
      %s1310 = scalar_lea.vmem %s1126, 3312
      %v1311 = vld [vmem:[%s1310] ss:$2 sm:$0xff]
      %s1312 = scalar_lea.vmem %s1126, 3328
      %v1313 = vld [vmem:[%s1312] ss:$2 sm:$0xff]
      %s1314 = scalar_lea.vmem %s1126, 3344
      %v1315 = vld [vmem:[%s1314] ss:$2 sm:$0xff]
      %s1316 = scalar_lea.vmem %s1126, 3360
      %v1317 = vld [vmem:[%s1316] ss:$2 sm:$0xff]
      %s1318 = scalar_lea.vmem %s1126, 3456
      %v1319 = vld [vmem:[%s1318] ss:$2 sm:$0xff]
      %s1320 = scalar_lea.vmem %s1126, 3472
      %v1321 = vld [vmem:[%s1320] ss:$2 sm:$0xff]
      %s1322 = scalar_lea.vmem %s1126, 3488
      %v1323 = vld [vmem:[%s1322] ss:$2 sm:$0xff]
      %s1324 = scalar_lea.vmem %s1126, 3504
      %v1325 = vld [vmem:[%s1324] ss:$2 sm:$0xff]
      %s1326 = scalar_lea.vmem %s1126, 3600
      %v1327 = vld [vmem:[%s1326] ss:$2 sm:$0xff]
      %s1328 = scalar_lea.vmem %s1126, 3616
      %v1329 = vld [vmem:[%s1328] ss:$2 sm:$0xff]
      %s1330 = scalar_lea.vmem %s1126, 3632
      %v1331 = vld [vmem:[%s1330] ss:$2 sm:$0xff]
      %s1332 = scalar_lea.vmem %s1126, 3648
      %v1333 = vld [vmem:[%s1332] ss:$2 sm:$0xff]
      %s1334 = scalar_lea.vmem %s1126, 3744
      %v1335 = vld [vmem:[%s1334] ss:$2 sm:$0xff]
      %s1336 = scalar_lea.vmem %s1126, 3760
      %v1337 = vld [vmem:[%s1336] ss:$2 sm:$0xff]
      %s1338 = scalar_lea.vmem %s1126, 3776
      %v1339 = vld [vmem:[%s1338] ss:$2 sm:$0xff]
      %s1340 = scalar_lea.vmem %s1126, 3792
      %v1341 = vld [vmem:[%s1340] ss:$2 sm:$0xff]
      %s1342 = scalar_lea.vmem %s1126, 3888
      %v1343 = vld [vmem:[%s1342] ss:$2 sm:$0xff]
      %s1344 = scalar_lea.vmem %s1126, 3904
      %v1345 = vld [vmem:[%s1344] ss:$2 sm:$0xff]
      %s1346 = scalar_lea.vmem %s1126, 3920
      %v1347 = vld [vmem:[%s1346] ss:$2 sm:$0xff]
      %s1348 = scalar_lea.vmem %s1126, 3936
      %v1349 = vld [vmem:[%s1348] ss:$2 sm:$0xff]
      %s1350 = scalar_lea.vmem %s1126, 4032
      %v1351 = vld [vmem:[%s1350] ss:$2 sm:$0xff]
      %s1352 = scalar_lea.vmem %s1126, 4048
      %v1353 = vld [vmem:[%s1352] ss:$2 sm:$0xff]
      %s1354 = scalar_lea.vmem %s1126, 4064
      %v1355 = vld [vmem:[%s1354] ss:$2 sm:$0xff]
      %s1356 = scalar_lea.vmem %s1126, 4080
      %v1357 = vld [vmem:[%s1356] ss:$2 sm:$0xff]
      %s1358 = scalar_lea.vmem %s1126, 4176
      %v1359 = vld [vmem:[%s1358] ss:$2 sm:$0xff]
      %s1360 = scalar_lea.vmem %s1126, 4192
      %v1361 = vld [vmem:[%s1360] ss:$2 sm:$0xff]
      %s1362 = scalar_lea.vmem %s1126, 4208
      %v1363 = vld [vmem:[%s1362] ss:$2 sm:$0xff]
      %s1364 = scalar_lea.vmem %s1126, 4224
      %v1365 = vld [vmem:[%s1364] ss:$2 sm:$0xff]
      %s1366 = scalar_lea.vmem %s1126, 4320
      %v1367 = vld [vmem:[%s1366] ss:$2 sm:$0xff]
      %s1368 = scalar_lea.vmem %s1126, 4336
      %v1369 = vld [vmem:[%s1368] ss:$2 sm:$0xff]
      %s1370 = scalar_lea.vmem %s1126, 4352
      %v1371 = vld [vmem:[%s1370] ss:$2 sm:$0xff]
      %s1372 = scalar_lea.vmem %s1126, 4368
      %v1373 = vld [vmem:[%s1372] ss:$2 sm:$0xff]
      %s1374 = scalar_lea.vmem %s1126, 1
      %v1375 = vld [vmem:[%s1374] ss:$2 sm:$0xff]
      %s1376 = scalar_lea.vmem %s1126, 17
      %v1377 = vld [vmem:[%s1376] ss:$2 sm:$0xff]
      %s1378 = scalar_lea.vmem %s1126, 33
      %v1379 = vld [vmem:[%s1378] ss:$2 sm:$0xff]
      %s1380 = scalar_lea.vmem %s1126, 49
      %v1381 = vld [vmem:[%s1380] ss:$2 sm:$0xff]
      %s1382 = scalar_lea.vmem %s1126, 145
      %v1383 = vld [vmem:[%s1382] ss:$2 sm:$0xff]
      %s1384 = scalar_lea.vmem %s1126, 161
      %v1385 = vld [vmem:[%s1384] ss:$2 sm:$0xff]
      %s1386 = scalar_lea.vmem %s1126, 177
      %v1387 = vld [vmem:[%s1386] ss:$2 sm:$0xff]
      %s1388 = scalar_lea.vmem %s1126, 193
      %v1389 = vld [vmem:[%s1388] ss:$2 sm:$0xff]
      %s1390 = scalar_lea.vmem %s1126, 289
      %v1391 = vld [vmem:[%s1390] ss:$2 sm:$0xff]
      %s1392 = scalar_lea.vmem %s1126, 305
      %v1393 = vld [vmem:[%s1392] ss:$2 sm:$0xff]
      %s1394 = scalar_lea.vmem %s1126, 321
      %v1395 = vld [vmem:[%s1394] ss:$2 sm:$0xff]
      %s1396 = scalar_lea.vmem %s1126, 337
      %v1397 = vld [vmem:[%s1396] ss:$2 sm:$0xff]
      %s1398 = scalar_lea.vmem %s1126, 433
      %v1399 = vld [vmem:[%s1398] ss:$2 sm:$0xff]
      %s1400 = scalar_lea.vmem %s1126, 449
      %v1401 = vld [vmem:[%s1400] ss:$2 sm:$0xff]
      %s1402 = scalar_lea.vmem %s1126, 465
      %v1403 = vld [vmem:[%s1402] ss:$2 sm:$0xff]
      %s1404 = scalar_lea.vmem %s1126, 481
      %v1405 = vld [vmem:[%s1404] ss:$2 sm:$0xff]
      %s1406 = scalar_lea.vmem %s1126, 577
      %v1407 = vld [vmem:[%s1406] ss:$2 sm:$0xff]
      %s1408 = scalar_lea.vmem %s1126, 593
      %v1409 = vld [vmem:[%s1408] ss:$2 sm:$0xff]
      %s1410 = scalar_lea.vmem %s1126, 609
      %v1411 = vld [vmem:[%s1410] ss:$2 sm:$0xff]
      %s1412 = scalar_lea.vmem %s1126, 625
      %v1413 = vld [vmem:[%s1412] ss:$2 sm:$0xff]
      %s1414 = scalar_lea.vmem %s1126, 721
      %v1415 = vld [vmem:[%s1414] ss:$2 sm:$0xff]
      %s1416 = scalar_lea.vmem %s1126, 737
      %v1417 = vld [vmem:[%s1416] ss:$2 sm:$0xff]
      %s1418 = scalar_lea.vmem %s1126, 753
      %v1419 = vld [vmem:[%s1418] ss:$2 sm:$0xff]
      %s1420 = scalar_lea.vmem %s1126, 769
      %v1421 = vld [vmem:[%s1420] ss:$2 sm:$0xff]
      %s1422 = scalar_lea.vmem %s1126, 865
      %v1423 = vld [vmem:[%s1422] ss:$2 sm:$0xff]
      %s1424 = scalar_lea.vmem %s1126, 881
      %v1425 = vld [vmem:[%s1424] ss:$2 sm:$0xff]
      %s1426 = scalar_lea.vmem %s1126, 897
      %v1427 = vld [vmem:[%s1426] ss:$2 sm:$0xff]
      %s1428 = scalar_lea.vmem %s1126, 913
      %v1429 = vld [vmem:[%s1428] ss:$2 sm:$0xff]
      %s1430 = scalar_lea.vmem %s1126, 1009
      %v1431 = vld [vmem:[%s1430] ss:$2 sm:$0xff]
      %s1432 = scalar_lea.vmem %s1126, 1025
      %v1433 = vld [vmem:[%s1432] ss:$2 sm:$0xff]
      %s1434 = scalar_lea.vmem %s1126, 1041
      %v1435 = vld [vmem:[%s1434] ss:$2 sm:$0xff]
      %s1436 = scalar_lea.vmem %s1126, 1057
      %v1437 = vld [vmem:[%s1436] ss:$2 sm:$0xff]
      %s1438 = scalar_lea.vmem %s1126, 1153
      %v1439 = vld [vmem:[%s1438] ss:$2 sm:$0xff]
      %s1440 = scalar_lea.vmem %s1126, 1169
      %v1441 = vld [vmem:[%s1440] ss:$2 sm:$0xff]
      %s1442 = scalar_lea.vmem %s1126, 1185
      %v1443 = vld [vmem:[%s1442] ss:$2 sm:$0xff]
      %s1444 = scalar_lea.vmem %s1126, 1201
      %v1445 = vld [vmem:[%s1444] ss:$2 sm:$0xff]
      %s1446 = scalar_lea.vmem %s1126, 1297
      %v1447 = vld [vmem:[%s1446] ss:$2 sm:$0xff]
      %s1448 = scalar_lea.vmem %s1126, 1313
      %v1449 = vld [vmem:[%s1448] ss:$2 sm:$0xff]
      %s1450 = scalar_lea.vmem %s1126, 1329
      %v1451 = vld [vmem:[%s1450] ss:$2 sm:$0xff]
      %s1452 = scalar_lea.vmem %s1126, 1345
      %v1453 = vld [vmem:[%s1452] ss:$2 sm:$0xff]
      %s1454 = scalar_lea.vmem %s1126, 1441
      %v1455 = vld [vmem:[%s1454] ss:$2 sm:$0xff]
      %s1456 = scalar_lea.vmem %s1126, 1457
      %v1457 = vld [vmem:[%s1456] ss:$2 sm:$0xff]
      %s1458 = scalar_lea.vmem %s1126, 1473
      %v1459 = vld [vmem:[%s1458] ss:$2 sm:$0xff]
      %s1460 = scalar_lea.vmem %s1126, 1489
      %v1461 = vld [vmem:[%s1460] ss:$2 sm:$0xff]
      %s1462 = scalar_lea.vmem %s1126, 1585
      %v1463 = vld [vmem:[%s1462] ss:$2 sm:$0xff]
      %s1464 = scalar_lea.vmem %s1126, 1601
      %v1465 = vld [vmem:[%s1464] ss:$2 sm:$0xff]
      %s1466 = scalar_lea.vmem %s1126, 1617
      %v1467 = vld [vmem:[%s1466] ss:$2 sm:$0xff]
      %s1468 = scalar_lea.vmem %s1126, 1633
      %v1469 = vld [vmem:[%s1468] ss:$2 sm:$0xff]
      %s1470 = scalar_lea.vmem %s1126, 1729
      %v1471 = vld [vmem:[%s1470] ss:$2 sm:$0xff]
      %s1472 = scalar_lea.vmem %s1126, 1745
      %v1473 = vld [vmem:[%s1472] ss:$2 sm:$0xff]
      %s1474 = scalar_lea.vmem %s1126, 1761
      %v1475 = vld [vmem:[%s1474] ss:$2 sm:$0xff]
      %s1476 = scalar_lea.vmem %s1126, 1777
      %v1477 = vld [vmem:[%s1476] ss:$2 sm:$0xff]
      %s1478 = scalar_lea.vmem %s1126, 1873
      %v1479 = vld [vmem:[%s1478] ss:$2 sm:$0xff]
      %s1480 = scalar_lea.vmem %s1126, 1889
      %v1481 = vld [vmem:[%s1480] ss:$2 sm:$0xff]
      %s1482 = scalar_lea.vmem %s1126, 1905
      %v1483 = vld [vmem:[%s1482] ss:$2 sm:$0xff]
      %s1484 = scalar_lea.vmem %s1126, 1921
      %v1485 = vld [vmem:[%s1484] ss:$2 sm:$0xff]
      %s1486 = scalar_lea.vmem %s1126, 2017
      %v1487 = vld [vmem:[%s1486] ss:$2 sm:$0xff]
      %s1488 = scalar_lea.vmem %s1126, 2033
      %v1489 = vld [vmem:[%s1488] ss:$2 sm:$0xff]
      %s1490 = scalar_lea.vmem %s1126, 2049
      %v1491 = vld [vmem:[%s1490] ss:$2 sm:$0xff]
      %s1492 = scalar_lea.vmem %s1126, 2065
      %v1493 = vld [vmem:[%s1492] ss:$2 sm:$0xff]
      %s1494 = scalar_lea.vmem %s1126, 2161
      %v1495 = vld [vmem:[%s1494] ss:$2 sm:$0xff]
      %s1496 = scalar_lea.vmem %s1126, 2177
      %v1497 = vld [vmem:[%s1496] ss:$2 sm:$0xff]
      %s1498 = scalar_lea.vmem %s1126, 2193
      %v1499 = vld [vmem:[%s1498] ss:$2 sm:$0xff]
      %s1500 = scalar_lea.vmem %s1126, 2209
      %v1501 = vld [vmem:[%s1500] ss:$2 sm:$0xff]
      %s1502 = scalar_lea.vmem %s1126, 2305
      %v1503 = vld [vmem:[%s1502] ss:$2 sm:$0xff]
      %s1504 = scalar_lea.vmem %s1126, 2321
      %v1505 = vld [vmem:[%s1504] ss:$2 sm:$0xff]
      %s1506 = scalar_lea.vmem %s1126, 2337
      %v1507 = vld [vmem:[%s1506] ss:$2 sm:$0xff]
      %s1508 = scalar_lea.vmem %s1126, 2353
      %v1509 = vld [vmem:[%s1508] ss:$2 sm:$0xff]
      %s1510 = scalar_lea.vmem %s1126, 2449
      %v1511 = vld [vmem:[%s1510] ss:$2 sm:$0xff]
      %s1512 = scalar_lea.vmem %s1126, 2465
      %v1513 = vld [vmem:[%s1512] ss:$2 sm:$0xff]
      %s1514 = scalar_lea.vmem %s1126, 2481
      %v1515 = vld [vmem:[%s1514] ss:$2 sm:$0xff]
      %s1516 = scalar_lea.vmem %s1126, 2497
      %v1517 = vld [vmem:[%s1516] ss:$2 sm:$0xff]
      %s1518 = scalar_lea.vmem %s1126, 2593
      %v1519 = vld [vmem:[%s1518] ss:$2 sm:$0xff]
      %s1520 = scalar_lea.vmem %s1126, 2609
      %v1521 = vld [vmem:[%s1520] ss:$2 sm:$0xff]
      %s1522 = scalar_lea.vmem %s1126, 2625
      %v1523 = vld [vmem:[%s1522] ss:$2 sm:$0xff]
      %s1524 = scalar_lea.vmem %s1126, 2641
      %v1525 = vld [vmem:[%s1524] ss:$2 sm:$0xff]
      %s1526 = scalar_lea.vmem %s1126, 2737
      %v1527 = vld [vmem:[%s1526] ss:$2 sm:$0xff]
      %s1528 = scalar_lea.vmem %s1126, 2753
      %v1529 = vld [vmem:[%s1528] ss:$2 sm:$0xff]
      %s1530 = scalar_lea.vmem %s1126, 2769
      %v1531 = vld [vmem:[%s1530] ss:$2 sm:$0xff]
      %s1532 = scalar_lea.vmem %s1126, 2785
      %v1533 = vld [vmem:[%s1532] ss:$2 sm:$0xff]
      %s1534 = scalar_lea.vmem %s1126, 2881
      %v1535 = vld [vmem:[%s1534] ss:$2 sm:$0xff]
      %s1536 = scalar_lea.vmem %s1126, 2897
      %v1537 = vld [vmem:[%s1536] ss:$2 sm:$0xff]
      %s1538 = scalar_lea.vmem %s1126, 2913
      %v1539 = vld [vmem:[%s1538] ss:$2 sm:$0xff]
      %s1540 = scalar_lea.vmem %s1126, 2929
      %v1541 = vld [vmem:[%s1540] ss:$2 sm:$0xff]
      %s1542 = scalar_lea.vmem %s1126, 3025
      %v1543 = vld [vmem:[%s1542] ss:$2 sm:$0xff]
      %s1544 = scalar_lea.vmem %s1126, 3041
      %v1545 = vld [vmem:[%s1544] ss:$2 sm:$0xff]
      %s1546 = scalar_lea.vmem %s1126, 3057
      %v1547 = vld [vmem:[%s1546] ss:$2 sm:$0xff]
      %s1548 = scalar_lea.vmem %s1126, 3073
      %v1549 = vld [vmem:[%s1548] ss:$2 sm:$0xff]
      %s1550 = scalar_lea.vmem %s1126, 3169
      %v1551 = vld [vmem:[%s1550] ss:$2 sm:$0xff]
      %s1552 = scalar_lea.vmem %s1126, 3185
      %v1553 = vld [vmem:[%s1552] ss:$2 sm:$0xff]
      %s1554 = scalar_lea.vmem %s1126, 3201
      %v1555 = vld [vmem:[%s1554] ss:$2 sm:$0xff]
      %s1556 = scalar_lea.vmem %s1126, 3217
      %v1557 = vld [vmem:[%s1556] ss:$2 sm:$0xff]
      %s1558 = scalar_lea.vmem %s1126, 3313
      %v1559 = vld [vmem:[%s1558] ss:$2 sm:$0xff]
      %s1560 = scalar_lea.vmem %s1126, 3329
      %v1561 = vld [vmem:[%s1560] ss:$2 sm:$0xff]
      %s1562 = scalar_lea.vmem %s1126, 3345
      %v1563 = vld [vmem:[%s1562] ss:$2 sm:$0xff]
      %s1564 = scalar_lea.vmem %s1126, 3361
      %v1565 = vld [vmem:[%s1564] ss:$2 sm:$0xff]
      %s1566 = scalar_lea.vmem %s1126, 3457
      %v1567 = vld [vmem:[%s1566] ss:$2 sm:$0xff]
      %s1568 = scalar_lea.vmem %s1126, 3473
      %v1569 = vld [vmem:[%s1568] ss:$2 sm:$0xff]
      %s1570 = scalar_lea.vmem %s1126, 3489
      %v1571 = vld [vmem:[%s1570] ss:$2 sm:$0xff]
      %s1572 = scalar_lea.vmem %s1126, 3505
      %v1573 = vld [vmem:[%s1572] ss:$2 sm:$0xff]
      %s1574 = scalar_lea.vmem %s1126, 3601
      %v1575 = vld [vmem:[%s1574] ss:$2 sm:$0xff]
      %s1576 = scalar_lea.vmem %s1126, 3617
      %v1577 = vld [vmem:[%s1576] ss:$2 sm:$0xff]
      %s1578 = scalar_lea.vmem %s1126, 3633
      %v1579 = vld [vmem:[%s1578] ss:$2 sm:$0xff]
      %s1580 = scalar_lea.vmem %s1126, 3649
      %v1581 = vld [vmem:[%s1580] ss:$2 sm:$0xff]
      %s1582 = scalar_lea.vmem %s1126, 3745
      %v1583 = vld [vmem:[%s1582] ss:$2 sm:$0xff]
      %s1584 = scalar_lea.vmem %s1126, 3761
      %v1585 = vld [vmem:[%s1584] ss:$2 sm:$0xff]
      %s1586 = scalar_lea.vmem %s1126, 3777
      %v1587 = vld [vmem:[%s1586] ss:$2 sm:$0xff]
      %s1588 = scalar_lea.vmem %s1126, 3793
      %v1589 = vld [vmem:[%s1588] ss:$2 sm:$0xff]
      %s1590 = scalar_lea.vmem %s1126, 3889
      %v1591 = vld [vmem:[%s1590] ss:$2 sm:$0xff]
      %s1592 = scalar_lea.vmem %s1126, 3905
      %v1593 = vld [vmem:[%s1592] ss:$2 sm:$0xff]
      %s1594 = scalar_lea.vmem %s1126, 3921
      %v1595 = vld [vmem:[%s1594] ss:$2 sm:$0xff]
      %s1596 = scalar_lea.vmem %s1126, 3937
      %v1597 = vld [vmem:[%s1596] ss:$2 sm:$0xff]
      %s1598 = scalar_lea.vmem %s1126, 4033
      %v1599 = vld [vmem:[%s1598] ss:$2 sm:$0xff]
      %s1600 = scalar_lea.vmem %s1126, 4049
      %v1601 = vld [vmem:[%s1600] ss:$2 sm:$0xff]
      %s1602 = scalar_lea.vmem %s1126, 4065
      %v1603 = vld [vmem:[%s1602] ss:$2 sm:$0xff]
      %s1604 = scalar_lea.vmem %s1126, 4081
      %v1605 = vld [vmem:[%s1604] ss:$2 sm:$0xff]
      %s1606 = scalar_lea.vmem %s1126, 4177
      %v1607 = vld [vmem:[%s1606] ss:$2 sm:$0xff]
      %s1608 = scalar_lea.vmem %s1126, 4193
      %v1609 = vld [vmem:[%s1608] ss:$2 sm:$0xff]
      %s1610 = scalar_lea.vmem %s1126, 4209
      %v1611 = vld [vmem:[%s1610] ss:$2 sm:$0xff]
      %s1612 = scalar_lea.vmem %s1126, 4225
      %v1613 = vld [vmem:[%s1612] ss:$2 sm:$0xff]
      %s1614 = scalar_lea.vmem %s1126, 4321
      %v1615 = vld [vmem:[%s1614] ss:$2 sm:$0xff]
      %s1616 = scalar_lea.vmem %s1126, 4337
      %v1617 = vld [vmem:[%s1616] ss:$2 sm:$0xff]
      %s1618 = scalar_lea.vmem %s1126, 4353
      %v1619 = vld [vmem:[%s1618] ss:$2 sm:$0xff]
      %s1620 = scalar_lea.vmem %s1126, 4369
      %v1621 = vld [vmem:[%s1620] ss:$2 sm:$0xff]
      %s1622 = scalar_lea.vmem %s1126, 2
      %v1623 = vld [vmem:[%s1622] ss:$2 sm:$0xff]
      %s1624 = scalar_lea.vmem %s1126, 18
      %v1625 = vld [vmem:[%s1624] ss:$2 sm:$0xff]
      %s1626 = scalar_lea.vmem %s1126, 34
      %v1627 = vld [vmem:[%s1626] ss:$2 sm:$0xff]
      %s1628 = scalar_lea.vmem %s1126, 50
      %v1629 = vld [vmem:[%s1628] ss:$2 sm:$0xff]
      %s1630 = scalar_lea.vmem %s1126, 146
      %v1631 = vld [vmem:[%s1630] ss:$2 sm:$0xff]
      %s1632 = scalar_lea.vmem %s1126, 162
      %v1633 = vld [vmem:[%s1632] ss:$2 sm:$0xff]
      %s1634 = scalar_lea.vmem %s1126, 178
      %v1635 = vld [vmem:[%s1634] ss:$2 sm:$0xff]
      %s1636 = scalar_lea.vmem %s1126, 194
      %v1637 = vld [vmem:[%s1636] ss:$2 sm:$0xff]
      %s1638 = scalar_lea.vmem %s1126, 290
      %v1639 = vld [vmem:[%s1638] ss:$2 sm:$0xff]
      %s1640 = scalar_lea.vmem %s1126, 306
      %v1641 = vld [vmem:[%s1640] ss:$2 sm:$0xff]
      %s1642 = scalar_lea.vmem %s1126, 322
      %v1643 = vld [vmem:[%s1642] ss:$2 sm:$0xff]
      %s1644 = scalar_lea.vmem %s1126, 338
      %v1645 = vld [vmem:[%s1644] ss:$2 sm:$0xff]
      %s1646 = scalar_lea.vmem %s1126, 434
      %v1647 = vld [vmem:[%s1646] ss:$2 sm:$0xff]
      %s1648 = scalar_lea.vmem %s1126, 450
      %v1649 = vld [vmem:[%s1648] ss:$2 sm:$0xff]
      %s1650 = scalar_lea.vmem %s1126, 466
      %v1651 = vld [vmem:[%s1650] ss:$2 sm:$0xff]
      %s1652 = scalar_lea.vmem %s1126, 482
      %v1653 = vld [vmem:[%s1652] ss:$2 sm:$0xff]
      %s1654 = scalar_lea.vmem %s1126, 578
      %v1655 = vld [vmem:[%s1654] ss:$2 sm:$0xff]
      %s1656 = scalar_lea.vmem %s1126, 594
      %v1657 = vld [vmem:[%s1656] ss:$2 sm:$0xff]
      %s1658 = scalar_lea.vmem %s1126, 610
      %v1659 = vld [vmem:[%s1658] ss:$2 sm:$0xff]
      %s1660 = scalar_lea.vmem %s1126, 626
      %v1661 = vld [vmem:[%s1660] ss:$2 sm:$0xff]
      %s1662 = scalar_lea.vmem %s1126, 722
      %v1663 = vld [vmem:[%s1662] ss:$2 sm:$0xff]
      %s1664 = scalar_lea.vmem %s1126, 738
      %v1665 = vld [vmem:[%s1664] ss:$2 sm:$0xff]
      %s1666 = scalar_lea.vmem %s1126, 754
      %v1667 = vld [vmem:[%s1666] ss:$2 sm:$0xff]
      %s1668 = scalar_lea.vmem %s1126, 770
      %v1669 = vld [vmem:[%s1668] ss:$2 sm:$0xff]
      %s1670 = scalar_lea.vmem %s1126, 866
      %v1671 = vld [vmem:[%s1670] ss:$2 sm:$0xff]
      %s1672 = scalar_lea.vmem %s1126, 882
      %v1673 = vld [vmem:[%s1672] ss:$2 sm:$0xff]
      %s1674 = scalar_lea.vmem %s1126, 898
      %v1675 = vld [vmem:[%s1674] ss:$2 sm:$0xff]
      %s1676 = scalar_lea.vmem %s1126, 914
      %v1677 = vld [vmem:[%s1676] ss:$2 sm:$0xff]
      %s1678 = scalar_lea.vmem %s1126, 1010
      %v1679 = vld [vmem:[%s1678] ss:$2 sm:$0xff]
      %s1680 = scalar_lea.vmem %s1126, 1026
      %v1681 = vld [vmem:[%s1680] ss:$2 sm:$0xff]
      %s1682 = scalar_lea.vmem %s1126, 1042
      %v1683 = vld [vmem:[%s1682] ss:$2 sm:$0xff]
      %s1684 = scalar_lea.vmem %s1126, 1058
      %v1685 = vld [vmem:[%s1684] ss:$2 sm:$0xff]
      %s1686 = scalar_lea.vmem %s1126, 1154
      %v1687 = vld [vmem:[%s1686] ss:$2 sm:$0xff]
      %s1688 = scalar_lea.vmem %s1126, 1170
      %v1689 = vld [vmem:[%s1688] ss:$2 sm:$0xff]
      %s1690 = scalar_lea.vmem %s1126, 1186
      %v1691 = vld [vmem:[%s1690] ss:$2 sm:$0xff]
      %s1692 = scalar_lea.vmem %s1126, 1202
      %v1693 = vld [vmem:[%s1692] ss:$2 sm:$0xff]
      %s1694 = scalar_lea.vmem %s1126, 1298
      %v1695 = vld [vmem:[%s1694] ss:$2 sm:$0xff]
      %s1696 = scalar_lea.vmem %s1126, 1314
      %v1697 = vld [vmem:[%s1696] ss:$2 sm:$0xff]
      %s1698 = scalar_lea.vmem %s1126, 1330
      %v1699 = vld [vmem:[%s1698] ss:$2 sm:$0xff]
      %s1700 = scalar_lea.vmem %s1126, 1346
      %v1701 = vld [vmem:[%s1700] ss:$2 sm:$0xff]
      %s1702 = scalar_lea.vmem %s1126, 1442
      %v1703 = vld [vmem:[%s1702] ss:$2 sm:$0xff]
      %s1704 = scalar_lea.vmem %s1126, 1458
      %v1705 = vld [vmem:[%s1704] ss:$2 sm:$0xff]
      %s1706 = scalar_lea.vmem %s1126, 1474
      %v1707 = vld [vmem:[%s1706] ss:$2 sm:$0xff]
      %s1708 = scalar_lea.vmem %s1126, 1490
      %v1709 = vld [vmem:[%s1708] ss:$2 sm:$0xff]
      %s1710 = scalar_lea.vmem %s1126, 1586
      %v1711 = vld [vmem:[%s1710] ss:$2 sm:$0xff]
      %s1712 = scalar_lea.vmem %s1126, 1602
      %v1713 = vld [vmem:[%s1712] ss:$2 sm:$0xff]
      %s1714 = scalar_lea.vmem %s1126, 1618
      %v1715 = vld [vmem:[%s1714] ss:$2 sm:$0xff]
      %s1716 = scalar_lea.vmem %s1126, 1634
      %v1717 = vld [vmem:[%s1716] ss:$2 sm:$0xff]
      %s1718 = scalar_lea.vmem %s1126, 1730
      %v1719 = vld [vmem:[%s1718] ss:$2 sm:$0xff]
      %s1720 = scalar_lea.vmem %s1126, 1746
      %v1721 = vld [vmem:[%s1720] ss:$2 sm:$0xff]
      %s1722 = scalar_lea.vmem %s1126, 1762
      %v1723 = vld [vmem:[%s1722] ss:$2 sm:$0xff]
      %s1724 = scalar_lea.vmem %s1126, 1778
      %v1725 = vld [vmem:[%s1724] ss:$2 sm:$0xff]
      %s1726 = scalar_lea.vmem %s1126, 1874
      %v1727 = vld [vmem:[%s1726] ss:$2 sm:$0xff]
      %s1728 = scalar_lea.vmem %s1126, 1890
      %v1729 = vld [vmem:[%s1728] ss:$2 sm:$0xff]
      %s1730 = scalar_lea.vmem %s1126, 1906
      %v1731 = vld [vmem:[%s1730] ss:$2 sm:$0xff]
      %s1732 = scalar_lea.vmem %s1126, 1922
      %v1733 = vld [vmem:[%s1732] ss:$2 sm:$0xff]
      %s1734 = scalar_lea.vmem %s1126, 2018
      %v1735 = vld [vmem:[%s1734] ss:$2 sm:$0xff]
      %s1736 = scalar_lea.vmem %s1126, 2034
      %v1737 = vld [vmem:[%s1736] ss:$2 sm:$0xff]
      %s1738 = scalar_lea.vmem %s1126, 2050
      %v1739 = vld [vmem:[%s1738] ss:$2 sm:$0xff]
      %s1740 = scalar_lea.vmem %s1126, 2066
      %v1741 = vld [vmem:[%s1740] ss:$2 sm:$0xff]
      %s1742 = scalar_lea.vmem %s1126, 2162
      %v1743 = vld [vmem:[%s1742] ss:$2 sm:$0xff]
      %s1744 = scalar_lea.vmem %s1126, 2178
      %v1745 = vld [vmem:[%s1744] ss:$2 sm:$0xff]
      %s1746 = scalar_lea.vmem %s1126, 2194
      %v1747 = vld [vmem:[%s1746] ss:$2 sm:$0xff]
      %s1748 = scalar_lea.vmem %s1126, 2210
      %v1749 = vld [vmem:[%s1748] ss:$2 sm:$0xff]
      %s1750 = scalar_lea.vmem %s1126, 2306
      %v1751 = vld [vmem:[%s1750] ss:$2 sm:$0xff]
      %s1752 = scalar_lea.vmem %s1126, 2322
      %v1753 = vld [vmem:[%s1752] ss:$2 sm:$0xff]
      %s1754 = scalar_lea.vmem %s1126, 2338
      %v1755 = vld [vmem:[%s1754] ss:$2 sm:$0xff]
      %s1756 = scalar_lea.vmem %s1126, 2354
      %v1757 = vld [vmem:[%s1756] ss:$2 sm:$0xff]
      %s1758 = scalar_lea.vmem %s1126, 2450
      %v1759 = vld [vmem:[%s1758] ss:$2 sm:$0xff]
      %s1760 = scalar_lea.vmem %s1126, 2466
      %v1761 = vld [vmem:[%s1760] ss:$2 sm:$0xff]
      %s1762 = scalar_lea.vmem %s1126, 2482
      %v1763 = vld [vmem:[%s1762] ss:$2 sm:$0xff]
      %s1764 = scalar_lea.vmem %s1126, 2498
      %v1765 = vld [vmem:[%s1764] ss:$2 sm:$0xff]
      %s1766 = scalar_lea.vmem %s1126, 2594
      %v1767 = vld [vmem:[%s1766] ss:$2 sm:$0xff]
      %s1768 = scalar_lea.vmem %s1126, 2610
      %v1769 = vld [vmem:[%s1768] ss:$2 sm:$0xff]
      %s1770 = scalar_lea.vmem %s1126, 2626
      %v1771 = vld [vmem:[%s1770] ss:$2 sm:$0xff]
      %s1772 = scalar_lea.vmem %s1126, 2642
      %v1773 = vld [vmem:[%s1772] ss:$2 sm:$0xff]
      %s1774 = scalar_lea.vmem %s1126, 2738
      %v1775 = vld [vmem:[%s1774] ss:$2 sm:$0xff]
      %s1776 = scalar_lea.vmem %s1126, 2754
      %v1777 = vld [vmem:[%s1776] ss:$2 sm:$0xff]
      %s1778 = scalar_lea.vmem %s1126, 2770
      %v1779 = vld [vmem:[%s1778] ss:$2 sm:$0xff]
      %s1780 = scalar_lea.vmem %s1126, 2786
      %v1781 = vld [vmem:[%s1780] ss:$2 sm:$0xff]
      %s1782 = scalar_lea.vmem %s1126, 2882
      %v1783 = vld [vmem:[%s1782] ss:$2 sm:$0xff]
      %s1784 = scalar_lea.vmem %s1126, 2898
      %v1785 = vld [vmem:[%s1784] ss:$2 sm:$0xff]
      %s1786 = scalar_lea.vmem %s1126, 2914
      %v1787 = vld [vmem:[%s1786] ss:$2 sm:$0xff]
      %s1788 = scalar_lea.vmem %s1126, 2930
      %v1789 = vld [vmem:[%s1788] ss:$2 sm:$0xff]
      %s1790 = scalar_lea.vmem %s1126, 3026
      %v1791 = vld [vmem:[%s1790] ss:$2 sm:$0xff]
      %s1792 = scalar_lea.vmem %s1126, 3042
      %v1793 = vld [vmem:[%s1792] ss:$2 sm:$0xff]
      %s1794 = scalar_lea.vmem %s1126, 3058
      %v1795 = vld [vmem:[%s1794] ss:$2 sm:$0xff]
      %s1796 = scalar_lea.vmem %s1126, 3074
      %v1797 = vld [vmem:[%s1796] ss:$2 sm:$0xff]
      %s1798 = scalar_lea.vmem %s1126, 3170
      %v1799 = vld [vmem:[%s1798] ss:$2 sm:$0xff]
      %s1800 = scalar_lea.vmem %s1126, 3186
      %v1801 = vld [vmem:[%s1800] ss:$2 sm:$0xff]
      %s1802 = scalar_lea.vmem %s1126, 3202
      %v1803 = vld [vmem:[%s1802] ss:$2 sm:$0xff]
      %s1804 = scalar_lea.vmem %s1126, 3218
      %v1805 = vld [vmem:[%s1804] ss:$2 sm:$0xff]
      %s1806 = scalar_lea.vmem %s1126, 3314
      %v1807 = vld [vmem:[%s1806] ss:$2 sm:$0xff]
      %s1808 = scalar_lea.vmem %s1126, 3330
      %v1809 = vld [vmem:[%s1808] ss:$2 sm:$0xff]
      %s1810 = scalar_lea.vmem %s1126, 3346
      %v1811 = vld [vmem:[%s1810] ss:$2 sm:$0xff]
      %s1812 = scalar_lea.vmem %s1126, 3362
      %v1813 = vld [vmem:[%s1812] ss:$2 sm:$0xff]
      %s1814 = scalar_lea.vmem %s1126, 3458
      %v1815 = vld [vmem:[%s1814] ss:$2 sm:$0xff]
      %s1816 = scalar_lea.vmem %s1126, 3474
      %v1817 = vld [vmem:[%s1816] ss:$2 sm:$0xff]
      %s1818 = scalar_lea.vmem %s1126, 3490
      %v1819 = vld [vmem:[%s1818] ss:$2 sm:$0xff]
      %s1820 = scalar_lea.vmem %s1126, 3506
      %v1821 = vld [vmem:[%s1820] ss:$2 sm:$0xff]
      %s1822 = scalar_lea.vmem %s1126, 3602
      %v1823 = vld [vmem:[%s1822] ss:$2 sm:$0xff]
      %s1824 = scalar_lea.vmem %s1126, 3618
      %v1825 = vld [vmem:[%s1824] ss:$2 sm:$0xff]
      %s1826 = scalar_lea.vmem %s1126, 3634
      %v1827 = vld [vmem:[%s1826] ss:$2 sm:$0xff]
      %s1828 = scalar_lea.vmem %s1126, 3650
      %v1829 = vld [vmem:[%s1828] ss:$2 sm:$0xff]
      %s1830 = scalar_lea.vmem %s1126, 3746
      %v1831 = vld [vmem:[%s1830] ss:$2 sm:$0xff]
      %s1832 = scalar_lea.vmem %s1126, 3762
      %v1833 = vld [vmem:[%s1832] ss:$2 sm:$0xff]
      %s1834 = scalar_lea.vmem %s1126, 3778
      %v1835 = vld [vmem:[%s1834] ss:$2 sm:$0xff]
      %s1836 = scalar_lea.vmem %s1126, 3794
      %v1837 = vld [vmem:[%s1836] ss:$2 sm:$0xff]
      %s1838 = scalar_lea.vmem %s1126, 3890
      %v1839 = vld [vmem:[%s1838] ss:$2 sm:$0xff]
      %s1840 = scalar_lea.vmem %s1126, 3906
      %v1841 = vld [vmem:[%s1840] ss:$2 sm:$0xff]
      %s1842 = scalar_lea.vmem %s1126, 3922
      %v1843 = vld [vmem:[%s1842] ss:$2 sm:$0xff]
      %s1844 = scalar_lea.vmem %s1126, 3938
      %v1845 = vld [vmem:[%s1844] ss:$2 sm:$0xff]
      %s1846 = scalar_lea.vmem %s1126, 4034
      %v1847 = vld [vmem:[%s1846] ss:$2 sm:$0xff]
      %s1848 = scalar_lea.vmem %s1126, 4050
      %v1849 = vld [vmem:[%s1848] ss:$2 sm:$0xff]
      %s1850 = scalar_lea.vmem %s1126, 4066
      %v1851 = vld [vmem:[%s1850] ss:$2 sm:$0xff]
      %s1852 = scalar_lea.vmem %s1126, 4082
      %v1853 = vld [vmem:[%s1852] ss:$2 sm:$0xff]
      %s1854 = scalar_lea.vmem %s1126, 4178
      %v1855 = vld [vmem:[%s1854] ss:$2 sm:$0xff]
      %s1856 = scalar_lea.vmem %s1126, 4194
      %v1857 = vld [vmem:[%s1856] ss:$2 sm:$0xff]
      %s1858 = scalar_lea.vmem %s1126, 4210
      %v1859 = vld [vmem:[%s1858] ss:$2 sm:$0xff]
      %s1860 = scalar_lea.vmem %s1126, 4226
      %v1861 = vld [vmem:[%s1860] ss:$2 sm:$0xff]
      %s1862 = scalar_lea.vmem %s1126, 4322
      %v1863 = vld [vmem:[%s1862] ss:$2 sm:$0xff]
      %s1864 = scalar_lea.vmem %s1126, 4338
      %v1865 = vld [vmem:[%s1864] ss:$2 sm:$0xff]
      %s1866 = scalar_lea.vmem %s1126, 4354
      %v1867 = vld [vmem:[%s1866] ss:$2 sm:$0xff]
      %s1868 = scalar_lea.vmem %s1126, 4370
      %v1869 = vld [vmem:[%s1868] ss:$2 sm:$0xff]
      %s1870 = scalar_lea.vmem %s379, 144
      %v1871 = vld [vmem:[%s1870] ss:$2 sm:$0xff]
      %s1872 = scalar_lea.vmem %s1870, 16
      %v1873 = vld [vmem:[%s1872] ss:$2 sm:$0xff]
      %s1874 = scalar_lea.vmem %s1870, 32
      %v1875 = vld [vmem:[%s1874] ss:$2 sm:$0xff]
      %s1876 = scalar_lea.vmem %s1870, 48
      %v1877 = vld [vmem:[%s1876] ss:$2 sm:$0xff]
      %s1878 = scalar_lea.vmem %s1870, 144
      %v1879 = vld [vmem:[%s1878] ss:$2 sm:$0xff]
      %s1880 = scalar_lea.vmem %s1870, 160
      %v1881 = vld [vmem:[%s1880] ss:$2 sm:$0xff]
      %s1882 = scalar_lea.vmem %s1870, 176
      %v1883 = vld [vmem:[%s1882] ss:$2 sm:$0xff]
      %s1884 = scalar_lea.vmem %s1870, 192
      %v1885 = vld [vmem:[%s1884] ss:$2 sm:$0xff]
      %s1886 = scalar_lea.vmem %s1870, 288
      %v1887 = vld [vmem:[%s1886] ss:$2 sm:$0xff]
      %s1888 = scalar_lea.vmem %s1870, 304
      %v1889 = vld [vmem:[%s1888] ss:$2 sm:$0xff]
      %s1890 = scalar_lea.vmem %s1870, 320
      %v1891 = vld [vmem:[%s1890] ss:$2 sm:$0xff]
      %s1892 = scalar_lea.vmem %s1870, 336
      %v1893 = vld [vmem:[%s1892] ss:$2 sm:$0xff]
      %s1894 = scalar_lea.vmem %s1870, 432
      %v1895 = vld [vmem:[%s1894] ss:$2 sm:$0xff]
      %s1896 = scalar_lea.vmem %s1870, 448
      %v1897 = vld [vmem:[%s1896] ss:$2 sm:$0xff]
      %s1898 = scalar_lea.vmem %s1870, 464
      %v1899 = vld [vmem:[%s1898] ss:$2 sm:$0xff]
      %s1900 = scalar_lea.vmem %s1870, 480
      %v1901 = vld [vmem:[%s1900] ss:$2 sm:$0xff]
      %s1902 = scalar_lea.vmem %s1870, 576
      %v1903 = vld [vmem:[%s1902] ss:$2 sm:$0xff]
      %s1904 = scalar_lea.vmem %s1870, 592
      %v1905 = vld [vmem:[%s1904] ss:$2 sm:$0xff]
      %s1906 = scalar_lea.vmem %s1870, 608
      %v1907 = vld [vmem:[%s1906] ss:$2 sm:$0xff]
      %s1908 = scalar_lea.vmem %s1870, 624
      %v1909 = vld [vmem:[%s1908] ss:$2 sm:$0xff]
      %s1910 = scalar_lea.vmem %s1870, 720
      %v1911 = vld [vmem:[%s1910] ss:$2 sm:$0xff]
      %s1912 = scalar_lea.vmem %s1870, 736
      %v1913 = vld [vmem:[%s1912] ss:$2 sm:$0xff]
      %s1914 = scalar_lea.vmem %s1870, 752
      %v1915 = vld [vmem:[%s1914] ss:$2 sm:$0xff]
      %s1916 = scalar_lea.vmem %s1870, 768
      %v1917 = vld [vmem:[%s1916] ss:$2 sm:$0xff]
      %s1918 = scalar_lea.vmem %s1870, 864
      %v1919 = vld [vmem:[%s1918] ss:$2 sm:$0xff]
      %s1920 = scalar_lea.vmem %s1870, 880
      %v1921 = vld [vmem:[%s1920] ss:$2 sm:$0xff]
      %s1922 = scalar_lea.vmem %s1870, 896
      %v1923 = vld [vmem:[%s1922] ss:$2 sm:$0xff]
      %s1924 = scalar_lea.vmem %s1870, 912
      %v1925 = vld [vmem:[%s1924] ss:$2 sm:$0xff]
      %s1926 = scalar_lea.vmem %s1870, 1008
      %v1927 = vld [vmem:[%s1926] ss:$2 sm:$0xff]
      %s1928 = scalar_lea.vmem %s1870, 1024
      %v1929 = vld [vmem:[%s1928] ss:$2 sm:$0xff]
      %s1930 = scalar_lea.vmem %s1870, 1040
      %v1931 = vld [vmem:[%s1930] ss:$2 sm:$0xff]
      %s1932 = scalar_lea.vmem %s1870, 1056
      %v1933 = vld [vmem:[%s1932] ss:$2 sm:$0xff]
      %s1934 = scalar_lea.vmem %s1870, 1152
      %v1935 = vld [vmem:[%s1934] ss:$2 sm:$0xff]
      %s1936 = scalar_lea.vmem %s1870, 1168
      %v1937 = vld [vmem:[%s1936] ss:$2 sm:$0xff]
      %s1938 = scalar_lea.vmem %s1870, 1184
      %v1939 = vld [vmem:[%s1938] ss:$2 sm:$0xff]
      %s1940 = scalar_lea.vmem %s1870, 1200
      %v1941 = vld [vmem:[%s1940] ss:$2 sm:$0xff]
      %s1942 = scalar_lea.vmem %s1870, 1296
      %v1943 = vld [vmem:[%s1942] ss:$2 sm:$0xff]
      %s1944 = scalar_lea.vmem %s1870, 1312
      %v1945 = vld [vmem:[%s1944] ss:$2 sm:$0xff]
      %s1946 = scalar_lea.vmem %s1870, 1328
      %v1947 = vld [vmem:[%s1946] ss:$2 sm:$0xff]
      %s1948 = scalar_lea.vmem %s1870, 1344
      %v1949 = vld [vmem:[%s1948] ss:$2 sm:$0xff]
      %s1950 = scalar_lea.vmem %s1870, 1440
      %v1951 = vld [vmem:[%s1950] ss:$2 sm:$0xff]
      %s1952 = scalar_lea.vmem %s1870, 1456
      %v1953 = vld [vmem:[%s1952] ss:$2 sm:$0xff]
      %s1954 = scalar_lea.vmem %s1870, 1472
      %v1955 = vld [vmem:[%s1954] ss:$2 sm:$0xff]
      %s1956 = scalar_lea.vmem %s1870, 1488
      %v1957 = vld [vmem:[%s1956] ss:$2 sm:$0xff]
      %s1958 = scalar_lea.vmem %s1870, 1584
      %v1959 = vld [vmem:[%s1958] ss:$2 sm:$0xff]
      %s1960 = scalar_lea.vmem %s1870, 1600
      %v1961 = vld [vmem:[%s1960] ss:$2 sm:$0xff]
      %s1962 = scalar_lea.vmem %s1870, 1616
      %v1963 = vld [vmem:[%s1962] ss:$2 sm:$0xff]
      %s1964 = scalar_lea.vmem %s1870, 1632
      %v1965 = vld [vmem:[%s1964] ss:$2 sm:$0xff]
      %s1966 = scalar_lea.vmem %s1870, 1728
      %v1967 = vld [vmem:[%s1966] ss:$2 sm:$0xff]
      %s1968 = scalar_lea.vmem %s1870, 1744
      %v1969 = vld [vmem:[%s1968] ss:$2 sm:$0xff]
      %s1970 = scalar_lea.vmem %s1870, 1760
      %v1971 = vld [vmem:[%s1970] ss:$2 sm:$0xff]
      %s1972 = scalar_lea.vmem %s1870, 1776
      %v1973 = vld [vmem:[%s1972] ss:$2 sm:$0xff]
      %s1974 = scalar_lea.vmem %s1870, 1872
      %v1975 = vld [vmem:[%s1974] ss:$2 sm:$0xff]
      %s1976 = scalar_lea.vmem %s1870, 1888
      %v1977 = vld [vmem:[%s1976] ss:$2 sm:$0xff]
      %s1978 = scalar_lea.vmem %s1870, 1904
      %v1979 = vld [vmem:[%s1978] ss:$2 sm:$0xff]
      %s1980 = scalar_lea.vmem %s1870, 1920
      %v1981 = vld [vmem:[%s1980] ss:$2 sm:$0xff]
      %s1982 = scalar_lea.vmem %s1870, 2016
      %v1983 = vld [vmem:[%s1982] ss:$2 sm:$0xff]
      %s1984 = scalar_lea.vmem %s1870, 2032
      %v1985 = vld [vmem:[%s1984] ss:$2 sm:$0xff]
      %s1986 = scalar_lea.vmem %s1870, 2048
      %v1987 = vld [vmem:[%s1986] ss:$2 sm:$0xff]
      %s1988 = scalar_lea.vmem %s1870, 2064
      %v1989 = vld [vmem:[%s1988] ss:$2 sm:$0xff]
      %s1990 = scalar_lea.vmem %s1870, 2160
      %v1991 = vld [vmem:[%s1990] ss:$2 sm:$0xff]
      %s1992 = scalar_lea.vmem %s1870, 2176
      %v1993 = vld [vmem:[%s1992] ss:$2 sm:$0xff]
      %s1994 = scalar_lea.vmem %s1870, 2192
      %v1995 = vld [vmem:[%s1994] ss:$2 sm:$0xff]
      %s1996 = scalar_lea.vmem %s1870, 2208
      %v1997 = vld [vmem:[%s1996] ss:$2 sm:$0xff]
      %s1998 = scalar_lea.vmem %s1870, 2304
      %v1999 = vld [vmem:[%s1998] ss:$2 sm:$0xff]
      %s2000 = scalar_lea.vmem %s1870, 2320
      %v2001 = vld [vmem:[%s2000] ss:$2 sm:$0xff]
      %s2002 = scalar_lea.vmem %s1870, 2336
      %v2003 = vld [vmem:[%s2002] ss:$2 sm:$0xff]
      %s2004 = scalar_lea.vmem %s1870, 2352
      %v2005 = vld [vmem:[%s2004] ss:$2 sm:$0xff]
      %s2006 = scalar_lea.vmem %s1870, 2448
      %v2007 = vld [vmem:[%s2006] ss:$2 sm:$0xff]
      %s2008 = scalar_lea.vmem %s1870, 2464
      %v2009 = vld [vmem:[%s2008] ss:$2 sm:$0xff]
      %s2010 = scalar_lea.vmem %s1870, 2480
      %v2011 = vld [vmem:[%s2010] ss:$2 sm:$0xff]
      %s2012 = scalar_lea.vmem %s1870, 2496
      %v2013 = vld [vmem:[%s2012] ss:$2 sm:$0xff]
      %s2014 = scalar_lea.vmem %s1870, 2592
      %v2015 = vld [vmem:[%s2014] ss:$2 sm:$0xff]
      %s2016 = scalar_lea.vmem %s1870, 2608
      %v2017 = vld [vmem:[%s2016] ss:$2 sm:$0xff]
      %s2018 = scalar_lea.vmem %s1870, 2624
      %v2019 = vld [vmem:[%s2018] ss:$2 sm:$0xff]
      %s2020 = scalar_lea.vmem %s1870, 2640
      %v2021 = vld [vmem:[%s2020] ss:$2 sm:$0xff]
      %s2022 = scalar_lea.vmem %s1870, 2736
      %v2023 = vld [vmem:[%s2022] ss:$2 sm:$0xff]
      %s2024 = scalar_lea.vmem %s1870, 2752
      %v2025 = vld [vmem:[%s2024] ss:$2 sm:$0xff]
      %s2026 = scalar_lea.vmem %s1870, 2768
      %v2027 = vld [vmem:[%s2026] ss:$2 sm:$0xff]
      %s2028 = scalar_lea.vmem %s1870, 2784
      %v2029 = vld [vmem:[%s2028] ss:$2 sm:$0xff]
      %s2030 = scalar_lea.vmem %s1870, 2880
      %v2031 = vld [vmem:[%s2030] ss:$2 sm:$0xff]
      %s2032 = scalar_lea.vmem %s1870, 2896
      %v2033 = vld [vmem:[%s2032] ss:$2 sm:$0xff]
      %s2034 = scalar_lea.vmem %s1870, 2912
      %v2035 = vld [vmem:[%s2034] ss:$2 sm:$0xff]
      %s2036 = scalar_lea.vmem %s1870, 2928
      %v2037 = vld [vmem:[%s2036] ss:$2 sm:$0xff]
      %s2038 = scalar_lea.vmem %s1870, 3024
      %v2039 = vld [vmem:[%s2038] ss:$2 sm:$0xff]
      %s2040 = scalar_lea.vmem %s1870, 3040
      %v2041 = vld [vmem:[%s2040] ss:$2 sm:$0xff]
      %s2042 = scalar_lea.vmem %s1870, 3056
      %v2043 = vld [vmem:[%s2042] ss:$2 sm:$0xff]
      %s2044 = scalar_lea.vmem %s1870, 3072
      %v2045 = vld [vmem:[%s2044] ss:$2 sm:$0xff]
      %s2046 = scalar_lea.vmem %s1870, 3168
      %v2047 = vld [vmem:[%s2046] ss:$2 sm:$0xff]
      %s2048 = scalar_lea.vmem %s1870, 3184
      %v2049 = vld [vmem:[%s2048] ss:$2 sm:$0xff]
      %s2050 = scalar_lea.vmem %s1870, 3200
      %v2051 = vld [vmem:[%s2050] ss:$2 sm:$0xff]
      %s2052 = scalar_lea.vmem %s1870, 3216
      %v2053 = vld [vmem:[%s2052] ss:$2 sm:$0xff]
      %s2054 = scalar_lea.vmem %s1870, 3312
      %v2055 = vld [vmem:[%s2054] ss:$2 sm:$0xff]
      %s2056 = scalar_lea.vmem %s1870, 3328
      %v2057 = vld [vmem:[%s2056] ss:$2 sm:$0xff]
      %s2058 = scalar_lea.vmem %s1870, 3344
      %v2059 = vld [vmem:[%s2058] ss:$2 sm:$0xff]
      %s2060 = scalar_lea.vmem %s1870, 3360
      %v2061 = vld [vmem:[%s2060] ss:$2 sm:$0xff]
      %s2062 = scalar_lea.vmem %s1870, 3456
      %v2063 = vld [vmem:[%s2062] ss:$2 sm:$0xff]
      %s2064 = scalar_lea.vmem %s1870, 3472
      %v2065 = vld [vmem:[%s2064] ss:$2 sm:$0xff]
      %s2066 = scalar_lea.vmem %s1870, 3488
      %v2067 = vld [vmem:[%s2066] ss:$2 sm:$0xff]
      %s2068 = scalar_lea.vmem %s1870, 3504
      %v2069 = vld [vmem:[%s2068] ss:$2 sm:$0xff]
      %s2070 = scalar_lea.vmem %s1870, 3600
      %v2071 = vld [vmem:[%s2070] ss:$2 sm:$0xff]
      %s2072 = scalar_lea.vmem %s1870, 3616
      %v2073 = vld [vmem:[%s2072] ss:$2 sm:$0xff]
      %s2074 = scalar_lea.vmem %s1870, 3632
      %v2075 = vld [vmem:[%s2074] ss:$2 sm:$0xff]
      %s2076 = scalar_lea.vmem %s1870, 3648
      %v2077 = vld [vmem:[%s2076] ss:$2 sm:$0xff]
      %s2078 = scalar_lea.vmem %s1870, 3744
      %v2079 = vld [vmem:[%s2078] ss:$2 sm:$0xff]
      %s2080 = scalar_lea.vmem %s1870, 3760
      %v2081 = vld [vmem:[%s2080] ss:$2 sm:$0xff]
      %s2082 = scalar_lea.vmem %s1870, 3776
      %v2083 = vld [vmem:[%s2082] ss:$2 sm:$0xff]
      %s2084 = scalar_lea.vmem %s1870, 3792
      %v2085 = vld [vmem:[%s2084] ss:$2 sm:$0xff]
      %s2086 = scalar_lea.vmem %s1870, 3888
      %v2087 = vld [vmem:[%s2086] ss:$2 sm:$0xff]
      %s2088 = scalar_lea.vmem %s1870, 3904
      %v2089 = vld [vmem:[%s2088] ss:$2 sm:$0xff]
      %s2090 = scalar_lea.vmem %s1870, 3920
      %v2091 = vld [vmem:[%s2090] ss:$2 sm:$0xff]
      %s2092 = scalar_lea.vmem %s1870, 3936
      %v2093 = vld [vmem:[%s2092] ss:$2 sm:$0xff]
      %s2094 = scalar_lea.vmem %s1870, 4032
      %v2095 = vld [vmem:[%s2094] ss:$2 sm:$0xff]
      %s2096 = scalar_lea.vmem %s1870, 4048
      %v2097 = vld [vmem:[%s2096] ss:$2 sm:$0xff]
      %s2098 = scalar_lea.vmem %s1870, 4064
      %v2099 = vld [vmem:[%s2098] ss:$2 sm:$0xff]
      %s2100 = scalar_lea.vmem %s1870, 4080
      %v2101 = vld [vmem:[%s2100] ss:$2 sm:$0xff]
      %s2102 = scalar_lea.vmem %s1870, 4176
      %v2103 = vld [vmem:[%s2102] ss:$2 sm:$0xff]
      %s2104 = scalar_lea.vmem %s1870, 4192
      %v2105 = vld [vmem:[%s2104] ss:$2 sm:$0xff]
      %s2106 = scalar_lea.vmem %s1870, 4208
      %v2107 = vld [vmem:[%s2106] ss:$2 sm:$0xff]
      %s2108 = scalar_lea.vmem %s1870, 4224
      %v2109 = vld [vmem:[%s2108] ss:$2 sm:$0xff]
      %s2110 = scalar_lea.vmem %s1870, 4320
      %v2111 = vld [vmem:[%s2110] ss:$2 sm:$0xff]
      %s2112 = scalar_lea.vmem %s1870, 4336
      %v2113 = vld [vmem:[%s2112] ss:$2 sm:$0xff]
      %s2114 = scalar_lea.vmem %s1870, 4352
      %v2115 = vld [vmem:[%s2114] ss:$2 sm:$0xff]
      %s2116 = scalar_lea.vmem %s1870, 4368
      %v2117 = vld [vmem:[%s2116] ss:$2 sm:$0xff]
      %s2118 = scalar_lea.vmem %s1870, 1
      %v2119 = vld [vmem:[%s2118] ss:$2 sm:$0xff]
      %s2120 = scalar_lea.vmem %s1870, 17
      %v2121 = vld [vmem:[%s2120] ss:$2 sm:$0xff]
      %s2122 = scalar_lea.vmem %s1870, 33
      %v2123 = vld [vmem:[%s2122] ss:$2 sm:$0xff]
      %s2124 = scalar_lea.vmem %s1870, 49
      %v2125 = vld [vmem:[%s2124] ss:$2 sm:$0xff]
      %s2126 = scalar_lea.vmem %s1870, 145
      %v2127 = vld [vmem:[%s2126] ss:$2 sm:$0xff]
      %s2128 = scalar_lea.vmem %s1870, 161
      %v2129 = vld [vmem:[%s2128] ss:$2 sm:$0xff]
      %s2130 = scalar_lea.vmem %s1870, 177
      %v2131 = vld [vmem:[%s2130] ss:$2 sm:$0xff]
      %s2132 = scalar_lea.vmem %s1870, 193
      %v2133 = vld [vmem:[%s2132] ss:$2 sm:$0xff]
      %s2134 = scalar_lea.vmem %s1870, 289
      %v2135 = vld [vmem:[%s2134] ss:$2 sm:$0xff]
      %s2136 = scalar_lea.vmem %s1870, 305
      %v2137 = vld [vmem:[%s2136] ss:$2 sm:$0xff]
      %s2138 = scalar_lea.vmem %s1870, 321
      %v2139 = vld [vmem:[%s2138] ss:$2 sm:$0xff]
      %s2140 = scalar_lea.vmem %s1870, 337
      %v2141 = vld [vmem:[%s2140] ss:$2 sm:$0xff]
      %s2142 = scalar_lea.vmem %s1870, 433
      %v2143 = vld [vmem:[%s2142] ss:$2 sm:$0xff]
      %s2144 = scalar_lea.vmem %s1870, 449
      %v2145 = vld [vmem:[%s2144] ss:$2 sm:$0xff]
      %s2146 = scalar_lea.vmem %s1870, 465
      %v2147 = vld [vmem:[%s2146] ss:$2 sm:$0xff]
      %s2148 = scalar_lea.vmem %s1870, 481
      %v2149 = vld [vmem:[%s2148] ss:$2 sm:$0xff]
      %s2150 = scalar_lea.vmem %s1870, 577
      %v2151 = vld [vmem:[%s2150] ss:$2 sm:$0xff]
      %s2152 = scalar_lea.vmem %s1870, 593
      %v2153 = vld [vmem:[%s2152] ss:$2 sm:$0xff]
      %s2154 = scalar_lea.vmem %s1870, 609
      %v2155 = vld [vmem:[%s2154] ss:$2 sm:$0xff]
      %s2156 = scalar_lea.vmem %s1870, 625
      %v2157 = vld [vmem:[%s2156] ss:$2 sm:$0xff]
      %s2158 = scalar_lea.vmem %s1870, 721
      %v2159 = vld [vmem:[%s2158] ss:$2 sm:$0xff]
      %s2160 = scalar_lea.vmem %s1870, 737
      %v2161 = vld [vmem:[%s2160] ss:$2 sm:$0xff]
      %s2162 = scalar_lea.vmem %s1870, 753
      %v2163 = vld [vmem:[%s2162] ss:$2 sm:$0xff]
      %s2164 = scalar_lea.vmem %s1870, 769
      %v2165 = vld [vmem:[%s2164] ss:$2 sm:$0xff]
      %s2166 = scalar_lea.vmem %s1870, 865
      %v2167 = vld [vmem:[%s2166] ss:$2 sm:$0xff]
      %s2168 = scalar_lea.vmem %s1870, 881
      %v2169 = vld [vmem:[%s2168] ss:$2 sm:$0xff]
      %s2170 = scalar_lea.vmem %s1870, 897
      %v2171 = vld [vmem:[%s2170] ss:$2 sm:$0xff]
      %s2172 = scalar_lea.vmem %s1870, 913
      %v2173 = vld [vmem:[%s2172] ss:$2 sm:$0xff]
      %s2174 = scalar_lea.vmem %s1870, 1009
      %v2175 = vld [vmem:[%s2174] ss:$2 sm:$0xff]
      %s2176 = scalar_lea.vmem %s1870, 1025
      %v2177 = vld [vmem:[%s2176] ss:$2 sm:$0xff]
      %s2178 = scalar_lea.vmem %s1870, 1041
      %v2179 = vld [vmem:[%s2178] ss:$2 sm:$0xff]
      %s2180 = scalar_lea.vmem %s1870, 1057
      %v2181 = vld [vmem:[%s2180] ss:$2 sm:$0xff]
      %s2182 = scalar_lea.vmem %s1870, 1153
      %v2183 = vld [vmem:[%s2182] ss:$2 sm:$0xff]
      %s2184 = scalar_lea.vmem %s1870, 1169
      %v2185 = vld [vmem:[%s2184] ss:$2 sm:$0xff]
      %s2186 = scalar_lea.vmem %s1870, 1185
      %v2187 = vld [vmem:[%s2186] ss:$2 sm:$0xff]
      %s2188 = scalar_lea.vmem %s1870, 1201
      %v2189 = vld [vmem:[%s2188] ss:$2 sm:$0xff]
      %s2190 = scalar_lea.vmem %s1870, 1297
      %v2191 = vld [vmem:[%s2190] ss:$2 sm:$0xff]
      %s2192 = scalar_lea.vmem %s1870, 1313
      %v2193 = vld [vmem:[%s2192] ss:$2 sm:$0xff]
      %s2194 = scalar_lea.vmem %s1870, 1329
      %v2195 = vld [vmem:[%s2194] ss:$2 sm:$0xff]
      %s2196 = scalar_lea.vmem %s1870, 1345
      %v2197 = vld [vmem:[%s2196] ss:$2 sm:$0xff]
      %s2198 = scalar_lea.vmem %s1870, 1441
      %v2199 = vld [vmem:[%s2198] ss:$2 sm:$0xff]
      %s2200 = scalar_lea.vmem %s1870, 1457
      %v2201 = vld [vmem:[%s2200] ss:$2 sm:$0xff]
      %s2202 = scalar_lea.vmem %s1870, 1473
      %v2203 = vld [vmem:[%s2202] ss:$2 sm:$0xff]
      %s2204 = scalar_lea.vmem %s1870, 1489
      %v2205 = vld [vmem:[%s2204] ss:$2 sm:$0xff]
      %s2206 = scalar_lea.vmem %s1870, 1585
      %v2207 = vld [vmem:[%s2206] ss:$2 sm:$0xff]
      %s2208 = scalar_lea.vmem %s1870, 1601
      %v2209 = vld [vmem:[%s2208] ss:$2 sm:$0xff]
      %s2210 = scalar_lea.vmem %s1870, 1617
      %v2211 = vld [vmem:[%s2210] ss:$2 sm:$0xff]
      %s2212 = scalar_lea.vmem %s1870, 1633
      %v2213 = vld [vmem:[%s2212] ss:$2 sm:$0xff]
      %s2214 = scalar_lea.vmem %s1870, 1729
      %v2215 = vld [vmem:[%s2214] ss:$2 sm:$0xff]
      %s2216 = scalar_lea.vmem %s1870, 1745
      %v2217 = vld [vmem:[%s2216] ss:$2 sm:$0xff]
      %s2218 = scalar_lea.vmem %s1870, 1761
      %v2219 = vld [vmem:[%s2218] ss:$2 sm:$0xff]
      %s2220 = scalar_lea.vmem %s1870, 1777
      %v2221 = vld [vmem:[%s2220] ss:$2 sm:$0xff]
      %s2222 = scalar_lea.vmem %s1870, 1873
      %v2223 = vld [vmem:[%s2222] ss:$2 sm:$0xff]
      %s2224 = scalar_lea.vmem %s1870, 1889
      %v2225 = vld [vmem:[%s2224] ss:$2 sm:$0xff]
      %s2226 = scalar_lea.vmem %s1870, 1905
      %v2227 = vld [vmem:[%s2226] ss:$2 sm:$0xff]
      %s2228 = scalar_lea.vmem %s1870, 1921
      %v2229 = vld [vmem:[%s2228] ss:$2 sm:$0xff]
      %s2230 = scalar_lea.vmem %s1870, 2017
      %v2231 = vld [vmem:[%s2230] ss:$2 sm:$0xff]
      %s2232 = scalar_lea.vmem %s1870, 2033
      %v2233 = vld [vmem:[%s2232] ss:$2 sm:$0xff]
      %s2234 = scalar_lea.vmem %s1870, 2049
      %v2235 = vld [vmem:[%s2234] ss:$2 sm:$0xff]
      %s2236 = scalar_lea.vmem %s1870, 2065
      %v2237 = vld [vmem:[%s2236] ss:$2 sm:$0xff]
      %s2238 = scalar_lea.vmem %s1870, 2161
      %v2239 = vld [vmem:[%s2238] ss:$2 sm:$0xff]
      %s2240 = scalar_lea.vmem %s1870, 2177
      %v2241 = vld [vmem:[%s2240] ss:$2 sm:$0xff]
      %s2242 = scalar_lea.vmem %s1870, 2193
      %v2243 = vld [vmem:[%s2242] ss:$2 sm:$0xff]
      %s2244 = scalar_lea.vmem %s1870, 2209
      %v2245 = vld [vmem:[%s2244] ss:$2 sm:$0xff]
      %s2246 = scalar_lea.vmem %s1870, 2305
      %v2247 = vld [vmem:[%s2246] ss:$2 sm:$0xff]
      %s2248 = scalar_lea.vmem %s1870, 2321
      %v2249 = vld [vmem:[%s2248] ss:$2 sm:$0xff]
      %s2250 = scalar_lea.vmem %s1870, 2337
      %v2251 = vld [vmem:[%s2250] ss:$2 sm:$0xff]
      %s2252 = scalar_lea.vmem %s1870, 2353
      %v2253 = vld [vmem:[%s2252] ss:$2 sm:$0xff]
      %s2254 = scalar_lea.vmem %s1870, 2449
      %v2255 = vld [vmem:[%s2254] ss:$2 sm:$0xff]
      %s2256 = scalar_lea.vmem %s1870, 2465
      %v2257 = vld [vmem:[%s2256] ss:$2 sm:$0xff]
      %s2258 = scalar_lea.vmem %s1870, 2481
      %v2259 = vld [vmem:[%s2258] ss:$2 sm:$0xff]
      %s2260 = scalar_lea.vmem %s1870, 2497
      %v2261 = vld [vmem:[%s2260] ss:$2 sm:$0xff]
      %s2262 = scalar_lea.vmem %s1870, 2593
      %v2263 = vld [vmem:[%s2262] ss:$2 sm:$0xff]
      %s2264 = scalar_lea.vmem %s1870, 2609
      %v2265 = vld [vmem:[%s2264] ss:$2 sm:$0xff]
      %s2266 = scalar_lea.vmem %s1870, 2625
      %v2267 = vld [vmem:[%s2266] ss:$2 sm:$0xff]
      %s2268 = scalar_lea.vmem %s1870, 2641
      %v2269 = vld [vmem:[%s2268] ss:$2 sm:$0xff]
      %s2270 = scalar_lea.vmem %s1870, 2737
      %v2271 = vld [vmem:[%s2270] ss:$2 sm:$0xff]
      %s2272 = scalar_lea.vmem %s1870, 2753
      %v2273 = vld [vmem:[%s2272] ss:$2 sm:$0xff]
      %s2274 = scalar_lea.vmem %s1870, 2769
      %v2275 = vld [vmem:[%s2274] ss:$2 sm:$0xff]
      %s2276 = scalar_lea.vmem %s1870, 2785
      %v2277 = vld [vmem:[%s2276] ss:$2 sm:$0xff]
      %s2278 = scalar_lea.vmem %s1870, 2881
      %v2279 = vld [vmem:[%s2278] ss:$2 sm:$0xff]
      %s2280 = scalar_lea.vmem %s1870, 2897
      %v2281 = vld [vmem:[%s2280] ss:$2 sm:$0xff]
      %s2282 = scalar_lea.vmem %s1870, 2913
      %v2283 = vld [vmem:[%s2282] ss:$2 sm:$0xff]
      %s2284 = scalar_lea.vmem %s1870, 2929
      %v2285 = vld [vmem:[%s2284] ss:$2 sm:$0xff]
      %s2286 = scalar_lea.vmem %s1870, 3025
      %v2287 = vld [vmem:[%s2286] ss:$2 sm:$0xff]
      %s2288 = scalar_lea.vmem %s1870, 3041
      %v2289 = vld [vmem:[%s2288] ss:$2 sm:$0xff]
      %s2290 = scalar_lea.vmem %s1870, 3057
      %v2291 = vld [vmem:[%s2290] ss:$2 sm:$0xff]
      %s2292 = scalar_lea.vmem %s1870, 3073
      %v2293 = vld [vmem:[%s2292] ss:$2 sm:$0xff]
      %s2294 = scalar_lea.vmem %s1870, 3169
      %v2295 = vld [vmem:[%s2294] ss:$2 sm:$0xff]
      %s2296 = scalar_lea.vmem %s1870, 3185
      %v2297 = vld [vmem:[%s2296] ss:$2 sm:$0xff]
      %s2298 = scalar_lea.vmem %s1870, 3201
      %v2299 = vld [vmem:[%s2298] ss:$2 sm:$0xff]
      %s2300 = scalar_lea.vmem %s1870, 3217
      %v2301 = vld [vmem:[%s2300] ss:$2 sm:$0xff]
      %s2302 = scalar_lea.vmem %s1870, 3313
      %v2303 = vld [vmem:[%s2302] ss:$2 sm:$0xff]
      %s2304 = scalar_lea.vmem %s1870, 3329
      %v2305 = vld [vmem:[%s2304] ss:$2 sm:$0xff]
      %s2306 = scalar_lea.vmem %s1870, 3345
      %v2307 = vld [vmem:[%s2306] ss:$2 sm:$0xff]
      %s2308 = scalar_lea.vmem %s1870, 3361
      %v2309 = vld [vmem:[%s2308] ss:$2 sm:$0xff]
      %s2310 = scalar_lea.vmem %s1870, 3457
      %v2311 = vld [vmem:[%s2310] ss:$2 sm:$0xff]
      %s2312 = scalar_lea.vmem %s1870, 3473
      %v2313 = vld [vmem:[%s2312] ss:$2 sm:$0xff]
      %s2314 = scalar_lea.vmem %s1870, 3489
      %v2315 = vld [vmem:[%s2314] ss:$2 sm:$0xff]
      %s2316 = scalar_lea.vmem %s1870, 3505
      %v2317 = vld [vmem:[%s2316] ss:$2 sm:$0xff]
      %s2318 = scalar_lea.vmem %s1870, 3601
      %v2319 = vld [vmem:[%s2318] ss:$2 sm:$0xff]
      %s2320 = scalar_lea.vmem %s1870, 3617
      %v2321 = vld [vmem:[%s2320] ss:$2 sm:$0xff]
      %s2322 = scalar_lea.vmem %s1870, 3633
      %v2323 = vld [vmem:[%s2322] ss:$2 sm:$0xff]
      %s2324 = scalar_lea.vmem %s1870, 3649
      %v2325 = vld [vmem:[%s2324] ss:$2 sm:$0xff]
      %s2326 = scalar_lea.vmem %s1870, 3745
      %v2327 = vld [vmem:[%s2326] ss:$2 sm:$0xff]
      %s2328 = scalar_lea.vmem %s1870, 3761
      %v2329 = vld [vmem:[%s2328] ss:$2 sm:$0xff]
      %s2330 = scalar_lea.vmem %s1870, 3777
      %v2331 = vld [vmem:[%s2330] ss:$2 sm:$0xff]
      %s2332 = scalar_lea.vmem %s1870, 3793
      %v2333 = vld [vmem:[%s2332] ss:$2 sm:$0xff]
      %s2334 = scalar_lea.vmem %s1870, 3889
      %v2335 = vld [vmem:[%s2334] ss:$2 sm:$0xff]
      %s2336 = scalar_lea.vmem %s1870, 3905
      %v2337 = vld [vmem:[%s2336] ss:$2 sm:$0xff]
      %s2338 = scalar_lea.vmem %s1870, 3921
      %v2339 = vld [vmem:[%s2338] ss:$2 sm:$0xff]
      %s2340 = scalar_lea.vmem %s1870, 3937
      %v2341 = vld [vmem:[%s2340] ss:$2 sm:$0xff]
      %s2342 = scalar_lea.vmem %s1870, 4033
      %v2343 = vld [vmem:[%s2342] ss:$2 sm:$0xff]
      %s2344 = scalar_lea.vmem %s1870, 4049
      %v2345 = vld [vmem:[%s2344] ss:$2 sm:$0xff]
      %s2346 = scalar_lea.vmem %s1870, 4065
      %v2347 = vld [vmem:[%s2346] ss:$2 sm:$0xff]
      %s2348 = scalar_lea.vmem %s1870, 4081
      %v2349 = vld [vmem:[%s2348] ss:$2 sm:$0xff]
      %s2350 = scalar_lea.vmem %s1870, 4177
      %v2351 = vld [vmem:[%s2350] ss:$2 sm:$0xff]
      %s2352 = scalar_lea.vmem %s1870, 4193
      %v2353 = vld [vmem:[%s2352] ss:$2 sm:$0xff]
      %s2354 = scalar_lea.vmem %s1870, 4209
      %v2355 = vld [vmem:[%s2354] ss:$2 sm:$0xff]
      %s2356 = scalar_lea.vmem %s1870, 4225
      %v2357 = vld [vmem:[%s2356] ss:$2 sm:$0xff]
      %s2358 = scalar_lea.vmem %s1870, 4321
      %v2359 = vld [vmem:[%s2358] ss:$2 sm:$0xff]
      %s2360 = scalar_lea.vmem %s1870, 4337
      %v2361 = vld [vmem:[%s2360] ss:$2 sm:$0xff]
      %s2362 = scalar_lea.vmem %s1870, 4353
      %v2363 = vld [vmem:[%s2362] ss:$2 sm:$0xff]
      %s2364 = scalar_lea.vmem %s1870, 4369
      %v2365 = vld [vmem:[%s2364] ss:$2 sm:$0xff]
      %s2366 = scalar_lea.vmem %s1870, 2
      %v2367 = vld [vmem:[%s2366] ss:$2 sm:$0xff]
      %s2368 = scalar_lea.vmem %s1870, 18
      %v2369 = vld [vmem:[%s2368] ss:$2 sm:$0xff]
      %s2370 = scalar_lea.vmem %s1870, 34
      %v2371 = vld [vmem:[%s2370] ss:$2 sm:$0xff]
      %s2372 = scalar_lea.vmem %s1870, 50
      %v2373 = vld [vmem:[%s2372] ss:$2 sm:$0xff]
      %s2374 = scalar_lea.vmem %s1870, 146
      %v2375 = vld [vmem:[%s2374] ss:$2 sm:$0xff]
      %s2376 = scalar_lea.vmem %s1870, 162
      %v2377 = vld [vmem:[%s2376] ss:$2 sm:$0xff]
      %s2378 = scalar_lea.vmem %s1870, 178
      %v2379 = vld [vmem:[%s2378] ss:$2 sm:$0xff]
      %s2380 = scalar_lea.vmem %s1870, 194
      %v2381 = vld [vmem:[%s2380] ss:$2 sm:$0xff]
      %s2382 = scalar_lea.vmem %s1870, 290
      %v2383 = vld [vmem:[%s2382] ss:$2 sm:$0xff]
      %s2384 = scalar_lea.vmem %s1870, 306
      %v2385 = vld [vmem:[%s2384] ss:$2 sm:$0xff]
      %s2386 = scalar_lea.vmem %s1870, 322
      %v2387 = vld [vmem:[%s2386] ss:$2 sm:$0xff]
      %s2388 = scalar_lea.vmem %s1870, 338
      %v2389 = vld [vmem:[%s2388] ss:$2 sm:$0xff]
      %s2390 = scalar_lea.vmem %s1870, 434
      %v2391 = vld [vmem:[%s2390] ss:$2 sm:$0xff]
      %s2392 = scalar_lea.vmem %s1870, 450
      %v2393 = vld [vmem:[%s2392] ss:$2 sm:$0xff]
      %s2394 = scalar_lea.vmem %s1870, 466
      %v2395 = vld [vmem:[%s2394] ss:$2 sm:$0xff]
      %s2396 = scalar_lea.vmem %s1870, 482
      %v2397 = vld [vmem:[%s2396] ss:$2 sm:$0xff]
      %s2398 = scalar_lea.vmem %s1870, 578
      %v2399 = vld [vmem:[%s2398] ss:$2 sm:$0xff]
      %s2400 = scalar_lea.vmem %s1870, 594
      %v2401 = vld [vmem:[%s2400] ss:$2 sm:$0xff]
      %s2402 = scalar_lea.vmem %s1870, 610
      %v2403 = vld [vmem:[%s2402] ss:$2 sm:$0xff]
      %s2404 = scalar_lea.vmem %s1870, 626
      %v2405 = vld [vmem:[%s2404] ss:$2 sm:$0xff]
      %s2406 = scalar_lea.vmem %s1870, 722
      %v2407 = vld [vmem:[%s2406] ss:$2 sm:$0xff]
      %s2408 = scalar_lea.vmem %s1870, 738
      %v2409 = vld [vmem:[%s2408] ss:$2 sm:$0xff]
      %s2410 = scalar_lea.vmem %s1870, 754
      %v2411 = vld [vmem:[%s2410] ss:$2 sm:$0xff]
      %s2412 = scalar_lea.vmem %s1870, 770
      %v2413 = vld [vmem:[%s2412] ss:$2 sm:$0xff]
      %s2414 = scalar_lea.vmem %s1870, 866
      %v2415 = vld [vmem:[%s2414] ss:$2 sm:$0xff]
      %s2416 = scalar_lea.vmem %s1870, 882
      %v2417 = vld [vmem:[%s2416] ss:$2 sm:$0xff]
      %s2418 = scalar_lea.vmem %s1870, 898
      %v2419 = vld [vmem:[%s2418] ss:$2 sm:$0xff]
      %s2420 = scalar_lea.vmem %s1870, 914
      %v2421 = vld [vmem:[%s2420] ss:$2 sm:$0xff]
      %s2422 = scalar_lea.vmem %s1870, 1010
      %v2423 = vld [vmem:[%s2422] ss:$2 sm:$0xff]
      %s2424 = scalar_lea.vmem %s1870, 1026
      %v2425 = vld [vmem:[%s2424] ss:$2 sm:$0xff]
      %s2426 = scalar_lea.vmem %s1870, 1042
      %v2427 = vld [vmem:[%s2426] ss:$2 sm:$0xff]
      %s2428 = scalar_lea.vmem %s1870, 1058
      %v2429 = vld [vmem:[%s2428] ss:$2 sm:$0xff]
      %s2430 = scalar_lea.vmem %s1870, 1154
      %v2431 = vld [vmem:[%s2430] ss:$2 sm:$0xff]
      %s2432 = scalar_lea.vmem %s1870, 1170
      %v2433 = vld [vmem:[%s2432] ss:$2 sm:$0xff]
      %s2434 = scalar_lea.vmem %s1870, 1186
      %v2435 = vld [vmem:[%s2434] ss:$2 sm:$0xff]
      %s2436 = scalar_lea.vmem %s1870, 1202
      %v2437 = vld [vmem:[%s2436] ss:$2 sm:$0xff]
      %s2438 = scalar_lea.vmem %s1870, 1298
      %v2439 = vld [vmem:[%s2438] ss:$2 sm:$0xff]
      %s2440 = scalar_lea.vmem %s1870, 1314
      %v2441 = vld [vmem:[%s2440] ss:$2 sm:$0xff]
      %s2442 = scalar_lea.vmem %s1870, 1330
      %v2443 = vld [vmem:[%s2442] ss:$2 sm:$0xff]
      %s2444 = scalar_lea.vmem %s1870, 1346
      %v2445 = vld [vmem:[%s2444] ss:$2 sm:$0xff]
      %s2446 = scalar_lea.vmem %s1870, 1442
      %v2447 = vld [vmem:[%s2446] ss:$2 sm:$0xff]
      %s2448 = scalar_lea.vmem %s1870, 1458
      %v2449 = vld [vmem:[%s2448] ss:$2 sm:$0xff]
      %s2450 = scalar_lea.vmem %s1870, 1474
      %v2451 = vld [vmem:[%s2450] ss:$2 sm:$0xff]
      %s2452 = scalar_lea.vmem %s1870, 1490
      %v2453 = vld [vmem:[%s2452] ss:$2 sm:$0xff]
      %s2454 = scalar_lea.vmem %s1870, 1586
      %v2455 = vld [vmem:[%s2454] ss:$2 sm:$0xff]
      %s2456 = scalar_lea.vmem %s1870, 1602
      %v2457 = vld [vmem:[%s2456] ss:$2 sm:$0xff]
      %s2458 = scalar_lea.vmem %s1870, 1618
      %v2459 = vld [vmem:[%s2458] ss:$2 sm:$0xff]
      %s2460 = scalar_lea.vmem %s1870, 1634
      %v2461 = vld [vmem:[%s2460] ss:$2 sm:$0xff]
      %s2462 = scalar_lea.vmem %s1870, 1730
      %v2463 = vld [vmem:[%s2462] ss:$2 sm:$0xff]
      %s2464 = scalar_lea.vmem %s1870, 1746
      %v2465 = vld [vmem:[%s2464] ss:$2 sm:$0xff]
      %s2466 = scalar_lea.vmem %s1870, 1762
      %v2467 = vld [vmem:[%s2466] ss:$2 sm:$0xff]
      %s2468 = scalar_lea.vmem %s1870, 1778
      %v2469 = vld [vmem:[%s2468] ss:$2 sm:$0xff]
      %s2470 = scalar_lea.vmem %s1870, 1874
      %v2471 = vld [vmem:[%s2470] ss:$2 sm:$0xff]
      %s2472 = scalar_lea.vmem %s1870, 1890
      %v2473 = vld [vmem:[%s2472] ss:$2 sm:$0xff]
      %s2474 = scalar_lea.vmem %s1870, 1906
      %v2475 = vld [vmem:[%s2474] ss:$2 sm:$0xff]
      %s2476 = scalar_lea.vmem %s1870, 1922
      %v2477 = vld [vmem:[%s2476] ss:$2 sm:$0xff]
      %s2478 = scalar_lea.vmem %s1870, 2018
      %v2479 = vld [vmem:[%s2478] ss:$2 sm:$0xff]
      %s2480 = scalar_lea.vmem %s1870, 2034
      %v2481 = vld [vmem:[%s2480] ss:$2 sm:$0xff]
      %s2482 = scalar_lea.vmem %s1870, 2050
      %v2483 = vld [vmem:[%s2482] ss:$2 sm:$0xff]
      %s2484 = scalar_lea.vmem %s1870, 2066
      %v2485 = vld [vmem:[%s2484] ss:$2 sm:$0xff]
      %s2486 = scalar_lea.vmem %s1870, 2162
      %v2487 = vld [vmem:[%s2486] ss:$2 sm:$0xff]
      %s2488 = scalar_lea.vmem %s1870, 2178
      %v2489 = vld [vmem:[%s2488] ss:$2 sm:$0xff]
      %s2490 = scalar_lea.vmem %s1870, 2194
      %v2491 = vld [vmem:[%s2490] ss:$2 sm:$0xff]
      %s2492 = scalar_lea.vmem %s1870, 2210
      %v2493 = vld [vmem:[%s2492] ss:$2 sm:$0xff]
      %s2494 = scalar_lea.vmem %s1870, 2306
      %v2495 = vld [vmem:[%s2494] ss:$2 sm:$0xff]
      %s2496 = scalar_lea.vmem %s1870, 2322
      %v2497 = vld [vmem:[%s2496] ss:$2 sm:$0xff]
      %s2498 = scalar_lea.vmem %s1870, 2338
      %v2499 = vld [vmem:[%s2498] ss:$2 sm:$0xff]
      %s2500 = scalar_lea.vmem %s1870, 2354
      %v2501 = vld [vmem:[%s2500] ss:$2 sm:$0xff]
      %s2502 = scalar_lea.vmem %s1870, 2450
      %v2503 = vld [vmem:[%s2502] ss:$2 sm:$0xff]
      %s2504 = scalar_lea.vmem %s1870, 2466
      %v2505 = vld [vmem:[%s2504] ss:$2 sm:$0xff]
      %s2506 = scalar_lea.vmem %s1870, 2482
      %v2507 = vld [vmem:[%s2506] ss:$2 sm:$0xff]
      %s2508 = scalar_lea.vmem %s1870, 2498
      %v2509 = vld [vmem:[%s2508] ss:$2 sm:$0xff]
      %s2510 = scalar_lea.vmem %s1870, 2594
      %v2511 = vld [vmem:[%s2510] ss:$2 sm:$0xff]
      %s2512 = scalar_lea.vmem %s1870, 2610
      %v2513 = vld [vmem:[%s2512] ss:$2 sm:$0xff]
      %s2514 = scalar_lea.vmem %s1870, 2626
      %v2515 = vld [vmem:[%s2514] ss:$2 sm:$0xff]
      %s2516 = scalar_lea.vmem %s1870, 2642
      %v2517 = vld [vmem:[%s2516] ss:$2 sm:$0xff]
      %s2518 = scalar_lea.vmem %s1870, 2738
      %v2519 = vld [vmem:[%s2518] ss:$2 sm:$0xff]
      %s2520 = scalar_lea.vmem %s1870, 2754
      %v2521 = vld [vmem:[%s2520] ss:$2 sm:$0xff]
      %s2522 = scalar_lea.vmem %s1870, 2770
      %v2523 = vld [vmem:[%s2522] ss:$2 sm:$0xff]
      %s2524 = scalar_lea.vmem %s1870, 2786
      %v2525 = vld [vmem:[%s2524] ss:$2 sm:$0xff]
      %s2526 = scalar_lea.vmem %s1870, 2882
      %v2527 = vld [vmem:[%s2526] ss:$2 sm:$0xff]
      %s2528 = scalar_lea.vmem %s1870, 2898
      %v2529 = vld [vmem:[%s2528] ss:$2 sm:$0xff]
      %s2530 = scalar_lea.vmem %s1870, 2914
      %v2531 = vld [vmem:[%s2530] ss:$2 sm:$0xff]
      %s2532 = scalar_lea.vmem %s1870, 2930
      %v2533 = vld [vmem:[%s2532] ss:$2 sm:$0xff]
      %s2534 = scalar_lea.vmem %s1870, 3026
      %v2535 = vld [vmem:[%s2534] ss:$2 sm:$0xff]
      %s2536 = scalar_lea.vmem %s1870, 3042
      %v2537 = vld [vmem:[%s2536] ss:$2 sm:$0xff]
      %s2538 = scalar_lea.vmem %s1870, 3058
      %v2539 = vld [vmem:[%s2538] ss:$2 sm:$0xff]
      %s2540 = scalar_lea.vmem %s1870, 3074
      %v2541 = vld [vmem:[%s2540] ss:$2 sm:$0xff]
      %s2542 = scalar_lea.vmem %s1870, 3170
      %v2543 = vld [vmem:[%s2542] ss:$2 sm:$0xff]
      %s2544 = scalar_lea.vmem %s1870, 3186
      %v2545 = vld [vmem:[%s2544] ss:$2 sm:$0xff]
      %s2546 = scalar_lea.vmem %s1870, 3202
      %v2547 = vld [vmem:[%s2546] ss:$2 sm:$0xff]
      %s2548 = scalar_lea.vmem %s1870, 3218
      %v2549 = vld [vmem:[%s2548] ss:$2 sm:$0xff]
      %s2550 = scalar_lea.vmem %s1870, 3314
      %v2551 = vld [vmem:[%s2550] ss:$2 sm:$0xff]
      %s2552 = scalar_lea.vmem %s1870, 3330
      %v2553 = vld [vmem:[%s2552] ss:$2 sm:$0xff]
      %s2554 = scalar_lea.vmem %s1870, 3346
      %v2555 = vld [vmem:[%s2554] ss:$2 sm:$0xff]
      %s2556 = scalar_lea.vmem %s1870, 3362
      %v2557 = vld [vmem:[%s2556] ss:$2 sm:$0xff]
      %s2558 = scalar_lea.vmem %s1870, 3458
      %v2559 = vld [vmem:[%s2558] ss:$2 sm:$0xff]
      %s2560 = scalar_lea.vmem %s1870, 3474
      %v2561 = vld [vmem:[%s2560] ss:$2 sm:$0xff]
      %s2562 = scalar_lea.vmem %s1870, 3490
      %v2563 = vld [vmem:[%s2562] ss:$2 sm:$0xff]
      %s2564 = scalar_lea.vmem %s1870, 3506
      %v2565 = vld [vmem:[%s2564] ss:$2 sm:$0xff]
      %s2566 = scalar_lea.vmem %s1870, 3602
      %v2567 = vld [vmem:[%s2566] ss:$2 sm:$0xff]
      %s2568 = scalar_lea.vmem %s1870, 3618
      %v2569 = vld [vmem:[%s2568] ss:$2 sm:$0xff]
      %s2570 = scalar_lea.vmem %s1870, 3634
      %v2571 = vld [vmem:[%s2570] ss:$2 sm:$0xff]
      %s2572 = scalar_lea.vmem %s1870, 3650
      %v2573 = vld [vmem:[%s2572] ss:$2 sm:$0xff]
      %s2574 = scalar_lea.vmem %s1870, 3746
      %v2575 = vld [vmem:[%s2574] ss:$2 sm:$0xff]
      %s2576 = scalar_lea.vmem %s1870, 3762
      %v2577 = vld [vmem:[%s2576] ss:$2 sm:$0xff]
      %s2578 = scalar_lea.vmem %s1870, 3778
      %v2579 = vld [vmem:[%s2578] ss:$2 sm:$0xff]
      %s2580 = scalar_lea.vmem %s1870, 3794
      %v2581 = vld [vmem:[%s2580] ss:$2 sm:$0xff]
      %s2582 = scalar_lea.vmem %s1870, 3890
      %v2583 = vld [vmem:[%s2582] ss:$2 sm:$0xff]
      %s2584 = scalar_lea.vmem %s1870, 3906
      %v2585 = vld [vmem:[%s2584] ss:$2 sm:$0xff]
      %s2586 = scalar_lea.vmem %s1870, 3922
      %v2587 = vld [vmem:[%s2586] ss:$2 sm:$0xff]
      %s2588 = scalar_lea.vmem %s1870, 3938
      %v2589 = vld [vmem:[%s2588] ss:$2 sm:$0xff]
      %s2590 = scalar_lea.vmem %s1870, 4034
      %v2591 = vld [vmem:[%s2590] ss:$2 sm:$0xff]
      %s2592 = scalar_lea.vmem %s1870, 4050
      %v2593 = vld [vmem:[%s2592] ss:$2 sm:$0xff]
      %s2594 = scalar_lea.vmem %s1870, 4066
      %v2595 = vld [vmem:[%s2594] ss:$2 sm:$0xff]
      %s2596 = scalar_lea.vmem %s1870, 4082
      %v2597 = vld [vmem:[%s2596] ss:$2 sm:$0xff]
      %s2598 = scalar_lea.vmem %s1870, 4178
      %v2599 = vld [vmem:[%s2598] ss:$2 sm:$0xff]
      %s2600 = scalar_lea.vmem %s1870, 4194
      %v2601 = vld [vmem:[%s2600] ss:$2 sm:$0xff]
      %s2602 = scalar_lea.vmem %s1870, 4210
      %v2603 = vld [vmem:[%s2602] ss:$2 sm:$0xff]
      %s2604 = scalar_lea.vmem %s1870, 4226
      %v2605 = vld [vmem:[%s2604] ss:$2 sm:$0xff]
      %s2606 = scalar_lea.vmem %s1870, 4322
      %v2607 = vld [vmem:[%s2606] ss:$2 sm:$0xff]
      %s2608 = scalar_lea.vmem %s1870, 4338
      %v2609 = vld [vmem:[%s2608] ss:$2 sm:$0xff]
      %s2610 = scalar_lea.vmem %s1870, 4354
      %v2611 = vld [vmem:[%s2610] ss:$2 sm:$0xff]
      %s2612 = scalar_lea.vmem %s1870, 4370
      %v2613 = vld [vmem:[%s2612] ss:$2 sm:$0xff]
      %2738 = vrot.lane.b32.xlu0 %v631, 8
      %v2739 = vpop.permute.xlu0 %2738
      %2740 = vrot.lane.b32.xlu0 %v633, 8
      %v2741 = vpop.permute.xlu0 %2740
      %2742 = vrot.lane.b32.xlu0 %v635, 8
      %v2743 = vpop.permute.xlu0 %2742
      %2744 = vrot.lane.b32.xlu0 %v637, 8
      %v2745 = vpop.permute.xlu0 %2744
      %2746 = vrot.lane.b32.xlu0 %v639, 8
      %v2747 = vpop.permute.xlu0 %2746
      %2748 = vrot.lane.b32.xlu0 %v641, 8
      %v2749 = vpop.permute.xlu0 %2748
      %2750 = vrot.lane.b32.xlu0 %v643, 8
      %v2751 = vpop.permute.xlu0 %2750
      %2752 = vrot.lane.b32.xlu0 %v645, 8
      %v2753 = vpop.permute.xlu0 %2752
      %2754 = vrot.lane.b32.xlu0 %v647, 8
      %v2755 = vpop.permute.xlu0 %2754
      %2756 = vrot.lane.b32.xlu0 %v649, 8
      %v2757 = vpop.permute.xlu0 %2756
      %2758 = vrot.lane.b32.xlu0 %v651, 8
      %v2759 = vpop.permute.xlu0 %2758
      %2760 = vrot.lane.b32.xlu0 %v653, 8
      %v2761 = vpop.permute.xlu0 %2760
      %2762 = vrot.lane.b32.xlu0 %v655, 8
      %v2763 = vpop.permute.xlu0 %2762
      %2764 = vrot.lane.b32.xlu0 %v657, 8
      %v2765 = vpop.permute.xlu0 %2764
      %2766 = vrot.lane.b32.xlu0 %v659, 8
      %v2767 = vpop.permute.xlu0 %2766
      %2768 = vrot.lane.b32.xlu0 %v661, 8
      %v2769 = vpop.permute.xlu0 %2768
      %2770 = vrot.lane.b32.xlu0 %v663, 8
      %v2771 = vpop.permute.xlu0 %2770
      %2772 = vrot.lane.b32.xlu0 %v665, 8
      %v2773 = vpop.permute.xlu0 %2772
      %2774 = vrot.lane.b32.xlu0 %v667, 8
      %v2775 = vpop.permute.xlu0 %2774
      %2776 = vrot.lane.b32.xlu0 %v669, 8
      %v2777 = vpop.permute.xlu0 %2776
      %2778 = vrot.lane.b32.xlu0 %v671, 8
      %v2779 = vpop.permute.xlu0 %2778
      %2780 = vrot.lane.b32.xlu0 %v673, 8
      %v2781 = vpop.permute.xlu0 %2780
      %2782 = vrot.lane.b32.xlu0 %v675, 8
      %v2783 = vpop.permute.xlu0 %2782
      %2784 = vrot.lane.b32.xlu0 %v677, 8
      %v2785 = vpop.permute.xlu0 %2784
      %2786 = vrot.lane.b32.xlu0 %v679, 8
      %v2787 = vpop.permute.xlu0 %2786
      %2788 = vrot.lane.b32.xlu0 %v681, 8
      %v2789 = vpop.permute.xlu0 %2788
      %2790 = vrot.lane.b32.xlu0 %v683, 8
      %v2791 = vpop.permute.xlu0 %2790
      %2792 = vrot.lane.b32.xlu0 %v685, 8
      %v2793 = vpop.permute.xlu0 %2792
      %2794 = vrot.lane.b32.xlu0 %v687, 8
      %v2795 = vpop.permute.xlu0 %2794
      %2796 = vrot.lane.b32.xlu0 %v689, 8
      %v2797 = vpop.permute.xlu0 %2796
      %2798 = vrot.lane.b32.xlu0 %v691, 8
      %v2799 = vpop.permute.xlu0 %2798
      %2800 = vrot.lane.b32.xlu0 %v693, 8
      %v2801 = vpop.permute.xlu0 %2800
      %2802 = vrot.lane.b32.xlu0 %v695, 8
      %v2803 = vpop.permute.xlu0 %2802
      %2804 = vrot.lane.b32.xlu0 %v697, 8
      %v2805 = vpop.permute.xlu0 %2804
      %2806 = vrot.lane.b32.xlu0 %v699, 8
      %v2807 = vpop.permute.xlu0 %2806
      %2808 = vrot.lane.b32.xlu0 %v701, 8
      %v2809 = vpop.permute.xlu0 %2808
      %2810 = vrot.lane.b32.xlu0 %v703, 8
      %v2811 = vpop.permute.xlu0 %2810
      %2812 = vrot.lane.b32.xlu0 %v705, 8
      %v2813 = vpop.permute.xlu0 %2812
      %2814 = vrot.lane.b32.xlu0 %v707, 8
      %v2815 = vpop.permute.xlu0 %2814
      %2816 = vrot.lane.b32.xlu0 %v709, 8
      %v2817 = vpop.permute.xlu0 %2816
      %2818 = vrot.lane.b32.xlu0 %v711, 8
      %v2819 = vpop.permute.xlu0 %2818
      %2820 = vrot.lane.b32.xlu0 %v713, 8
      %v2821 = vpop.permute.xlu0 %2820
      %2822 = vrot.lane.b32.xlu0 %v715, 8
      %v2823 = vpop.permute.xlu0 %2822
      %2824 = vrot.lane.b32.xlu0 %v717, 8
      %v2825 = vpop.permute.xlu0 %2824
      %2826 = vrot.lane.b32.xlu0 %v719, 8
      %v2827 = vpop.permute.xlu0 %2826
      %2828 = vrot.lane.b32.xlu0 %v721, 8
      %v2829 = vpop.permute.xlu0 %2828
      %2830 = vrot.lane.b32.xlu0 %v723, 8
      %v2831 = vpop.permute.xlu0 %2830
      %2832 = vrot.lane.b32.xlu0 %v725, 8
      %v2833 = vpop.permute.xlu0 %2832
      %2834 = vrot.lane.b32.xlu0 %v727, 8
      %v2835 = vpop.permute.xlu0 %2834
      %2836 = vrot.lane.b32.xlu0 %v729, 8
      %v2837 = vpop.permute.xlu0 %2836
      %2838 = vrot.lane.b32.xlu0 %v731, 8
      %v2839 = vpop.permute.xlu0 %2838
      %2840 = vrot.lane.b32.xlu0 %v733, 8
      %v2841 = vpop.permute.xlu0 %2840
      %2842 = vrot.lane.b32.xlu0 %v735, 8
      %v2843 = vpop.permute.xlu0 %2842
      %2844 = vrot.lane.b32.xlu0 %v737, 8
      %v2845 = vpop.permute.xlu0 %2844
      %2846 = vrot.lane.b32.xlu0 %v739, 8
      %v2847 = vpop.permute.xlu0 %2846
      %2848 = vrot.lane.b32.xlu0 %v741, 8
      %v2849 = vpop.permute.xlu0 %2848
      %2850 = vrot.lane.b32.xlu0 %v743, 8
      %v2851 = vpop.permute.xlu0 %2850
      %2852 = vrot.lane.b32.xlu0 %v745, 8
      %v2853 = vpop.permute.xlu0 %2852
      %2854 = vrot.lane.b32.xlu0 %v747, 8
      %v2855 = vpop.permute.xlu0 %2854
      %2856 = vrot.lane.b32.xlu0 %v749, 8
      %v2857 = vpop.permute.xlu0 %2856
      %2858 = vrot.lane.b32.xlu0 %v751, 8
      %v2859 = vpop.permute.xlu0 %2858
      %2860 = vrot.lane.b32.xlu0 %v753, 8
      %v2861 = vpop.permute.xlu0 %2860
      %2862 = vrot.lane.b32.xlu0 %v755, 8
      %v2863 = vpop.permute.xlu0 %2862
      %2864 = vrot.lane.b32.xlu0 %v757, 8
      %v2865 = vpop.permute.xlu0 %2864
      %2866 = vrot.lane.b32.xlu0 %v759, 8
      %v2867 = vpop.permute.xlu0 %2866
      %2868 = vrot.lane.b32.xlu0 %v761, 8
      %v2869 = vpop.permute.xlu0 %2868
      %2870 = vrot.lane.b32.xlu0 %v763, 8
      %v2871 = vpop.permute.xlu0 %2870
      %2872 = vrot.lane.b32.xlu0 %v765, 8
      %v2873 = vpop.permute.xlu0 %2872
      %2874 = vrot.lane.b32.xlu0 %v767, 8
      %v2875 = vpop.permute.xlu0 %2874
      %2876 = vrot.lane.b32.xlu0 %v769, 8
      %v2877 = vpop.permute.xlu0 %2876
      %2878 = vrot.lane.b32.xlu0 %v771, 8
      %v2879 = vpop.permute.xlu0 %2878
      %2880 = vrot.lane.b32.xlu0 %v773, 8
      %v2881 = vpop.permute.xlu0 %2880
      %2882 = vrot.lane.b32.xlu0 %v775, 8
      %v2883 = vpop.permute.xlu0 %2882
      %2884 = vrot.lane.b32.xlu0 %v777, 8
      %v2885 = vpop.permute.xlu0 %2884
      %2886 = vrot.lane.b32.xlu0 %v779, 8
      %v2887 = vpop.permute.xlu0 %2886
      %2888 = vrot.lane.b32.xlu0 %v781, 8
      %v2889 = vpop.permute.xlu0 %2888
      %2890 = vrot.lane.b32.xlu0 %v783, 8
      %v2891 = vpop.permute.xlu0 %2890
      %2892 = vrot.lane.b32.xlu0 %v785, 8
      %v2893 = vpop.permute.xlu0 %2892
      %2894 = vrot.lane.b32.xlu0 %v787, 8
      %v2895 = vpop.permute.xlu0 %2894
      %2896 = vrot.lane.b32.xlu0 %v789, 8
      %v2897 = vpop.permute.xlu0 %2896
      %2898 = vrot.lane.b32.xlu0 %v791, 8
      %v2899 = vpop.permute.xlu0 %2898
      %2900 = vrot.lane.b32.xlu0 %v793, 8
      %v2901 = vpop.permute.xlu0 %2900
      %2902 = vrot.lane.b32.xlu0 %v795, 8
      %v2903 = vpop.permute.xlu0 %2902
      %2904 = vrot.lane.b32.xlu0 %v797, 8
      %v2905 = vpop.permute.xlu0 %2904
      %2906 = vrot.lane.b32.xlu0 %v799, 8
      %v2907 = vpop.permute.xlu0 %2906
      %2908 = vrot.lane.b32.xlu0 %v801, 8
      %v2909 = vpop.permute.xlu0 %2908
      %2910 = vrot.lane.b32.xlu0 %v803, 8
      %v2911 = vpop.permute.xlu0 %2910
      %2912 = vrot.lane.b32.xlu0 %v805, 8
      %v2913 = vpop.permute.xlu0 %2912
      %2914 = vrot.lane.b32.xlu0 %v807, 8
      %v2915 = vpop.permute.xlu0 %2914
      %2916 = vrot.lane.b32.xlu0 %v809, 8
      %v2917 = vpop.permute.xlu0 %2916
      %2918 = vrot.lane.b32.xlu0 %v811, 8
      %v2919 = vpop.permute.xlu0 %2918
      %2920 = vrot.lane.b32.xlu0 %v813, 8
      %v2921 = vpop.permute.xlu0 %2920
      %2922 = vrot.lane.b32.xlu0 %v815, 8
      %v2923 = vpop.permute.xlu0 %2922
      %2924 = vrot.lane.b32.xlu0 %v817, 8
      %v2925 = vpop.permute.xlu0 %2924
      %2926 = vrot.lane.b32.xlu0 %v819, 8
      %v2927 = vpop.permute.xlu0 %2926
      %2928 = vrot.lane.b32.xlu0 %v821, 8
      %v2929 = vpop.permute.xlu0 %2928
      %2930 = vrot.lane.b32.xlu0 %v823, 8
      %v2931 = vpop.permute.xlu0 %2930
      %2932 = vrot.lane.b32.xlu0 %v825, 8
      %v2933 = vpop.permute.xlu0 %2932
      %2934 = vrot.lane.b32.xlu0 %v827, 8
      %v2935 = vpop.permute.xlu0 %2934
      %2936 = vrot.lane.b32.xlu0 %v829, 8
      %v2937 = vpop.permute.xlu0 %2936
      %2938 = vrot.lane.b32.xlu0 %v831, 8
      %v2939 = vpop.permute.xlu0 %2938
      %2940 = vrot.lane.b32.xlu0 %v833, 8
      %v2941 = vpop.permute.xlu0 %2940
      %2942 = vrot.lane.b32.xlu0 %v835, 8
      %v2943 = vpop.permute.xlu0 %2942
      %2944 = vrot.lane.b32.xlu0 %v837, 8
      %v2945 = vpop.permute.xlu0 %2944
      %2946 = vrot.lane.b32.xlu0 %v839, 8
      %v2947 = vpop.permute.xlu0 %2946
      %2948 = vrot.lane.b32.xlu0 %v841, 8
      %v2949 = vpop.permute.xlu0 %2948
      %2950 = vrot.lane.b32.xlu0 %v843, 8
      %v2951 = vpop.permute.xlu0 %2950
      %2952 = vrot.lane.b32.xlu0 %v845, 8
      %v2953 = vpop.permute.xlu0 %2952
      %2954 = vrot.lane.b32.xlu0 %v847, 8
      %v2955 = vpop.permute.xlu0 %2954
      %2956 = vrot.lane.b32.xlu0 %v849, 8
      %v2957 = vpop.permute.xlu0 %2956
      %2958 = vrot.lane.b32.xlu0 %v851, 8
      %v2959 = vpop.permute.xlu0 %2958
      %2960 = vrot.lane.b32.xlu0 %v853, 8
      %v2961 = vpop.permute.xlu0 %2960
      %2962 = vrot.lane.b32.xlu0 %v855, 8
      %v2963 = vpop.permute.xlu0 %2962
      %2964 = vrot.lane.b32.xlu0 %v857, 8
      %v2965 = vpop.permute.xlu0 %2964
      %2966 = vrot.lane.b32.xlu0 %v859, 8
      %v2967 = vpop.permute.xlu0 %2966
      %2968 = vrot.lane.b32.xlu0 %v861, 8
      %v2969 = vpop.permute.xlu0 %2968
      %2970 = vrot.lane.b32.xlu0 %v863, 8
      %v2971 = vpop.permute.xlu0 %2970
      %2972 = vrot.lane.b32.xlu0 %v865, 8
      %v2973 = vpop.permute.xlu0 %2972
      %2974 = vrot.lane.b32.xlu0 %v867, 8
      %v2975 = vpop.permute.xlu0 %2974
      %2976 = vrot.lane.b32.xlu0 %v869, 8
      %v2977 = vpop.permute.xlu0 %2976
      %2978 = vrot.lane.b32.xlu0 %v871, 8
      %v2979 = vpop.permute.xlu0 %2978
      %2980 = vrot.lane.b32.xlu0 %v873, 8
      %v2981 = vpop.permute.xlu0 %2980
      %2982 = vrot.lane.b32.xlu0 %v875, 8
      %v2983 = vpop.permute.xlu0 %2982
      %2984 = vrot.lane.b32.xlu0 %v877, 8
      %v2985 = vpop.permute.xlu0 %2984
      %3234 = vrot.lane.b32.xlu0 %v879, 16
      %v3235 = vpop.permute.xlu0 %3234
      %3236 = vrot.lane.b32.xlu0 %v881, 16
      %v3237 = vpop.permute.xlu0 %3236
      %3238 = vrot.lane.b32.xlu0 %v883, 16
      %v3239 = vpop.permute.xlu0 %3238
      %3240 = vrot.lane.b32.xlu0 %v885, 16
      %v3241 = vpop.permute.xlu0 %3240
      %3242 = vrot.lane.b32.xlu0 %v887, 16
      %v3243 = vpop.permute.xlu0 %3242
      %3244 = vrot.lane.b32.xlu0 %v889, 16
      %v3245 = vpop.permute.xlu0 %3244
      %3246 = vrot.lane.b32.xlu0 %v891, 16
      %v3247 = vpop.permute.xlu0 %3246
      %3248 = vrot.lane.b32.xlu0 %v893, 16
      %v3249 = vpop.permute.xlu0 %3248
      %3250 = vrot.lane.b32.xlu0 %v895, 16
      %v3251 = vpop.permute.xlu0 %3250
      %3252 = vrot.lane.b32.xlu0 %v897, 16
      %v3253 = vpop.permute.xlu0 %3252
      %3254 = vrot.lane.b32.xlu0 %v899, 16
      %v3255 = vpop.permute.xlu0 %3254
      %3256 = vrot.lane.b32.xlu0 %v901, 16
      %v3257 = vpop.permute.xlu0 %3256
      %3258 = vrot.lane.b32.xlu0 %v903, 16
      %v3259 = vpop.permute.xlu0 %3258
      %3260 = vrot.lane.b32.xlu0 %v905, 16
      %v3261 = vpop.permute.xlu0 %3260
      %3262 = vrot.lane.b32.xlu0 %v907, 16
      %v3263 = vpop.permute.xlu0 %3262
      %3264 = vrot.lane.b32.xlu0 %v909, 16
      %v3265 = vpop.permute.xlu0 %3264
      %3266 = vrot.lane.b32.xlu0 %v911, 16
      %v3267 = vpop.permute.xlu0 %3266
      %3268 = vrot.lane.b32.xlu0 %v913, 16
      %v3269 = vpop.permute.xlu0 %3268
      %3270 = vrot.lane.b32.xlu0 %v915, 16
      %v3271 = vpop.permute.xlu0 %3270
      %3272 = vrot.lane.b32.xlu0 %v917, 16
      %v3273 = vpop.permute.xlu0 %3272
      %3274 = vrot.lane.b32.xlu0 %v919, 16
      %v3275 = vpop.permute.xlu0 %3274
      %3276 = vrot.lane.b32.xlu0 %v921, 16
      %v3277 = vpop.permute.xlu0 %3276
      %3278 = vrot.lane.b32.xlu0 %v923, 16
      %v3279 = vpop.permute.xlu0 %3278
      %3280 = vrot.lane.b32.xlu0 %v925, 16
      %v3281 = vpop.permute.xlu0 %3280
      %3282 = vrot.lane.b32.xlu0 %v927, 16
      %v3283 = vpop.permute.xlu0 %3282
      %3284 = vrot.lane.b32.xlu0 %v929, 16
      %v3285 = vpop.permute.xlu0 %3284
      %3286 = vrot.lane.b32.xlu0 %v931, 16
      %v3287 = vpop.permute.xlu0 %3286
      %3288 = vrot.lane.b32.xlu0 %v933, 16
      %v3289 = vpop.permute.xlu0 %3288
      %3290 = vrot.lane.b32.xlu0 %v935, 16
      %v3291 = vpop.permute.xlu0 %3290
      %3292 = vrot.lane.b32.xlu0 %v937, 16
      %v3293 = vpop.permute.xlu0 %3292
      %3294 = vrot.lane.b32.xlu0 %v939, 16
      %v3295 = vpop.permute.xlu0 %3294
      %3296 = vrot.lane.b32.xlu0 %v941, 16
      %v3297 = vpop.permute.xlu0 %3296
      %3298 = vrot.lane.b32.xlu0 %v943, 16
      %v3299 = vpop.permute.xlu0 %3298
      %3300 = vrot.lane.b32.xlu0 %v945, 16
      %v3301 = vpop.permute.xlu0 %3300
      %3302 = vrot.lane.b32.xlu0 %v947, 16
      %v3303 = vpop.permute.xlu0 %3302
      %3304 = vrot.lane.b32.xlu0 %v949, 16
      %v3305 = vpop.permute.xlu0 %3304
      %3306 = vrot.lane.b32.xlu0 %v951, 16
      %v3307 = vpop.permute.xlu0 %3306
      %3308 = vrot.lane.b32.xlu0 %v953, 16
      %v3309 = vpop.permute.xlu0 %3308
      %3310 = vrot.lane.b32.xlu0 %v955, 16
      %v3311 = vpop.permute.xlu0 %3310
      %3312 = vrot.lane.b32.xlu0 %v957, 16
      %v3313 = vpop.permute.xlu0 %3312
      %3314 = vrot.lane.b32.xlu0 %v959, 16
      %v3315 = vpop.permute.xlu0 %3314
      %3316 = vrot.lane.b32.xlu0 %v961, 16
      %v3317 = vpop.permute.xlu0 %3316
      %3318 = vrot.lane.b32.xlu0 %v963, 16
      %v3319 = vpop.permute.xlu0 %3318
      %3320 = vrot.lane.b32.xlu0 %v965, 16
      %v3321 = vpop.permute.xlu0 %3320
      %3322 = vrot.lane.b32.xlu0 %v967, 16
      %v3323 = vpop.permute.xlu0 %3322
      %3324 = vrot.lane.b32.xlu0 %v969, 16
      %v3325 = vpop.permute.xlu0 %3324
      %3326 = vrot.lane.b32.xlu0 %v971, 16
      %v3327 = vpop.permute.xlu0 %3326
      %3328 = vrot.lane.b32.xlu0 %v973, 16
      %v3329 = vpop.permute.xlu0 %3328
      %3330 = vrot.lane.b32.xlu0 %v975, 16
      %v3331 = vpop.permute.xlu0 %3330
      %3332 = vrot.lane.b32.xlu0 %v977, 16
      %v3333 = vpop.permute.xlu0 %3332
      %3334 = vrot.lane.b32.xlu0 %v979, 16
      %v3335 = vpop.permute.xlu0 %3334
      %3336 = vrot.lane.b32.xlu0 %v981, 16
      %v3337 = vpop.permute.xlu0 %3336
      %3338 = vrot.lane.b32.xlu0 %v983, 16
      %v3339 = vpop.permute.xlu0 %3338
      %3340 = vrot.lane.b32.xlu0 %v985, 16
      %v3341 = vpop.permute.xlu0 %3340
      %3342 = vrot.lane.b32.xlu0 %v987, 16
      %v3343 = vpop.permute.xlu0 %3342
      %3344 = vrot.lane.b32.xlu0 %v989, 16
      %v3345 = vpop.permute.xlu0 %3344
      %3346 = vrot.lane.b32.xlu0 %v991, 16
      %v3347 = vpop.permute.xlu0 %3346
      %3348 = vrot.lane.b32.xlu0 %v993, 16
      %v3349 = vpop.permute.xlu0 %3348
      %3350 = vrot.lane.b32.xlu0 %v995, 16
      %v3351 = vpop.permute.xlu0 %3350
      %3352 = vrot.lane.b32.xlu0 %v997, 16
      %v3353 = vpop.permute.xlu0 %3352
      %3354 = vrot.lane.b32.xlu0 %v999, 16
      %v3355 = vpop.permute.xlu0 %3354
      %3356 = vrot.lane.b32.xlu0 %v1001, 16
      %v3357 = vpop.permute.xlu0 %3356
      %3358 = vrot.lane.b32.xlu0 %v1003, 16
      %v3359 = vpop.permute.xlu0 %3358
      %3360 = vrot.lane.b32.xlu0 %v1005, 16
      %v3361 = vpop.permute.xlu0 %3360
      %3362 = vrot.lane.b32.xlu0 %v1007, 16
      %v3363 = vpop.permute.xlu0 %3362
      %3364 = vrot.lane.b32.xlu0 %v1009, 16
      %v3365 = vpop.permute.xlu0 %3364
      %3366 = vrot.lane.b32.xlu0 %v1011, 16
      %v3367 = vpop.permute.xlu0 %3366
      %3368 = vrot.lane.b32.xlu0 %v1013, 16
      %v3369 = vpop.permute.xlu0 %3368
      %3370 = vrot.lane.b32.xlu0 %v1015, 16
      %v3371 = vpop.permute.xlu0 %3370
      %3372 = vrot.lane.b32.xlu0 %v1017, 16
      %v3373 = vpop.permute.xlu0 %3372
      %3374 = vrot.lane.b32.xlu0 %v1019, 16
      %v3375 = vpop.permute.xlu0 %3374
      %3376 = vrot.lane.b32.xlu0 %v1021, 16
      %v3377 = vpop.permute.xlu0 %3376
      %3378 = vrot.lane.b32.xlu0 %v1023, 16
      %v3379 = vpop.permute.xlu0 %3378
      %3380 = vrot.lane.b32.xlu0 %v1025, 16
      %v3381 = vpop.permute.xlu0 %3380
      %3382 = vrot.lane.b32.xlu0 %v1027, 16
      %v3383 = vpop.permute.xlu0 %3382
      %3384 = vrot.lane.b32.xlu0 %v1029, 16
      %v3385 = vpop.permute.xlu0 %3384
      %3386 = vrot.lane.b32.xlu0 %v1031, 16
      %v3387 = vpop.permute.xlu0 %3386
      %3388 = vrot.lane.b32.xlu0 %v1033, 16
      %v3389 = vpop.permute.xlu0 %3388
      %3390 = vrot.lane.b32.xlu0 %v1035, 16
      %v3391 = vpop.permute.xlu0 %3390
      %3392 = vrot.lane.b32.xlu0 %v1037, 16
      %v3393 = vpop.permute.xlu0 %3392
      %3394 = vrot.lane.b32.xlu0 %v1039, 16
      %v3395 = vpop.permute.xlu0 %3394
      %3396 = vrot.lane.b32.xlu0 %v1041, 16
      %v3397 = vpop.permute.xlu0 %3396
      %3398 = vrot.lane.b32.xlu0 %v1043, 16
      %v3399 = vpop.permute.xlu0 %3398
      %3400 = vrot.lane.b32.xlu0 %v1045, 16
      %v3401 = vpop.permute.xlu0 %3400
      %3402 = vrot.lane.b32.xlu0 %v1047, 16
      %v3403 = vpop.permute.xlu0 %3402
      %3404 = vrot.lane.b32.xlu0 %v1049, 16
      %v3405 = vpop.permute.xlu0 %3404
      %3406 = vrot.lane.b32.xlu0 %v1051, 16
      %v3407 = vpop.permute.xlu0 %3406
      %3408 = vrot.lane.b32.xlu0 %v1053, 16
      %v3409 = vpop.permute.xlu0 %3408
      %3410 = vrot.lane.b32.xlu0 %v1055, 16
      %v3411 = vpop.permute.xlu0 %3410
      %3412 = vrot.lane.b32.xlu0 %v1057, 16
      %v3413 = vpop.permute.xlu0 %3412
      %3414 = vrot.lane.b32.xlu0 %v1059, 16
      %v3415 = vpop.permute.xlu0 %3414
      %3416 = vrot.lane.b32.xlu0 %v1061, 16
      %v3417 = vpop.permute.xlu0 %3416
      %3418 = vrot.lane.b32.xlu0 %v1063, 16
      %v3419 = vpop.permute.xlu0 %3418
      %3420 = vrot.lane.b32.xlu0 %v1065, 16
      %v3421 = vpop.permute.xlu0 %3420
      %3422 = vrot.lane.b32.xlu0 %v1067, 16
      %v3423 = vpop.permute.xlu0 %3422
      %3424 = vrot.lane.b32.xlu0 %v1069, 16
      %v3425 = vpop.permute.xlu0 %3424
      %3426 = vrot.lane.b32.xlu0 %v1071, 16
      %v3427 = vpop.permute.xlu0 %3426
      %3428 = vrot.lane.b32.xlu0 %v1073, 16
      %v3429 = vpop.permute.xlu0 %3428
      %3430 = vrot.lane.b32.xlu0 %v1075, 16
      %v3431 = vpop.permute.xlu0 %3430
      %3432 = vrot.lane.b32.xlu0 %v1077, 16
      %v3433 = vpop.permute.xlu0 %3432
      %3434 = vrot.lane.b32.xlu0 %v1079, 16
      %v3435 = vpop.permute.xlu0 %3434
      %3436 = vrot.lane.b32.xlu0 %v1081, 16
      %v3437 = vpop.permute.xlu0 %3436
      %3438 = vrot.lane.b32.xlu0 %v1083, 16
      %v3439 = vpop.permute.xlu0 %3438
      %3440 = vrot.lane.b32.xlu0 %v1085, 16
      %v3441 = vpop.permute.xlu0 %3440
      %3442 = vrot.lane.b32.xlu0 %v1087, 16
      %v3443 = vpop.permute.xlu0 %3442
      %3444 = vrot.lane.b32.xlu0 %v1089, 16
      %v3445 = vpop.permute.xlu0 %3444
      %3446 = vrot.lane.b32.xlu0 %v1091, 16
      %v3447 = vpop.permute.xlu0 %3446
      %3448 = vrot.lane.b32.xlu0 %v1093, 16
      %v3449 = vpop.permute.xlu0 %3448
      %3450 = vrot.lane.b32.xlu0 %v1095, 16
      %v3451 = vpop.permute.xlu0 %3450
      %3452 = vrot.lane.b32.xlu0 %v1097, 16
      %v3453 = vpop.permute.xlu0 %3452
      %3454 = vrot.lane.b32.xlu0 %v1099, 16
      %v3455 = vpop.permute.xlu0 %3454
      %3456 = vrot.lane.b32.xlu0 %v1101, 16
      %v3457 = vpop.permute.xlu0 %3456
      %3458 = vrot.lane.b32.xlu0 %v1103, 16
      %v3459 = vpop.permute.xlu0 %3458
      %3460 = vrot.lane.b32.xlu0 %v1105, 16
      %v3461 = vpop.permute.xlu0 %3460
      %3462 = vrot.lane.b32.xlu0 %v1107, 16
      %v3463 = vpop.permute.xlu0 %3462
      %3464 = vrot.lane.b32.xlu0 %v1109, 16
      %v3465 = vpop.permute.xlu0 %3464
      %3466 = vrot.lane.b32.xlu0 %v1111, 16
      %v3467 = vpop.permute.xlu0 %3466
      %3468 = vrot.lane.b32.xlu0 %v1113, 16
      %v3469 = vpop.permute.xlu0 %3468
      %3470 = vrot.lane.b32.xlu0 %v1115, 16
      %v3471 = vpop.permute.xlu0 %3470
      %3472 = vrot.lane.b32.xlu0 %v1117, 16
      %v3473 = vpop.permute.xlu0 %3472
      %3474 = vrot.lane.b32.xlu0 %v1119, 16
      %v3475 = vpop.permute.xlu0 %3474
      %3476 = vrot.lane.b32.xlu0 %v1121, 16
      %v3477 = vpop.permute.xlu0 %3476
      %3478 = vrot.lane.b32.xlu0 %v1123, 16
      %v3479 = vpop.permute.xlu0 %3478
      %3480 = vrot.lane.b32.xlu0 %v1125, 16
      %v3481 = vpop.permute.xlu0 %3480
      %3730 = vrot.lane.b32.xlu0 %v1127, 24
      %v3731 = vpop.permute.xlu0 %3730
      %3732 = vrot.lane.b32.xlu0 %v1129, 24
      %v3733 = vpop.permute.xlu0 %3732
      %3734 = vrot.lane.b32.xlu0 %v1131, 24
      %v3735 = vpop.permute.xlu0 %3734
      %3736 = vrot.lane.b32.xlu0 %v1133, 24
      %v3737 = vpop.permute.xlu0 %3736
      %3738 = vrot.lane.b32.xlu0 %v1135, 24
      %v3739 = vpop.permute.xlu0 %3738
      %3740 = vrot.lane.b32.xlu0 %v1137, 24
      %v3741 = vpop.permute.xlu0 %3740
      %3742 = vrot.lane.b32.xlu0 %v1139, 24
      %v3743 = vpop.permute.xlu0 %3742
      %3744 = vrot.lane.b32.xlu0 %v1141, 24
      %v3745 = vpop.permute.xlu0 %3744
      %3746 = vrot.lane.b32.xlu0 %v1143, 24
      %v3747 = vpop.permute.xlu0 %3746
      %3748 = vrot.lane.b32.xlu0 %v1145, 24
      %v3749 = vpop.permute.xlu0 %3748
      %3750 = vrot.lane.b32.xlu0 %v1147, 24
      %v3751 = vpop.permute.xlu0 %3750
      %3752 = vrot.lane.b32.xlu0 %v1149, 24
      %v3753 = vpop.permute.xlu0 %3752
      %3754 = vrot.lane.b32.xlu0 %v1151, 24
      %v3755 = vpop.permute.xlu0 %3754
      %3756 = vrot.lane.b32.xlu0 %v1153, 24
      %v3757 = vpop.permute.xlu0 %3756
      %3758 = vrot.lane.b32.xlu0 %v1155, 24
      %v3759 = vpop.permute.xlu0 %3758
      %3760 = vrot.lane.b32.xlu0 %v1157, 24
      %v3761 = vpop.permute.xlu0 %3760
      %3762 = vrot.lane.b32.xlu0 %v1159, 24
      %v3763 = vpop.permute.xlu0 %3762
      %3764 = vrot.lane.b32.xlu0 %v1161, 24
      %v3765 = vpop.permute.xlu0 %3764
      %3766 = vrot.lane.b32.xlu0 %v1163, 24
      %v3767 = vpop.permute.xlu0 %3766
      %3768 = vrot.lane.b32.xlu0 %v1165, 24
      %v3769 = vpop.permute.xlu0 %3768
      %3770 = vrot.lane.b32.xlu0 %v1167, 24
      %v3771 = vpop.permute.xlu0 %3770
      %3772 = vrot.lane.b32.xlu0 %v1169, 24
      %v3773 = vpop.permute.xlu0 %3772
      %3774 = vrot.lane.b32.xlu0 %v1171, 24
      %v3775 = vpop.permute.xlu0 %3774
      %3776 = vrot.lane.b32.xlu0 %v1173, 24
      %v3777 = vpop.permute.xlu0 %3776
      %3778 = vrot.lane.b32.xlu0 %v1175, 24
      %v3779 = vpop.permute.xlu0 %3778
      %3780 = vrot.lane.b32.xlu0 %v1177, 24
      %v3781 = vpop.permute.xlu0 %3780
      %3782 = vrot.lane.b32.xlu0 %v1179, 24
      %v3783 = vpop.permute.xlu0 %3782
      %3784 = vrot.lane.b32.xlu0 %v1181, 24
      %v3785 = vpop.permute.xlu0 %3784
      %3786 = vrot.lane.b32.xlu0 %v1183, 24
      %v3787 = vpop.permute.xlu0 %3786
      %3788 = vrot.lane.b32.xlu0 %v1185, 24
      %v3789 = vpop.permute.xlu0 %3788
      %3790 = vrot.lane.b32.xlu0 %v1187, 24
      %v3791 = vpop.permute.xlu0 %3790
      %3792 = vrot.lane.b32.xlu0 %v1189, 24
      %v3793 = vpop.permute.xlu0 %3792
      %3794 = vrot.lane.b32.xlu0 %v1191, 24
      %v3795 = vpop.permute.xlu0 %3794
      %3796 = vrot.lane.b32.xlu0 %v1193, 24
      %v3797 = vpop.permute.xlu0 %3796
      %3798 = vrot.lane.b32.xlu0 %v1195, 24
      %v3799 = vpop.permute.xlu0 %3798
      %3800 = vrot.lane.b32.xlu0 %v1197, 24
      %v3801 = vpop.permute.xlu0 %3800
      %3802 = vrot.lane.b32.xlu0 %v1199, 24
      %v3803 = vpop.permute.xlu0 %3802
      %3804 = vrot.lane.b32.xlu0 %v1201, 24
      %v3805 = vpop.permute.xlu0 %3804
      %3806 = vrot.lane.b32.xlu0 %v1203, 24
      %v3807 = vpop.permute.xlu0 %3806
      %3808 = vrot.lane.b32.xlu0 %v1205, 24
      %v3809 = vpop.permute.xlu0 %3808
      %3810 = vrot.lane.b32.xlu0 %v1207, 24
      %v3811 = vpop.permute.xlu0 %3810
      %3812 = vrot.lane.b32.xlu0 %v1209, 24
      %v3813 = vpop.permute.xlu0 %3812
      %3814 = vrot.lane.b32.xlu0 %v1211, 24
      %v3815 = vpop.permute.xlu0 %3814
      %3816 = vrot.lane.b32.xlu0 %v1213, 24
      %v3817 = vpop.permute.xlu0 %3816
      %3818 = vrot.lane.b32.xlu0 %v1215, 24
      %v3819 = vpop.permute.xlu0 %3818
      %3820 = vrot.lane.b32.xlu0 %v1217, 24
      %v3821 = vpop.permute.xlu0 %3820
      %3822 = vrot.lane.b32.xlu0 %v1219, 24
      %v3823 = vpop.permute.xlu0 %3822
      %3824 = vrot.lane.b32.xlu0 %v1221, 24
      %v3825 = vpop.permute.xlu0 %3824
      %3826 = vrot.lane.b32.xlu0 %v1223, 24
      %v3827 = vpop.permute.xlu0 %3826
      %3828 = vrot.lane.b32.xlu0 %v1225, 24
      %v3829 = vpop.permute.xlu0 %3828
      %3830 = vrot.lane.b32.xlu0 %v1227, 24
      %v3831 = vpop.permute.xlu0 %3830
      %3832 = vrot.lane.b32.xlu0 %v1229, 24
      %v3833 = vpop.permute.xlu0 %3832
      %3834 = vrot.lane.b32.xlu0 %v1231, 24
      %v3835 = vpop.permute.xlu0 %3834
      %3836 = vrot.lane.b32.xlu0 %v1233, 24
      %v3837 = vpop.permute.xlu0 %3836
      %3838 = vrot.lane.b32.xlu0 %v1235, 24
      %v3839 = vpop.permute.xlu0 %3838
      %3840 = vrot.lane.b32.xlu0 %v1237, 24
      %v3841 = vpop.permute.xlu0 %3840
      %3842 = vrot.lane.b32.xlu0 %v1239, 24
      %v3843 = vpop.permute.xlu0 %3842
      %3844 = vrot.lane.b32.xlu0 %v1241, 24
      %v3845 = vpop.permute.xlu0 %3844
      %3846 = vrot.lane.b32.xlu0 %v1243, 24
      %v3847 = vpop.permute.xlu0 %3846
      %3848 = vrot.lane.b32.xlu0 %v1245, 24
      %v3849 = vpop.permute.xlu0 %3848
      %3850 = vrot.lane.b32.xlu0 %v1247, 24
      %v3851 = vpop.permute.xlu0 %3850
      %3852 = vrot.lane.b32.xlu0 %v1249, 24
      %v3853 = vpop.permute.xlu0 %3852
      %3854 = vrot.lane.b32.xlu0 %v1251, 24
      %v3855 = vpop.permute.xlu0 %3854
      %3856 = vrot.lane.b32.xlu0 %v1253, 24
      %v3857 = vpop.permute.xlu0 %3856
      %3858 = vrot.lane.b32.xlu0 %v1255, 24
      %v3859 = vpop.permute.xlu0 %3858
      %3860 = vrot.lane.b32.xlu0 %v1257, 24
      %v3861 = vpop.permute.xlu0 %3860
      %3862 = vrot.lane.b32.xlu0 %v1259, 24
      %v3863 = vpop.permute.xlu0 %3862
      %3864 = vrot.lane.b32.xlu0 %v1261, 24
      %v3865 = vpop.permute.xlu0 %3864
      %3866 = vrot.lane.b32.xlu0 %v1263, 24
      %v3867 = vpop.permute.xlu0 %3866
      %3868 = vrot.lane.b32.xlu0 %v1265, 24
      %v3869 = vpop.permute.xlu0 %3868
      %3870 = vrot.lane.b32.xlu0 %v1267, 24
      %v3871 = vpop.permute.xlu0 %3870
      %3872 = vrot.lane.b32.xlu0 %v1269, 24
      %v3873 = vpop.permute.xlu0 %3872
      %3874 = vrot.lane.b32.xlu0 %v1271, 24
      %v3875 = vpop.permute.xlu0 %3874
      %3876 = vrot.lane.b32.xlu0 %v1273, 24
      %v3877 = vpop.permute.xlu0 %3876
      %3878 = vrot.lane.b32.xlu0 %v1275, 24
      %v3879 = vpop.permute.xlu0 %3878
      %3880 = vrot.lane.b32.xlu0 %v1277, 24
      %v3881 = vpop.permute.xlu0 %3880
      %3882 = vrot.lane.b32.xlu0 %v1279, 24
      %v3883 = vpop.permute.xlu0 %3882
      %3884 = vrot.lane.b32.xlu0 %v1281, 24
      %v3885 = vpop.permute.xlu0 %3884
      %3886 = vrot.lane.b32.xlu0 %v1283, 24
      %v3887 = vpop.permute.xlu0 %3886
      %3888 = vrot.lane.b32.xlu0 %v1285, 24
      %v3889 = vpop.permute.xlu0 %3888
      %3890 = vrot.lane.b32.xlu0 %v1287, 24
      %v3891 = vpop.permute.xlu0 %3890
      %3892 = vrot.lane.b32.xlu0 %v1289, 24
      %v3893 = vpop.permute.xlu0 %3892
      %3894 = vrot.lane.b32.xlu0 %v1291, 24
      %v3895 = vpop.permute.xlu0 %3894
      %3896 = vrot.lane.b32.xlu0 %v1293, 24
      %v3897 = vpop.permute.xlu0 %3896
      %3898 = vrot.lane.b32.xlu0 %v1295, 24
      %v3899 = vpop.permute.xlu0 %3898
      %3900 = vrot.lane.b32.xlu0 %v1297, 24
      %v3901 = vpop.permute.xlu0 %3900
      %3902 = vrot.lane.b32.xlu0 %v1299, 24
      %v3903 = vpop.permute.xlu0 %3902
      %3904 = vrot.lane.b32.xlu0 %v1301, 24
      %v3905 = vpop.permute.xlu0 %3904
      %3906 = vrot.lane.b32.xlu0 %v1303, 24
      %v3907 = vpop.permute.xlu0 %3906
      %3908 = vrot.lane.b32.xlu0 %v1305, 24
      %v3909 = vpop.permute.xlu0 %3908
      %3910 = vrot.lane.b32.xlu0 %v1307, 24
      %v3911 = vpop.permute.xlu0 %3910
      %3912 = vrot.lane.b32.xlu0 %v1309, 24
      %v3913 = vpop.permute.xlu0 %3912
      %3914 = vrot.lane.b32.xlu0 %v1311, 24
      %v3915 = vpop.permute.xlu0 %3914
      %3916 = vrot.lane.b32.xlu0 %v1313, 24
      %v3917 = vpop.permute.xlu0 %3916
      %3918 = vrot.lane.b32.xlu0 %v1315, 24
      %v3919 = vpop.permute.xlu0 %3918
      %3920 = vrot.lane.b32.xlu0 %v1317, 24
      %v3921 = vpop.permute.xlu0 %3920
      %3922 = vrot.lane.b32.xlu0 %v1319, 24
      %v3923 = vpop.permute.xlu0 %3922
      %3924 = vrot.lane.b32.xlu0 %v1321, 24
      %v3925 = vpop.permute.xlu0 %3924
      %3926 = vrot.lane.b32.xlu0 %v1323, 24
      %v3927 = vpop.permute.xlu0 %3926
      %3928 = vrot.lane.b32.xlu0 %v1325, 24
      %v3929 = vpop.permute.xlu0 %3928
      %3930 = vrot.lane.b32.xlu0 %v1327, 24
      %v3931 = vpop.permute.xlu0 %3930
      %3932 = vrot.lane.b32.xlu0 %v1329, 24
      %v3933 = vpop.permute.xlu0 %3932
      %3934 = vrot.lane.b32.xlu0 %v1331, 24
      %v3935 = vpop.permute.xlu0 %3934
      %3936 = vrot.lane.b32.xlu0 %v1333, 24
      %v3937 = vpop.permute.xlu0 %3936
      %3938 = vrot.lane.b32.xlu0 %v1335, 24
      %v3939 = vpop.permute.xlu0 %3938
      %3940 = vrot.lane.b32.xlu0 %v1337, 24
      %v3941 = vpop.permute.xlu0 %3940
      %3942 = vrot.lane.b32.xlu0 %v1339, 24
      %v3943 = vpop.permute.xlu0 %3942
      %3944 = vrot.lane.b32.xlu0 %v1341, 24
      %v3945 = vpop.permute.xlu0 %3944
      %3946 = vrot.lane.b32.xlu0 %v1343, 24
      %v3947 = vpop.permute.xlu0 %3946
      %3948 = vrot.lane.b32.xlu0 %v1345, 24
      %v3949 = vpop.permute.xlu0 %3948
      %3950 = vrot.lane.b32.xlu0 %v1347, 24
      %v3951 = vpop.permute.xlu0 %3950
      %3952 = vrot.lane.b32.xlu0 %v1349, 24
      %v3953 = vpop.permute.xlu0 %3952
      %3954 = vrot.lane.b32.xlu0 %v1351, 24
      %v3955 = vpop.permute.xlu0 %3954
      %3956 = vrot.lane.b32.xlu0 %v1353, 24
      %v3957 = vpop.permute.xlu0 %3956
      %3958 = vrot.lane.b32.xlu0 %v1355, 24
      %v3959 = vpop.permute.xlu0 %3958
      %3960 = vrot.lane.b32.xlu0 %v1357, 24
      %v3961 = vpop.permute.xlu0 %3960
      %3962 = vrot.lane.b32.xlu0 %v1359, 24
      %v3963 = vpop.permute.xlu0 %3962
      %3964 = vrot.lane.b32.xlu0 %v1361, 24
      %v3965 = vpop.permute.xlu0 %3964
      %3966 = vrot.lane.b32.xlu0 %v1363, 24
      %v3967 = vpop.permute.xlu0 %3966
      %3968 = vrot.lane.b32.xlu0 %v1365, 24
      %v3969 = vpop.permute.xlu0 %3968
      %3970 = vrot.lane.b32.xlu0 %v1367, 24
      %v3971 = vpop.permute.xlu0 %3970
      %3972 = vrot.lane.b32.xlu0 %v1369, 24
      %v3973 = vpop.permute.xlu0 %3972
      %3974 = vrot.lane.b32.xlu0 %v1371, 24
      %v3975 = vpop.permute.xlu0 %3974
      %3976 = vrot.lane.b32.xlu0 %v1373, 24
      %v3977 = vpop.permute.xlu0 %3976
      %4226 = vrot.lane.b32.xlu0 %v1375, 32
      %v4227 = vpop.permute.xlu0 %4226
      %4228 = vrot.lane.b32.xlu0 %v1377, 32
      %v4229 = vpop.permute.xlu0 %4228
      %4230 = vrot.lane.b32.xlu0 %v1379, 32
      %v4231 = vpop.permute.xlu0 %4230
      %4232 = vrot.lane.b32.xlu0 %v1381, 32
      %v4233 = vpop.permute.xlu0 %4232
      %4234 = vrot.lane.b32.xlu0 %v1383, 32
      %v4235 = vpop.permute.xlu0 %4234
      %4236 = vrot.lane.b32.xlu0 %v1385, 32
      %v4237 = vpop.permute.xlu0 %4236
      %4238 = vrot.lane.b32.xlu0 %v1387, 32
      %v4239 = vpop.permute.xlu0 %4238
      %4240 = vrot.lane.b32.xlu0 %v1389, 32
      %v4241 = vpop.permute.xlu0 %4240
      %4242 = vrot.lane.b32.xlu0 %v1391, 32
      %v4243 = vpop.permute.xlu0 %4242
      %4244 = vrot.lane.b32.xlu0 %v1393, 32
      %v4245 = vpop.permute.xlu0 %4244
      %4246 = vrot.lane.b32.xlu0 %v1395, 32
      %v4247 = vpop.permute.xlu0 %4246
      %4248 = vrot.lane.b32.xlu0 %v1397, 32
      %v4249 = vpop.permute.xlu0 %4248
      %4250 = vrot.lane.b32.xlu0 %v1399, 32
      %v4251 = vpop.permute.xlu0 %4250
      %4252 = vrot.lane.b32.xlu0 %v1401, 32
      %v4253 = vpop.permute.xlu0 %4252
      %4254 = vrot.lane.b32.xlu0 %v1403, 32
      %v4255 = vpop.permute.xlu0 %4254
      %4256 = vrot.lane.b32.xlu0 %v1405, 32
      %v4257 = vpop.permute.xlu0 %4256
      %4258 = vrot.lane.b32.xlu0 %v1407, 32
      %v4259 = vpop.permute.xlu0 %4258
      %4260 = vrot.lane.b32.xlu0 %v1409, 32
      %v4261 = vpop.permute.xlu0 %4260
      %4262 = vrot.lane.b32.xlu0 %v1411, 32
      %v4263 = vpop.permute.xlu0 %4262
      %4264 = vrot.lane.b32.xlu0 %v1413, 32
      %v4265 = vpop.permute.xlu0 %4264
      %4266 = vrot.lane.b32.xlu0 %v1415, 32
      %v4267 = vpop.permute.xlu0 %4266
      %4268 = vrot.lane.b32.xlu0 %v1417, 32
      %v4269 = vpop.permute.xlu0 %4268
      %4270 = vrot.lane.b32.xlu0 %v1419, 32
      %v4271 = vpop.permute.xlu0 %4270
      %4272 = vrot.lane.b32.xlu0 %v1421, 32
      %v4273 = vpop.permute.xlu0 %4272
      %4274 = vrot.lane.b32.xlu0 %v1423, 32
      %v4275 = vpop.permute.xlu0 %4274
      %4276 = vrot.lane.b32.xlu0 %v1425, 32
      %v4277 = vpop.permute.xlu0 %4276
      %4278 = vrot.lane.b32.xlu0 %v1427, 32
      %v4279 = vpop.permute.xlu0 %4278
      %4280 = vrot.lane.b32.xlu0 %v1429, 32
      %v4281 = vpop.permute.xlu0 %4280
      %4282 = vrot.lane.b32.xlu0 %v1431, 32
      %v4283 = vpop.permute.xlu0 %4282
      %4284 = vrot.lane.b32.xlu0 %v1433, 32
      %v4285 = vpop.permute.xlu0 %4284
      %4286 = vrot.lane.b32.xlu0 %v1435, 32
      %v4287 = vpop.permute.xlu0 %4286
      %4288 = vrot.lane.b32.xlu0 %v1437, 32
      %v4289 = vpop.permute.xlu0 %4288
      %4290 = vrot.lane.b32.xlu0 %v1439, 32
      %v4291 = vpop.permute.xlu0 %4290
      %4292 = vrot.lane.b32.xlu0 %v1441, 32
      %v4293 = vpop.permute.xlu0 %4292
      %4294 = vrot.lane.b32.xlu0 %v1443, 32
      %v4295 = vpop.permute.xlu0 %4294
      %4296 = vrot.lane.b32.xlu0 %v1445, 32
      %v4297 = vpop.permute.xlu0 %4296
      %4298 = vrot.lane.b32.xlu0 %v1447, 32
      %v4299 = vpop.permute.xlu0 %4298
      %4300 = vrot.lane.b32.xlu0 %v1449, 32
      %v4301 = vpop.permute.xlu0 %4300
      %4302 = vrot.lane.b32.xlu0 %v1451, 32
      %v4303 = vpop.permute.xlu0 %4302
      %4304 = vrot.lane.b32.xlu0 %v1453, 32
      %v4305 = vpop.permute.xlu0 %4304
      %4306 = vrot.lane.b32.xlu0 %v1455, 32
      %v4307 = vpop.permute.xlu0 %4306
      %4308 = vrot.lane.b32.xlu0 %v1457, 32
      %v4309 = vpop.permute.xlu0 %4308
      %4310 = vrot.lane.b32.xlu0 %v1459, 32
      %v4311 = vpop.permute.xlu0 %4310
      %4312 = vrot.lane.b32.xlu0 %v1461, 32
      %v4313 = vpop.permute.xlu0 %4312
      %4314 = vrot.lane.b32.xlu0 %v1463, 32
      %v4315 = vpop.permute.xlu0 %4314
      %4316 = vrot.lane.b32.xlu0 %v1465, 32
      %v4317 = vpop.permute.xlu0 %4316
      %4318 = vrot.lane.b32.xlu0 %v1467, 32
      %v4319 = vpop.permute.xlu0 %4318
      %4320 = vrot.lane.b32.xlu0 %v1469, 32
      %v4321 = vpop.permute.xlu0 %4320
      %4322 = vrot.lane.b32.xlu0 %v1471, 32
      %v4323 = vpop.permute.xlu0 %4322
      %4324 = vrot.lane.b32.xlu0 %v1473, 32
      %v4325 = vpop.permute.xlu0 %4324
      %4326 = vrot.lane.b32.xlu0 %v1475, 32
      %v4327 = vpop.permute.xlu0 %4326
      %4328 = vrot.lane.b32.xlu0 %v1477, 32
      %v4329 = vpop.permute.xlu0 %4328
      %4330 = vrot.lane.b32.xlu0 %v1479, 32
      %v4331 = vpop.permute.xlu0 %4330
      %4332 = vrot.lane.b32.xlu0 %v1481, 32
      %v4333 = vpop.permute.xlu0 %4332
      %4334 = vrot.lane.b32.xlu0 %v1483, 32
      %v4335 = vpop.permute.xlu0 %4334
      %4336 = vrot.lane.b32.xlu0 %v1485, 32
      %v4337 = vpop.permute.xlu0 %4336
      %4338 = vrot.lane.b32.xlu0 %v1487, 32
      %v4339 = vpop.permute.xlu0 %4338
      %4340 = vrot.lane.b32.xlu0 %v1489, 32
      %v4341 = vpop.permute.xlu0 %4340
      %4342 = vrot.lane.b32.xlu0 %v1491, 32
      %v4343 = vpop.permute.xlu0 %4342
      %4344 = vrot.lane.b32.xlu0 %v1493, 32
      %v4345 = vpop.permute.xlu0 %4344
      %4346 = vrot.lane.b32.xlu0 %v1495, 32
      %v4347 = vpop.permute.xlu0 %4346
      %4348 = vrot.lane.b32.xlu0 %v1497, 32
      %v4349 = vpop.permute.xlu0 %4348
      %4350 = vrot.lane.b32.xlu0 %v1499, 32
      %v4351 = vpop.permute.xlu0 %4350
      %4352 = vrot.lane.b32.xlu0 %v1501, 32
      %v4353 = vpop.permute.xlu0 %4352
      %4354 = vrot.lane.b32.xlu0 %v1503, 32
      %v4355 = vpop.permute.xlu0 %4354
      %4356 = vrot.lane.b32.xlu0 %v1505, 32
      %v4357 = vpop.permute.xlu0 %4356
      %4358 = vrot.lane.b32.xlu0 %v1507, 32
      %v4359 = vpop.permute.xlu0 %4358
      %4360 = vrot.lane.b32.xlu0 %v1509, 32
      %v4361 = vpop.permute.xlu0 %4360
      %4362 = vrot.lane.b32.xlu0 %v1511, 32
      %v4363 = vpop.permute.xlu0 %4362
      %4364 = vrot.lane.b32.xlu0 %v1513, 32
      %v4365 = vpop.permute.xlu0 %4364
      %4366 = vrot.lane.b32.xlu0 %v1515, 32
      %v4367 = vpop.permute.xlu0 %4366
      %4368 = vrot.lane.b32.xlu0 %v1517, 32
      %v4369 = vpop.permute.xlu0 %4368
      %4370 = vrot.lane.b32.xlu0 %v1519, 32
      %v4371 = vpop.permute.xlu0 %4370
      %4372 = vrot.lane.b32.xlu0 %v1521, 32
      %v4373 = vpop.permute.xlu0 %4372
      %4374 = vrot.lane.b32.xlu0 %v1523, 32
      %v4375 = vpop.permute.xlu0 %4374
      %4376 = vrot.lane.b32.xlu0 %v1525, 32
      %v4377 = vpop.permute.xlu0 %4376
      %4378 = vrot.lane.b32.xlu0 %v1527, 32
      %v4379 = vpop.permute.xlu0 %4378
      %4380 = vrot.lane.b32.xlu0 %v1529, 32
      %v4381 = vpop.permute.xlu0 %4380
      %4382 = vrot.lane.b32.xlu0 %v1531, 32
      %v4383 = vpop.permute.xlu0 %4382
      %4384 = vrot.lane.b32.xlu0 %v1533, 32
      %v4385 = vpop.permute.xlu0 %4384
      %4386 = vrot.lane.b32.xlu0 %v1535, 32
      %v4387 = vpop.permute.xlu0 %4386
      %4388 = vrot.lane.b32.xlu0 %v1537, 32
      %v4389 = vpop.permute.xlu0 %4388
      %4390 = vrot.lane.b32.xlu0 %v1539, 32
      %v4391 = vpop.permute.xlu0 %4390
      %4392 = vrot.lane.b32.xlu0 %v1541, 32
      %v4393 = vpop.permute.xlu0 %4392
      %4394 = vrot.lane.b32.xlu0 %v1543, 32
      %v4395 = vpop.permute.xlu0 %4394
      %4396 = vrot.lane.b32.xlu0 %v1545, 32
      %v4397 = vpop.permute.xlu0 %4396
      %4398 = vrot.lane.b32.xlu0 %v1547, 32
      %v4399 = vpop.permute.xlu0 %4398
      %4400 = vrot.lane.b32.xlu0 %v1549, 32
      %v4401 = vpop.permute.xlu0 %4400
      %4402 = vrot.lane.b32.xlu0 %v1551, 32
      %v4403 = vpop.permute.xlu0 %4402
      %4404 = vrot.lane.b32.xlu0 %v1553, 32
      %v4405 = vpop.permute.xlu0 %4404
      %4406 = vrot.lane.b32.xlu0 %v1555, 32
      %v4407 = vpop.permute.xlu0 %4406
      %4408 = vrot.lane.b32.xlu0 %v1557, 32
      %v4409 = vpop.permute.xlu0 %4408
      %4410 = vrot.lane.b32.xlu0 %v1559, 32
      %v4411 = vpop.permute.xlu0 %4410
      %4412 = vrot.lane.b32.xlu0 %v1561, 32
      %v4413 = vpop.permute.xlu0 %4412
      %4414 = vrot.lane.b32.xlu0 %v1563, 32
      %v4415 = vpop.permute.xlu0 %4414
      %4416 = vrot.lane.b32.xlu0 %v1565, 32
      %v4417 = vpop.permute.xlu0 %4416
      %4418 = vrot.lane.b32.xlu0 %v1567, 32
      %v4419 = vpop.permute.xlu0 %4418
      %4420 = vrot.lane.b32.xlu0 %v1569, 32
      %v4421 = vpop.permute.xlu0 %4420
      %4422 = vrot.lane.b32.xlu0 %v1571, 32
      %v4423 = vpop.permute.xlu0 %4422
      %4424 = vrot.lane.b32.xlu0 %v1573, 32
      %v4425 = vpop.permute.xlu0 %4424
      %4426 = vrot.lane.b32.xlu0 %v1575, 32
      %v4427 = vpop.permute.xlu0 %4426
      %4428 = vrot.lane.b32.xlu0 %v1577, 32
      %v4429 = vpop.permute.xlu0 %4428
      %4430 = vrot.lane.b32.xlu0 %v1579, 32
      %v4431 = vpop.permute.xlu0 %4430
      %4432 = vrot.lane.b32.xlu0 %v1581, 32
      %v4433 = vpop.permute.xlu0 %4432
      %4434 = vrot.lane.b32.xlu0 %v1583, 32
      %v4435 = vpop.permute.xlu0 %4434
      %4436 = vrot.lane.b32.xlu0 %v1585, 32
      %v4437 = vpop.permute.xlu0 %4436
      %4438 = vrot.lane.b32.xlu0 %v1587, 32
      %v4439 = vpop.permute.xlu0 %4438
      %4440 = vrot.lane.b32.xlu0 %v1589, 32
      %v4441 = vpop.permute.xlu0 %4440
      %4442 = vrot.lane.b32.xlu0 %v1591, 32
      %v4443 = vpop.permute.xlu0 %4442
      %4444 = vrot.lane.b32.xlu0 %v1593, 32
      %v4445 = vpop.permute.xlu0 %4444
      %4446 = vrot.lane.b32.xlu0 %v1595, 32
      %v4447 = vpop.permute.xlu0 %4446
      %4448 = vrot.lane.b32.xlu0 %v1597, 32
      %v4449 = vpop.permute.xlu0 %4448
      %4450 = vrot.lane.b32.xlu0 %v1599, 32
      %v4451 = vpop.permute.xlu0 %4450
      %4452 = vrot.lane.b32.xlu0 %v1601, 32
      %v4453 = vpop.permute.xlu0 %4452
      %4454 = vrot.lane.b32.xlu0 %v1603, 32
      %v4455 = vpop.permute.xlu0 %4454
      %4456 = vrot.lane.b32.xlu0 %v1605, 32
      %v4457 = vpop.permute.xlu0 %4456
      %4458 = vrot.lane.b32.xlu0 %v1607, 32
      %v4459 = vpop.permute.xlu0 %4458
      %4460 = vrot.lane.b32.xlu0 %v1609, 32
      %v4461 = vpop.permute.xlu0 %4460
      %4462 = vrot.lane.b32.xlu0 %v1611, 32
      %v4463 = vpop.permute.xlu0 %4462
      %4464 = vrot.lane.b32.xlu0 %v1613, 32
      %v4465 = vpop.permute.xlu0 %4464
      %4466 = vrot.lane.b32.xlu0 %v1615, 32
      %v4467 = vpop.permute.xlu0 %4466
      %4468 = vrot.lane.b32.xlu0 %v1617, 32
      %v4469 = vpop.permute.xlu0 %4468
      %4470 = vrot.lane.b32.xlu0 %v1619, 32
      %v4471 = vpop.permute.xlu0 %4470
      %4472 = vrot.lane.b32.xlu0 %v1621, 32
      %v4473 = vpop.permute.xlu0 %4472
      %4722 = vrot.lane.b32.xlu0 %v1623, 40
      %v4723 = vpop.permute.xlu0 %4722
      %4724 = vrot.lane.b32.xlu0 %v1625, 40
      %v4725 = vpop.permute.xlu0 %4724
      %4726 = vrot.lane.b32.xlu0 %v1627, 40
      %v4727 = vpop.permute.xlu0 %4726
      %4728 = vrot.lane.b32.xlu0 %v1629, 40
      %v4729 = vpop.permute.xlu0 %4728
      %4730 = vrot.lane.b32.xlu0 %v1631, 40
      %v4731 = vpop.permute.xlu0 %4730
      %4732 = vrot.lane.b32.xlu0 %v1633, 40
      %v4733 = vpop.permute.xlu0 %4732
      %4734 = vrot.lane.b32.xlu0 %v1635, 40
      %v4735 = vpop.permute.xlu0 %4734
      %4736 = vrot.lane.b32.xlu0 %v1637, 40
      %v4737 = vpop.permute.xlu0 %4736
      %4738 = vrot.lane.b32.xlu0 %v1639, 40
      %v4739 = vpop.permute.xlu0 %4738
      %4740 = vrot.lane.b32.xlu0 %v1641, 40
      %v4741 = vpop.permute.xlu0 %4740
      %4742 = vrot.lane.b32.xlu0 %v1643, 40
      %v4743 = vpop.permute.xlu0 %4742
      %4744 = vrot.lane.b32.xlu0 %v1645, 40
      %v4745 = vpop.permute.xlu0 %4744
      %4746 = vrot.lane.b32.xlu0 %v1647, 40
      %v4747 = vpop.permute.xlu0 %4746
      %4748 = vrot.lane.b32.xlu0 %v1649, 40
      %v4749 = vpop.permute.xlu0 %4748
      %4750 = vrot.lane.b32.xlu0 %v1651, 40
      %v4751 = vpop.permute.xlu0 %4750
      %4752 = vrot.lane.b32.xlu0 %v1653, 40
      %v4753 = vpop.permute.xlu0 %4752
      %4754 = vrot.lane.b32.xlu0 %v1655, 40
      %v4755 = vpop.permute.xlu0 %4754
      %4756 = vrot.lane.b32.xlu0 %v1657, 40
      %v4757 = vpop.permute.xlu0 %4756
      %4758 = vrot.lane.b32.xlu0 %v1659, 40
      %v4759 = vpop.permute.xlu0 %4758
      %4760 = vrot.lane.b32.xlu0 %v1661, 40
      %v4761 = vpop.permute.xlu0 %4760
      %4762 = vrot.lane.b32.xlu0 %v1663, 40
      %v4763 = vpop.permute.xlu0 %4762
      %4764 = vrot.lane.b32.xlu0 %v1665, 40
      %v4765 = vpop.permute.xlu0 %4764
      %4766 = vrot.lane.b32.xlu0 %v1667, 40
      %v4767 = vpop.permute.xlu0 %4766
      %4768 = vrot.lane.b32.xlu0 %v1669, 40
      %v4769 = vpop.permute.xlu0 %4768
      %4770 = vrot.lane.b32.xlu0 %v1671, 40
      %v4771 = vpop.permute.xlu0 %4770
      %4772 = vrot.lane.b32.xlu0 %v1673, 40
      %v4773 = vpop.permute.xlu0 %4772
      %4774 = vrot.lane.b32.xlu0 %v1675, 40
      %v4775 = vpop.permute.xlu0 %4774
      %4776 = vrot.lane.b32.xlu0 %v1677, 40
      %v4777 = vpop.permute.xlu0 %4776
      %4778 = vrot.lane.b32.xlu0 %v1679, 40
      %v4779 = vpop.permute.xlu0 %4778
      %4780 = vrot.lane.b32.xlu0 %v1681, 40
      %v4781 = vpop.permute.xlu0 %4780
      %4782 = vrot.lane.b32.xlu0 %v1683, 40
      %v4783 = vpop.permute.xlu0 %4782
      %4784 = vrot.lane.b32.xlu0 %v1685, 40
      %v4785 = vpop.permute.xlu0 %4784
      %4786 = vrot.lane.b32.xlu0 %v1687, 40
      %v4787 = vpop.permute.xlu0 %4786
      %4788 = vrot.lane.b32.xlu0 %v1689, 40
      %v4789 = vpop.permute.xlu0 %4788
      %4790 = vrot.lane.b32.xlu0 %v1691, 40
      %v4791 = vpop.permute.xlu0 %4790
      %4792 = vrot.lane.b32.xlu0 %v1693, 40
      %v4793 = vpop.permute.xlu0 %4792
      %4794 = vrot.lane.b32.xlu0 %v1695, 40
      %v4795 = vpop.permute.xlu0 %4794
      %4796 = vrot.lane.b32.xlu0 %v1697, 40
      %v4797 = vpop.permute.xlu0 %4796
      %4798 = vrot.lane.b32.xlu0 %v1699, 40
      %v4799 = vpop.permute.xlu0 %4798
      %4800 = vrot.lane.b32.xlu0 %v1701, 40
      %v4801 = vpop.permute.xlu0 %4800
      %4802 = vrot.lane.b32.xlu0 %v1703, 40
      %v4803 = vpop.permute.xlu0 %4802
      %4804 = vrot.lane.b32.xlu0 %v1705, 40
      %v4805 = vpop.permute.xlu0 %4804
      %4806 = vrot.lane.b32.xlu0 %v1707, 40
      %v4807 = vpop.permute.xlu0 %4806
      %4808 = vrot.lane.b32.xlu0 %v1709, 40
      %v4809 = vpop.permute.xlu0 %4808
      %4810 = vrot.lane.b32.xlu0 %v1711, 40
      %v4811 = vpop.permute.xlu0 %4810
      %4812 = vrot.lane.b32.xlu0 %v1713, 40
      %v4813 = vpop.permute.xlu0 %4812
      %4814 = vrot.lane.b32.xlu0 %v1715, 40
      %v4815 = vpop.permute.xlu0 %4814
      %4816 = vrot.lane.b32.xlu0 %v1717, 40
      %v4817 = vpop.permute.xlu0 %4816
      %4818 = vrot.lane.b32.xlu0 %v1719, 40
      %v4819 = vpop.permute.xlu0 %4818
      %4820 = vrot.lane.b32.xlu0 %v1721, 40
      %v4821 = vpop.permute.xlu0 %4820
      %4822 = vrot.lane.b32.xlu0 %v1723, 40
      %v4823 = vpop.permute.xlu0 %4822
      %4824 = vrot.lane.b32.xlu0 %v1725, 40
      %v4825 = vpop.permute.xlu0 %4824
      %4826 = vrot.lane.b32.xlu0 %v1727, 40
      %v4827 = vpop.permute.xlu0 %4826
      %4828 = vrot.lane.b32.xlu0 %v1729, 40
      %v4829 = vpop.permute.xlu0 %4828
      %4830 = vrot.lane.b32.xlu0 %v1731, 40
      %v4831 = vpop.permute.xlu0 %4830
      %4832 = vrot.lane.b32.xlu0 %v1733, 40
      %v4833 = vpop.permute.xlu0 %4832
      %4834 = vrot.lane.b32.xlu0 %v1735, 40
      %v4835 = vpop.permute.xlu0 %4834
      %4836 = vrot.lane.b32.xlu0 %v1737, 40
      %v4837 = vpop.permute.xlu0 %4836
      %4838 = vrot.lane.b32.xlu0 %v1739, 40
      %v4839 = vpop.permute.xlu0 %4838
      %4840 = vrot.lane.b32.xlu0 %v1741, 40
      %v4841 = vpop.permute.xlu0 %4840
      %4842 = vrot.lane.b32.xlu0 %v1743, 40
      %v4843 = vpop.permute.xlu0 %4842
      %4844 = vrot.lane.b32.xlu0 %v1745, 40
      %v4845 = vpop.permute.xlu0 %4844
      %4846 = vrot.lane.b32.xlu0 %v1747, 40
      %v4847 = vpop.permute.xlu0 %4846
      %4848 = vrot.lane.b32.xlu0 %v1749, 40
      %v4849 = vpop.permute.xlu0 %4848
      %4850 = vrot.lane.b32.xlu0 %v1751, 40
      %v4851 = vpop.permute.xlu0 %4850
      %4852 = vrot.lane.b32.xlu0 %v1753, 40
      %v4853 = vpop.permute.xlu0 %4852
      %4854 = vrot.lane.b32.xlu0 %v1755, 40
      %v4855 = vpop.permute.xlu0 %4854
      %4856 = vrot.lane.b32.xlu0 %v1757, 40
      %v4857 = vpop.permute.xlu0 %4856
      %4858 = vrot.lane.b32.xlu0 %v1759, 40
      %v4859 = vpop.permute.xlu0 %4858
      %4860 = vrot.lane.b32.xlu0 %v1761, 40
      %v4861 = vpop.permute.xlu0 %4860
      %4862 = vrot.lane.b32.xlu0 %v1763, 40
      %v4863 = vpop.permute.xlu0 %4862
      %4864 = vrot.lane.b32.xlu0 %v1765, 40
      %v4865 = vpop.permute.xlu0 %4864
      %4866 = vrot.lane.b32.xlu0 %v1767, 40
      %v4867 = vpop.permute.xlu0 %4866
      %4868 = vrot.lane.b32.xlu0 %v1769, 40
      %v4869 = vpop.permute.xlu0 %4868
      %4870 = vrot.lane.b32.xlu0 %v1771, 40
      %v4871 = vpop.permute.xlu0 %4870
      %4872 = vrot.lane.b32.xlu0 %v1773, 40
      %v4873 = vpop.permute.xlu0 %4872
      %4874 = vrot.lane.b32.xlu0 %v1775, 40
      %v4875 = vpop.permute.xlu0 %4874
      %4876 = vrot.lane.b32.xlu0 %v1777, 40
      %v4877 = vpop.permute.xlu0 %4876
      %4878 = vrot.lane.b32.xlu0 %v1779, 40
      %v4879 = vpop.permute.xlu0 %4878
      %4880 = vrot.lane.b32.xlu0 %v1781, 40
      %v4881 = vpop.permute.xlu0 %4880
      %4882 = vrot.lane.b32.xlu0 %v1783, 40
      %v4883 = vpop.permute.xlu0 %4882
      %4884 = vrot.lane.b32.xlu0 %v1785, 40
      %v4885 = vpop.permute.xlu0 %4884
      %4886 = vrot.lane.b32.xlu0 %v1787, 40
      %v4887 = vpop.permute.xlu0 %4886
      %4888 = vrot.lane.b32.xlu0 %v1789, 40
      %v4889 = vpop.permute.xlu0 %4888
      %4890 = vrot.lane.b32.xlu0 %v1791, 40
      %v4891 = vpop.permute.xlu0 %4890
      %4892 = vrot.lane.b32.xlu0 %v1793, 40
      %v4893 = vpop.permute.xlu0 %4892
      %4894 = vrot.lane.b32.xlu0 %v1795, 40
      %v4895 = vpop.permute.xlu0 %4894
      %4896 = vrot.lane.b32.xlu0 %v1797, 40
      %v4897 = vpop.permute.xlu0 %4896
      %4898 = vrot.lane.b32.xlu0 %v1799, 40
      %v4899 = vpop.permute.xlu0 %4898
      %4900 = vrot.lane.b32.xlu0 %v1801, 40
      %v4901 = vpop.permute.xlu0 %4900
      %4902 = vrot.lane.b32.xlu0 %v1803, 40
      %v4903 = vpop.permute.xlu0 %4902
      %4904 = vrot.lane.b32.xlu0 %v1805, 40
      %v4905 = vpop.permute.xlu0 %4904
      %4906 = vrot.lane.b32.xlu0 %v1807, 40
      %v4907 = vpop.permute.xlu0 %4906
      %4908 = vrot.lane.b32.xlu0 %v1809, 40
      %v4909 = vpop.permute.xlu0 %4908
      %4910 = vrot.lane.b32.xlu0 %v1811, 40
      %v4911 = vpop.permute.xlu0 %4910
      %4912 = vrot.lane.b32.xlu0 %v1813, 40
      %v4913 = vpop.permute.xlu0 %4912
      %4914 = vrot.lane.b32.xlu0 %v1815, 40
      %v4915 = vpop.permute.xlu0 %4914
      %4916 = vrot.lane.b32.xlu0 %v1817, 40
      %v4917 = vpop.permute.xlu0 %4916
      %4918 = vrot.lane.b32.xlu0 %v1819, 40
      %v4919 = vpop.permute.xlu0 %4918
      %4920 = vrot.lane.b32.xlu0 %v1821, 40
      %v4921 = vpop.permute.xlu0 %4920
      %4922 = vrot.lane.b32.xlu0 %v1823, 40
      %v4923 = vpop.permute.xlu0 %4922
      %4924 = vrot.lane.b32.xlu0 %v1825, 40
      %v4925 = vpop.permute.xlu0 %4924
      %4926 = vrot.lane.b32.xlu0 %v1827, 40
      %v4927 = vpop.permute.xlu0 %4926
      %4928 = vrot.lane.b32.xlu0 %v1829, 40
      %v4929 = vpop.permute.xlu0 %4928
      %4930 = vrot.lane.b32.xlu0 %v1831, 40
      %v4931 = vpop.permute.xlu0 %4930
      %4932 = vrot.lane.b32.xlu0 %v1833, 40
      %v4933 = vpop.permute.xlu0 %4932
      %4934 = vrot.lane.b32.xlu0 %v1835, 40
      %v4935 = vpop.permute.xlu0 %4934
      %4936 = vrot.lane.b32.xlu0 %v1837, 40
      %v4937 = vpop.permute.xlu0 %4936
      %4938 = vrot.lane.b32.xlu0 %v1839, 40
      %v4939 = vpop.permute.xlu0 %4938
      %4940 = vrot.lane.b32.xlu0 %v1841, 40
      %v4941 = vpop.permute.xlu0 %4940
      %4942 = vrot.lane.b32.xlu0 %v1843, 40
      %v4943 = vpop.permute.xlu0 %4942
      %4944 = vrot.lane.b32.xlu0 %v1845, 40
      %v4945 = vpop.permute.xlu0 %4944
      %4946 = vrot.lane.b32.xlu0 %v1847, 40
      %v4947 = vpop.permute.xlu0 %4946
      %4948 = vrot.lane.b32.xlu0 %v1849, 40
      %v4949 = vpop.permute.xlu0 %4948
      %4950 = vrot.lane.b32.xlu0 %v1851, 40
      %v4951 = vpop.permute.xlu0 %4950
      %4952 = vrot.lane.b32.xlu0 %v1853, 40
      %v4953 = vpop.permute.xlu0 %4952
      %4954 = vrot.lane.b32.xlu0 %v1855, 40
      %v4955 = vpop.permute.xlu0 %4954
      %4956 = vrot.lane.b32.xlu0 %v1857, 40
      %v4957 = vpop.permute.xlu0 %4956
      %4958 = vrot.lane.b32.xlu0 %v1859, 40
      %v4959 = vpop.permute.xlu0 %4958
      %4960 = vrot.lane.b32.xlu0 %v1861, 40
      %v4961 = vpop.permute.xlu0 %4960
      %4962 = vrot.lane.b32.xlu0 %v1863, 40
      %v4963 = vpop.permute.xlu0 %4962
      %4964 = vrot.lane.b32.xlu0 %v1865, 40
      %v4965 = vpop.permute.xlu0 %4964
      %4966 = vrot.lane.b32.xlu0 %v1867, 40
      %v4967 = vpop.permute.xlu0 %4966
      %4968 = vrot.lane.b32.xlu0 %v1869, 40
      %v4969 = vpop.permute.xlu0 %4968
      %5218 = vrot.lane.b32.xlu0 %v1871, 48
      %v5219 = vpop.permute.xlu0 %5218
      %5220 = vrot.lane.b32.xlu0 %v1873, 48
      %v5221 = vpop.permute.xlu0 %5220
      %5222 = vrot.lane.b32.xlu0 %v1875, 48
      %v5223 = vpop.permute.xlu0 %5222
      %5224 = vrot.lane.b32.xlu0 %v1877, 48
      %v5225 = vpop.permute.xlu0 %5224
      %5226 = vrot.lane.b32.xlu0 %v1879, 48
      %v5227 = vpop.permute.xlu0 %5226
      %5228 = vrot.lane.b32.xlu0 %v1881, 48
      %v5229 = vpop.permute.xlu0 %5228
      %5230 = vrot.lane.b32.xlu0 %v1883, 48
      %v5231 = vpop.permute.xlu0 %5230
      %5232 = vrot.lane.b32.xlu0 %v1885, 48
      %v5233 = vpop.permute.xlu0 %5232
      %5234 = vrot.lane.b32.xlu0 %v1887, 48
      %v5235 = vpop.permute.xlu0 %5234
      %5236 = vrot.lane.b32.xlu0 %v1889, 48
      %v5237 = vpop.permute.xlu0 %5236
      %5238 = vrot.lane.b32.xlu0 %v1891, 48
      %v5239 = vpop.permute.xlu0 %5238
      %5240 = vrot.lane.b32.xlu0 %v1893, 48
      %v5241 = vpop.permute.xlu0 %5240
      %5242 = vrot.lane.b32.xlu0 %v1895, 48
      %v5243 = vpop.permute.xlu0 %5242
      %5244 = vrot.lane.b32.xlu0 %v1897, 48
      %v5245 = vpop.permute.xlu0 %5244
      %5246 = vrot.lane.b32.xlu0 %v1899, 48
      %v5247 = vpop.permute.xlu0 %5246
      %5248 = vrot.lane.b32.xlu0 %v1901, 48
      %v5249 = vpop.permute.xlu0 %5248
      %5250 = vrot.lane.b32.xlu0 %v1903, 48
      %v5251 = vpop.permute.xlu0 %5250
      %5252 = vrot.lane.b32.xlu0 %v1905, 48
      %v5253 = vpop.permute.xlu0 %5252
      %5254 = vrot.lane.b32.xlu0 %v1907, 48
      %v5255 = vpop.permute.xlu0 %5254
      %5256 = vrot.lane.b32.xlu0 %v1909, 48
      %v5257 = vpop.permute.xlu0 %5256
      %5258 = vrot.lane.b32.xlu0 %v1911, 48
      %v5259 = vpop.permute.xlu0 %5258
      %5260 = vrot.lane.b32.xlu0 %v1913, 48
      %v5261 = vpop.permute.xlu0 %5260
      %5262 = vrot.lane.b32.xlu0 %v1915, 48
      %v5263 = vpop.permute.xlu0 %5262
      %5264 = vrot.lane.b32.xlu0 %v1917, 48
      %v5265 = vpop.permute.xlu0 %5264
      %5266 = vrot.lane.b32.xlu0 %v1919, 48
      %v5267 = vpop.permute.xlu0 %5266
      %5268 = vrot.lane.b32.xlu0 %v1921, 48
      %v5269 = vpop.permute.xlu0 %5268
      %5270 = vrot.lane.b32.xlu0 %v1923, 48
      %v5271 = vpop.permute.xlu0 %5270
      %5272 = vrot.lane.b32.xlu0 %v1925, 48
      %v5273 = vpop.permute.xlu0 %5272
      %5274 = vrot.lane.b32.xlu0 %v1927, 48
      %v5275 = vpop.permute.xlu0 %5274
      %5276 = vrot.lane.b32.xlu0 %v1929, 48
      %v5277 = vpop.permute.xlu0 %5276
      %5278 = vrot.lane.b32.xlu0 %v1931, 48
      %v5279 = vpop.permute.xlu0 %5278
      %5280 = vrot.lane.b32.xlu0 %v1933, 48
      %v5281 = vpop.permute.xlu0 %5280
      %5282 = vrot.lane.b32.xlu0 %v1935, 48
      %v5283 = vpop.permute.xlu0 %5282
      %5284 = vrot.lane.b32.xlu0 %v1937, 48
      %v5285 = vpop.permute.xlu0 %5284
      %5286 = vrot.lane.b32.xlu0 %v1939, 48
      %v5287 = vpop.permute.xlu0 %5286
      %5288 = vrot.lane.b32.xlu0 %v1941, 48
      %v5289 = vpop.permute.xlu0 %5288
      %5290 = vrot.lane.b32.xlu0 %v1943, 48
      %v5291 = vpop.permute.xlu0 %5290
      %5292 = vrot.lane.b32.xlu0 %v1945, 48
      %v5293 = vpop.permute.xlu0 %5292
      %5294 = vrot.lane.b32.xlu0 %v1947, 48
      %v5295 = vpop.permute.xlu0 %5294
      %5296 = vrot.lane.b32.xlu0 %v1949, 48
      %v5297 = vpop.permute.xlu0 %5296
      %5298 = vrot.lane.b32.xlu0 %v1951, 48
      %v5299 = vpop.permute.xlu0 %5298
      %5300 = vrot.lane.b32.xlu0 %v1953, 48
      %v5301 = vpop.permute.xlu0 %5300
      %5302 = vrot.lane.b32.xlu0 %v1955, 48
      %v5303 = vpop.permute.xlu0 %5302
      %5304 = vrot.lane.b32.xlu0 %v1957, 48
      %v5305 = vpop.permute.xlu0 %5304
      %5306 = vrot.lane.b32.xlu0 %v1959, 48
      %v5307 = vpop.permute.xlu0 %5306
      %5308 = vrot.lane.b32.xlu0 %v1961, 48
      %v5309 = vpop.permute.xlu0 %5308
      %5310 = vrot.lane.b32.xlu0 %v1963, 48
      %v5311 = vpop.permute.xlu0 %5310
      %5312 = vrot.lane.b32.xlu0 %v1965, 48
      %v5313 = vpop.permute.xlu0 %5312
      %5314 = vrot.lane.b32.xlu0 %v1967, 48
      %v5315 = vpop.permute.xlu0 %5314
      %5316 = vrot.lane.b32.xlu0 %v1969, 48
      %v5317 = vpop.permute.xlu0 %5316
      %5318 = vrot.lane.b32.xlu0 %v1971, 48
      %v5319 = vpop.permute.xlu0 %5318
      %5320 = vrot.lane.b32.xlu0 %v1973, 48
      %v5321 = vpop.permute.xlu0 %5320
      %5322 = vrot.lane.b32.xlu0 %v1975, 48
      %v5323 = vpop.permute.xlu0 %5322
      %5324 = vrot.lane.b32.xlu0 %v1977, 48
      %v5325 = vpop.permute.xlu0 %5324
      %5326 = vrot.lane.b32.xlu0 %v1979, 48
      %v5327 = vpop.permute.xlu0 %5326
      %5328 = vrot.lane.b32.xlu0 %v1981, 48
      %v5329 = vpop.permute.xlu0 %5328
      %5330 = vrot.lane.b32.xlu0 %v1983, 48
      %v5331 = vpop.permute.xlu0 %5330
      %5332 = vrot.lane.b32.xlu0 %v1985, 48
      %v5333 = vpop.permute.xlu0 %5332
      %5334 = vrot.lane.b32.xlu0 %v1987, 48
      %v5335 = vpop.permute.xlu0 %5334
      %5336 = vrot.lane.b32.xlu0 %v1989, 48
      %v5337 = vpop.permute.xlu0 %5336
      %5338 = vrot.lane.b32.xlu0 %v1991, 48
      %v5339 = vpop.permute.xlu0 %5338
      %5340 = vrot.lane.b32.xlu0 %v1993, 48
      %v5341 = vpop.permute.xlu0 %5340
      %5342 = vrot.lane.b32.xlu0 %v1995, 48
      %v5343 = vpop.permute.xlu0 %5342
      %5344 = vrot.lane.b32.xlu0 %v1997, 48
      %v5345 = vpop.permute.xlu0 %5344
      %5346 = vrot.lane.b32.xlu0 %v1999, 48
      %v5347 = vpop.permute.xlu0 %5346
      %5348 = vrot.lane.b32.xlu0 %v2001, 48
      %v5349 = vpop.permute.xlu0 %5348
      %5350 = vrot.lane.b32.xlu0 %v2003, 48
      %v5351 = vpop.permute.xlu0 %5350
      %5352 = vrot.lane.b32.xlu0 %v2005, 48
      %v5353 = vpop.permute.xlu0 %5352
      %5354 = vrot.lane.b32.xlu0 %v2007, 48
      %v5355 = vpop.permute.xlu0 %5354
      %5356 = vrot.lane.b32.xlu0 %v2009, 48
      %v5357 = vpop.permute.xlu0 %5356
      %5358 = vrot.lane.b32.xlu0 %v2011, 48
      %v5359 = vpop.permute.xlu0 %5358
      %5360 = vrot.lane.b32.xlu0 %v2013, 48
      %v5361 = vpop.permute.xlu0 %5360
      %5362 = vrot.lane.b32.xlu0 %v2015, 48
      %v5363 = vpop.permute.xlu0 %5362
      %5364 = vrot.lane.b32.xlu0 %v2017, 48
      %v5365 = vpop.permute.xlu0 %5364
      %5366 = vrot.lane.b32.xlu0 %v2019, 48
      %v5367 = vpop.permute.xlu0 %5366
      %5368 = vrot.lane.b32.xlu0 %v2021, 48
      %v5369 = vpop.permute.xlu0 %5368
      %5370 = vrot.lane.b32.xlu0 %v2023, 48
      %v5371 = vpop.permute.xlu0 %5370
      %5372 = vrot.lane.b32.xlu0 %v2025, 48
      %v5373 = vpop.permute.xlu0 %5372
      %5374 = vrot.lane.b32.xlu0 %v2027, 48
      %v5375 = vpop.permute.xlu0 %5374
      %5376 = vrot.lane.b32.xlu0 %v2029, 48
      %v5377 = vpop.permute.xlu0 %5376
      %5378 = vrot.lane.b32.xlu0 %v2031, 48
      %v5379 = vpop.permute.xlu0 %5378
      %5380 = vrot.lane.b32.xlu0 %v2033, 48
      %v5381 = vpop.permute.xlu0 %5380
      %5382 = vrot.lane.b32.xlu0 %v2035, 48
      %v5383 = vpop.permute.xlu0 %5382
      %5384 = vrot.lane.b32.xlu0 %v2037, 48
      %v5385 = vpop.permute.xlu0 %5384
      %5386 = vrot.lane.b32.xlu0 %v2039, 48
      %v5387 = vpop.permute.xlu0 %5386
      %5388 = vrot.lane.b32.xlu0 %v2041, 48
      %v5389 = vpop.permute.xlu0 %5388
      %5390 = vrot.lane.b32.xlu0 %v2043, 48
      %v5391 = vpop.permute.xlu0 %5390
      %5392 = vrot.lane.b32.xlu0 %v2045, 48
      %v5393 = vpop.permute.xlu0 %5392
      %5394 = vrot.lane.b32.xlu0 %v2047, 48
      %v5395 = vpop.permute.xlu0 %5394
      %5396 = vrot.lane.b32.xlu0 %v2049, 48
      %v5397 = vpop.permute.xlu0 %5396
      %5398 = vrot.lane.b32.xlu0 %v2051, 48
      %v5399 = vpop.permute.xlu0 %5398
      %5400 = vrot.lane.b32.xlu0 %v2053, 48
      %v5401 = vpop.permute.xlu0 %5400
      %5402 = vrot.lane.b32.xlu0 %v2055, 48
      %v5403 = vpop.permute.xlu0 %5402
      %5404 = vrot.lane.b32.xlu0 %v2057, 48
      %v5405 = vpop.permute.xlu0 %5404
      %5406 = vrot.lane.b32.xlu0 %v2059, 48
      %v5407 = vpop.permute.xlu0 %5406
      %5408 = vrot.lane.b32.xlu0 %v2061, 48
      %v5409 = vpop.permute.xlu0 %5408
      %5410 = vrot.lane.b32.xlu0 %v2063, 48
      %v5411 = vpop.permute.xlu0 %5410
      %5412 = vrot.lane.b32.xlu0 %v2065, 48
      %v5413 = vpop.permute.xlu0 %5412
      %5414 = vrot.lane.b32.xlu0 %v2067, 48
      %v5415 = vpop.permute.xlu0 %5414
      %5416 = vrot.lane.b32.xlu0 %v2069, 48
      %v5417 = vpop.permute.xlu0 %5416
      %5418 = vrot.lane.b32.xlu0 %v2071, 48
      %v5419 = vpop.permute.xlu0 %5418
      %5420 = vrot.lane.b32.xlu0 %v2073, 48
      %v5421 = vpop.permute.xlu0 %5420
      %5422 = vrot.lane.b32.xlu0 %v2075, 48
      %v5423 = vpop.permute.xlu0 %5422
      %5424 = vrot.lane.b32.xlu0 %v2077, 48
      %v5425 = vpop.permute.xlu0 %5424
      %5426 = vrot.lane.b32.xlu0 %v2079, 48
      %v5427 = vpop.permute.xlu0 %5426
      %5428 = vrot.lane.b32.xlu0 %v2081, 48
      %v5429 = vpop.permute.xlu0 %5428
      %5430 = vrot.lane.b32.xlu0 %v2083, 48
      %v5431 = vpop.permute.xlu0 %5430
      %5432 = vrot.lane.b32.xlu0 %v2085, 48
      %v5433 = vpop.permute.xlu0 %5432
      %5434 = vrot.lane.b32.xlu0 %v2087, 48
      %v5435 = vpop.permute.xlu0 %5434
      %5436 = vrot.lane.b32.xlu0 %v2089, 48
      %v5437 = vpop.permute.xlu0 %5436
      %5438 = vrot.lane.b32.xlu0 %v2091, 48
      %v5439 = vpop.permute.xlu0 %5438
      %5440 = vrot.lane.b32.xlu0 %v2093, 48
      %v5441 = vpop.permute.xlu0 %5440
      %5442 = vrot.lane.b32.xlu0 %v2095, 48
      %v5443 = vpop.permute.xlu0 %5442
      %5444 = vrot.lane.b32.xlu0 %v2097, 48
      %v5445 = vpop.permute.xlu0 %5444
      %5446 = vrot.lane.b32.xlu0 %v2099, 48
      %v5447 = vpop.permute.xlu0 %5446
      %5448 = vrot.lane.b32.xlu0 %v2101, 48
      %v5449 = vpop.permute.xlu0 %5448
      %5450 = vrot.lane.b32.xlu0 %v2103, 48
      %v5451 = vpop.permute.xlu0 %5450
      %5452 = vrot.lane.b32.xlu0 %v2105, 48
      %v5453 = vpop.permute.xlu0 %5452
      %5454 = vrot.lane.b32.xlu0 %v2107, 48
      %v5455 = vpop.permute.xlu0 %5454
      %5456 = vrot.lane.b32.xlu0 %v2109, 48
      %v5457 = vpop.permute.xlu0 %5456
      %5458 = vrot.lane.b32.xlu0 %v2111, 48
      %v5459 = vpop.permute.xlu0 %5458
      %5460 = vrot.lane.b32.xlu0 %v2113, 48
      %v5461 = vpop.permute.xlu0 %5460
      %5462 = vrot.lane.b32.xlu0 %v2115, 48
      %v5463 = vpop.permute.xlu0 %5462
      %5464 = vrot.lane.b32.xlu0 %v2117, 48
      %v5465 = vpop.permute.xlu0 %5464
      %5714 = vrot.lane.b32.xlu0 %v2119, 56
      %v5715 = vpop.permute.xlu0 %5714
      %5716 = vrot.lane.b32.xlu0 %v2121, 56
      %v5717 = vpop.permute.xlu0 %5716
      %5718 = vrot.lane.b32.xlu0 %v2123, 56
      %v5719 = vpop.permute.xlu0 %5718
      %5720 = vrot.lane.b32.xlu0 %v2125, 56
      %v5721 = vpop.permute.xlu0 %5720
      %5722 = vrot.lane.b32.xlu0 %v2127, 56
      %v5723 = vpop.permute.xlu0 %5722
      %5724 = vrot.lane.b32.xlu0 %v2129, 56
      %v5725 = vpop.permute.xlu0 %5724
      %5726 = vrot.lane.b32.xlu0 %v2131, 56
      %v5727 = vpop.permute.xlu0 %5726
      %5728 = vrot.lane.b32.xlu0 %v2133, 56
      %v5729 = vpop.permute.xlu0 %5728
      %5730 = vrot.lane.b32.xlu0 %v2135, 56
      %v5731 = vpop.permute.xlu0 %5730
      %5732 = vrot.lane.b32.xlu0 %v2137, 56
      %v5733 = vpop.permute.xlu0 %5732
      %5734 = vrot.lane.b32.xlu0 %v2139, 56
      %v5735 = vpop.permute.xlu0 %5734
      %5736 = vrot.lane.b32.xlu0 %v2141, 56
      %v5737 = vpop.permute.xlu0 %5736
      %5738 = vrot.lane.b32.xlu0 %v2143, 56
      %v5739 = vpop.permute.xlu0 %5738
      %5740 = vrot.lane.b32.xlu0 %v2145, 56
      %v5741 = vpop.permute.xlu0 %5740
      %5742 = vrot.lane.b32.xlu0 %v2147, 56
      %v5743 = vpop.permute.xlu0 %5742
      %5744 = vrot.lane.b32.xlu0 %v2149, 56
      %v5745 = vpop.permute.xlu0 %5744
      %5746 = vrot.lane.b32.xlu0 %v2151, 56
      %v5747 = vpop.permute.xlu0 %5746
      %5748 = vrot.lane.b32.xlu0 %v2153, 56
      %v5749 = vpop.permute.xlu0 %5748
      %5750 = vrot.lane.b32.xlu0 %v2155, 56
      %v5751 = vpop.permute.xlu0 %5750
      %5752 = vrot.lane.b32.xlu0 %v2157, 56
      %v5753 = vpop.permute.xlu0 %5752
      %5754 = vrot.lane.b32.xlu0 %v2159, 56
      %v5755 = vpop.permute.xlu0 %5754
      %5756 = vrot.lane.b32.xlu0 %v2161, 56
      %v5757 = vpop.permute.xlu0 %5756
      %5758 = vrot.lane.b32.xlu0 %v2163, 56
      %v5759 = vpop.permute.xlu0 %5758
      %5760 = vrot.lane.b32.xlu0 %v2165, 56
      %v5761 = vpop.permute.xlu0 %5760
      %5762 = vrot.lane.b32.xlu0 %v2167, 56
      %v5763 = vpop.permute.xlu0 %5762
      %5764 = vrot.lane.b32.xlu0 %v2169, 56
      %v5765 = vpop.permute.xlu0 %5764
      %5766 = vrot.lane.b32.xlu0 %v2171, 56
      %v5767 = vpop.permute.xlu0 %5766
      %5768 = vrot.lane.b32.xlu0 %v2173, 56
      %v5769 = vpop.permute.xlu0 %5768
      %5770 = vrot.lane.b32.xlu0 %v2175, 56
      %v5771 = vpop.permute.xlu0 %5770
      %5772 = vrot.lane.b32.xlu0 %v2177, 56
      %v5773 = vpop.permute.xlu0 %5772
      %5774 = vrot.lane.b32.xlu0 %v2179, 56
      %v5775 = vpop.permute.xlu0 %5774
      %5776 = vrot.lane.b32.xlu0 %v2181, 56
      %v5777 = vpop.permute.xlu0 %5776
      %5778 = vrot.lane.b32.xlu0 %v2183, 56
      %v5779 = vpop.permute.xlu0 %5778
      %5780 = vrot.lane.b32.xlu0 %v2185, 56
      %v5781 = vpop.permute.xlu0 %5780
      %5782 = vrot.lane.b32.xlu0 %v2187, 56
      %v5783 = vpop.permute.xlu0 %5782
      %5784 = vrot.lane.b32.xlu0 %v2189, 56
      %v5785 = vpop.permute.xlu0 %5784
      %5786 = vrot.lane.b32.xlu0 %v2191, 56
      %v5787 = vpop.permute.xlu0 %5786
      %5788 = vrot.lane.b32.xlu0 %v2193, 56
      %v5789 = vpop.permute.xlu0 %5788
      %5790 = vrot.lane.b32.xlu0 %v2195, 56
      %v5791 = vpop.permute.xlu0 %5790
      %5792 = vrot.lane.b32.xlu0 %v2197, 56
      %v5793 = vpop.permute.xlu0 %5792
      %5794 = vrot.lane.b32.xlu0 %v2199, 56
      %v5795 = vpop.permute.xlu0 %5794
      %5796 = vrot.lane.b32.xlu0 %v2201, 56
      %v5797 = vpop.permute.xlu0 %5796
      %5798 = vrot.lane.b32.xlu0 %v2203, 56
      %v5799 = vpop.permute.xlu0 %5798
      %5800 = vrot.lane.b32.xlu0 %v2205, 56
      %v5801 = vpop.permute.xlu0 %5800
      %5802 = vrot.lane.b32.xlu0 %v2207, 56
      %v5803 = vpop.permute.xlu0 %5802
      %5804 = vrot.lane.b32.xlu0 %v2209, 56
      %v5805 = vpop.permute.xlu0 %5804
      %5806 = vrot.lane.b32.xlu0 %v2211, 56
      %v5807 = vpop.permute.xlu0 %5806
      %5808 = vrot.lane.b32.xlu0 %v2213, 56
      %v5809 = vpop.permute.xlu0 %5808
      %5810 = vrot.lane.b32.xlu0 %v2215, 56
      %v5811 = vpop.permute.xlu0 %5810
      %5812 = vrot.lane.b32.xlu0 %v2217, 56
      %v5813 = vpop.permute.xlu0 %5812
      %5814 = vrot.lane.b32.xlu0 %v2219, 56
      %v5815 = vpop.permute.xlu0 %5814
      %5816 = vrot.lane.b32.xlu0 %v2221, 56
      %v5817 = vpop.permute.xlu0 %5816
      %5818 = vrot.lane.b32.xlu0 %v2223, 56
      %v5819 = vpop.permute.xlu0 %5818
      %5820 = vrot.lane.b32.xlu0 %v2225, 56
      %v5821 = vpop.permute.xlu0 %5820
      %5822 = vrot.lane.b32.xlu0 %v2227, 56
      %v5823 = vpop.permute.xlu0 %5822
      %5824 = vrot.lane.b32.xlu0 %v2229, 56
      %v5825 = vpop.permute.xlu0 %5824
      %5826 = vrot.lane.b32.xlu0 %v2231, 56
      %v5827 = vpop.permute.xlu0 %5826
      %5828 = vrot.lane.b32.xlu0 %v2233, 56
      %v5829 = vpop.permute.xlu0 %5828
      %5830 = vrot.lane.b32.xlu0 %v2235, 56
      %v5831 = vpop.permute.xlu0 %5830
      %5832 = vrot.lane.b32.xlu0 %v2237, 56
      %v5833 = vpop.permute.xlu0 %5832
      %5834 = vrot.lane.b32.xlu0 %v2239, 56
      %v5835 = vpop.permute.xlu0 %5834
      %5836 = vrot.lane.b32.xlu0 %v2241, 56
      %v5837 = vpop.permute.xlu0 %5836
      %5838 = vrot.lane.b32.xlu0 %v2243, 56
      %v5839 = vpop.permute.xlu0 %5838
      %5840 = vrot.lane.b32.xlu0 %v2245, 56
      %v5841 = vpop.permute.xlu0 %5840
      %5842 = vrot.lane.b32.xlu0 %v2247, 56
      %v5843 = vpop.permute.xlu0 %5842
      %5844 = vrot.lane.b32.xlu0 %v2249, 56
      %v5845 = vpop.permute.xlu0 %5844
      %5846 = vrot.lane.b32.xlu0 %v2251, 56
      %v5847 = vpop.permute.xlu0 %5846
      %5848 = vrot.lane.b32.xlu0 %v2253, 56
      %v5849 = vpop.permute.xlu0 %5848
      %5850 = vrot.lane.b32.xlu0 %v2255, 56
      %v5851 = vpop.permute.xlu0 %5850
      %5852 = vrot.lane.b32.xlu0 %v2257, 56
      %v5853 = vpop.permute.xlu0 %5852
      %5854 = vrot.lane.b32.xlu0 %v2259, 56
      %v5855 = vpop.permute.xlu0 %5854
      %5856 = vrot.lane.b32.xlu0 %v2261, 56
      %v5857 = vpop.permute.xlu0 %5856
      %5858 = vrot.lane.b32.xlu0 %v2263, 56
      %v5859 = vpop.permute.xlu0 %5858
      %5860 = vrot.lane.b32.xlu0 %v2265, 56
      %v5861 = vpop.permute.xlu0 %5860
      %5862 = vrot.lane.b32.xlu0 %v2267, 56
      %v5863 = vpop.permute.xlu0 %5862
      %5864 = vrot.lane.b32.xlu0 %v2269, 56
      %v5865 = vpop.permute.xlu0 %5864
      %5866 = vrot.lane.b32.xlu0 %v2271, 56
      %v5867 = vpop.permute.xlu0 %5866
      %5868 = vrot.lane.b32.xlu0 %v2273, 56
      %v5869 = vpop.permute.xlu0 %5868
      %5870 = vrot.lane.b32.xlu0 %v2275, 56
      %v5871 = vpop.permute.xlu0 %5870
      %5872 = vrot.lane.b32.xlu0 %v2277, 56
      %v5873 = vpop.permute.xlu0 %5872
      %5874 = vrot.lane.b32.xlu0 %v2279, 56
      %v5875 = vpop.permute.xlu0 %5874
      %5876 = vrot.lane.b32.xlu0 %v2281, 56
      %v5877 = vpop.permute.xlu0 %5876
      %5878 = vrot.lane.b32.xlu0 %v2283, 56
      %v5879 = vpop.permute.xlu0 %5878
      %5880 = vrot.lane.b32.xlu0 %v2285, 56
      %v5881 = vpop.permute.xlu0 %5880
      %5882 = vrot.lane.b32.xlu0 %v2287, 56
      %v5883 = vpop.permute.xlu0 %5882
      %5884 = vrot.lane.b32.xlu0 %v2289, 56
      %v5885 = vpop.permute.xlu0 %5884
      %5886 = vrot.lane.b32.xlu0 %v2291, 56
      %v5887 = vpop.permute.xlu0 %5886
      %5888 = vrot.lane.b32.xlu0 %v2293, 56
      %v5889 = vpop.permute.xlu0 %5888
      %5890 = vrot.lane.b32.xlu0 %v2295, 56
      %v5891 = vpop.permute.xlu0 %5890
      %5892 = vrot.lane.b32.xlu0 %v2297, 56
      %v5893 = vpop.permute.xlu0 %5892
      %5894 = vrot.lane.b32.xlu0 %v2299, 56
      %v5895 = vpop.permute.xlu0 %5894
      %5896 = vrot.lane.b32.xlu0 %v2301, 56
      %v5897 = vpop.permute.xlu0 %5896
      %5898 = vrot.lane.b32.xlu0 %v2303, 56
      %v5899 = vpop.permute.xlu0 %5898
      %5900 = vrot.lane.b32.xlu0 %v2305, 56
      %v5901 = vpop.permute.xlu0 %5900
      %5902 = vrot.lane.b32.xlu0 %v2307, 56
      %v5903 = vpop.permute.xlu0 %5902
      %5904 = vrot.lane.b32.xlu0 %v2309, 56
      %v5905 = vpop.permute.xlu0 %5904
      %5906 = vrot.lane.b32.xlu0 %v2311, 56
      %v5907 = vpop.permute.xlu0 %5906
      %5908 = vrot.lane.b32.xlu0 %v2313, 56
      %v5909 = vpop.permute.xlu0 %5908
      %5910 = vrot.lane.b32.xlu0 %v2315, 56
      %v5911 = vpop.permute.xlu0 %5910
      %5912 = vrot.lane.b32.xlu0 %v2317, 56
      %v5913 = vpop.permute.xlu0 %5912
      %5914 = vrot.lane.b32.xlu0 %v2319, 56
      %v5915 = vpop.permute.xlu0 %5914
      %5916 = vrot.lane.b32.xlu0 %v2321, 56
      %v5917 = vpop.permute.xlu0 %5916
      %5918 = vrot.lane.b32.xlu0 %v2323, 56
      %v5919 = vpop.permute.xlu0 %5918
      %5920 = vrot.lane.b32.xlu0 %v2325, 56
      %v5921 = vpop.permute.xlu0 %5920
      %5922 = vrot.lane.b32.xlu0 %v2327, 56
      %v5923 = vpop.permute.xlu0 %5922
      %5924 = vrot.lane.b32.xlu0 %v2329, 56
      %v5925 = vpop.permute.xlu0 %5924
      %5926 = vrot.lane.b32.xlu0 %v2331, 56
      %v5927 = vpop.permute.xlu0 %5926
      %5928 = vrot.lane.b32.xlu0 %v2333, 56
      %v5929 = vpop.permute.xlu0 %5928
      %5930 = vrot.lane.b32.xlu0 %v2335, 56
      %v5931 = vpop.permute.xlu0 %5930
      %5932 = vrot.lane.b32.xlu0 %v2337, 56
      %v5933 = vpop.permute.xlu0 %5932
      %5934 = vrot.lane.b32.xlu0 %v2339, 56
      %v5935 = vpop.permute.xlu0 %5934
      %5936 = vrot.lane.b32.xlu0 %v2341, 56
      %v5937 = vpop.permute.xlu0 %5936
      %5938 = vrot.lane.b32.xlu0 %v2343, 56
      %v5939 = vpop.permute.xlu0 %5938
      %5940 = vrot.lane.b32.xlu0 %v2345, 56
      %v5941 = vpop.permute.xlu0 %5940
      %5942 = vrot.lane.b32.xlu0 %v2347, 56
      %v5943 = vpop.permute.xlu0 %5942
      %5944 = vrot.lane.b32.xlu0 %v2349, 56
      %v5945 = vpop.permute.xlu0 %5944
      %5946 = vrot.lane.b32.xlu0 %v2351, 56
      %v5947 = vpop.permute.xlu0 %5946
      %5948 = vrot.lane.b32.xlu0 %v2353, 56
      %v5949 = vpop.permute.xlu0 %5948
      %5950 = vrot.lane.b32.xlu0 %v2355, 56
      %v5951 = vpop.permute.xlu0 %5950
      %5952 = vrot.lane.b32.xlu0 %v2357, 56
      %v5953 = vpop.permute.xlu0 %5952
      %5954 = vrot.lane.b32.xlu0 %v2359, 56
      %v5955 = vpop.permute.xlu0 %5954
      %5956 = vrot.lane.b32.xlu0 %v2361, 56
      %v5957 = vpop.permute.xlu0 %5956
      %5958 = vrot.lane.b32.xlu0 %v2363, 56
      %v5959 = vpop.permute.xlu0 %5958
      %5960 = vrot.lane.b32.xlu0 %v2365, 56
      %v5961 = vpop.permute.xlu0 %5960
      %6210 = vrot.lane.b32.xlu0 %v2367, 64
      %v6211 = vpop.permute.xlu0 %6210
      %6212 = vrot.lane.b32.xlu0 %v2369, 64
      %v6213 = vpop.permute.xlu0 %6212
      %6214 = vrot.lane.b32.xlu0 %v2371, 64
      %v6215 = vpop.permute.xlu0 %6214
      %6216 = vrot.lane.b32.xlu0 %v2373, 64
      %v6217 = vpop.permute.xlu0 %6216
      %6218 = vrot.lane.b32.xlu0 %v2375, 64
      %v6219 = vpop.permute.xlu0 %6218
      %6220 = vrot.lane.b32.xlu0 %v2377, 64
      %v6221 = vpop.permute.xlu0 %6220
      %6222 = vrot.lane.b32.xlu0 %v2379, 64
      %v6223 = vpop.permute.xlu0 %6222
      %6224 = vrot.lane.b32.xlu0 %v2381, 64
      %v6225 = vpop.permute.xlu0 %6224
      %6226 = vrot.lane.b32.xlu0 %v2383, 64
      %v6227 = vpop.permute.xlu0 %6226
      %6228 = vrot.lane.b32.xlu0 %v2385, 64
      %v6229 = vpop.permute.xlu0 %6228
      %6230 = vrot.lane.b32.xlu0 %v2387, 64
      %v6231 = vpop.permute.xlu0 %6230
      %6232 = vrot.lane.b32.xlu0 %v2389, 64
      %v6233 = vpop.permute.xlu0 %6232
      %6234 = vrot.lane.b32.xlu0 %v2391, 64
      %v6235 = vpop.permute.xlu0 %6234
      %6236 = vrot.lane.b32.xlu0 %v2393, 64
      %v6237 = vpop.permute.xlu0 %6236
      %6238 = vrot.lane.b32.xlu0 %v2395, 64
      %v6239 = vpop.permute.xlu0 %6238
      %6240 = vrot.lane.b32.xlu0 %v2397, 64
      %v6241 = vpop.permute.xlu0 %6240
      %6242 = vrot.lane.b32.xlu0 %v2399, 64
      %v6243 = vpop.permute.xlu0 %6242
      %6244 = vrot.lane.b32.xlu0 %v2401, 64
      %v6245 = vpop.permute.xlu0 %6244
      %6246 = vrot.lane.b32.xlu0 %v2403, 64
      %v6247 = vpop.permute.xlu0 %6246
      %6248 = vrot.lane.b32.xlu0 %v2405, 64
      %v6249 = vpop.permute.xlu0 %6248
      %6250 = vrot.lane.b32.xlu0 %v2407, 64
      %v6251 = vpop.permute.xlu0 %6250
      %6252 = vrot.lane.b32.xlu0 %v2409, 64
      %v6253 = vpop.permute.xlu0 %6252
      %6254 = vrot.lane.b32.xlu0 %v2411, 64
      %v6255 = vpop.permute.xlu0 %6254
      %6256 = vrot.lane.b32.xlu0 %v2413, 64
      %v6257 = vpop.permute.xlu0 %6256
      %6258 = vrot.lane.b32.xlu0 %v2415, 64
      %v6259 = vpop.permute.xlu0 %6258
      %6260 = vrot.lane.b32.xlu0 %v2417, 64
      %v6261 = vpop.permute.xlu0 %6260
      %6262 = vrot.lane.b32.xlu0 %v2419, 64
      %v6263 = vpop.permute.xlu0 %6262
      %6264 = vrot.lane.b32.xlu0 %v2421, 64
      %v6265 = vpop.permute.xlu0 %6264
      %6266 = vrot.lane.b32.xlu0 %v2423, 64
      %v6267 = vpop.permute.xlu0 %6266
      %6268 = vrot.lane.b32.xlu0 %v2425, 64
      %v6269 = vpop.permute.xlu0 %6268
      %6270 = vrot.lane.b32.xlu0 %v2427, 64
      %v6271 = vpop.permute.xlu0 %6270
      %6272 = vrot.lane.b32.xlu0 %v2429, 64
      %v6273 = vpop.permute.xlu0 %6272
      %6274 = vrot.lane.b32.xlu0 %v2431, 64
      %v6275 = vpop.permute.xlu0 %6274
      %6276 = vrot.lane.b32.xlu0 %v2433, 64
      %v6277 = vpop.permute.xlu0 %6276
      %6278 = vrot.lane.b32.xlu0 %v2435, 64
      %v6279 = vpop.permute.xlu0 %6278
      %6280 = vrot.lane.b32.xlu0 %v2437, 64
      %v6281 = vpop.permute.xlu0 %6280
      %6282 = vrot.lane.b32.xlu0 %v2439, 64
      %v6283 = vpop.permute.xlu0 %6282
      %6284 = vrot.lane.b32.xlu0 %v2441, 64
      %v6285 = vpop.permute.xlu0 %6284
      %6286 = vrot.lane.b32.xlu0 %v2443, 64
      %v6287 = vpop.permute.xlu0 %6286
      %6288 = vrot.lane.b32.xlu0 %v2445, 64
      %v6289 = vpop.permute.xlu0 %6288
      %6290 = vrot.lane.b32.xlu0 %v2447, 64
      %v6291 = vpop.permute.xlu0 %6290
      %6292 = vrot.lane.b32.xlu0 %v2449, 64
      %v6293 = vpop.permute.xlu0 %6292
      %6294 = vrot.lane.b32.xlu0 %v2451, 64
      %v6295 = vpop.permute.xlu0 %6294
      %6296 = vrot.lane.b32.xlu0 %v2453, 64
      %v6297 = vpop.permute.xlu0 %6296
      %6298 = vrot.lane.b32.xlu0 %v2455, 64
      %v6299 = vpop.permute.xlu0 %6298
      %6300 = vrot.lane.b32.xlu0 %v2457, 64
      %v6301 = vpop.permute.xlu0 %6300
      %6302 = vrot.lane.b32.xlu0 %v2459, 64
      %v6303 = vpop.permute.xlu0 %6302
      %6304 = vrot.lane.b32.xlu0 %v2461, 64
      %v6305 = vpop.permute.xlu0 %6304
      %6306 = vrot.lane.b32.xlu0 %v2463, 64
      %v6307 = vpop.permute.xlu0 %6306
      %6308 = vrot.lane.b32.xlu0 %v2465, 64
      %v6309 = vpop.permute.xlu0 %6308
      %6310 = vrot.lane.b32.xlu0 %v2467, 64
      %v6311 = vpop.permute.xlu0 %6310
      %6312 = vrot.lane.b32.xlu0 %v2469, 64
      %v6313 = vpop.permute.xlu0 %6312
      %6314 = vrot.lane.b32.xlu0 %v2471, 64
      %v6315 = vpop.permute.xlu0 %6314
      %6316 = vrot.lane.b32.xlu0 %v2473, 64
      %v6317 = vpop.permute.xlu0 %6316
      %6318 = vrot.lane.b32.xlu0 %v2475, 64
      %v6319 = vpop.permute.xlu0 %6318
      %6320 = vrot.lane.b32.xlu0 %v2477, 64
      %v6321 = vpop.permute.xlu0 %6320
      %6322 = vrot.lane.b32.xlu0 %v2479, 64
      %v6323 = vpop.permute.xlu0 %6322
      %6324 = vrot.lane.b32.xlu0 %v2481, 64
      %v6325 = vpop.permute.xlu0 %6324
      %6326 = vrot.lane.b32.xlu0 %v2483, 64
      %v6327 = vpop.permute.xlu0 %6326
      %6328 = vrot.lane.b32.xlu0 %v2485, 64
      %v6329 = vpop.permute.xlu0 %6328
      %6330 = vrot.lane.b32.xlu0 %v2487, 64
      %v6331 = vpop.permute.xlu0 %6330
      %6332 = vrot.lane.b32.xlu0 %v2489, 64
      %v6333 = vpop.permute.xlu0 %6332
      %6334 = vrot.lane.b32.xlu0 %v2491, 64
      %v6335 = vpop.permute.xlu0 %6334
      %6336 = vrot.lane.b32.xlu0 %v2493, 64
      %v6337 = vpop.permute.xlu0 %6336
      %6338 = vrot.lane.b32.xlu0 %v2495, 64
      %v6339 = vpop.permute.xlu0 %6338
      %6340 = vrot.lane.b32.xlu0 %v2497, 64
      %v6341 = vpop.permute.xlu0 %6340
      %6342 = vrot.lane.b32.xlu0 %v2499, 64
      %v6343 = vpop.permute.xlu0 %6342
      %6344 = vrot.lane.b32.xlu0 %v2501, 64
      %v6345 = vpop.permute.xlu0 %6344
      %6346 = vrot.lane.b32.xlu0 %v2503, 64
      %v6347 = vpop.permute.xlu0 %6346
      %6348 = vrot.lane.b32.xlu0 %v2505, 64
      %v6349 = vpop.permute.xlu0 %6348
      %6350 = vrot.lane.b32.xlu0 %v2507, 64
      %v6351 = vpop.permute.xlu0 %6350
      %6352 = vrot.lane.b32.xlu0 %v2509, 64
      %v6353 = vpop.permute.xlu0 %6352
      %6354 = vrot.lane.b32.xlu0 %v2511, 64
      %v6355 = vpop.permute.xlu0 %6354
      %6356 = vrot.lane.b32.xlu0 %v2513, 64
      %v6357 = vpop.permute.xlu0 %6356
      %6358 = vrot.lane.b32.xlu0 %v2515, 64
      %v6359 = vpop.permute.xlu0 %6358
      %6360 = vrot.lane.b32.xlu0 %v2517, 64
      %v6361 = vpop.permute.xlu0 %6360
      %6362 = vrot.lane.b32.xlu0 %v2519, 64
      %v6363 = vpop.permute.xlu0 %6362
      %6364 = vrot.lane.b32.xlu0 %v2521, 64
      %v6365 = vpop.permute.xlu0 %6364
      %6366 = vrot.lane.b32.xlu0 %v2523, 64
      %v6367 = vpop.permute.xlu0 %6366
      %6368 = vrot.lane.b32.xlu0 %v2525, 64
      %v6369 = vpop.permute.xlu0 %6368
      %6370 = vrot.lane.b32.xlu0 %v2527, 64
      %v6371 = vpop.permute.xlu0 %6370
      %6372 = vrot.lane.b32.xlu0 %v2529, 64
      %v6373 = vpop.permute.xlu0 %6372
      %6374 = vrot.lane.b32.xlu0 %v2531, 64
      %v6375 = vpop.permute.xlu0 %6374
      %6376 = vrot.lane.b32.xlu0 %v2533, 64
      %v6377 = vpop.permute.xlu0 %6376
      %6378 = vrot.lane.b32.xlu0 %v2535, 64
      %v6379 = vpop.permute.xlu0 %6378
      %6380 = vrot.lane.b32.xlu0 %v2537, 64
      %v6381 = vpop.permute.xlu0 %6380
      %6382 = vrot.lane.b32.xlu0 %v2539, 64
      %v6383 = vpop.permute.xlu0 %6382
      %6384 = vrot.lane.b32.xlu0 %v2541, 64
      %v6385 = vpop.permute.xlu0 %6384
      %6386 = vrot.lane.b32.xlu0 %v2543, 64
      %v6387 = vpop.permute.xlu0 %6386
      %6388 = vrot.lane.b32.xlu0 %v2545, 64
      %v6389 = vpop.permute.xlu0 %6388
      %6390 = vrot.lane.b32.xlu0 %v2547, 64
      %v6391 = vpop.permute.xlu0 %6390
      %6392 = vrot.lane.b32.xlu0 %v2549, 64
      %v6393 = vpop.permute.xlu0 %6392
      %6394 = vrot.lane.b32.xlu0 %v2551, 64
      %v6395 = vpop.permute.xlu0 %6394
      %6396 = vrot.lane.b32.xlu0 %v2553, 64
      %v6397 = vpop.permute.xlu0 %6396
      %6398 = vrot.lane.b32.xlu0 %v2555, 64
      %v6399 = vpop.permute.xlu0 %6398
      %6400 = vrot.lane.b32.xlu0 %v2557, 64
      %v6401 = vpop.permute.xlu0 %6400
      %6402 = vrot.lane.b32.xlu0 %v2559, 64
      %v6403 = vpop.permute.xlu0 %6402
      %6404 = vrot.lane.b32.xlu0 %v2561, 64
      %v6405 = vpop.permute.xlu0 %6404
      %6406 = vrot.lane.b32.xlu0 %v2563, 64
      %v6407 = vpop.permute.xlu0 %6406
      %6408 = vrot.lane.b32.xlu0 %v2565, 64
      %v6409 = vpop.permute.xlu0 %6408
      %6410 = vrot.lane.b32.xlu0 %v2567, 64
      %v6411 = vpop.permute.xlu0 %6410
      %6412 = vrot.lane.b32.xlu0 %v2569, 64
      %v6413 = vpop.permute.xlu0 %6412
      %6414 = vrot.lane.b32.xlu0 %v2571, 64
      %v6415 = vpop.permute.xlu0 %6414
      %6416 = vrot.lane.b32.xlu0 %v2573, 64
      %v6417 = vpop.permute.xlu0 %6416
      %6418 = vrot.lane.b32.xlu0 %v2575, 64
      %v6419 = vpop.permute.xlu0 %6418
      %6420 = vrot.lane.b32.xlu0 %v2577, 64
      %v6421 = vpop.permute.xlu0 %6420
      %6422 = vrot.lane.b32.xlu0 %v2579, 64
      %v6423 = vpop.permute.xlu0 %6422
      %6424 = vrot.lane.b32.xlu0 %v2581, 64
      %v6425 = vpop.permute.xlu0 %6424
      %6426 = vrot.lane.b32.xlu0 %v2583, 64
      %v6427 = vpop.permute.xlu0 %6426
      %6428 = vrot.lane.b32.xlu0 %v2585, 64
      %v6429 = vpop.permute.xlu0 %6428
      %6430 = vrot.lane.b32.xlu0 %v2587, 64
      %v6431 = vpop.permute.xlu0 %6430
      %6432 = vrot.lane.b32.xlu0 %v2589, 64
      %v6433 = vpop.permute.xlu0 %6432
      %6434 = vrot.lane.b32.xlu0 %v2591, 64
      %v6435 = vpop.permute.xlu0 %6434
      %6436 = vrot.lane.b32.xlu0 %v2593, 64
      %v6437 = vpop.permute.xlu0 %6436
      %6438 = vrot.lane.b32.xlu0 %v2595, 64
      %v6439 = vpop.permute.xlu0 %6438
      %6440 = vrot.lane.b32.xlu0 %v2597, 64
      %v6441 = vpop.permute.xlu0 %6440
      %6442 = vrot.lane.b32.xlu0 %v2599, 64
      %v6443 = vpop.permute.xlu0 %6442
      %6444 = vrot.lane.b32.xlu0 %v2601, 64
      %v6445 = vpop.permute.xlu0 %6444
      %6446 = vrot.lane.b32.xlu0 %v2603, 64
      %v6447 = vpop.permute.xlu0 %6446
      %6448 = vrot.lane.b32.xlu0 %v2605, 64
      %v6449 = vpop.permute.xlu0 %6448
      %6450 = vrot.lane.b32.xlu0 %v2607, 64
      %v6451 = vpop.permute.xlu0 %6450
      %6452 = vrot.lane.b32.xlu0 %v2609, 64
      %v6453 = vpop.permute.xlu0 %6452
      %6454 = vrot.lane.b32.xlu0 %v2611, 64
      %v6455 = vpop.permute.xlu0 %6454
      %6456 = vrot.lane.b32.xlu0 %v2613, 64
      %v6457 = vpop.permute.xlu0 %6456
      %vm6582 = vcmask 64512
      %v6583 = vsel %vm6582, %v383, %v2739
      %v6584 = vsel %vm6582, %v385, %v2741
      %v6585 = vsel %vm6582, %v387, %v2743
      %v6586 = vsel %vm6582, %v389, %v2745
      %v6587 = vsel %vm6582, %v391, %v2747
      %v6588 = vsel %vm6582, %v393, %v2749
      %v6589 = vsel %vm6582, %v395, %v2751
      %v6590 = vsel %vm6582, %v397, %v2753
      %v6591 = vsel %vm6582, %v399, %v2755
      %v6592 = vsel %vm6582, %v401, %v2757
      %v6593 = vsel %vm6582, %v403, %v2759
      %v6594 = vsel %vm6582, %v405, %v2761
      %v6595 = vsel %vm6582, %v407, %v2763
      %v6596 = vsel %vm6582, %v409, %v2765
      %v6597 = vsel %vm6582, %v411, %v2767
      %v6598 = vsel %vm6582, %v413, %v2769
      %v6599 = vsel %vm6582, %v415, %v2771
      %v6600 = vsel %vm6582, %v417, %v2773
      %v6601 = vsel %vm6582, %v419, %v2775
      %v6602 = vsel %vm6582, %v421, %v2777
      %v6603 = vsel %vm6582, %v423, %v2779
      %v6604 = vsel %vm6582, %v425, %v2781
      %v6605 = vsel %vm6582, %v427, %v2783
      %v6606 = vsel %vm6582, %v429, %v2785
      %v6607 = vsel %vm6582, %v431, %v2787
      %v6608 = vsel %vm6582, %v433, %v2789
      %v6609 = vsel %vm6582, %v435, %v2791
      %v6610 = vsel %vm6582, %v437, %v2793
      %v6611 = vsel %vm6582, %v439, %v2795
      %v6612 = vsel %vm6582, %v441, %v2797
      %v6613 = vsel %vm6582, %v443, %v2799
      %v6614 = vsel %vm6582, %v445, %v2801
      %v6615 = vsel %vm6582, %v447, %v2803
      %v6616 = vsel %vm6582, %v449, %v2805
      %v6617 = vsel %vm6582, %v451, %v2807
      %v6618 = vsel %vm6582, %v453, %v2809
      %v6619 = vsel %vm6582, %v455, %v2811
      %v6620 = vsel %vm6582, %v457, %v2813
      %v6621 = vsel %vm6582, %v459, %v2815
      %v6622 = vsel %vm6582, %v461, %v2817
      %v6623 = vsel %vm6582, %v463, %v2819
      %v6624 = vsel %vm6582, %v465, %v2821
      %v6625 = vsel %vm6582, %v467, %v2823
      %v6626 = vsel %vm6582, %v469, %v2825
      %v6627 = vsel %vm6582, %v471, %v2827
      %v6628 = vsel %vm6582, %v473, %v2829
      %v6629 = vsel %vm6582, %v475, %v2831
      %v6630 = vsel %vm6582, %v477, %v2833
      %v6631 = vsel %vm6582, %v479, %v2835
      %v6632 = vsel %vm6582, %v481, %v2837
      %v6633 = vsel %vm6582, %v483, %v2839
      %v6634 = vsel %vm6582, %v485, %v2841
      %v6635 = vsel %vm6582, %v487, %v2843
      %v6636 = vsel %vm6582, %v489, %v2845
      %v6637 = vsel %vm6582, %v491, %v2847
      %v6638 = vsel %vm6582, %v493, %v2849
      %v6639 = vsel %vm6582, %v495, %v2851
      %v6640 = vsel %vm6582, %v497, %v2853
      %v6641 = vsel %vm6582, %v499, %v2855
      %v6642 = vsel %vm6582, %v501, %v2857
      %v6643 = vsel %vm6582, %v503, %v2859
      %v6644 = vsel %vm6582, %v505, %v2861
      %v6645 = vsel %vm6582, %v507, %v2863
      %v6646 = vsel %vm6582, %v509, %v2865
      %v6647 = vsel %vm6582, %v511, %v2867
      %v6648 = vsel %vm6582, %v513, %v2869
      %v6649 = vsel %vm6582, %v515, %v2871
      %v6650 = vsel %vm6582, %v517, %v2873
      %v6651 = vsel %vm6582, %v519, %v2875
      %v6652 = vsel %vm6582, %v521, %v2877
      %v6653 = vsel %vm6582, %v523, %v2879
      %v6654 = vsel %vm6582, %v525, %v2881
      %v6655 = vsel %vm6582, %v527, %v2883
      %v6656 = vsel %vm6582, %v529, %v2885
      %v6657 = vsel %vm6582, %v531, %v2887
      %v6658 = vsel %vm6582, %v533, %v2889
      %v6659 = vsel %vm6582, %v535, %v2891
      %v6660 = vsel %vm6582, %v537, %v2893
      %v6661 = vsel %vm6582, %v539, %v2895
      %v6662 = vsel %vm6582, %v541, %v2897
      %v6663 = vsel %vm6582, %v543, %v2899
      %v6664 = vsel %vm6582, %v545, %v2901
      %v6665 = vsel %vm6582, %v547, %v2903
      %v6666 = vsel %vm6582, %v549, %v2905
      %v6667 = vsel %vm6582, %v551, %v2907
      %v6668 = vsel %vm6582, %v553, %v2909
      %v6669 = vsel %vm6582, %v555, %v2911
      %v6670 = vsel %vm6582, %v557, %v2913
      %v6671 = vsel %vm6582, %v559, %v2915
      %v6672 = vsel %vm6582, %v561, %v2917
      %v6673 = vsel %vm6582, %v563, %v2919
      %v6674 = vsel %vm6582, %v565, %v2921
      %v6675 = vsel %vm6582, %v567, %v2923
      %v6676 = vsel %vm6582, %v569, %v2925
      %v6677 = vsel %vm6582, %v571, %v2927
      %v6678 = vsel %vm6582, %v573, %v2929
      %v6679 = vsel %vm6582, %v575, %v2931
      %v6680 = vsel %vm6582, %v577, %v2933
      %v6681 = vsel %vm6582, %v579, %v2935
      %v6682 = vsel %vm6582, %v581, %v2937
      %v6683 = vsel %vm6582, %v583, %v2939
      %v6684 = vsel %vm6582, %v585, %v2941
      %v6685 = vsel %vm6582, %v587, %v2943
      %v6686 = vsel %vm6582, %v589, %v2945
      %v6687 = vsel %vm6582, %v591, %v2947
      %v6688 = vsel %vm6582, %v593, %v2949
      %v6689 = vsel %vm6582, %v595, %v2951
      %v6690 = vsel %vm6582, %v597, %v2953
      %v6691 = vsel %vm6582, %v599, %v2955
      %v6692 = vsel %vm6582, %v601, %v2957
      %v6693 = vsel %vm6582, %v603, %v2959
      %v6694 = vsel %vm6582, %v605, %v2961
      %v6695 = vsel %vm6582, %v607, %v2963
      %v6696 = vsel %vm6582, %v609, %v2965
      %v6697 = vsel %vm6582, %v611, %v2967
      %v6698 = vsel %vm6582, %v613, %v2969
      %v6699 = vsel %vm6582, %v615, %v2971
      %v6700 = vsel %vm6582, %v617, %v2973
      %v6701 = vsel %vm6582, %v619, %v2975
      %v6702 = vsel %vm6582, %v621, %v2977
      %v6703 = vsel %vm6582, %v623, %v2979
      %v6704 = vsel %vm6582, %v625, %v2981
      %v6705 = vsel %vm6582, %v627, %v2983
      %v6706 = vsel %vm6582, %v629, %v2985
      %vm6707 = vcmask 130048
      %v6708 = vsel %vm6707, %v6583, %v3235
      %v6709 = vsel %vm6707, %v6584, %v3237
      %v6710 = vsel %vm6707, %v6585, %v3239
      %v6711 = vsel %vm6707, %v6586, %v3241
      %v6712 = vsel %vm6707, %v6587, %v3243
      %v6713 = vsel %vm6707, %v6588, %v3245
      %v6714 = vsel %vm6707, %v6589, %v3247
      %v6715 = vsel %vm6707, %v6590, %v3249
      %v6716 = vsel %vm6707, %v6591, %v3251
      %v6717 = vsel %vm6707, %v6592, %v3253
      %v6718 = vsel %vm6707, %v6593, %v3255
      %v6719 = vsel %vm6707, %v6594, %v3257
      %v6720 = vsel %vm6707, %v6595, %v3259
      %v6721 = vsel %vm6707, %v6596, %v3261
      %v6722 = vsel %vm6707, %v6597, %v3263
      %v6723 = vsel %vm6707, %v6598, %v3265
      %v6724 = vsel %vm6707, %v6599, %v3267
      %v6725 = vsel %vm6707, %v6600, %v3269
      %v6726 = vsel %vm6707, %v6601, %v3271
      %v6727 = vsel %vm6707, %v6602, %v3273
      %v6728 = vsel %vm6707, %v6603, %v3275
      %v6729 = vsel %vm6707, %v6604, %v3277
      %v6730 = vsel %vm6707, %v6605, %v3279
      %v6731 = vsel %vm6707, %v6606, %v3281
      %v6732 = vsel %vm6707, %v6607, %v3283
      %v6733 = vsel %vm6707, %v6608, %v3285
      %v6734 = vsel %vm6707, %v6609, %v3287
      %v6735 = vsel %vm6707, %v6610, %v3289
      %v6736 = vsel %vm6707, %v6611, %v3291
      %v6737 = vsel %vm6707, %v6612, %v3293
      %v6738 = vsel %vm6707, %v6613, %v3295
      %v6739 = vsel %vm6707, %v6614, %v3297
      %v6740 = vsel %vm6707, %v6615, %v3299
      %v6741 = vsel %vm6707, %v6616, %v3301
      %v6742 = vsel %vm6707, %v6617, %v3303
      %v6743 = vsel %vm6707, %v6618, %v3305
      %v6744 = vsel %vm6707, %v6619, %v3307
      %v6745 = vsel %vm6707, %v6620, %v3309
      %v6746 = vsel %vm6707, %v6621, %v3311
      %v6747 = vsel %vm6707, %v6622, %v3313
      %v6748 = vsel %vm6707, %v6623, %v3315
      %v6749 = vsel %vm6707, %v6624, %v3317
      %v6750 = vsel %vm6707, %v6625, %v3319
      %v6751 = vsel %vm6707, %v6626, %v3321
      %v6752 = vsel %vm6707, %v6627, %v3323
      %v6753 = vsel %vm6707, %v6628, %v3325
      %v6754 = vsel %vm6707, %v6629, %v3327
      %v6755 = vsel %vm6707, %v6630, %v3329
      %v6756 = vsel %vm6707, %v6631, %v3331
      %v6757 = vsel %vm6707, %v6632, %v3333
      %v6758 = vsel %vm6707, %v6633, %v3335
      %v6759 = vsel %vm6707, %v6634, %v3337
      %v6760 = vsel %vm6707, %v6635, %v3339
      %v6761 = vsel %vm6707, %v6636, %v3341
      %v6762 = vsel %vm6707, %v6637, %v3343
      %v6763 = vsel %vm6707, %v6638, %v3345
      %v6764 = vsel %vm6707, %v6639, %v3347
      %v6765 = vsel %vm6707, %v6640, %v3349
      %v6766 = vsel %vm6707, %v6641, %v3351
      %v6767 = vsel %vm6707, %v6642, %v3353
      %v6768 = vsel %vm6707, %v6643, %v3355
      %v6769 = vsel %vm6707, %v6644, %v3357
      %v6770 = vsel %vm6707, %v6645, %v3359
      %v6771 = vsel %vm6707, %v6646, %v3361
      %v6772 = vsel %vm6707, %v6647, %v3363
      %v6773 = vsel %vm6707, %v6648, %v3365
      %v6774 = vsel %vm6707, %v6649, %v3367
      %v6775 = vsel %vm6707, %v6650, %v3369
      %v6776 = vsel %vm6707, %v6651, %v3371
      %v6777 = vsel %vm6707, %v6652, %v3373
      %v6778 = vsel %vm6707, %v6653, %v3375
      %v6779 = vsel %vm6707, %v6654, %v3377
      %v6780 = vsel %vm6707, %v6655, %v3379
      %v6781 = vsel %vm6707, %v6656, %v3381
      %v6782 = vsel %vm6707, %v6657, %v3383
      %v6783 = vsel %vm6707, %v6658, %v3385
      %v6784 = vsel %vm6707, %v6659, %v3387
      %v6785 = vsel %vm6707, %v6660, %v3389
      %v6786 = vsel %vm6707, %v6661, %v3391
      %v6787 = vsel %vm6707, %v6662, %v3393
      %v6788 = vsel %vm6707, %v6663, %v3395
      %v6789 = vsel %vm6707, %v6664, %v3397
      %v6790 = vsel %vm6707, %v6665, %v3399
      %v6791 = vsel %vm6707, %v6666, %v3401
      %v6792 = vsel %vm6707, %v6667, %v3403
      %v6793 = vsel %vm6707, %v6668, %v3405
      %v6794 = vsel %vm6707, %v6669, %v3407
      %v6795 = vsel %vm6707, %v6670, %v3409
      %v6796 = vsel %vm6707, %v6671, %v3411
      %v6797 = vsel %vm6707, %v6672, %v3413
      %v6798 = vsel %vm6707, %v6673, %v3415
      %v6799 = vsel %vm6707, %v6674, %v3417
      %v6800 = vsel %vm6707, %v6675, %v3419
      %v6801 = vsel %vm6707, %v6676, %v3421
      %v6802 = vsel %vm6707, %v6677, %v3423
      %v6803 = vsel %vm6707, %v6678, %v3425
      %v6804 = vsel %vm6707, %v6679, %v3427
      %v6805 = vsel %vm6707, %v6680, %v3429
      %v6806 = vsel %vm6707, %v6681, %v3431
      %v6807 = vsel %vm6707, %v6682, %v3433
      %v6808 = vsel %vm6707, %v6683, %v3435
      %v6809 = vsel %vm6707, %v6684, %v3437
      %v6810 = vsel %vm6707, %v6685, %v3439
      %v6811 = vsel %vm6707, %v6686, %v3441
      %v6812 = vsel %vm6707, %v6687, %v3443
      %v6813 = vsel %vm6707, %v6688, %v3445
      %v6814 = vsel %vm6707, %v6689, %v3447
      %v6815 = vsel %vm6707, %v6690, %v3449
      %v6816 = vsel %vm6707, %v6691, %v3451
      %v6817 = vsel %vm6707, %v6692, %v3453
      %v6818 = vsel %vm6707, %v6693, %v3455
      %v6819 = vsel %vm6707, %v6694, %v3457
      %v6820 = vsel %vm6707, %v6695, %v3459
      %v6821 = vsel %vm6707, %v6696, %v3461
      %v6822 = vsel %vm6707, %v6697, %v3463
      %v6823 = vsel %vm6707, %v6698, %v3465
      %v6824 = vsel %vm6707, %v6699, %v3467
      %v6825 = vsel %vm6707, %v6700, %v3469
      %v6826 = vsel %vm6707, %v6701, %v3471
      %v6827 = vsel %vm6707, %v6702, %v3473
      %v6828 = vsel %vm6707, %v6703, %v3475
      %v6829 = vsel %vm6707, %v6704, %v3477
      %v6830 = vsel %vm6707, %v6705, %v3479
      %v6831 = vsel %vm6707, %v6706, %v3481
      %vm6832 = vcmask 195584
      %v6833 = vsel %vm6832, %v6708, %v3731
      %v6834 = vsel %vm6832, %v6709, %v3733
      %v6835 = vsel %vm6832, %v6710, %v3735
      %v6836 = vsel %vm6832, %v6711, %v3737
      %v6837 = vsel %vm6832, %v6712, %v3739
      %v6838 = vsel %vm6832, %v6713, %v3741
      %v6839 = vsel %vm6832, %v6714, %v3743
      %v6840 = vsel %vm6832, %v6715, %v3745
      %v6841 = vsel %vm6832, %v6716, %v3747
      %v6842 = vsel %vm6832, %v6717, %v3749
      %v6843 = vsel %vm6832, %v6718, %v3751
      %v6844 = vsel %vm6832, %v6719, %v3753
      %v6845 = vsel %vm6832, %v6720, %v3755
      %v6846 = vsel %vm6832, %v6721, %v3757
      %v6847 = vsel %vm6832, %v6722, %v3759
      %v6848 = vsel %vm6832, %v6723, %v3761
      %v6849 = vsel %vm6832, %v6724, %v3763
      %v6850 = vsel %vm6832, %v6725, %v3765
      %v6851 = vsel %vm6832, %v6726, %v3767
      %v6852 = vsel %vm6832, %v6727, %v3769
      %v6853 = vsel %vm6832, %v6728, %v3771
      %v6854 = vsel %vm6832, %v6729, %v3773
      %v6855 = vsel %vm6832, %v6730, %v3775
      %v6856 = vsel %vm6832, %v6731, %v3777
      %v6857 = vsel %vm6832, %v6732, %v3779
      %v6858 = vsel %vm6832, %v6733, %v3781
      %v6859 = vsel %vm6832, %v6734, %v3783
      %v6860 = vsel %vm6832, %v6735, %v3785
      %v6861 = vsel %vm6832, %v6736, %v3787
      %v6862 = vsel %vm6832, %v6737, %v3789
      %v6863 = vsel %vm6832, %v6738, %v3791
      %v6864 = vsel %vm6832, %v6739, %v3793
      %v6865 = vsel %vm6832, %v6740, %v3795
      %v6866 = vsel %vm6832, %v6741, %v3797
      %v6867 = vsel %vm6832, %v6742, %v3799
      %v6868 = vsel %vm6832, %v6743, %v3801
      %v6869 = vsel %vm6832, %v6744, %v3803
      %v6870 = vsel %vm6832, %v6745, %v3805
      %v6871 = vsel %vm6832, %v6746, %v3807
      %v6872 = vsel %vm6832, %v6747, %v3809
      %v6873 = vsel %vm6832, %v6748, %v3811
      %v6874 = vsel %vm6832, %v6749, %v3813
      %v6875 = vsel %vm6832, %v6750, %v3815
      %v6876 = vsel %vm6832, %v6751, %v3817
      %v6877 = vsel %vm6832, %v6752, %v3819
      %v6878 = vsel %vm6832, %v6753, %v3821
      %v6879 = vsel %vm6832, %v6754, %v3823
      %v6880 = vsel %vm6832, %v6755, %v3825
      %v6881 = vsel %vm6832, %v6756, %v3827
      %v6882 = vsel %vm6832, %v6757, %v3829
      %v6883 = vsel %vm6832, %v6758, %v3831
      %v6884 = vsel %vm6832, %v6759, %v3833
      %v6885 = vsel %vm6832, %v6760, %v3835
      %v6886 = vsel %vm6832, %v6761, %v3837
      %v6887 = vsel %vm6832, %v6762, %v3839
      %v6888 = vsel %vm6832, %v6763, %v3841
      %v6889 = vsel %vm6832, %v6764, %v3843
      %v6890 = vsel %vm6832, %v6765, %v3845
      %v6891 = vsel %vm6832, %v6766, %v3847
      %v6892 = vsel %vm6832, %v6767, %v3849
      %v6893 = vsel %vm6832, %v6768, %v3851
      %v6894 = vsel %vm6832, %v6769, %v3853
      %v6895 = vsel %vm6832, %v6770, %v3855
      %v6896 = vsel %vm6832, %v6771, %v3857
      %v6897 = vsel %vm6832, %v6772, %v3859
      %v6898 = vsel %vm6832, %v6773, %v3861
      %v6899 = vsel %vm6832, %v6774, %v3863
      %v6900 = vsel %vm6832, %v6775, %v3865
      %v6901 = vsel %vm6832, %v6776, %v3867
      %v6902 = vsel %vm6832, %v6777, %v3869
      %v6903 = vsel %vm6832, %v6778, %v3871
      %v6904 = vsel %vm6832, %v6779, %v3873
      %v6905 = vsel %vm6832, %v6780, %v3875
      %v6906 = vsel %vm6832, %v6781, %v3877
      %v6907 = vsel %vm6832, %v6782, %v3879
      %v6908 = vsel %vm6832, %v6783, %v3881
      %v6909 = vsel %vm6832, %v6784, %v3883
      %v6910 = vsel %vm6832, %v6785, %v3885
      %v6911 = vsel %vm6832, %v6786, %v3887
      %v6912 = vsel %vm6832, %v6787, %v3889
      %v6913 = vsel %vm6832, %v6788, %v3891
      %v6914 = vsel %vm6832, %v6789, %v3893
      %v6915 = vsel %vm6832, %v6790, %v3895
      %v6916 = vsel %vm6832, %v6791, %v3897
      %v6917 = vsel %vm6832, %v6792, %v3899
      %v6918 = vsel %vm6832, %v6793, %v3901
      %v6919 = vsel %vm6832, %v6794, %v3903
      %v6920 = vsel %vm6832, %v6795, %v3905
      %v6921 = vsel %vm6832, %v6796, %v3907
      %v6922 = vsel %vm6832, %v6797, %v3909
      %v6923 = vsel %vm6832, %v6798, %v3911
      %v6924 = vsel %vm6832, %v6799, %v3913
      %v6925 = vsel %vm6832, %v6800, %v3915
      %v6926 = vsel %vm6832, %v6801, %v3917
      %v6927 = vsel %vm6832, %v6802, %v3919
      %v6928 = vsel %vm6832, %v6803, %v3921
      %v6929 = vsel %vm6832, %v6804, %v3923
      %v6930 = vsel %vm6832, %v6805, %v3925
      %v6931 = vsel %vm6832, %v6806, %v3927
      %v6932 = vsel %vm6832, %v6807, %v3929
      %v6933 = vsel %vm6832, %v6808, %v3931
      %v6934 = vsel %vm6832, %v6809, %v3933
      %v6935 = vsel %vm6832, %v6810, %v3935
      %v6936 = vsel %vm6832, %v6811, %v3937
      %v6937 = vsel %vm6832, %v6812, %v3939
      %v6938 = vsel %vm6832, %v6813, %v3941
      %v6939 = vsel %vm6832, %v6814, %v3943
      %v6940 = vsel %vm6832, %v6815, %v3945
      %v6941 = vsel %vm6832, %v6816, %v3947
      %v6942 = vsel %vm6832, %v6817, %v3949
      %v6943 = vsel %vm6832, %v6818, %v3951
      %v6944 = vsel %vm6832, %v6819, %v3953
      %v6945 = vsel %vm6832, %v6820, %v3955
      %v6946 = vsel %vm6832, %v6821, %v3957
      %v6947 = vsel %vm6832, %v6822, %v3959
      %v6948 = vsel %vm6832, %v6823, %v3961
      %v6949 = vsel %vm6832, %v6824, %v3963
      %v6950 = vsel %vm6832, %v6825, %v3965
      %v6951 = vsel %vm6832, %v6826, %v3967
      %v6952 = vsel %vm6832, %v6827, %v3969
      %v6953 = vsel %vm6832, %v6828, %v3971
      %v6954 = vsel %vm6832, %v6829, %v3973
      %v6955 = vsel %vm6832, %v6830, %v3975
      %v6956 = vsel %vm6832, %v6831, %v3977
      %vm6957 = vcmask 261120
      %v6958 = vsel %vm6957, %v6833, %v4227
      %v6959 = vsel %vm6957, %v6834, %v4229
      %v6960 = vsel %vm6957, %v6835, %v4231
      %v6961 = vsel %vm6957, %v6836, %v4233
      %v6962 = vsel %vm6957, %v6837, %v4235
      %v6963 = vsel %vm6957, %v6838, %v4237
      %v6964 = vsel %vm6957, %v6839, %v4239
      %v6965 = vsel %vm6957, %v6840, %v4241
      %v6966 = vsel %vm6957, %v6841, %v4243
      %v6967 = vsel %vm6957, %v6842, %v4245
      %v6968 = vsel %vm6957, %v6843, %v4247
      %v6969 = vsel %vm6957, %v6844, %v4249
      %v6970 = vsel %vm6957, %v6845, %v4251
      %v6971 = vsel %vm6957, %v6846, %v4253
      %v6972 = vsel %vm6957, %v6847, %v4255
      %v6973 = vsel %vm6957, %v6848, %v4257
      %v6974 = vsel %vm6957, %v6849, %v4259
      %v6975 = vsel %vm6957, %v6850, %v4261
      %v6976 = vsel %vm6957, %v6851, %v4263
      %v6977 = vsel %vm6957, %v6852, %v4265
      %v6978 = vsel %vm6957, %v6853, %v4267
      %v6979 = vsel %vm6957, %v6854, %v4269
      %v6980 = vsel %vm6957, %v6855, %v4271
      %v6981 = vsel %vm6957, %v6856, %v4273
      %v6982 = vsel %vm6957, %v6857, %v4275
      %v6983 = vsel %vm6957, %v6858, %v4277
      %v6984 = vsel %vm6957, %v6859, %v4279
      %v6985 = vsel %vm6957, %v6860, %v4281
      %v6986 = vsel %vm6957, %v6861, %v4283
      %v6987 = vsel %vm6957, %v6862, %v4285
      %v6988 = vsel %vm6957, %v6863, %v4287
      %v6989 = vsel %vm6957, %v6864, %v4289
      %v6990 = vsel %vm6957, %v6865, %v4291
      %v6991 = vsel %vm6957, %v6866, %v4293
      %v6992 = vsel %vm6957, %v6867, %v4295
      %v6993 = vsel %vm6957, %v6868, %v4297
      %v6994 = vsel %vm6957, %v6869, %v4299
      %v6995 = vsel %vm6957, %v6870, %v4301
      %v6996 = vsel %vm6957, %v6871, %v4303
      %v6997 = vsel %vm6957, %v6872, %v4305
      %v6998 = vsel %vm6957, %v6873, %v4307
      %v6999 = vsel %vm6957, %v6874, %v4309
      %v7000 = vsel %vm6957, %v6875, %v4311
      %v7001 = vsel %vm6957, %v6876, %v4313
      %v7002 = vsel %vm6957, %v6877, %v4315
      %v7003 = vsel %vm6957, %v6878, %v4317
      %v7004 = vsel %vm6957, %v6879, %v4319
      %v7005 = vsel %vm6957, %v6880, %v4321
      %v7006 = vsel %vm6957, %v6881, %v4323
      %v7007 = vsel %vm6957, %v6882, %v4325
      %v7008 = vsel %vm6957, %v6883, %v4327
      %v7009 = vsel %vm6957, %v6884, %v4329
      %v7010 = vsel %vm6957, %v6885, %v4331
      %v7011 = vsel %vm6957, %v6886, %v4333
      %v7012 = vsel %vm6957, %v6887, %v4335
      %v7013 = vsel %vm6957, %v6888, %v4337
      %v7014 = vsel %vm6957, %v6889, %v4339
      %v7015 = vsel %vm6957, %v6890, %v4341
      %v7016 = vsel %vm6957, %v6891, %v4343
      %v7017 = vsel %vm6957, %v6892, %v4345
      %v7018 = vsel %vm6957, %v6893, %v4347
      %v7019 = vsel %vm6957, %v6894, %v4349
      %v7020 = vsel %vm6957, %v6895, %v4351
      %v7021 = vsel %vm6957, %v6896, %v4353
      %v7022 = vsel %vm6957, %v6897, %v4355
      %v7023 = vsel %vm6957, %v6898, %v4357
      %v7024 = vsel %vm6957, %v6899, %v4359
      %v7025 = vsel %vm6957, %v6900, %v4361
      %v7026 = vsel %vm6957, %v6901, %v4363
      %v7027 = vsel %vm6957, %v6902, %v4365
      %v7028 = vsel %vm6957, %v6903, %v4367
      %v7029 = vsel %vm6957, %v6904, %v4369
      %v7030 = vsel %vm6957, %v6905, %v4371
      %v7031 = vsel %vm6957, %v6906, %v4373
      %v7032 = vsel %vm6957, %v6907, %v4375
      %v7033 = vsel %vm6957, %v6908, %v4377
      %v7034 = vsel %vm6957, %v6909, %v4379
      %v7035 = vsel %vm6957, %v6910, %v4381
      %v7036 = vsel %vm6957, %v6911, %v4383
      %v7037 = vsel %vm6957, %v6912, %v4385
      %v7038 = vsel %vm6957, %v6913, %v4387
      %v7039 = vsel %vm6957, %v6914, %v4389
      %v7040 = vsel %vm6957, %v6915, %v4391
      %v7041 = vsel %vm6957, %v6916, %v4393
      %v7042 = vsel %vm6957, %v6917, %v4395
      %v7043 = vsel %vm6957, %v6918, %v4397
      %v7044 = vsel %vm6957, %v6919, %v4399
      %v7045 = vsel %vm6957, %v6920, %v4401
      %v7046 = vsel %vm6957, %v6921, %v4403
      %v7047 = vsel %vm6957, %v6922, %v4405
      %v7048 = vsel %vm6957, %v6923, %v4407
      %v7049 = vsel %vm6957, %v6924, %v4409
      %v7050 = vsel %vm6957, %v6925, %v4411
      %v7051 = vsel %vm6957, %v6926, %v4413
      %v7052 = vsel %vm6957, %v6927, %v4415
      %v7053 = vsel %vm6957, %v6928, %v4417
      %v7054 = vsel %vm6957, %v6929, %v4419
      %v7055 = vsel %vm6957, %v6930, %v4421
      %v7056 = vsel %vm6957, %v6931, %v4423
      %v7057 = vsel %vm6957, %v6932, %v4425
      %v7058 = vsel %vm6957, %v6933, %v4427
      %v7059 = vsel %vm6957, %v6934, %v4429
      %v7060 = vsel %vm6957, %v6935, %v4431
      %v7061 = vsel %vm6957, %v6936, %v4433
      %v7062 = vsel %vm6957, %v6937, %v4435
      %v7063 = vsel %vm6957, %v6938, %v4437
      %v7064 = vsel %vm6957, %v6939, %v4439
      %v7065 = vsel %vm6957, %v6940, %v4441
      %v7066 = vsel %vm6957, %v6941, %v4443
      %v7067 = vsel %vm6957, %v6942, %v4445
      %v7068 = vsel %vm6957, %v6943, %v4447
      %v7069 = vsel %vm6957, %v6944, %v4449
      %v7070 = vsel %vm6957, %v6945, %v4451
      %v7071 = vsel %vm6957, %v6946, %v4453
      %v7072 = vsel %vm6957, %v6947, %v4455
      %v7073 = vsel %vm6957, %v6948, %v4457
      %v7074 = vsel %vm6957, %v6949, %v4459
      %v7075 = vsel %vm6957, %v6950, %v4461
      %v7076 = vsel %vm6957, %v6951, %v4463
      %v7077 = vsel %vm6957, %v6952, %v4465
      %v7078 = vsel %vm6957, %v6953, %v4467
      %v7079 = vsel %vm6957, %v6954, %v4469
      %v7080 = vsel %vm6957, %v6955, %v4471
      %v7081 = vsel %vm6957, %v6956, %v4473
      %vm7082 = vcmask 326656
      %v7083 = vsel %vm7082, %v6958, %v4723
      %v7084 = vsel %vm7082, %v6959, %v4725
      %v7085 = vsel %vm7082, %v6960, %v4727
      %v7086 = vsel %vm7082, %v6961, %v4729
      %v7087 = vsel %vm7082, %v6962, %v4731
      %v7088 = vsel %vm7082, %v6963, %v4733
      %v7089 = vsel %vm7082, %v6964, %v4735
      %v7090 = vsel %vm7082, %v6965, %v4737
      %v7091 = vsel %vm7082, %v6966, %v4739
      %v7092 = vsel %vm7082, %v6967, %v4741
      %v7093 = vsel %vm7082, %v6968, %v4743
      %v7094 = vsel %vm7082, %v6969, %v4745
      %v7095 = vsel %vm7082, %v6970, %v4747
      %v7096 = vsel %vm7082, %v6971, %v4749
      %v7097 = vsel %vm7082, %v6972, %v4751
      %v7098 = vsel %vm7082, %v6973, %v4753
      %v7099 = vsel %vm7082, %v6974, %v4755
      %v7100 = vsel %vm7082, %v6975, %v4757
      %v7101 = vsel %vm7082, %v6976, %v4759
      %v7102 = vsel %vm7082, %v6977, %v4761
      %v7103 = vsel %vm7082, %v6978, %v4763
      %v7104 = vsel %vm7082, %v6979, %v4765
      %v7105 = vsel %vm7082, %v6980, %v4767
      %v7106 = vsel %vm7082, %v6981, %v4769
      %v7107 = vsel %vm7082, %v6982, %v4771
      %v7108 = vsel %vm7082, %v6983, %v4773
      %v7109 = vsel %vm7082, %v6984, %v4775
      %v7110 = vsel %vm7082, %v6985, %v4777
      %v7111 = vsel %vm7082, %v6986, %v4779
      %v7112 = vsel %vm7082, %v6987, %v4781
      %v7113 = vsel %vm7082, %v6988, %v4783
      %v7114 = vsel %vm7082, %v6989, %v4785
      %v7115 = vsel %vm7082, %v6990, %v4787
      %v7116 = vsel %vm7082, %v6991, %v4789
      %v7117 = vsel %vm7082, %v6992, %v4791
      %v7118 = vsel %vm7082, %v6993, %v4793
      %v7119 = vsel %vm7082, %v6994, %v4795
      %v7120 = vsel %vm7082, %v6995, %v4797
      %v7121 = vsel %vm7082, %v6996, %v4799
      %v7122 = vsel %vm7082, %v6997, %v4801
      %v7123 = vsel %vm7082, %v6998, %v4803
      %v7124 = vsel %vm7082, %v6999, %v4805
      %v7125 = vsel %vm7082, %v7000, %v4807
      %v7126 = vsel %vm7082, %v7001, %v4809
      %v7127 = vsel %vm7082, %v7002, %v4811
      %v7128 = vsel %vm7082, %v7003, %v4813
      %v7129 = vsel %vm7082, %v7004, %v4815
      %v7130 = vsel %vm7082, %v7005, %v4817
      %v7131 = vsel %vm7082, %v7006, %v4819
      %v7132 = vsel %vm7082, %v7007, %v4821
      %v7133 = vsel %vm7082, %v7008, %v4823
      %v7134 = vsel %vm7082, %v7009, %v4825
      %v7135 = vsel %vm7082, %v7010, %v4827
      %v7136 = vsel %vm7082, %v7011, %v4829
      %v7137 = vsel %vm7082, %v7012, %v4831
      %v7138 = vsel %vm7082, %v7013, %v4833
      %v7139 = vsel %vm7082, %v7014, %v4835
      %v7140 = vsel %vm7082, %v7015, %v4837
      %v7141 = vsel %vm7082, %v7016, %v4839
      %v7142 = vsel %vm7082, %v7017, %v4841
      %v7143 = vsel %vm7082, %v7018, %v4843
      %v7144 = vsel %vm7082, %v7019, %v4845
      %v7145 = vsel %vm7082, %v7020, %v4847
      %v7146 = vsel %vm7082, %v7021, %v4849
      %v7147 = vsel %vm7082, %v7022, %v4851
      %v7148 = vsel %vm7082, %v7023, %v4853
      %v7149 = vsel %vm7082, %v7024, %v4855
      %v7150 = vsel %vm7082, %v7025, %v4857
      %v7151 = vsel %vm7082, %v7026, %v4859
      %v7152 = vsel %vm7082, %v7027, %v4861
      %v7153 = vsel %vm7082, %v7028, %v4863
      %v7154 = vsel %vm7082, %v7029, %v4865
      %v7155 = vsel %vm7082, %v7030, %v4867
      %v7156 = vsel %vm7082, %v7031, %v4869
      %v7157 = vsel %vm7082, %v7032, %v4871
      %v7158 = vsel %vm7082, %v7033, %v4873
      %v7159 = vsel %vm7082, %v7034, %v4875
      %v7160 = vsel %vm7082, %v7035, %v4877
      %v7161 = vsel %vm7082, %v7036, %v4879
      %v7162 = vsel %vm7082, %v7037, %v4881
      %v7163 = vsel %vm7082, %v7038, %v4883
      %v7164 = vsel %vm7082, %v7039, %v4885
      %v7165 = vsel %vm7082, %v7040, %v4887
      %v7166 = vsel %vm7082, %v7041, %v4889
      %v7167 = vsel %vm7082, %v7042, %v4891
      %v7168 = vsel %vm7082, %v7043, %v4893
      %v7169 = vsel %vm7082, %v7044, %v4895
      %v7170 = vsel %vm7082, %v7045, %v4897
      %v7171 = vsel %vm7082, %v7046, %v4899
      %v7172 = vsel %vm7082, %v7047, %v4901
      %v7173 = vsel %vm7082, %v7048, %v4903
      %v7174 = vsel %vm7082, %v7049, %v4905
      %v7175 = vsel %vm7082, %v7050, %v4907
      %v7176 = vsel %vm7082, %v7051, %v4909
      %v7177 = vsel %vm7082, %v7052, %v4911
      %v7178 = vsel %vm7082, %v7053, %v4913
      %v7179 = vsel %vm7082, %v7054, %v4915
      %v7180 = vsel %vm7082, %v7055, %v4917
      %v7181 = vsel %vm7082, %v7056, %v4919
      %v7182 = vsel %vm7082, %v7057, %v4921
      %v7183 = vsel %vm7082, %v7058, %v4923
      %v7184 = vsel %vm7082, %v7059, %v4925
      %v7185 = vsel %vm7082, %v7060, %v4927
      %v7186 = vsel %vm7082, %v7061, %v4929
      %v7187 = vsel %vm7082, %v7062, %v4931
      %v7188 = vsel %vm7082, %v7063, %v4933
      %v7189 = vsel %vm7082, %v7064, %v4935
      %v7190 = vsel %vm7082, %v7065, %v4937
      %v7191 = vsel %vm7082, %v7066, %v4939
      %v7192 = vsel %vm7082, %v7067, %v4941
      %v7193 = vsel %vm7082, %v7068, %v4943
      %v7194 = vsel %vm7082, %v7069, %v4945
      %v7195 = vsel %vm7082, %v7070, %v4947
      %v7196 = vsel %vm7082, %v7071, %v4949
      %v7197 = vsel %vm7082, %v7072, %v4951
      %v7198 = vsel %vm7082, %v7073, %v4953
      %v7199 = vsel %vm7082, %v7074, %v4955
      %v7200 = vsel %vm7082, %v7075, %v4957
      %v7201 = vsel %vm7082, %v7076, %v4959
      %v7202 = vsel %vm7082, %v7077, %v4961
      %v7203 = vsel %vm7082, %v7078, %v4963
      %v7204 = vsel %vm7082, %v7079, %v4965
      %v7205 = vsel %vm7082, %v7080, %v4967
      %v7206 = vsel %vm7082, %v7081, %v4969
      %vm7207 = vcmask 392192
      %v7208 = vsel %vm7207, %v7083, %v5219
      %v7209 = vsel %vm7207, %v7084, %v5221
      %v7210 = vsel %vm7207, %v7085, %v5223
      %v7211 = vsel %vm7207, %v7086, %v5225
      %v7212 = vsel %vm7207, %v7087, %v5227
      %v7213 = vsel %vm7207, %v7088, %v5229
      %v7214 = vsel %vm7207, %v7089, %v5231
      %v7215 = vsel %vm7207, %v7090, %v5233
      %v7216 = vsel %vm7207, %v7091, %v5235
      %v7217 = vsel %vm7207, %v7092, %v5237
      %v7218 = vsel %vm7207, %v7093, %v5239
      %v7219 = vsel %vm7207, %v7094, %v5241
      %v7220 = vsel %vm7207, %v7095, %v5243
      %v7221 = vsel %vm7207, %v7096, %v5245
      %v7222 = vsel %vm7207, %v7097, %v5247
      %v7223 = vsel %vm7207, %v7098, %v5249
      %v7224 = vsel %vm7207, %v7099, %v5251
      %v7225 = vsel %vm7207, %v7100, %v5253
      %v7226 = vsel %vm7207, %v7101, %v5255
      %v7227 = vsel %vm7207, %v7102, %v5257
      %v7228 = vsel %vm7207, %v7103, %v5259
      %v7229 = vsel %vm7207, %v7104, %v5261
      %v7230 = vsel %vm7207, %v7105, %v5263
      %v7231 = vsel %vm7207, %v7106, %v5265
      %v7232 = vsel %vm7207, %v7107, %v5267
      %v7233 = vsel %vm7207, %v7108, %v5269
      %v7234 = vsel %vm7207, %v7109, %v5271
      %v7235 = vsel %vm7207, %v7110, %v5273
      %v7236 = vsel %vm7207, %v7111, %v5275
      %v7237 = vsel %vm7207, %v7112, %v5277
      %v7238 = vsel %vm7207, %v7113, %v5279
      %v7239 = vsel %vm7207, %v7114, %v5281
      %v7240 = vsel %vm7207, %v7115, %v5283
      %v7241 = vsel %vm7207, %v7116, %v5285
      %v7242 = vsel %vm7207, %v7117, %v5287
      %v7243 = vsel %vm7207, %v7118, %v5289
      %v7244 = vsel %vm7207, %v7119, %v5291
      %v7245 = vsel %vm7207, %v7120, %v5293
      %v7246 = vsel %vm7207, %v7121, %v5295
      %v7247 = vsel %vm7207, %v7122, %v5297
      %v7248 = vsel %vm7207, %v7123, %v5299
      %v7249 = vsel %vm7207, %v7124, %v5301
      %v7250 = vsel %vm7207, %v7125, %v5303
      %v7251 = vsel %vm7207, %v7126, %v5305
      %v7252 = vsel %vm7207, %v7127, %v5307
      %v7253 = vsel %vm7207, %v7128, %v5309
      %v7254 = vsel %vm7207, %v7129, %v5311
      %v7255 = vsel %vm7207, %v7130, %v5313
      %v7256 = vsel %vm7207, %v7131, %v5315
      %v7257 = vsel %vm7207, %v7132, %v5317
      %v7258 = vsel %vm7207, %v7133, %v5319
      %v7259 = vsel %vm7207, %v7134, %v5321
      %v7260 = vsel %vm7207, %v7135, %v5323
      %v7261 = vsel %vm7207, %v7136, %v5325
      %v7262 = vsel %vm7207, %v7137, %v5327
      %v7263 = vsel %vm7207, %v7138, %v5329
      %v7264 = vsel %vm7207, %v7139, %v5331
      %v7265 = vsel %vm7207, %v7140, %v5333
      %v7266 = vsel %vm7207, %v7141, %v5335
      %v7267 = vsel %vm7207, %v7142, %v5337
      %v7268 = vsel %vm7207, %v7143, %v5339
      %v7269 = vsel %vm7207, %v7144, %v5341
      %v7270 = vsel %vm7207, %v7145, %v5343
      %v7271 = vsel %vm7207, %v7146, %v5345
      %v7272 = vsel %vm7207, %v7147, %v5347
      %v7273 = vsel %vm7207, %v7148, %v5349
      %v7274 = vsel %vm7207, %v7149, %v5351
      %v7275 = vsel %vm7207, %v7150, %v5353
      %v7276 = vsel %vm7207, %v7151, %v5355
      %v7277 = vsel %vm7207, %v7152, %v5357
      %v7278 = vsel %vm7207, %v7153, %v5359
      %v7279 = vsel %vm7207, %v7154, %v5361
      %v7280 = vsel %vm7207, %v7155, %v5363
      %v7281 = vsel %vm7207, %v7156, %v5365
      %v7282 = vsel %vm7207, %v7157, %v5367
      %v7283 = vsel %vm7207, %v7158, %v5369
      %v7284 = vsel %vm7207, %v7159, %v5371
      %v7285 = vsel %vm7207, %v7160, %v5373
      %v7286 = vsel %vm7207, %v7161, %v5375
      %v7287 = vsel %vm7207, %v7162, %v5377
      %v7288 = vsel %vm7207, %v7163, %v5379
      %v7289 = vsel %vm7207, %v7164, %v5381
      %v7290 = vsel %vm7207, %v7165, %v5383
      %v7291 = vsel %vm7207, %v7166, %v5385
      %v7292 = vsel %vm7207, %v7167, %v5387
      %v7293 = vsel %vm7207, %v7168, %v5389
      %v7294 = vsel %vm7207, %v7169, %v5391
      %v7295 = vsel %vm7207, %v7170, %v5393
      %v7296 = vsel %vm7207, %v7171, %v5395
      %v7297 = vsel %vm7207, %v7172, %v5397
      %v7298 = vsel %vm7207, %v7173, %v5399
      %v7299 = vsel %vm7207, %v7174, %v5401
      %v7300 = vsel %vm7207, %v7175, %v5403
      %v7301 = vsel %vm7207, %v7176, %v5405
      %v7302 = vsel %vm7207, %v7177, %v5407
      %v7303 = vsel %vm7207, %v7178, %v5409
      %v7304 = vsel %vm7207, %v7179, %v5411
      %v7305 = vsel %vm7207, %v7180, %v5413
      %v7306 = vsel %vm7207, %v7181, %v5415
      %v7307 = vsel %vm7207, %v7182, %v5417
      %v7308 = vsel %vm7207, %v7183, %v5419
      %v7309 = vsel %vm7207, %v7184, %v5421
      %v7310 = vsel %vm7207, %v7185, %v5423
      %v7311 = vsel %vm7207, %v7186, %v5425
      %v7312 = vsel %vm7207, %v7187, %v5427
      %v7313 = vsel %vm7207, %v7188, %v5429
      %v7314 = vsel %vm7207, %v7189, %v5431
      %v7315 = vsel %vm7207, %v7190, %v5433
      %v7316 = vsel %vm7207, %v7191, %v5435
      %v7317 = vsel %vm7207, %v7192, %v5437
      %v7318 = vsel %vm7207, %v7193, %v5439
      %v7319 = vsel %vm7207, %v7194, %v5441
      %v7320 = vsel %vm7207, %v7195, %v5443
      %v7321 = vsel %vm7207, %v7196, %v5445
      %v7322 = vsel %vm7207, %v7197, %v5447
      %v7323 = vsel %vm7207, %v7198, %v5449
      %v7324 = vsel %vm7207, %v7199, %v5451
      %v7325 = vsel %vm7207, %v7200, %v5453
      %v7326 = vsel %vm7207, %v7201, %v5455
      %v7327 = vsel %vm7207, %v7202, %v5457
      %v7328 = vsel %vm7207, %v7203, %v5459
      %v7329 = vsel %vm7207, %v7204, %v5461
      %v7330 = vsel %vm7207, %v7205, %v5463
      %v7331 = vsel %vm7207, %v7206, %v5465
      %vm7332 = vcmask 457728
      %v7333 = vsel %vm7332, %v7208, %v5715
      %v7334 = vsel %vm7332, %v7209, %v5717
      %v7335 = vsel %vm7332, %v7210, %v5719
      %v7336 = vsel %vm7332, %v7211, %v5721
      %v7337 = vsel %vm7332, %v7212, %v5723
      %v7338 = vsel %vm7332, %v7213, %v5725
      %v7339 = vsel %vm7332, %v7214, %v5727
      %v7340 = vsel %vm7332, %v7215, %v5729
      %v7341 = vsel %vm7332, %v7216, %v5731
      %v7342 = vsel %vm7332, %v7217, %v5733
      %v7343 = vsel %vm7332, %v7218, %v5735
      %v7344 = vsel %vm7332, %v7219, %v5737
      %v7345 = vsel %vm7332, %v7220, %v5739
      %v7346 = vsel %vm7332, %v7221, %v5741
      %v7347 = vsel %vm7332, %v7222, %v5743
      %v7348 = vsel %vm7332, %v7223, %v5745
      %v7349 = vsel %vm7332, %v7224, %v5747
      %v7350 = vsel %vm7332, %v7225, %v5749
      %v7351 = vsel %vm7332, %v7226, %v5751
      %v7352 = vsel %vm7332, %v7227, %v5753
      %v7353 = vsel %vm7332, %v7228, %v5755
      %v7354 = vsel %vm7332, %v7229, %v5757
      %v7355 = vsel %vm7332, %v7230, %v5759
      %v7356 = vsel %vm7332, %v7231, %v5761
      %v7357 = vsel %vm7332, %v7232, %v5763
      %v7358 = vsel %vm7332, %v7233, %v5765
      %v7359 = vsel %vm7332, %v7234, %v5767
      %v7360 = vsel %vm7332, %v7235, %v5769
      %v7361 = vsel %vm7332, %v7236, %v5771
      %v7362 = vsel %vm7332, %v7237, %v5773
      %v7363 = vsel %vm7332, %v7238, %v5775
      %v7364 = vsel %vm7332, %v7239, %v5777
      %v7365 = vsel %vm7332, %v7240, %v5779
      %v7366 = vsel %vm7332, %v7241, %v5781
      %v7367 = vsel %vm7332, %v7242, %v5783
      %v7368 = vsel %vm7332, %v7243, %v5785
      %v7369 = vsel %vm7332, %v7244, %v5787
      %v7370 = vsel %vm7332, %v7245, %v5789
      %v7371 = vsel %vm7332, %v7246, %v5791
      %v7372 = vsel %vm7332, %v7247, %v5793
      %v7373 = vsel %vm7332, %v7248, %v5795
      %v7374 = vsel %vm7332, %v7249, %v5797
      %v7375 = vsel %vm7332, %v7250, %v5799
      %v7376 = vsel %vm7332, %v7251, %v5801
      %v7377 = vsel %vm7332, %v7252, %v5803
      %v7378 = vsel %vm7332, %v7253, %v5805
      %v7379 = vsel %vm7332, %v7254, %v5807
      %v7380 = vsel %vm7332, %v7255, %v5809
      %v7381 = vsel %vm7332, %v7256, %v5811
      %v7382 = vsel %vm7332, %v7257, %v5813
      %v7383 = vsel %vm7332, %v7258, %v5815
      %v7384 = vsel %vm7332, %v7259, %v5817
      %v7385 = vsel %vm7332, %v7260, %v5819
      %v7386 = vsel %vm7332, %v7261, %v5821
      %v7387 = vsel %vm7332, %v7262, %v5823
      %v7388 = vsel %vm7332, %v7263, %v5825
      %v7389 = vsel %vm7332, %v7264, %v5827
      %v7390 = vsel %vm7332, %v7265, %v5829
      %v7391 = vsel %vm7332, %v7266, %v5831
      %v7392 = vsel %vm7332, %v7267, %v5833
      %v7393 = vsel %vm7332, %v7268, %v5835
      %v7394 = vsel %vm7332, %v7269, %v5837
      %v7395 = vsel %vm7332, %v7270, %v5839
      %v7396 = vsel %vm7332, %v7271, %v5841
      %v7397 = vsel %vm7332, %v7272, %v5843
      %v7398 = vsel %vm7332, %v7273, %v5845
      %v7399 = vsel %vm7332, %v7274, %v5847
      %v7400 = vsel %vm7332, %v7275, %v5849
      %v7401 = vsel %vm7332, %v7276, %v5851
      %v7402 = vsel %vm7332, %v7277, %v5853
      %v7403 = vsel %vm7332, %v7278, %v5855
      %v7404 = vsel %vm7332, %v7279, %v5857
      %v7405 = vsel %vm7332, %v7280, %v5859
      %v7406 = vsel %vm7332, %v7281, %v5861
      %v7407 = vsel %vm7332, %v7282, %v5863
      %v7408 = vsel %vm7332, %v7283, %v5865
      %v7409 = vsel %vm7332, %v7284, %v5867
      %v7410 = vsel %vm7332, %v7285, %v5869
      %v7411 = vsel %vm7332, %v7286, %v5871
      %v7412 = vsel %vm7332, %v7287, %v5873
      %v7413 = vsel %vm7332, %v7288, %v5875
      %v7414 = vsel %vm7332, %v7289, %v5877
      %v7415 = vsel %vm7332, %v7290, %v5879
      %v7416 = vsel %vm7332, %v7291, %v5881
      %v7417 = vsel %vm7332, %v7292, %v5883
      %v7418 = vsel %vm7332, %v7293, %v5885
      %v7419 = vsel %vm7332, %v7294, %v5887
      %v7420 = vsel %vm7332, %v7295, %v5889
      %v7421 = vsel %vm7332, %v7296, %v5891
      %v7422 = vsel %vm7332, %v7297, %v5893
      %v7423 = vsel %vm7332, %v7298, %v5895
      %v7424 = vsel %vm7332, %v7299, %v5897
      %v7425 = vsel %vm7332, %v7300, %v5899
      %v7426 = vsel %vm7332, %v7301, %v5901
      %v7427 = vsel %vm7332, %v7302, %v5903
      %v7428 = vsel %vm7332, %v7303, %v5905
      %v7429 = vsel %vm7332, %v7304, %v5907
      %v7430 = vsel %vm7332, %v7305, %v5909
      %v7431 = vsel %vm7332, %v7306, %v5911
      %v7432 = vsel %vm7332, %v7307, %v5913
      %v7433 = vsel %vm7332, %v7308, %v5915
      %v7434 = vsel %vm7332, %v7309, %v5917
      %v7435 = vsel %vm7332, %v7310, %v5919
      %v7436 = vsel %vm7332, %v7311, %v5921
      %v7437 = vsel %vm7332, %v7312, %v5923
      %v7438 = vsel %vm7332, %v7313, %v5925
      %v7439 = vsel %vm7332, %v7314, %v5927
      %v7440 = vsel %vm7332, %v7315, %v5929
      %v7441 = vsel %vm7332, %v7316, %v5931
      %v7442 = vsel %vm7332, %v7317, %v5933
      %v7443 = vsel %vm7332, %v7318, %v5935
      %v7444 = vsel %vm7332, %v7319, %v5937
      %v7445 = vsel %vm7332, %v7320, %v5939
      %v7446 = vsel %vm7332, %v7321, %v5941
      %v7447 = vsel %vm7332, %v7322, %v5943
      %v7448 = vsel %vm7332, %v7323, %v5945
      %v7449 = vsel %vm7332, %v7324, %v5947
      %v7450 = vsel %vm7332, %v7325, %v5949
      %v7451 = vsel %vm7332, %v7326, %v5951
      %v7452 = vsel %vm7332, %v7327, %v5953
      %v7453 = vsel %vm7332, %v7328, %v5955
      %v7454 = vsel %vm7332, %v7329, %v5957
      %v7455 = vsel %vm7332, %v7330, %v5959
      %v7456 = vsel %vm7332, %v7331, %v5961
      %vm7457 = vcmask 523264
      %v7458 = vsel %vm7457, %v7333, %v6211
      %v7459 = vsel %vm7457, %v7334, %v6213
      %v7460 = vsel %vm7457, %v7335, %v6215
      %v7461 = vsel %vm7457, %v7336, %v6217
      %v7462 = vsel %vm7457, %v7337, %v6219
      %v7463 = vsel %vm7457, %v7338, %v6221
      %v7464 = vsel %vm7457, %v7339, %v6223
      %v7465 = vsel %vm7457, %v7340, %v6225
      %v7466 = vsel %vm7457, %v7341, %v6227
      %v7467 = vsel %vm7457, %v7342, %v6229
      %v7468 = vsel %vm7457, %v7343, %v6231
      %v7469 = vsel %vm7457, %v7344, %v6233
      %v7470 = vsel %vm7457, %v7345, %v6235
      %v7471 = vsel %vm7457, %v7346, %v6237
      %v7472 = vsel %vm7457, %v7347, %v6239
      %v7473 = vsel %vm7457, %v7348, %v6241
      %v7474 = vsel %vm7457, %v7349, %v6243
      %v7475 = vsel %vm7457, %v7350, %v6245
      %v7476 = vsel %vm7457, %v7351, %v6247
      %v7477 = vsel %vm7457, %v7352, %v6249
      %v7478 = vsel %vm7457, %v7353, %v6251
      %v7479 = vsel %vm7457, %v7354, %v6253
      %v7480 = vsel %vm7457, %v7355, %v6255
      %v7481 = vsel %vm7457, %v7356, %v6257
      %v7482 = vsel %vm7457, %v7357, %v6259
      %v7483 = vsel %vm7457, %v7358, %v6261
      %v7484 = vsel %vm7457, %v7359, %v6263
      %v7485 = vsel %vm7457, %v7360, %v6265
      %v7486 = vsel %vm7457, %v7361, %v6267
      %v7487 = vsel %vm7457, %v7362, %v6269
      %v7488 = vsel %vm7457, %v7363, %v6271
      %v7489 = vsel %vm7457, %v7364, %v6273
      %v7490 = vsel %vm7457, %v7365, %v6275
      %v7491 = vsel %vm7457, %v7366, %v6277
      %v7492 = vsel %vm7457, %v7367, %v6279
      %v7493 = vsel %vm7457, %v7368, %v6281
      %v7494 = vsel %vm7457, %v7369, %v6283
      %v7495 = vsel %vm7457, %v7370, %v6285
      %v7496 = vsel %vm7457, %v7371, %v6287
      %v7497 = vsel %vm7457, %v7372, %v6289
      %v7498 = vsel %vm7457, %v7373, %v6291
      %v7499 = vsel %vm7457, %v7374, %v6293
      %v7500 = vsel %vm7457, %v7375, %v6295
      %v7501 = vsel %vm7457, %v7376, %v6297
      %v7502 = vsel %vm7457, %v7377, %v6299
      %v7503 = vsel %vm7457, %v7378, %v6301
      %v7504 = vsel %vm7457, %v7379, %v6303
      %v7505 = vsel %vm7457, %v7380, %v6305
      %v7506 = vsel %vm7457, %v7381, %v6307
      %v7507 = vsel %vm7457, %v7382, %v6309
      %v7508 = vsel %vm7457, %v7383, %v6311
      %v7509 = vsel %vm7457, %v7384, %v6313
      %v7510 = vsel %vm7457, %v7385, %v6315
      %v7511 = vsel %vm7457, %v7386, %v6317
      %v7512 = vsel %vm7457, %v7387, %v6319
      %v7513 = vsel %vm7457, %v7388, %v6321
      %v7514 = vsel %vm7457, %v7389, %v6323
      %v7515 = vsel %vm7457, %v7390, %v6325
      %v7516 = vsel %vm7457, %v7391, %v6327
      %v7517 = vsel %vm7457, %v7392, %v6329
      %v7518 = vsel %vm7457, %v7393, %v6331
      %v7519 = vsel %vm7457, %v7394, %v6333
      %v7520 = vsel %vm7457, %v7395, %v6335
      %v7521 = vsel %vm7457, %v7396, %v6337
      %v7522 = vsel %vm7457, %v7397, %v6339
      %v7523 = vsel %vm7457, %v7398, %v6341
      %v7524 = vsel %vm7457, %v7399, %v6343
      %v7525 = vsel %vm7457, %v7400, %v6345
      %v7526 = vsel %vm7457, %v7401, %v6347
      %v7527 = vsel %vm7457, %v7402, %v6349
      %v7528 = vsel %vm7457, %v7403, %v6351
      %v7529 = vsel %vm7457, %v7404, %v6353
      %v7530 = vsel %vm7457, %v7405, %v6355
      %v7531 = vsel %vm7457, %v7406, %v6357
      %v7532 = vsel %vm7457, %v7407, %v6359
      %v7533 = vsel %vm7457, %v7408, %v6361
      %v7534 = vsel %vm7457, %v7409, %v6363
      %v7535 = vsel %vm7457, %v7410, %v6365
      %v7536 = vsel %vm7457, %v7411, %v6367
      %v7537 = vsel %vm7457, %v7412, %v6369
      %v7538 = vsel %vm7457, %v7413, %v6371
      %v7539 = vsel %vm7457, %v7414, %v6373
      %v7540 = vsel %vm7457, %v7415, %v6375
      %v7541 = vsel %vm7457, %v7416, %v6377
      %v7542 = vsel %vm7457, %v7417, %v6379
      %v7543 = vsel %vm7457, %v7418, %v6381
      %v7544 = vsel %vm7457, %v7419, %v6383
      %v7545 = vsel %vm7457, %v7420, %v6385
      %v7546 = vsel %vm7457, %v7421, %v6387
      %v7547 = vsel %vm7457, %v7422, %v6389
      %v7548 = vsel %vm7457, %v7423, %v6391
      %v7549 = vsel %vm7457, %v7424, %v6393
      %v7550 = vsel %vm7457, %v7425, %v6395
      %v7551 = vsel %vm7457, %v7426, %v6397
      %v7552 = vsel %vm7457, %v7427, %v6399
      %v7553 = vsel %vm7457, %v7428, %v6401
      %v7554 = vsel %vm7457, %v7429, %v6403
      %v7555 = vsel %vm7457, %v7430, %v6405
      %v7556 = vsel %vm7457, %v7431, %v6407
      %v7557 = vsel %vm7457, %v7432, %v6409
      %v7558 = vsel %vm7457, %v7433, %v6411
      %v7559 = vsel %vm7457, %v7434, %v6413
      %v7560 = vsel %vm7457, %v7435, %v6415
      %v7561 = vsel %vm7457, %v7436, %v6417
      %v7562 = vsel %vm7457, %v7437, %v6419
      %v7563 = vsel %vm7457, %v7438, %v6421
      %v7564 = vsel %vm7457, %v7439, %v6423
      %v7565 = vsel %vm7457, %v7440, %v6425
      %v7566 = vsel %vm7457, %v7441, %v6427
      %v7567 = vsel %vm7457, %v7442, %v6429
      %v7568 = vsel %vm7457, %v7443, %v6431
      %v7569 = vsel %vm7457, %v7444, %v6433
      %v7570 = vsel %vm7457, %v7445, %v6435
      %v7571 = vsel %vm7457, %v7446, %v6437
      %v7572 = vsel %vm7457, %v7447, %v6439
      %v7573 = vsel %vm7457, %v7448, %v6441
      %v7574 = vsel %vm7457, %v7449, %v6443
      %v7575 = vsel %vm7457, %v7450, %v6445
      %v7576 = vsel %vm7457, %v7451, %v6447
      %v7577 = vsel %vm7457, %v7452, %v6449
      %v7578 = vsel %vm7457, %v7453, %v6451
      %v7579 = vsel %vm7457, %v7454, %v6453
      %v7580 = vsel %vm7457, %v7455, %v6455
      %v7581 = vsel %vm7457, %v7456, %v6457
      %v7582 = vld [vmem:[%s1] sm:$0xff]
      %v7583 = vld [vmem:[%s1 + $0x8] sm:$0xff]
      %v7584 = vld [vmem:[%s1 + $0x10] sm:$0xff]
      %v7585 = vld [vmem:[%s1 + $0x18] sm:$0xff]
      %v7586 = vld [vmem:[%s1 + $0x20] sm:$0xff]
      %v7587 = vld [vmem:[%s1 + $0x28] sm:$0xff]
      %v7588 = vld [vmem:[%s1 + $0x30] sm:$0xff]
      %v7589 = vld [vmem:[%s1 + $0x38] sm:$0xff]
      %v7590 = vld [vmem:[%s1 + $0x40] sm:$0xff]
      %v7591 = vld [vmem:[%s2] sm:$0x1]
      %v7593 = vlaneseq
      %v7594 = vshrl.u32 %v7593, 7
      %v7595 = vsub.s32 0, %v7594
      %v7596 = vrot.slane %v7591, %v7595
      %vm7598 = vcmask 588800
      %v7600 = vsel %vm7598, %v7458, 0
      %v7603 = vsel %vm7598, %v7459, 0
      %v7606 = vsel %vm7598, %v7460, 0
      %v7609 = vsel %vm7598, %v7461, 0
      %v7612 = vsel %vm7598, %v7462, 0
      %v7615 = vsel %vm7598, %v7463, 0
      %v7618 = vsel %vm7598, %v7464, 0
      %v7621 = vsel %vm7598, %v7465, 0
      %v7624 = vsel %vm7598, %v7466, 0
      %v7627 = vsel %vm7598, %v7467, 0
      %v7630 = vsel %vm7598, %v7468, 0
      %v7633 = vsel %vm7598, %v7469, 0
      %v7636 = vsel %vm7598, %v7470, 0
      %v7639 = vsel %vm7598, %v7471, 0
      %v7642 = vsel %vm7598, %v7472, 0
      %v7645 = vsel %vm7598, %v7473, 0
      %v7648 = vsel %vm7598, %v7474, 0
      %v7651 = vsel %vm7598, %v7475, 0
      %v7654 = vsel %vm7598, %v7476, 0
      %v7657 = vsel %vm7598, %v7477, 0
      %v7660 = vsel %vm7598, %v7478, 0
      %v7663 = vsel %vm7598, %v7479, 0
      %v7666 = vsel %vm7598, %v7480, 0
      %v7669 = vsel %vm7598, %v7481, 0
      %v7672 = vsel %vm7598, %v7482, 0
      %v7675 = vsel %vm7598, %v7483, 0
      %v7678 = vsel %vm7598, %v7484, 0
      %v7681 = vsel %vm7598, %v7485, 0
      %v7684 = vsel %vm7598, %v7486, 0
      %v7687 = vsel %vm7598, %v7487, 0
      %v7690 = vsel %vm7598, %v7488, 0
      %v7693 = vsel %vm7598, %v7489, 0
      %v7696 = vsel %vm7598, %v7490, 0
      %v7699 = vsel %vm7598, %v7491, 0
      %v7702 = vsel %vm7598, %v7492, 0
      %v7705 = vsel %vm7598, %v7493, 0
      %v7708 = vsel %vm7598, %v7494, 0
      %v7711 = vsel %vm7598, %v7495, 0
      %v7714 = vsel %vm7598, %v7496, 0
      %v7717 = vsel %vm7598, %v7497, 0
      %v7720 = vsel %vm7598, %v7498, 0
      %v7723 = vsel %vm7598, %v7499, 0
      %v7726 = vsel %vm7598, %v7500, 0
      %v7729 = vsel %vm7598, %v7501, 0
      %v7732 = vsel %vm7598, %v7502, 0
      %v7735 = vsel %vm7598, %v7503, 0
      %v7738 = vsel %vm7598, %v7504, 0
      %v7741 = vsel %vm7598, %v7505, 0
      %v7744 = vsel %vm7598, %v7506, 0
      %v7747 = vsel %vm7598, %v7507, 0
      %v7750 = vsel %vm7598, %v7508, 0
      %v7753 = vsel %vm7598, %v7509, 0
      %v7756 = vsel %vm7598, %v7510, 0
      %v7759 = vsel %vm7598, %v7511, 0
      %v7762 = vsel %vm7598, %v7512, 0
      %v7765 = vsel %vm7598, %v7513, 0
      %v7768 = vsel %vm7598, %v7514, 0
      %v7771 = vsel %vm7598, %v7515, 0
      %v7774 = vsel %vm7598, %v7516, 0
      %v7777 = vsel %vm7598, %v7517, 0
      %v7780 = vsel %vm7598, %v7518, 0
      %v7783 = vsel %vm7598, %v7519, 0
      %v7786 = vsel %vm7598, %v7520, 0
      %v7789 = vsel %vm7598, %v7521, 0
      %v7792 = vsel %vm7598, %v7522, 0
      %v7795 = vsel %vm7598, %v7523, 0
      %v7798 = vsel %vm7598, %v7524, 0
      %v7801 = vsel %vm7598, %v7525, 0
      %v7804 = vsel %vm7598, %v7526, 0
      %v7807 = vsel %vm7598, %v7527, 0
      %v7810 = vsel %vm7598, %v7528, 0
      %v7813 = vsel %vm7598, %v7529, 0
      %v7816 = vsel %vm7598, %v7530, 0
      %v7819 = vsel %vm7598, %v7531, 0
      %v7822 = vsel %vm7598, %v7532, 0
      %v7825 = vsel %vm7598, %v7533, 0
      %v7828 = vsel %vm7598, %v7534, 0
      %v7831 = vsel %vm7598, %v7535, 0
      %v7834 = vsel %vm7598, %v7536, 0
      %v7837 = vsel %vm7598, %v7537, 0
      %v7840 = vsel %vm7598, %v7538, 0
      %v7843 = vsel %vm7598, %v7539, 0
      %v7846 = vsel %vm7598, %v7540, 0
      %v7849 = vsel %vm7598, %v7541, 0
      %v7852 = vsel %vm7598, %v7542, 0
      %v7855 = vsel %vm7598, %v7543, 0
      %v7858 = vsel %vm7598, %v7544, 0
      %v7861 = vsel %vm7598, %v7545, 0
      %v7864 = vsel %vm7598, %v7546, 0
      %v7867 = vsel %vm7598, %v7547, 0
      %v7870 = vsel %vm7598, %v7548, 0
      %v7873 = vsel %vm7598, %v7549, 0
      %v7876 = vsel %vm7598, %v7550, 0
      %v7879 = vsel %vm7598, %v7551, 0
      %v7882 = vsel %vm7598, %v7552, 0
      %v7885 = vsel %vm7598, %v7553, 0
      %v7888 = vsel %vm7598, %v7554, 0
      %v7891 = vsel %vm7598, %v7555, 0
      %v7894 = vsel %vm7598, %v7556, 0
      %v7897 = vsel %vm7598, %v7557, 0
      %v7900 = vsel %vm7598, %v7558, 0
      %v7903 = vsel %vm7598, %v7559, 0
      %v7906 = vsel %vm7598, %v7560, 0
      %v7909 = vsel %vm7598, %v7561, 0
      %v7912 = vsel %vm7598, %v7562, 0
      %v7915 = vsel %vm7598, %v7563, 0
      %v7918 = vsel %vm7598, %v7564, 0
      %v7921 = vsel %vm7598, %v7565, 0
      %v7924 = vsel %vm7598, %v7566, 0
      %v7927 = vsel %vm7598, %v7567, 0
      %v7930 = vsel %vm7598, %v7568, 0
      %v7933 = vsel %vm7598, %v7569, 0
      %v7936 = vsel %vm7598, %v7570, 0
      %v7939 = vsel %vm7598, %v7571, 0
      %v7942 = vsel %vm7598, %v7572, 0
      %v7945 = vsel %vm7598, %v7573, 0
      %v7948 = vsel %vm7598, %v7574, 0
      %v7951 = vsel %vm7598, %v7575, 0
      %v7954 = vsel %vm7598, %v7576, 0
      %v7957 = vsel %vm7598, %v7577, 0
      %v7960 = vsel %vm7598, %v7578, 0
      %v7963 = vsel %vm7598, %v7579, 0
      %v7966 = vsel %vm7598, %v7580, 0
      %v7969 = vsel %vm7598, %v7581, 0
      %7971 = vmatprep.subr.mxu0 0.0
      %7972 = vmatpush1.msra.mxu0 %v7582
      %7973 = vmatprep.subr.mxu0 0.0
      %7974 = vmatpush1.msra.mxu0 %v7583
      %7975 = vmatprep.subr.mxu0 0.0
      %7976 = vmatpush1.msra.mxu0 %v7584
      %7977 = vmatprep.subr.mxu0 0.0
      %7978 = vmatpush1.msra.mxu0 %v7585
      %7979 = vmatprep.subr.mxu0 0.0
      %7980 = vmatpush1.msra.mxu0 %v7586
      %7981 = vmatprep.subr.mxu0 0.0
      %7982 = vmatpush1.msra.mxu0 %v7587
      %7983 = vmatprep.subr.mxu0 0.0
      %7984 = vmatpush1.msra.mxu0 %v7588
      %7985 = vmatprep.subr.mxu0 0.0
      %7986 = vmatpush1.msra.mxu0 %v7589
      %7987 = vmatprep.subr.mxu0 0.0
      %7988 = vmatpush1.msra.mxu0 %v7590
      %7989 = vmatprep.subr.mxu0 0.0
      %7990 = vmatpush1.msra.mxu0 0.0
      %7991 = vmatprep.subr.mxu0 0.0
      %7992 = vmatpush1.msra.mxu0 0.0
      %7993 = vmatprep.subr.mxu0 0.0
      %7994 = vmatpush1.msra.mxu0 0.0
      %7995 = vmatprep.subr.mxu0 0.0
      %7996 = vmatpush1.msra.mxu0 0.0
      %7997 = vmatprep.subr.mxu0 0.0
      %7998 = vmatpush1.msra.mxu0 0.0
      %7999 = vmatprep.subr.mxu0 0.0
      %8000 = vmatpush1.msra.mxu0 0.0
      %8001 = vmatprep.subr.mxu0 0.0
      %8002 = vmatpush1.msra.mxu0 0.0
      %8003 = vmatprep.subr.mxu0 0.0
      %8004 = vmatpush1.msra.mxu0 0.0
      %8005 = vmatprep.subr.mxu0 0.0
      %8006 = vmatpush1.msra.mxu0 0.0
      %8007 = vmatprep.subr.mxu0 0.0
      %8008 = vmatpush1.msra.mxu0 0.0
      %8009 = vmatprep.subr.mxu0 0.0
      %8010 = vmatpush1.msra.mxu0 0.0
      %8011 = vmatprep.subr.mxu0 0.0
      %8012 = vmatpush1.msra.mxu0 0.0
      %8013 = vmatprep.subr.mxu0 0.0
      %8014 = vmatpush1.msra.mxu0 0.0
      %8015 = vmatprep.subr.mxu0 0.0
      %8016 = vmatpush1.msra.mxu0 0.0
      %8017 = vmatprep.subr.mxu0 0.0
      %8018 = vmatpush1.msra.mxu0 0.0
      %8019 = vmatprep.subr.mxu0 0.0
      %8020 = vmatpush1.msra.mxu0 0.0
      %8021 = vmatprep.subr.mxu0 0.0
      %8022 = vmatpush1.msra.mxu0 0.0
      %8023 = vmatprep.subr.mxu0 0.0
      %8024 = vmatpush1.msra.mxu0 0.0
      %8025 = vmatprep.subr.mxu0 0.0
      %8026 = vmatpush1.msra.mxu0 0.0
      %8027 = vmatprep.subr.mxu0 0.0
      %8028 = vmatpush1.msra.mxu0 0.0
      %8029 = vmatprep.subr.mxu0 0.0
      %8030 = vmatpush1.msra.mxu0 0.0
      %8031 = vmatprep.subr.mxu0 0.0
      %8032 = vmatpush1.msra.mxu0 0.0
      %8033 = vmatprep.subr.mxu0 0.0
      %8034 = vmatpush1.msra.mxu0 0.0
      %8035 = vmatprep.mubr.f32.mxu0 0.0
      %8036 = vmatmul.mubr.f32.gmra.mrb[0].mxu0 %v7600
      %v8037 = vpop.f32.mrb[0].mxu0
      %v8038 = vadd.f32 %v7596, %v8037
      %v8039 = vpop.f32.mrb[0].mxu0
      %8040 = vmatprep.mubr.f32.mxu0 0.0
      %8041 = vmatmul.mubr.f32.gmra.mrb[0].mxu0 %v7603
      %v8042 = vpop.f32.mrb[0].mxu0
      %v8043 = vadd.f32 %v7596, %v8042
      %v8044 = vpop.f32.mrb[0].mxu0
      %8045 = vmatprep.mubr.f32.mxu0 0.0
      %8046 = vmatmul.mubr.f32.gmra.mrb[0].mxu0 %v7606
      %v8047 = vpop.f32.mrb[0].mxu0
      %v8048 = vadd.f32 %v7596, %v8047
      %v8049 = vpop.f32.mrb[0].mxu0
      %8050 = vmatprep.mubr.f32.mxu0 0.0
      %8051 = vmatmul.mubr.f32.gmra.mrb[0].mxu0 %v7609
      %v8052 = vpop.f32.mrb[0].mxu0
      %v8053 = vadd.f32 %v7596, %v8052
      %v8054 = vpop.f32.mrb[0].mxu0
      %8055 = vmatprep.mubr.f32.mxu0 0.0
      %8056 = vmatmul.mubr.f32.gmra.mrb[0].mxu0 %v7612
      %v8057 = vpop.f32.mrb[0].mxu0
      %v8058 = vadd.f32 %v7596, %v8057
      %v8059 = vpop.f32.mrb[0].mxu0
      %8060 = vmatprep.mubr.f32.mxu0 0.0
      %8061 = vmatmul.mubr.f32.gmra.mrb[0].mxu0 %v7615
      %v8062 = vpop.f32.mrb[0].mxu0
      %v8063 = vadd.f32 %v7596, %v8062
      %v8064 = vpop.f32.mrb[0].mxu0
      %8065 = vmatprep.mubr.f32.mxu0 0.0
      %8066 = vmatmul.mubr.f32.gmra.mrb[0].mxu0 %v7618
      %v8067 = vpop.f32.mrb[0].mxu0
      %v8068 = vadd.f32 %v7596, %v8067
      %v8069 = vpop.f32.mrb[0].mxu0
      %8070 = vmatprep.mubr.f32.mxu0 0.0
      %8071 = vmatmul.mubr.f32.gmra.mrb[0].mxu0 %v7621
      %v8072 = vpop.f32.mrb[0].mxu0
      %v8073 = vadd.f32 %v7596, %v8072
      %v8074 = vpop.f32.mrb[0].mxu0
      %8075 = vmatprep.mubr.f32.mxu0 0.0
      %8076 = vmatmul.mubr.f32.gmra.mrb[0].mxu0 %v7624
      %v8077 = vpop.f32.mrb[0].mxu0
      %v8078 = vadd.f32 %v7596, %v8077
      %v8079 = vpop.f32.mrb[0].mxu0
      %8080 = vmatprep.mubr.f32.mxu0 0.0
      %8081 = vmatmul.mubr.f32.gmra.mrb[0].mxu0 %v7627
      %v8082 = vpop.f32.mrb[0].mxu0
      %v8083 = vadd.f32 %v7596, %v8082
      %v8084 = vpop.f32.mrb[0].mxu0
      %8085 = vmatprep.mubr.f32.mxu0 0.0
      %8086 = vmatmul.mubr.f32.gmra.mrb[0].mxu0 %v7630
      %v8087 = vpop.f32.mrb[0].mxu0
      %v8088 = vadd.f32 %v7596, %v8087
      %v8089 = vpop.f32.mrb[0].mxu0
      %8090 = vmatprep.mubr.f32.mxu0 0.0
      %8091 = vmatmul.mubr.f32.gmra.mrb[0].mxu0 %v7633
      %v8092 = vpop.f32.mrb[0].mxu0
      %v8093 = vadd.f32 %v7596, %v8092
      %v8094 = vpop.f32.mrb[0].mxu0
      %8095 = vmatprep.mubr.f32.mxu0 0.0
      %8096 = vmatmul.mubr.f32.gmra.mrb[0].mxu0 %v7636
      %v8097 = vpop.f32.mrb[0].mxu0
      %v8098 = vadd.f32 %v7596, %v8097
      %v8099 = vpop.f32.mrb[0].mxu0
      %8100 = vmatprep.mubr.f32.mxu0 0.0
      %8101 = vmatmul.mubr.f32.gmra.mrb[0].mxu0 %v7639
      %v8102 = vpop.f32.mrb[0].mxu0
      %v8103 = vadd.f32 %v7596, %v8102
      %v8104 = vpop.f32.mrb[0].mxu0
      %8105 = vmatprep.mubr.f32.mxu0 0.0
      %8106 = vmatmul.mubr.f32.gmra.mrb[0].mxu0 %v7642
      %v8107 = vpop.f32.mrb[0].mxu0
      %v8108 = vadd.f32 %v7596, %v8107
      %v8109 = vpop.f32.mrb[0].mxu0
      %8110 = vmatprep.mubr.f32.mxu0 0.0
      %8111 = vmatmul.mubr.f32.gmra.mrb[0].mxu0 %v7645
      %v8112 = vpop.f32.mrb[0].mxu0
      %v8113 = vadd.f32 %v7596, %v8112
      %v8114 = vpop.f32.mrb[0].mxu0
      %8115 = vmatprep.mubr.f32.mxu0 0.0
      %8116 = vmatmul.mubr.f32.gmra.mrb[0].mxu0 %v7648
      %v8117 = vpop.f32.mrb[0].mxu0
      %v8118 = vadd.f32 %v7596, %v8117
      %v8119 = vpop.f32.mrb[0].mxu0
      %8120 = vmatprep.mubr.f32.mxu0 0.0
      %8121 = vmatmul.mubr.f32.gmra.mrb[0].mxu0 %v7651
      %v8122 = vpop.f32.mrb[0].mxu0
      %v8123 = vadd.f32 %v7596, %v8122
      %v8124 = vpop.f32.mrb[0].mxu0
      %8125 = vmatprep.mubr.f32.mxu0 0.0
      %8126 = vmatmul.mubr.f32.gmra.mrb[0].mxu0 %v7654
      %v8127 = vpop.f32.mrb[0].mxu0
      %v8128 = vadd.f32 %v7596, %v8127
      %v8129 = vpop.f32.mrb[0].mxu0
      %8130 = vmatprep.mubr.f32.mxu0 0.0
      %8131 = vmatmul.mubr.f32.gmra.mrb[0].mxu0 %v7657
      %v8132 = vpop.f32.mrb[0].mxu0
      %v8133 = vadd.f32 %v7596, %v8132
      %v8134 = vpop.f32.mrb[0].mxu0
      %8135 = vmatprep.mubr.f32.mxu0 0.0
      %8136 = vmatmul.mubr.f32.gmra.mrb[0].mxu0 %v7660
      %v8137 = vpop.f32.mrb[0].mxu0
      %v8138 = vadd.f32 %v7596, %v8137
      %v8139 = vpop.f32.mrb[0].mxu0
      %8140 = vmatprep.mubr.f32.mxu0 0.0
      %8141 = vmatmul.mubr.f32.gmra.mrb[0].mxu0 %v7663
      %v8142 = vpop.f32.mrb[0].mxu0
      %v8143 = vadd.f32 %v7596, %v8142
      %v8144 = vpop.f32.mrb[0].mxu0
      %8145 = vmatprep.mubr.f32.mxu0 0.0
      %8146 = vmatmul.mubr.f32.gmra.mrb[0].mxu0 %v7666
      %v8147 = vpop.f32.mrb[0].mxu0
      %v8148 = vadd.f32 %v7596, %v8147
      %v8149 = vpop.f32.mrb[0].mxu0
      %8150 = vmatprep.mubr.f32.mxu0 0.0
      %8151 = vmatmul.mubr.f32.gmra.mrb[0].mxu0 %v7669
      %v8152 = vpop.f32.mrb[0].mxu0
      %v8153 = vadd.f32 %v7596, %v8152
      %v8154 = vpop.f32.mrb[0].mxu0
      %8155 = vmatprep.mubr.f32.mxu0 0.0
      %8156 = vmatmul.mubr.f32.gmra.mrb[0].mxu0 %v7672
      %v8157 = vpop.f32.mrb[0].mxu0
      %v8158 = vadd.f32 %v7596, %v8157
      %v8159 = vpop.f32.mrb[0].mxu0
      %8160 = vmatprep.mubr.f32.mxu0 0.0
      %8161 = vmatmul.mubr.f32.gmra.mrb[0].mxu0 %v7675
      %v8162 = vpop.f32.mrb[0].mxu0
      %v8163 = vadd.f32 %v7596, %v8162
      %v8164 = vpop.f32.mrb[0].mxu0
      %8165 = vmatprep.mubr.f32.mxu0 0.0
      %8166 = vmatmul.mubr.f32.gmra.mrb[0].mxu0 %v7678
      %v8167 = vpop.f32.mrb[0].mxu0
      %v8168 = vadd.f32 %v7596, %v8167
      %v8169 = vpop.f32.mrb[0].mxu0
      %8170 = vmatprep.mubr.f32.mxu0 0.0
      %8171 = vmatmul.mubr.f32.gmra.mrb[0].mxu0 %v7681
      %v8172 = vpop.f32.mrb[0].mxu0
      %v8173 = vadd.f32 %v7596, %v8172
      %v8174 = vpop.f32.mrb[0].mxu0
      %8175 = vmatprep.mubr.f32.mxu0 0.0
      %8176 = vmatmul.mubr.f32.gmra.mrb[0].mxu0 %v7684
      %v8177 = vpop.f32.mrb[0].mxu0
      %v8178 = vadd.f32 %v7596, %v8177
      %v8179 = vpop.f32.mrb[0].mxu0
      %8180 = vmatprep.mubr.f32.mxu0 0.0
      %8181 = vmatmul.mubr.f32.gmra.mrb[0].mxu0 %v7687
      %v8182 = vpop.f32.mrb[0].mxu0
      %v8183 = vadd.f32 %v7596, %v8182
      %v8184 = vpop.f32.mrb[0].mxu0
      %8185 = vmatprep.mubr.f32.mxu0 0.0
      %8186 = vmatmul.mubr.f32.gmra.mrb[0].mxu0 %v7690
      %v8187 = vpop.f32.mrb[0].mxu0
      %v8188 = vadd.f32 %v7596, %v8187
      %v8189 = vpop.f32.mrb[0].mxu0
      %8190 = vmatprep.mubr.f32.mxu0 0.0
      %8191 = vmatmul.mubr.f32.gmra.mrb[0].mxu0 %v7693
      %v8192 = vpop.f32.mrb[0].mxu0
      %v8193 = vadd.f32 %v7596, %v8192
      %v8194 = vpop.f32.mrb[0].mxu0
      %8195 = vmatprep.mubr.f32.mxu0 0.0
      %8196 = vmatmul.mubr.f32.gmra.mrb[0].mxu0 %v7696
      %v8197 = vpop.f32.mrb[0].mxu0
      %v8198 = vadd.f32 %v7596, %v8197
      %v8199 = vpop.f32.mrb[0].mxu0
      %8200 = vmatprep.mubr.f32.mxu0 0.0
      %8201 = vmatmul.mubr.f32.gmra.mrb[0].mxu0 %v7699
      %v8202 = vpop.f32.mrb[0].mxu0
      %v8203 = vadd.f32 %v7596, %v8202
      %v8204 = vpop.f32.mrb[0].mxu0
      %8205 = vmatprep.mubr.f32.mxu0 0.0
      %8206 = vmatmul.mubr.f32.gmra.mrb[0].mxu0 %v7702
      %v8207 = vpop.f32.mrb[0].mxu0
      %v8208 = vadd.f32 %v7596, %v8207
      %v8209 = vpop.f32.mrb[0].mxu0
      %8210 = vmatprep.mubr.f32.mxu0 0.0
      %8211 = vmatmul.mubr.f32.gmra.mrb[0].mxu0 %v7705
      %v8212 = vpop.f32.mrb[0].mxu0
      %v8213 = vadd.f32 %v7596, %v8212
      %v8214 = vpop.f32.mrb[0].mxu0
      %8215 = vmatprep.mubr.f32.mxu0 0.0
      %8216 = vmatmul.mubr.f32.gmra.mrb[0].mxu0 %v7708
      %v8217 = vpop.f32.mrb[0].mxu0
      %v8218 = vadd.f32 %v7596, %v8217
      %v8219 = vpop.f32.mrb[0].mxu0
      %8220 = vmatprep.mubr.f32.mxu0 0.0
      %8221 = vmatmul.mubr.f32.gmra.mrb[0].mxu0 %v7711
      %v8222 = vpop.f32.mrb[0].mxu0
      %v8223 = vadd.f32 %v7596, %v8222
      %v8224 = vpop.f32.mrb[0].mxu0
      %8225 = vmatprep.mubr.f32.mxu0 0.0
      %8226 = vmatmul.mubr.f32.gmra.mrb[0].mxu0 %v7714
      %v8227 = vpop.f32.mrb[0].mxu0
      %v8228 = vadd.f32 %v7596, %v8227
      %v8229 = vpop.f32.mrb[0].mxu0
      %8230 = vmatprep.mubr.f32.mxu0 0.0
      %8231 = vmatmul.mubr.f32.gmra.mrb[0].mxu0 %v7717
      %v8232 = vpop.f32.mrb[0].mxu0
      %v8233 = vadd.f32 %v7596, %v8232
      %v8234 = vpop.f32.mrb[0].mxu0
      %8235 = vmatprep.mubr.f32.mxu0 0.0
      %8236 = vmatmul.mubr.f32.gmra.mrb[0].mxu0 %v7720
      %v8237 = vpop.f32.mrb[0].mxu0
      %v8238 = vadd.f32 %v7596, %v8237
      %v8239 = vpop.f32.mrb[0].mxu0
      %8240 = vmatprep.mubr.f32.mxu0 0.0
      %8241 = vmatmul.mubr.f32.gmra.mrb[0].mxu0 %v7723
      %v8242 = vpop.f32.mrb[0].mxu0
      %v8243 = vadd.f32 %v7596, %v8242
      %v8244 = vpop.f32.mrb[0].mxu0
      %8245 = vmatprep.mubr.f32.mxu0 0.0
      %8246 = vmatmul.mubr.f32.gmra.mrb[0].mxu0 %v7726
      %v8247 = vpop.f32.mrb[0].mxu0
      %v8248 = vadd.f32 %v7596, %v8247
      %v8249 = vpop.f32.mrb[0].mxu0
      %8250 = vmatprep.mubr.f32.mxu0 0.0
      %8251 = vmatmul.mubr.f32.gmra.mrb[0].mxu0 %v7729
      %v8252 = vpop.f32.mrb[0].mxu0
      %v8253 = vadd.f32 %v7596, %v8252
      %v8254 = vpop.f32.mrb[0].mxu0
      %8255 = vmatprep.mubr.f32.mxu0 0.0
      %8256 = vmatmul.mubr.f32.gmra.mrb[0].mxu0 %v7732
      %v8257 = vpop.f32.mrb[0].mxu0
      %v8258 = vadd.f32 %v7596, %v8257
      %v8259 = vpop.f32.mrb[0].mxu0
      %8260 = vmatprep.mubr.f32.mxu0 0.0
      %8261 = vmatmul.mubr.f32.gmra.mrb[0].mxu0 %v7735
      %v8262 = vpop.f32.mrb[0].mxu0
      %v8263 = vadd.f32 %v7596, %v8262
      %v8264 = vpop.f32.mrb[0].mxu0
      %8265 = vmatprep.mubr.f32.mxu0 0.0
      %8266 = vmatmul.mubr.f32.gmra.mrb[0].mxu0 %v7738
      %v8267 = vpop.f32.mrb[0].mxu0
      %v8268 = vadd.f32 %v7596, %v8267
      %v8269 = vpop.f32.mrb[0].mxu0
      %8270 = vmatprep.mubr.f32.mxu0 0.0
      %8271 = vmatmul.mubr.f32.gmra.mrb[0].mxu0 %v7741
      %v8272 = vpop.f32.mrb[0].mxu0
      %v8273 = vadd.f32 %v7596, %v8272
      %v8274 = vpop.f32.mrb[0].mxu0
      %8275 = vmatprep.mubr.f32.mxu0 0.0
      %8276 = vmatmul.mubr.f32.gmra.mrb[0].mxu0 %v7744
      %v8277 = vpop.f32.mrb[0].mxu0
      %v8278 = vadd.f32 %v7596, %v8277
      %v8279 = vpop.f32.mrb[0].mxu0
      %8280 = vmatprep.mubr.f32.mxu0 0.0
      %8281 = vmatmul.mubr.f32.gmra.mrb[0].mxu0 %v7747
      %v8282 = vpop.f32.mrb[0].mxu0
      %v8283 = vadd.f32 %v7596, %v8282
      %v8284 = vpop.f32.mrb[0].mxu0
      %8285 = vmatprep.mubr.f32.mxu0 0.0
      %8286 = vmatmul.mubr.f32.gmra.mrb[0].mxu0 %v7750
      %v8287 = vpop.f32.mrb[0].mxu0
      %v8288 = vadd.f32 %v7596, %v8287
      %v8289 = vpop.f32.mrb[0].mxu0
      %8290 = vmatprep.mubr.f32.mxu0 0.0
      %8291 = vmatmul.mubr.f32.gmra.mrb[0].mxu0 %v7753
      %v8292 = vpop.f32.mrb[0].mxu0
      %v8293 = vadd.f32 %v7596, %v8292
      %v8294 = vpop.f32.mrb[0].mxu0
      %8295 = vmatprep.mubr.f32.mxu0 0.0
      %8296 = vmatmul.mubr.f32.gmra.mrb[0].mxu0 %v7756
      %v8297 = vpop.f32.mrb[0].mxu0
      %v8298 = vadd.f32 %v7596, %v8297
      %v8299 = vpop.f32.mrb[0].mxu0
      %8300 = vmatprep.mubr.f32.mxu0 0.0
      %8301 = vmatmul.mubr.f32.gmra.mrb[0].mxu0 %v7759
      %v8302 = vpop.f32.mrb[0].mxu0
      %v8303 = vadd.f32 %v7596, %v8302
      %v8304 = vpop.f32.mrb[0].mxu0
      %8305 = vmatprep.mubr.f32.mxu0 0.0
      %8306 = vmatmul.mubr.f32.gmra.mrb[0].mxu0 %v7762
      %v8307 = vpop.f32.mrb[0].mxu0
      %v8308 = vadd.f32 %v7596, %v8307
      %v8309 = vpop.f32.mrb[0].mxu0
      %8310 = vmatprep.mubr.f32.mxu0 0.0
      %8311 = vmatmul.mubr.f32.gmra.mrb[0].mxu0 %v7765
      %v8312 = vpop.f32.mrb[0].mxu0
      %v8313 = vadd.f32 %v7596, %v8312
      %v8314 = vpop.f32.mrb[0].mxu0
      %8315 = vmatprep.mubr.f32.mxu0 0.0
      %8316 = vmatmul.mubr.f32.gmra.mrb[0].mxu0 %v7768
      %v8317 = vpop.f32.mrb[0].mxu0
      %v8318 = vadd.f32 %v7596, %v8317
      %v8319 = vpop.f32.mrb[0].mxu0
      %8320 = vmatprep.mubr.f32.mxu0 0.0
      %8321 = vmatmul.mubr.f32.gmra.mrb[0].mxu0 %v7771
      %v8322 = vpop.f32.mrb[0].mxu0
      %v8323 = vadd.f32 %v7596, %v8322
      %v8324 = vpop.f32.mrb[0].mxu0
      %8325 = vmatprep.mubr.f32.mxu0 0.0
      %8326 = vmatmul.mubr.f32.gmra.mrb[0].mxu0 %v7774
      %v8327 = vpop.f32.mrb[0].mxu0
      %v8328 = vadd.f32 %v7596, %v8327
      %v8329 = vpop.f32.mrb[0].mxu0
      %8330 = vmatprep.mubr.f32.mxu0 0.0
      %8331 = vmatmul.mubr.f32.gmra.mrb[0].mxu0 %v7777
      %v8332 = vpop.f32.mrb[0].mxu0
      %v8333 = vadd.f32 %v7596, %v8332
      %v8334 = vpop.f32.mrb[0].mxu0
      %8335 = vmatprep.mubr.f32.mxu0 0.0
      %8336 = vmatmul.mubr.f32.gmra.mrb[0].mxu0 %v7780
      %v8337 = vpop.f32.mrb[0].mxu0
      %v8338 = vadd.f32 %v7596, %v8337
      %v8339 = vpop.f32.mrb[0].mxu0
      %8340 = vmatprep.mubr.f32.mxu0 0.0
      %8341 = vmatmul.mubr.f32.gmra.mrb[0].mxu0 %v7783
      %v8342 = vpop.f32.mrb[0].mxu0
      %v8343 = vadd.f32 %v7596, %v8342
      %v8344 = vpop.f32.mrb[0].mxu0
      %8345 = vmatprep.mubr.f32.mxu0 0.0
      %8346 = vmatmul.mubr.f32.gmra.mrb[0].mxu0 %v7786
      %v8347 = vpop.f32.mrb[0].mxu0
      %v8348 = vadd.f32 %v7596, %v8347
      %v8349 = vpop.f32.mrb[0].mxu0
      %8350 = vmatprep.mubr.f32.mxu0 0.0
      %8351 = vmatmul.mubr.f32.gmra.mrb[0].mxu0 %v7789
      %v8352 = vpop.f32.mrb[0].mxu0
      %v8353 = vadd.f32 %v7596, %v8352
      %v8354 = vpop.f32.mrb[0].mxu0
      %8355 = vmatprep.mubr.f32.mxu0 0.0
      %8356 = vmatmul.mubr.f32.gmra.mrb[0].mxu0 %v7792
      %v8357 = vpop.f32.mrb[0].mxu0
      %v8358 = vadd.f32 %v7596, %v8357
      %v8359 = vpop.f32.mrb[0].mxu0
      %8360 = vmatprep.mubr.f32.mxu0 0.0
      %8361 = vmatmul.mubr.f32.gmra.mrb[0].mxu0 %v7795
      %v8362 = vpop.f32.mrb[0].mxu0
      %v8363 = vadd.f32 %v7596, %v8362
      %v8364 = vpop.f32.mrb[0].mxu0
      %8365 = vmatprep.mubr.f32.mxu0 0.0
      %8366 = vmatmul.mubr.f32.gmra.mrb[0].mxu0 %v7798
      %v8367 = vpop.f32.mrb[0].mxu0
      %v8368 = vadd.f32 %v7596, %v8367
      %v8369 = vpop.f32.mrb[0].mxu0
      %8370 = vmatprep.mubr.f32.mxu0 0.0
      %8371 = vmatmul.mubr.f32.gmra.mrb[0].mxu0 %v7801
      %v8372 = vpop.f32.mrb[0].mxu0
      %v8373 = vadd.f32 %v7596, %v8372
      %v8374 = vpop.f32.mrb[0].mxu0
      %8375 = vmatprep.mubr.f32.mxu0 0.0
      %8376 = vmatmul.mubr.f32.gmra.mrb[0].mxu0 %v7804
      %v8377 = vpop.f32.mrb[0].mxu0
      %v8378 = vadd.f32 %v7596, %v8377
      %v8379 = vpop.f32.mrb[0].mxu0
      %8380 = vmatprep.mubr.f32.mxu0 0.0
      %8381 = vmatmul.mubr.f32.gmra.mrb[0].mxu0 %v7807
      %v8382 = vpop.f32.mrb[0].mxu0
      %v8383 = vadd.f32 %v7596, %v8382
      %v8384 = vpop.f32.mrb[0].mxu0
      %8385 = vmatprep.mubr.f32.mxu0 0.0
      %8386 = vmatmul.mubr.f32.gmra.mrb[0].mxu0 %v7810
      %v8387 = vpop.f32.mrb[0].mxu0
      %v8388 = vadd.f32 %v7596, %v8387
      %v8389 = vpop.f32.mrb[0].mxu0
      %8390 = vmatprep.mubr.f32.mxu0 0.0
      %8391 = vmatmul.mubr.f32.gmra.mrb[0].mxu0 %v7813
      %v8392 = vpop.f32.mrb[0].mxu0
      %v8393 = vadd.f32 %v7596, %v8392
      %v8394 = vpop.f32.mrb[0].mxu0
      %8395 = vmatprep.mubr.f32.mxu0 0.0
      %8396 = vmatmul.mubr.f32.gmra.mrb[0].mxu0 %v7816
      %v8397 = vpop.f32.mrb[0].mxu0
      %v8398 = vadd.f32 %v7596, %v8397
      %v8399 = vpop.f32.mrb[0].mxu0
      %8400 = vmatprep.mubr.f32.mxu0 0.0
      %8401 = vmatmul.mubr.f32.gmra.mrb[0].mxu0 %v7819
      %v8402 = vpop.f32.mrb[0].mxu0
      %v8403 = vadd.f32 %v7596, %v8402
      %v8404 = vpop.f32.mrb[0].mxu0
      %8405 = vmatprep.mubr.f32.mxu0 0.0
      %8406 = vmatmul.mubr.f32.gmra.mrb[0].mxu0 %v7822
      %v8407 = vpop.f32.mrb[0].mxu0
      %v8408 = vadd.f32 %v7596, %v8407
      %v8409 = vpop.f32.mrb[0].mxu0
      %8410 = vmatprep.mubr.f32.mxu0 0.0
      %8411 = vmatmul.mubr.f32.gmra.mrb[0].mxu0 %v7825
      %v8412 = vpop.f32.mrb[0].mxu0
      %v8413 = vadd.f32 %v7596, %v8412
      %v8414 = vpop.f32.mrb[0].mxu0
      %8415 = vmatprep.mubr.f32.mxu0 0.0
      %8416 = vmatmul.mubr.f32.gmra.mrb[0].mxu0 %v7828
      %v8417 = vpop.f32.mrb[0].mxu0
      %v8418 = vadd.f32 %v7596, %v8417
      %v8419 = vpop.f32.mrb[0].mxu0
      %8420 = vmatprep.mubr.f32.mxu0 0.0
      %8421 = vmatmul.mubr.f32.gmra.mrb[0].mxu0 %v7831
      %v8422 = vpop.f32.mrb[0].mxu0
      %v8423 = vadd.f32 %v7596, %v8422
      %v8424 = vpop.f32.mrb[0].mxu0
      %8425 = vmatprep.mubr.f32.mxu0 0.0
      %8426 = vmatmul.mubr.f32.gmra.mrb[0].mxu0 %v7834
      %v8427 = vpop.f32.mrb[0].mxu0
      %v8428 = vadd.f32 %v7596, %v8427
      %v8429 = vpop.f32.mrb[0].mxu0
      %8430 = vmatprep.mubr.f32.mxu0 0.0
      %8431 = vmatmul.mubr.f32.gmra.mrb[0].mxu0 %v7837
      %v8432 = vpop.f32.mrb[0].mxu0
      %v8433 = vadd.f32 %v7596, %v8432
      %v8434 = vpop.f32.mrb[0].mxu0
      %8435 = vmatprep.mubr.f32.mxu0 0.0
      %8436 = vmatmul.mubr.f32.gmra.mrb[0].mxu0 %v7840
      %v8437 = vpop.f32.mrb[0].mxu0
      %v8438 = vadd.f32 %v7596, %v8437
      %v8439 = vpop.f32.mrb[0].mxu0
      %8440 = vmatprep.mubr.f32.mxu0 0.0
      %8441 = vmatmul.mubr.f32.gmra.mrb[0].mxu0 %v7843
      %v8442 = vpop.f32.mrb[0].mxu0
      %v8443 = vadd.f32 %v7596, %v8442
      %v8444 = vpop.f32.mrb[0].mxu0
      %8445 = vmatprep.mubr.f32.mxu0 0.0
      %8446 = vmatmul.mubr.f32.gmra.mrb[0].mxu0 %v7846
      %v8447 = vpop.f32.mrb[0].mxu0
      %v8448 = vadd.f32 %v7596, %v8447
      %v8449 = vpop.f32.mrb[0].mxu0
      %8450 = vmatprep.mubr.f32.mxu0 0.0
      %8451 = vmatmul.mubr.f32.gmra.mrb[0].mxu0 %v7849
      %v8452 = vpop.f32.mrb[0].mxu0
      %v8453 = vadd.f32 %v7596, %v8452
      %v8454 = vpop.f32.mrb[0].mxu0
      %8455 = vmatprep.mubr.f32.mxu0 0.0
      %8456 = vmatmul.mubr.f32.gmra.mrb[0].mxu0 %v7852
      %v8457 = vpop.f32.mrb[0].mxu0
      %v8458 = vadd.f32 %v7596, %v8457
      %v8459 = vpop.f32.mrb[0].mxu0
      %8460 = vmatprep.mubr.f32.mxu0 0.0
      %8461 = vmatmul.mubr.f32.gmra.mrb[0].mxu0 %v7855
      %v8462 = vpop.f32.mrb[0].mxu0
      %v8463 = vadd.f32 %v7596, %v8462
      %v8464 = vpop.f32.mrb[0].mxu0
      %8465 = vmatprep.mubr.f32.mxu0 0.0
      %8466 = vmatmul.mubr.f32.gmra.mrb[0].mxu0 %v7858
      %v8467 = vpop.f32.mrb[0].mxu0
      %v8468 = vadd.f32 %v7596, %v8467
      %v8469 = vpop.f32.mrb[0].mxu0
      %8470 = vmatprep.mubr.f32.mxu0 0.0
      %8471 = vmatmul.mubr.f32.gmra.mrb[0].mxu0 %v7861
      %v8472 = vpop.f32.mrb[0].mxu0
      %v8473 = vadd.f32 %v7596, %v8472
      %v8474 = vpop.f32.mrb[0].mxu0
      %8475 = vmatprep.mubr.f32.mxu0 0.0
      %8476 = vmatmul.mubr.f32.gmra.mrb[0].mxu0 %v7864
      %v8477 = vpop.f32.mrb[0].mxu0
      %v8478 = vadd.f32 %v7596, %v8477
      %v8479 = vpop.f32.mrb[0].mxu0
      %8480 = vmatprep.mubr.f32.mxu0 0.0
      %8481 = vmatmul.mubr.f32.gmra.mrb[0].mxu0 %v7867
      %v8482 = vpop.f32.mrb[0].mxu0
      %v8483 = vadd.f32 %v7596, %v8482
      %v8484 = vpop.f32.mrb[0].mxu0
      %8485 = vmatprep.mubr.f32.mxu0 0.0
      %8486 = vmatmul.mubr.f32.gmra.mrb[0].mxu0 %v7870
      %v8487 = vpop.f32.mrb[0].mxu0
      %v8488 = vadd.f32 %v7596, %v8487
      %v8489 = vpop.f32.mrb[0].mxu0
      %8490 = vmatprep.mubr.f32.mxu0 0.0
      %8491 = vmatmul.mubr.f32.gmra.mrb[0].mxu0 %v7873
      %v8492 = vpop.f32.mrb[0].mxu0
      %v8493 = vadd.f32 %v7596, %v8492
      %v8494 = vpop.f32.mrb[0].mxu0
      %8495 = vmatprep.mubr.f32.mxu0 0.0
      %8496 = vmatmul.mubr.f32.gmra.mrb[0].mxu0 %v7876
      %v8497 = vpop.f32.mrb[0].mxu0
      %v8498 = vadd.f32 %v7596, %v8497
      %v8499 = vpop.f32.mrb[0].mxu0
      %8500 = vmatprep.mubr.f32.mxu0 0.0
      %8501 = vmatmul.mubr.f32.gmra.mrb[0].mxu0 %v7879
      %v8502 = vpop.f32.mrb[0].mxu0
      %v8503 = vadd.f32 %v7596, %v8502
      %v8504 = vpop.f32.mrb[0].mxu0
      %8505 = vmatprep.mubr.f32.mxu0 0.0
      %8506 = vmatmul.mubr.f32.gmra.mrb[0].mxu0 %v7882
      %v8507 = vpop.f32.mrb[0].mxu0
      %v8508 = vadd.f32 %v7596, %v8507
      %v8509 = vpop.f32.mrb[0].mxu0
      %8510 = vmatprep.mubr.f32.mxu0 0.0
      %8511 = vmatmul.mubr.f32.gmra.mrb[0].mxu0 %v7885
      %v8512 = vpop.f32.mrb[0].mxu0
      %v8513 = vadd.f32 %v7596, %v8512
      %v8514 = vpop.f32.mrb[0].mxu0
      %8515 = vmatprep.mubr.f32.mxu0 0.0
      %8516 = vmatmul.mubr.f32.gmra.mrb[0].mxu0 %v7888
      %v8517 = vpop.f32.mrb[0].mxu0
      %v8518 = vadd.f32 %v7596, %v8517
      %v8519 = vpop.f32.mrb[0].mxu0
      %8520 = vmatprep.mubr.f32.mxu0 0.0
      %8521 = vmatmul.mubr.f32.gmra.mrb[0].mxu0 %v7891
      %v8522 = vpop.f32.mrb[0].mxu0
      %v8523 = vadd.f32 %v7596, %v8522
      %v8524 = vpop.f32.mrb[0].mxu0
      %8525 = vmatprep.mubr.f32.mxu0 0.0
      %8526 = vmatmul.mubr.f32.gmra.mrb[0].mxu0 %v7894
      %v8527 = vpop.f32.mrb[0].mxu0
      %v8528 = vadd.f32 %v7596, %v8527
      %v8529 = vpop.f32.mrb[0].mxu0
      %8530 = vmatprep.mubr.f32.mxu0 0.0
      %8531 = vmatmul.mubr.f32.gmra.mrb[0].mxu0 %v7897
      %v8532 = vpop.f32.mrb[0].mxu0
      %v8533 = vadd.f32 %v7596, %v8532
      %v8534 = vpop.f32.mrb[0].mxu0
      %8535 = vmatprep.mubr.f32.mxu0 0.0
      %8536 = vmatmul.mubr.f32.gmra.mrb[0].mxu0 %v7900
      %v8537 = vpop.f32.mrb[0].mxu0
      %v8538 = vadd.f32 %v7596, %v8537
      %v8539 = vpop.f32.mrb[0].mxu0
      %8540 = vmatprep.mubr.f32.mxu0 0.0
      %8541 = vmatmul.mubr.f32.gmra.mrb[0].mxu0 %v7903
      %v8542 = vpop.f32.mrb[0].mxu0
      %v8543 = vadd.f32 %v7596, %v8542
      %v8544 = vpop.f32.mrb[0].mxu0
      %8545 = vmatprep.mubr.f32.mxu0 0.0
      %8546 = vmatmul.mubr.f32.gmra.mrb[0].mxu0 %v7906
      %v8547 = vpop.f32.mrb[0].mxu0
      %v8548 = vadd.f32 %v7596, %v8547
      %v8549 = vpop.f32.mrb[0].mxu0
      %8550 = vmatprep.mubr.f32.mxu0 0.0
      %8551 = vmatmul.mubr.f32.gmra.mrb[0].mxu0 %v7909
      %v8552 = vpop.f32.mrb[0].mxu0
      %v8553 = vadd.f32 %v7596, %v8552
      %v8554 = vpop.f32.mrb[0].mxu0
      %8555 = vmatprep.mubr.f32.mxu0 0.0
      %8556 = vmatmul.mubr.f32.gmra.mrb[0].mxu0 %v7912
      %v8557 = vpop.f32.mrb[0].mxu0
      %v8558 = vadd.f32 %v7596, %v8557
      %v8559 = vpop.f32.mrb[0].mxu0
      %8560 = vmatprep.mubr.f32.mxu0 0.0
      %8561 = vmatmul.mubr.f32.gmra.mrb[0].mxu0 %v7915
      %v8562 = vpop.f32.mrb[0].mxu0
      %v8563 = vadd.f32 %v7596, %v8562
      %v8564 = vpop.f32.mrb[0].mxu0
      %8565 = vmatprep.mubr.f32.mxu0 0.0
      %8566 = vmatmul.mubr.f32.gmra.mrb[0].mxu0 %v7918
      %v8567 = vpop.f32.mrb[0].mxu0
      %v8568 = vadd.f32 %v7596, %v8567
      %v8569 = vpop.f32.mrb[0].mxu0
      %8570 = vmatprep.mubr.f32.mxu0 0.0
      %8571 = vmatmul.mubr.f32.gmra.mrb[0].mxu0 %v7921
      %v8572 = vpop.f32.mrb[0].mxu0
      %v8573 = vadd.f32 %v7596, %v8572
      %v8574 = vpop.f32.mrb[0].mxu0
      %8575 = vmatprep.mubr.f32.mxu0 0.0
      %8576 = vmatmul.mubr.f32.gmra.mrb[0].mxu0 %v7924
      %v8577 = vpop.f32.mrb[0].mxu0
      %v8578 = vadd.f32 %v7596, %v8577
      %v8579 = vpop.f32.mrb[0].mxu0
      %8580 = vmatprep.mubr.f32.mxu0 0.0
      %8581 = vmatmul.mubr.f32.gmra.mrb[0].mxu0 %v7927
      %v8582 = vpop.f32.mrb[0].mxu0
      %v8583 = vadd.f32 %v7596, %v8582
      %v8584 = vpop.f32.mrb[0].mxu0
      %8585 = vmatprep.mubr.f32.mxu0 0.0
      %8586 = vmatmul.mubr.f32.gmra.mrb[0].mxu0 %v7930
      %v8587 = vpop.f32.mrb[0].mxu0
      %v8588 = vadd.f32 %v7596, %v8587
      %v8589 = vpop.f32.mrb[0].mxu0
      %8590 = vmatprep.mubr.f32.mxu0 0.0
      %8591 = vmatmul.mubr.f32.gmra.mrb[0].mxu0 %v7933
      %v8592 = vpop.f32.mrb[0].mxu0
      %v8593 = vadd.f32 %v7596, %v8592
      %v8594 = vpop.f32.mrb[0].mxu0
      %8595 = vmatprep.mubr.f32.mxu0 0.0
      %8596 = vmatmul.mubr.f32.gmra.mrb[0].mxu0 %v7936
      %v8597 = vpop.f32.mrb[0].mxu0
      %v8598 = vadd.f32 %v7596, %v8597
      %v8599 = vpop.f32.mrb[0].mxu0
      %8600 = vmatprep.mubr.f32.mxu0 0.0
      %8601 = vmatmul.mubr.f32.gmra.mrb[0].mxu0 %v7939
      %v8602 = vpop.f32.mrb[0].mxu0
      %v8603 = vadd.f32 %v7596, %v8602
      %v8604 = vpop.f32.mrb[0].mxu0
      %8605 = vmatprep.mubr.f32.mxu0 0.0
      %8606 = vmatmul.mubr.f32.gmra.mrb[0].mxu0 %v7942
      %v8607 = vpop.f32.mrb[0].mxu0
      %v8608 = vadd.f32 %v7596, %v8607
      %v8609 = vpop.f32.mrb[0].mxu0
      %8610 = vmatprep.mubr.f32.mxu0 0.0
      %8611 = vmatmul.mubr.f32.gmra.mrb[0].mxu0 %v7945
      %v8612 = vpop.f32.mrb[0].mxu0
      %v8613 = vadd.f32 %v7596, %v8612
      %v8614 = vpop.f32.mrb[0].mxu0
      %8615 = vmatprep.mubr.f32.mxu0 0.0
      %8616 = vmatmul.mubr.f32.gmra.mrb[0].mxu0 %v7948
      %v8617 = vpop.f32.mrb[0].mxu0
      %v8618 = vadd.f32 %v7596, %v8617
      %v8619 = vpop.f32.mrb[0].mxu0
      %8620 = vmatprep.mubr.f32.mxu0 0.0
      %8621 = vmatmul.mubr.f32.gmra.mrb[0].mxu0 %v7951
      %v8622 = vpop.f32.mrb[0].mxu0
      %v8623 = vadd.f32 %v7596, %v8622
      %v8624 = vpop.f32.mrb[0].mxu0
      %8625 = vmatprep.mubr.f32.mxu0 0.0
      %8626 = vmatmul.mubr.f32.gmra.mrb[0].mxu0 %v7954
      %v8627 = vpop.f32.mrb[0].mxu0
      %v8628 = vadd.f32 %v7596, %v8627
      %v8629 = vpop.f32.mrb[0].mxu0
      %8630 = vmatprep.mubr.f32.mxu0 0.0
      %8631 = vmatmul.mubr.f32.gmra.mrb[0].mxu0 %v7957
      %v8632 = vpop.f32.mrb[0].mxu0
      %v8633 = vadd.f32 %v7596, %v8632
      %v8634 = vpop.f32.mrb[0].mxu0
      %8635 = vmatprep.mubr.f32.mxu0 0.0
      %8636 = vmatmul.mubr.f32.gmra.mrb[0].mxu0 %v7960
      %v8637 = vpop.f32.mrb[0].mxu0
      %v8638 = vadd.f32 %v7596, %v8637
      %v8639 = vpop.f32.mrb[0].mxu0
      %8640 = vmatprep.mubr.f32.mxu0 0.0
      %8641 = vmatmul.mubr.f32.gmra.mrb[0].mxu0 %v7963
      %v8642 = vpop.f32.mrb[0].mxu0
      %v8643 = vadd.f32 %v7596, %v8642
      %v8644 = vpop.f32.mrb[0].mxu0
      %8645 = vmatprep.mubr.f32.mxu0 0.0
      %8646 = vmatmul.mubr.f32.gmra.mrb[0].mxu0 %v7966
      %v8647 = vpop.f32.mrb[0].mxu0
      %v8648 = vadd.f32 %v7596, %v8647
      %v8649 = vpop.f32.mrb[0].mxu0
      %8650 = vmatprep.mubr.f32.mxu0 0.0
      %8651 = vmatmul.mubr.f32.gmra.mrb[0].mxu0 %v7969
      %v8652 = vpop.f32.mrb[0].mxu0
      %v8653 = vadd.f32 %v7596, %v8652
      %v8654 = vpop.f32.mrb[0].mxu0
      %8655 = vdwg.mxu0
      %v8656 = vmax.f32 %v8038, 0.0
      %v8657 = vmax.f32 %v8043, 0.0
      %v8658 = vmax.f32 %v8048, 0.0
      %v8659 = vmax.f32 %v8053, 0.0
      %v8660 = vmax.f32 %v8058, 0.0
      %v8661 = vmax.f32 %v8063, 0.0
      %v8662 = vmax.f32 %v8068, 0.0
      %v8663 = vmax.f32 %v8073, 0.0
      %v8664 = vmax.f32 %v8078, 0.0
      %v8665 = vmax.f32 %v8083, 0.0
      %v8666 = vmax.f32 %v8088, 0.0
      %v8667 = vmax.f32 %v8093, 0.0
      %v8668 = vmax.f32 %v8098, 0.0
      %v8669 = vmax.f32 %v8103, 0.0
      %v8670 = vmax.f32 %v8108, 0.0
      %v8671 = vmax.f32 %v8113, 0.0
      %v8672 = vmax.f32 %v8118, 0.0
      %v8673 = vmax.f32 %v8123, 0.0
      %v8674 = vmax.f32 %v8128, 0.0
      %v8675 = vmax.f32 %v8133, 0.0
      %v8676 = vmax.f32 %v8138, 0.0
      %v8677 = vmax.f32 %v8143, 0.0
      %v8678 = vmax.f32 %v8148, 0.0
      %v8679 = vmax.f32 %v8153, 0.0
      %v8680 = vmax.f32 %v8158, 0.0
      %v8681 = vmax.f32 %v8163, 0.0
      %v8682 = vmax.f32 %v8168, 0.0
      %v8683 = vmax.f32 %v8173, 0.0
      %v8684 = vmax.f32 %v8178, 0.0
      %v8685 = vmax.f32 %v8183, 0.0
      %v8686 = vmax.f32 %v8188, 0.0
      %v8687 = vmax.f32 %v8193, 0.0
      %v8688 = vmax.f32 %v8198, 0.0
      %v8689 = vmax.f32 %v8203, 0.0
      %v8690 = vmax.f32 %v8208, 0.0
      %v8691 = vmax.f32 %v8213, 0.0
      %v8692 = vmax.f32 %v8218, 0.0
      %v8693 = vmax.f32 %v8223, 0.0
      %v8694 = vmax.f32 %v8228, 0.0
      %v8695 = vmax.f32 %v8233, 0.0
      %v8696 = vmax.f32 %v8238, 0.0
      %v8697 = vmax.f32 %v8243, 0.0
      %v8698 = vmax.f32 %v8248, 0.0
      %v8699 = vmax.f32 %v8253, 0.0
      %v8700 = vmax.f32 %v8258, 0.0
      %v8701 = vmax.f32 %v8263, 0.0
      %v8702 = vmax.f32 %v8268, 0.0
      %v8703 = vmax.f32 %v8273, 0.0
      %v8704 = vmax.f32 %v8278, 0.0
      %v8705 = vmax.f32 %v8283, 0.0
      %v8706 = vmax.f32 %v8288, 0.0
      %v8707 = vmax.f32 %v8293, 0.0
      %v8708 = vmax.f32 %v8298, 0.0
      %v8709 = vmax.f32 %v8303, 0.0
      %v8710 = vmax.f32 %v8308, 0.0
      %v8711 = vmax.f32 %v8313, 0.0
      %v8712 = vmax.f32 %v8318, 0.0
      %v8713 = vmax.f32 %v8323, 0.0
      %v8714 = vmax.f32 %v8328, 0.0
      %v8715 = vmax.f32 %v8333, 0.0
      %v8716 = vmax.f32 %v8338, 0.0
      %v8717 = vmax.f32 %v8343, 0.0
      %v8718 = vmax.f32 %v8348, 0.0
      %v8719 = vmax.f32 %v8353, 0.0
      %v8720 = vmax.f32 %v8358, 0.0
      %v8721 = vmax.f32 %v8363, 0.0
      %v8722 = vmax.f32 %v8368, 0.0
      %v8723 = vmax.f32 %v8373, 0.0
      %v8724 = vmax.f32 %v8378, 0.0
      %v8725 = vmax.f32 %v8383, 0.0
      %v8726 = vmax.f32 %v8388, 0.0
      %v8727 = vmax.f32 %v8393, 0.0
      %v8728 = vmax.f32 %v8398, 0.0
      %v8729 = vmax.f32 %v8403, 0.0
      %v8730 = vmax.f32 %v8408, 0.0
      %v8731 = vmax.f32 %v8413, 0.0
      %v8732 = vmax.f32 %v8418, 0.0
      %v8733 = vmax.f32 %v8423, 0.0
      %v8734 = vmax.f32 %v8428, 0.0
      %v8735 = vmax.f32 %v8433, 0.0
      %v8736 = vmax.f32 %v8438, 0.0
      %v8737 = vmax.f32 %v8443, 0.0
      %v8738 = vmax.f32 %v8448, 0.0
      %v8739 = vmax.f32 %v8453, 0.0
      %v8740 = vmax.f32 %v8458, 0.0
      %v8741 = vmax.f32 %v8463, 0.0
      %v8742 = vmax.f32 %v8468, 0.0
      %v8743 = vmax.f32 %v8473, 0.0
      %v8744 = vmax.f32 %v8478, 0.0
      %v8745 = vmax.f32 %v8483, 0.0
      %v8746 = vmax.f32 %v8488, 0.0
      %v8747 = vmax.f32 %v8493, 0.0
      %v8748 = vmax.f32 %v8498, 0.0
      %v8749 = vmax.f32 %v8503, 0.0
      %v8750 = vmax.f32 %v8508, 0.0
      %v8751 = vmax.f32 %v8513, 0.0
      %v8752 = vmax.f32 %v8518, 0.0
      %v8753 = vmax.f32 %v8523, 0.0
      %v8754 = vmax.f32 %v8528, 0.0
      %v8755 = vmax.f32 %v8533, 0.0
      %v8756 = vmax.f32 %v8538, 0.0
      %v8757 = vmax.f32 %v8543, 0.0
      %v8758 = vmax.f32 %v8548, 0.0
      %v8759 = vmax.f32 %v8553, 0.0
      %v8760 = vmax.f32 %v8558, 0.0
      %v8761 = vmax.f32 %v8563, 0.0
      %v8762 = vmax.f32 %v8568, 0.0
      %v8763 = vmax.f32 %v8573, 0.0
      %v8764 = vmax.f32 %v8578, 0.0
      %v8765 = vmax.f32 %v8583, 0.0
      %v8766 = vmax.f32 %v8588, 0.0
      %v8767 = vmax.f32 %v8593, 0.0
      %v8768 = vmax.f32 %v8598, 0.0
      %v8769 = vmax.f32 %v8603, 0.0
      %v8770 = vmax.f32 %v8608, 0.0
      %v8771 = vmax.f32 %v8613, 0.0
      %v8772 = vmax.f32 %v8618, 0.0
      %v8773 = vmax.f32 %v8623, 0.0
      %v8774 = vmax.f32 %v8628, 0.0
      %v8775 = vmax.f32 %v8633, 0.0
      %v8776 = vmax.f32 %v8638, 0.0
      %v8777 = vmax.f32 %v8643, 0.0
      %v8778 = vmax.f32 %v8648, 0.0
      %v8779 = vmax.f32 %v8653, 0.0
      %8780 = vst.msk [vmem:[#allocation2] sm:$0xff] %vm6957, %v8656
      %8781 = vst.msk [vmem:[#allocation2 + $0x8] sm:$0xff] %vm6957, %v8657
      %8782 = vst.msk [vmem:[#allocation2 + $0x10] sm:$0xff] %vm6957, %v8658
      %8783 = vst.msk [vmem:[#allocation2 + $0x18] sm:$0xff] %vm6957, %v8659
      %8784 = vst.msk [vmem:[#allocation2 + $0x28] sm:$0xff] %vm6957, %v8660
      %8785 = vst.msk [vmem:[#allocation2 + $0x30] sm:$0xff] %vm6957, %v8661
      %8786 = vst.msk [vmem:[#allocation2 + $0x38] sm:$0xff] %vm6957, %v8662
      %8787 = vst.msk [vmem:[#allocation2 + $0x40] sm:$0xff] %vm6957, %v8663
      %8788 = vst.msk [vmem:[#allocation2 + $0x50] sm:$0xff] %vm6957, %v8664
      %8789 = vst.msk [vmem:[#allocation2 + $0x58] sm:$0xff] %vm6957, %v8665
      %8790 = vst.msk [vmem:[#allocation2 + $0x60] sm:$0xff] %vm6957, %v8666
      %8791 = vst.msk [vmem:[#allocation2 + $0x68] sm:$0xff] %vm6957, %v8667
      %8792 = vst.msk [vmem:[#allocation2 + $0x78] sm:$0xff] %vm6957, %v8668
      %8793 = vst.msk [vmem:[#allocation2 + $0x80] sm:$0xff] %vm6957, %v8669
      %8794 = vst.msk [vmem:[#allocation2 + $0x88] sm:$0xff] %vm6957, %v8670
      %8795 = vst.msk [vmem:[#allocation2 + $0x90] sm:$0xff] %vm6957, %v8671
      %8796 = vst.msk [vmem:[#allocation2 + $0xa0] sm:$0xff] %vm6957, %v8672
      %8797 = vst.msk [vmem:[#allocation2 + $0xa8] sm:$0xff] %vm6957, %v8673
      %8798 = vst.msk [vmem:[#allocation2 + $0xb0] sm:$0xff] %vm6957, %v8674
      %8799 = vst.msk [vmem:[#allocation2 + $0xb8] sm:$0xff] %vm6957, %v8675
      %8800 = vst.msk [vmem:[#allocation2 + $0xc8] sm:$0xff] %vm6957, %v8676
      %8801 = vst.msk [vmem:[#allocation2 + $0xd0] sm:$0xff] %vm6957, %v8677
      %8802 = vst.msk [vmem:[#allocation2 + $0xd8] sm:$0xff] %vm6957, %v8678
      %8803 = vst.msk [vmem:[#allocation2 + $0xe0] sm:$0xff] %vm6957, %v8679
      %8804 = vst.msk [vmem:[#allocation2 + $0xf0] sm:$0xff] %vm6957, %v8680
      %8805 = vst.msk [vmem:[#allocation2 + $0xf8] sm:$0xff] %vm6957, %v8681
      %8806 = vst.msk [vmem:[#allocation2 + $0x100] sm:$0xff] %vm6957, %v8682
      %8807 = vst.msk [vmem:[#allocation2 + $0x108] sm:$0xff] %vm6957, %v8683
      %8808 = vst.msk [vmem:[#allocation2 + $0x118] sm:$0xff] %vm6957, %v8684
      %8809 = vst.msk [vmem:[#allocation2 + $0x120] sm:$0xff] %vm6957, %v8685
      %8810 = vst.msk [vmem:[#allocation2 + $0x128] sm:$0xff] %vm6957, %v8686
      %8811 = vst.msk [vmem:[#allocation2 + $0x130] sm:$0xff] %vm6957, %v8687
      %8812 = vst.msk [vmem:[#allocation2 + $0x140] sm:$0xff] %vm6957, %v8688
      %8813 = vst.msk [vmem:[#allocation2 + $0x148] sm:$0xff] %vm6957, %v8689
      %8814 = vst.msk [vmem:[#allocation2 + $0x150] sm:$0xff] %vm6957, %v8690
      %8815 = vst.msk [vmem:[#allocation2 + $0x158] sm:$0xff] %vm6957, %v8691
      %8816 = vst.msk [vmem:[#allocation2 + $0x168] sm:$0xff] %vm6957, %v8692
      %8817 = vst.msk [vmem:[#allocation2 + $0x170] sm:$0xff] %vm6957, %v8693
      %8818 = vst.msk [vmem:[#allocation2 + $0x178] sm:$0xff] %vm6957, %v8694
      %8819 = vst.msk [vmem:[#allocation2 + $0x180] sm:$0xff] %vm6957, %v8695
      %8820 = vst.msk [vmem:[#allocation2 + $0x190] sm:$0xff] %vm6957, %v8696
      %8821 = vst.msk [vmem:[#allocation2 + $0x198] sm:$0xff] %vm6957, %v8697
      %8822 = vst.msk [vmem:[#allocation2 + $0x1a0] sm:$0xff] %vm6957, %v8698
      %8823 = vst.msk [vmem:[#allocation2 + $0x1a8] sm:$0xff] %vm6957, %v8699
      %8824 = vst.msk [vmem:[#allocation2 + $0x1b8] sm:$0xff] %vm6957, %v8700
      %8825 = vst.msk [vmem:[#allocation2 + $0x1c0] sm:$0xff] %vm6957, %v8701
      %8826 = vst.msk [vmem:[#allocation2 + $0x1c8] sm:$0xff] %vm6957, %v8702
      %8827 = vst.msk [vmem:[#allocation2 + $0x1d0] sm:$0xff] %vm6957, %v8703
      %8828 = vst.msk [vmem:[#allocation2 + $0x1e0] sm:$0xff] %vm6957, %v8704
      %8829 = vst.msk [vmem:[#allocation2 + $0x1e8] sm:$0xff] %vm6957, %v8705
      %8830 = vst.msk [vmem:[#allocation2 + $0x1f0] sm:$0xff] %vm6957, %v8706
      %8831 = vst.msk [vmem:[#allocation2 + $0x1f8] sm:$0xff] %vm6957, %v8707
      %8832 = vst.msk [vmem:[#allocation2 + $0x208] sm:$0xff] %vm6957, %v8708
      %8833 = vst.msk [vmem:[#allocation2 + $0x210] sm:$0xff] %vm6957, %v8709
      %8834 = vst.msk [vmem:[#allocation2 + $0x218] sm:$0xff] %vm6957, %v8710
      %8835 = vst.msk [vmem:[#allocation2 + $0x220] sm:$0xff] %vm6957, %v8711
      %8836 = vst.msk [vmem:[#allocation2 + $0x230] sm:$0xff] %vm6957, %v8712
      %8837 = vst.msk [vmem:[#allocation2 + $0x238] sm:$0xff] %vm6957, %v8713
      %8838 = vst.msk [vmem:[#allocation2 + $0x240] sm:$0xff] %vm6957, %v8714
      %8839 = vst.msk [vmem:[#allocation2 + $0x248] sm:$0xff] %vm6957, %v8715
      %8840 = vst.msk [vmem:[#allocation2 + $0x258] sm:$0xff] %vm6957, %v8716
      %8841 = vst.msk [vmem:[#allocation2 + $0x260] sm:$0xff] %vm6957, %v8717
      %8842 = vst.msk [vmem:[#allocation2 + $0x268] sm:$0xff] %vm6957, %v8718
      %8843 = vst.msk [vmem:[#allocation2 + $0x270] sm:$0xff] %vm6957, %v8719
      %8844 = vst.msk [vmem:[#allocation2 + $0x280] sm:$0xff] %vm6957, %v8720
      %8845 = vst.msk [vmem:[#allocation2 + $0x288] sm:$0xff] %vm6957, %v8721
      %8846 = vst.msk [vmem:[#allocation2 + $0x290] sm:$0xff] %vm6957, %v8722
      %8847 = vst.msk [vmem:[#allocation2 + $0x298] sm:$0xff] %vm6957, %v8723
      %8848 = vst.msk [vmem:[#allocation2 + $0x2a8] sm:$0xff] %vm6957, %v8724
      %8849 = vst.msk [vmem:[#allocation2 + $0x2b0] sm:$0xff] %vm6957, %v8725
      %8850 = vst.msk [vmem:[#allocation2 + $0x2b8] sm:$0xff] %vm6957, %v8726
      %8851 = vst.msk [vmem:[#allocation2 + $0x2c0] sm:$0xff] %vm6957, %v8727
      %8852 = vst.msk [vmem:[#allocation2 + $0x2d0] sm:$0xff] %vm6957, %v8728
      %8853 = vst.msk [vmem:[#allocation2 + $0x2d8] sm:$0xff] %vm6957, %v8729
      %8854 = vst.msk [vmem:[#allocation2 + $0x2e0] sm:$0xff] %vm6957, %v8730
      %8855 = vst.msk [vmem:[#allocation2 + $0x2e8] sm:$0xff] %vm6957, %v8731
      %8856 = vst.msk [vmem:[#allocation2 + $0x2f8] sm:$0xff] %vm6957, %v8732
      %8857 = vst.msk [vmem:[#allocation2 + $0x300] sm:$0xff] %vm6957, %v8733
      %8858 = vst.msk [vmem:[#allocation2 + $0x308] sm:$0xff] %vm6957, %v8734
      %8859 = vst.msk [vmem:[#allocation2 + $0x310] sm:$0xff] %vm6957, %v8735
      %8860 = vst.msk [vmem:[#allocation2 + $0x320] sm:$0xff] %vm6957, %v8736
      %8861 = vst.msk [vmem:[#allocation2 + $0x328] sm:$0xff] %vm6957, %v8737
      %8862 = vst.msk [vmem:[#allocation2 + $0x330] sm:$0xff] %vm6957, %v8738
      %8863 = vst.msk [vmem:[#allocation2 + $0x338] sm:$0xff] %vm6957, %v8739
      %8864 = vst.msk [vmem:[#allocation2 + $0x348] sm:$0xff] %vm6957, %v8740
      %8865 = vst.msk [vmem:[#allocation2 + $0x350] sm:$0xff] %vm6957, %v8741
      %8866 = vst.msk [vmem:[#allocation2 + $0x358] sm:$0xff] %vm6957, %v8742
      %8867 = vst.msk [vmem:[#allocation2 + $0x360] sm:$0xff] %vm6957, %v8743
      %8868 = vst.msk [vmem:[#allocation2 + $0x370] sm:$0xff] %vm6957, %v8744
      %8869 = vst.msk [vmem:[#allocation2 + $0x378] sm:$0xff] %vm6957, %v8745
      %8870 = vst.msk [vmem:[#allocation2 + $0x380] sm:$0xff] %vm6957, %v8746
      %8871 = vst.msk [vmem:[#allocation2 + $0x388] sm:$0xff] %vm6957, %v8747
      %8872 = vst.msk [vmem:[#allocation2 + $0x398] sm:$0xff] %vm6957, %v8748
      %8873 = vst.msk [vmem:[#allocation2 + $0x3a0] sm:$0xff] %vm6957, %v8749
      %8874 = vst.msk [vmem:[#allocation2 + $0x3a8] sm:$0xff] %vm6957, %v8750
      %8875 = vst.msk [vmem:[#allocation2 + $0x3b0] sm:$0xff] %vm6957, %v8751
      %8876 = vst.msk [vmem:[#allocation2 + $0x3c0] sm:$0xff] %vm6957, %v8752
      %8877 = vst.msk [vmem:[#allocation2 + $0x3c8] sm:$0xff] %vm6957, %v8753
      %8878 = vst.msk [vmem:[#allocation2 + $0x3d0] sm:$0xff] %vm6957, %v8754
      %8879 = vst.msk [vmem:[#allocation2 + $0x3d8] sm:$0xff] %vm6957, %v8755
      %8880 = vst.msk [vmem:[#allocation2 + $0x3e8] sm:$0xff] %vm6957, %v8756
      %8881 = vst.msk [vmem:[#allocation2 + $0x3f0] sm:$0xff] %vm6957, %v8757
      %8882 = vst.msk [vmem:[#allocation2 + $0x3f8] sm:$0xff] %vm6957, %v8758
      %8883 = vst.msk [vmem:[#allocation2 + $0x400] sm:$0xff] %vm6957, %v8759
      %8884 = vst.msk [vmem:[#allocation2 + $0x410] sm:$0xff] %vm6957, %v8760
      %8885 = vst.msk [vmem:[#allocation2 + $0x418] sm:$0xff] %vm6957, %v8761
      %8886 = vst.msk [vmem:[#allocation2 + $0x420] sm:$0xff] %vm6957, %v8762
      %8887 = vst.msk [vmem:[#allocation2 + $0x428] sm:$0xff] %vm6957, %v8763
      %8888 = vst.msk [vmem:[#allocation2 + $0x438] sm:$0xff] %vm6957, %v8764
      %8889 = vst.msk [vmem:[#allocation2 + $0x440] sm:$0xff] %vm6957, %v8765
      %8890 = vst.msk [vmem:[#allocation2 + $0x448] sm:$0xff] %vm6957, %v8766
      %8891 = vst.msk [vmem:[#allocation2 + $0x450] sm:$0xff] %vm6957, %v8767
      %8892 = vst.msk [vmem:[#allocation2 + $0x460] sm:$0xff] %vm6957, %v8768
      %8893 = vst.msk [vmem:[#allocation2 + $0x468] sm:$0xff] %vm6957, %v8769
      %8894 = vst.msk [vmem:[#allocation2 + $0x470] sm:$0xff] %vm6957, %v8770
      %8895 = vst.msk [vmem:[#allocation2 + $0x478] sm:$0xff] %vm6957, %v8771
      %8896 = vst.msk [vmem:[#allocation2 + $0x488] sm:$0xff] %vm6957, %v8772
      %8897 = vst.msk [vmem:[#allocation2 + $0x490] sm:$0xff] %vm6957, %v8773
      %8898 = vst.msk [vmem:[#allocation2 + $0x498] sm:$0xff] %vm6957, %v8774
      %8899 = vst.msk [vmem:[#allocation2 + $0x4a0] sm:$0xff] %vm6957, %v8775
      %8900 = vst.msk [vmem:[#allocation2 + $0x4b0] sm:$0xff] %vm6957, %v8776
      %8901 = vst.msk [vmem:[#allocation2 + $0x4b8] sm:$0xff] %vm6957, %v8777
      %8902 = vst.msk [vmem:[#allocation2 + $0x4c0] sm:$0xff] %vm6957, %v8778
      %8903 = vst.msk [vmem:[#allocation2 + $0x4c8] sm:$0xff] %vm6957, %v8779
      %8904 = vst.msk [vmem:[#allocation2 + $0x20] sm:$0xff] %vm6957, 0.0
      %8905 = vst.msk [vmem:[#allocation2 + $0x48] sm:$0xff] %vm6957, 0.0
      %8906 = vst.msk [vmem:[#allocation2 + $0x70] sm:$0xff] %vm6957, 0.0
      %8907 = vst.msk [vmem:[#allocation2 + $0x98] sm:$0xff] %vm6957, 0.0
      %8908 = vst.msk [vmem:[#allocation2 + $0xc0] sm:$0xff] %vm6957, 0.0
      %8909 = vst.msk [vmem:[#allocation2 + $0xe8] sm:$0xff] %vm6957, 0.0
      %8910 = vst.msk [vmem:[#allocation2 + $0x110] sm:$0xff] %vm6957, 0.0
      %8911 = vst.msk [vmem:[#allocation2 + $0x138] sm:$0xff] %vm6957, 0.0
      %8912 = vst.msk [vmem:[#allocation2 + $0x160] sm:$0xff] %vm6957, 0.0
      %8913 = vst.msk [vmem:[#allocation2 + $0x188] sm:$0xff] %vm6957, 0.0
      %8914 = vst.msk [vmem:[#allocation2 + $0x1b0] sm:$0xff] %vm6957, 0.0
      %8915 = vst.msk [vmem:[#allocation2 + $0x1d8] sm:$0xff] %vm6957, 0.0
      %8916 = vst.msk [vmem:[#allocation2 + $0x200] sm:$0xff] %vm6957, 0.0
      %8917 = vst.msk [vmem:[#allocation2 + $0x228] sm:$0xff] %vm6957, 0.0
      %8918 = vst.msk [vmem:[#allocation2 + $0x250] sm:$0xff] %vm6957, 0.0
      %8919 = vst.msk [vmem:[#allocation2 + $0x278] sm:$0xff] %vm6957, 0.0
      %8920 = vst.msk [vmem:[#allocation2 + $0x2a0] sm:$0xff] %vm6957, 0.0
      %8921 = vst.msk [vmem:[#allocation2 + $0x2c8] sm:$0xff] %vm6957, 0.0
      %8922 = vst.msk [vmem:[#allocation2 + $0x2f0] sm:$0xff] %vm6957, 0.0
      %8923 = vst.msk [vmem:[#allocation2 + $0x318] sm:$0xff] %vm6957, 0.0
      %8924 = vst.msk [vmem:[#allocation2 + $0x340] sm:$0xff] %vm6957, 0.0
      %8925 = vst.msk [vmem:[#allocation2 + $0x368] sm:$0xff] %vm6957, 0.0
      %8926 = vst.msk [vmem:[#allocation2 + $0x390] sm:$0xff] %vm6957, 0.0
      %8927 = vst.msk [vmem:[#allocation2 + $0x3b8] sm:$0xff] %vm6957, 0.0
      %8928 = vst.msk [vmem:[#allocation2 + $0x3e0] sm:$0xff] %vm6957, 0.0
      %8929 = vst.msk [vmem:[#allocation2 + $0x408] sm:$0xff] %vm6957, 0.0
      %8930 = vst.msk [vmem:[#allocation2 + $0x430] sm:$0xff] %vm6957, 0.0
      %8931 = vst.msk [vmem:[#allocation2 + $0x458] sm:$0xff] %vm6957, 0.0
      %8932 = vst.msk [vmem:[#allocation2 + $0x480] sm:$0xff] %vm6957, 0.0
      %8933 = vst.msk [vmem:[#allocation2 + $0x4a8] sm:$0xff] %vm6957, 0.0
      %8934 = vst.msk [vmem:[#allocation2 + $0x4d0] sm:$0xff] %vm6957, 0.0
      %v8935 = vld [vmem:[#allocation2] ss:$2 sm:$0xff]
      %s8936 = scalar_lea.vmem [#allocation2], 16
      %v8937 = vld [vmem:[%s8936] ss:$2 sm:$0xff]
      %s8938 = scalar_lea.vmem [#allocation2], 80
      %v8939 = vld [vmem:[%s8938] ss:$2 sm:$0xff]
      %s8940 = scalar_lea.vmem [#allocation2], 96
      %v8941 = vld [vmem:[%s8940] ss:$2 sm:$0xff]
      %s8942 = scalar_lea.vmem [#allocation2], 160
      %v8943 = vld [vmem:[%s8942] ss:$2 sm:$0xff]
      %s8944 = scalar_lea.vmem [#allocation2], 176
      %v8945 = vld [vmem:[%s8944] ss:$2 sm:$0xff]
      %s8946 = scalar_lea.vmem [#allocation2], 240
      %v8947 = vld [vmem:[%s8946] ss:$2 sm:$0xff]
      %s8948 = scalar_lea.vmem [#allocation2], 256
      %v8949 = vld [vmem:[%s8948] ss:$2 sm:$0xff]
      %s8950 = scalar_lea.vmem [#allocation2], 320
      %v8951 = vld [vmem:[%s8950] ss:$2 sm:$0xff]
      %s8952 = scalar_lea.vmem [#allocation2], 336
      %v8953 = vld [vmem:[%s8952] ss:$2 sm:$0xff]
      %s8954 = scalar_lea.vmem [#allocation2], 400
      %v8955 = vld [vmem:[%s8954] ss:$2 sm:$0xff]
      %s8956 = scalar_lea.vmem [#allocation2], 416
      %v8957 = vld [vmem:[%s8956] ss:$2 sm:$0xff]
      %s8958 = scalar_lea.vmem [#allocation2], 480
      %v8959 = vld [vmem:[%s8958] ss:$2 sm:$0xff]
      %s8960 = scalar_lea.vmem [#allocation2], 496
      %v8961 = vld [vmem:[%s8960] ss:$2 sm:$0xff]
      %s8962 = scalar_lea.vmem [#allocation2], 560
      %v8963 = vld [vmem:[%s8962] ss:$2 sm:$0xff]
      %s8964 = scalar_lea.vmem [#allocation2], 576
      %v8965 = vld [vmem:[%s8964] ss:$2 sm:$0xff]
      %s8966 = scalar_lea.vmem [#allocation2], 640
      %v8967 = vld [vmem:[%s8966] ss:$2 sm:$0xff]
      %s8968 = scalar_lea.vmem [#allocation2], 656
      %v8969 = vld [vmem:[%s8968] ss:$2 sm:$0xff]
      %s8970 = scalar_lea.vmem [#allocation2], 720
      %v8971 = vld [vmem:[%s8970] ss:$2 sm:$0xff]
      %s8972 = scalar_lea.vmem [#allocation2], 736
      %v8973 = vld [vmem:[%s8972] ss:$2 sm:$0xff]
      %s8974 = scalar_lea.vmem [#allocation2], 800
      %v8975 = vld [vmem:[%s8974] ss:$2 sm:$0xff]
      %s8976 = scalar_lea.vmem [#allocation2], 816
      %v8977 = vld [vmem:[%s8976] ss:$2 sm:$0xff]
      %s8978 = scalar_lea.vmem [#allocation2], 880
      %v8979 = vld [vmem:[%s8978] ss:$2 sm:$0xff]
      %s8980 = scalar_lea.vmem [#allocation2], 896
      %v8981 = vld [vmem:[%s8980] ss:$2 sm:$0xff]
      %s8982 = scalar_lea.vmem [#allocation2], 960
      %v8983 = vld [vmem:[%s8982] ss:$2 sm:$0xff]
      %s8984 = scalar_lea.vmem [#allocation2], 976
      %v8985 = vld [vmem:[%s8984] ss:$2 sm:$0xff]
      %s8986 = scalar_lea.vmem [#allocation2], 1040
      %v8987 = vld [vmem:[%s8986] ss:$2 sm:$0xff]
      %s8988 = scalar_lea.vmem [#allocation2], 1056
      %v8989 = vld [vmem:[%s8988] ss:$2 sm:$0xff]
      %s8990 = scalar_lea.vmem [#allocation2], 1120
      %v8991 = vld [vmem:[%s8990] ss:$2 sm:$0xff]
      %s8992 = scalar_lea.vmem [#allocation2], 1136
      %v8993 = vld [vmem:[%s8992] ss:$2 sm:$0xff]
      %s8994 = scalar_lea.vmem [#allocation2], 1
      %v8995 = vld [vmem:[%s8994] ss:$2 sm:$0xff]
      %s8996 = scalar_lea.vmem [#allocation2], 17
      %v8997 = vld [vmem:[%s8996] ss:$2 sm:$0xff]
      %s8998 = scalar_lea.vmem [#allocation2], 81
      %v8999 = vld [vmem:[%s8998] ss:$2 sm:$0xff]
      %s9000 = scalar_lea.vmem [#allocation2], 97
      %v9001 = vld [vmem:[%s9000] ss:$2 sm:$0xff]
      %s9002 = scalar_lea.vmem [#allocation2], 161
      %v9003 = vld [vmem:[%s9002] ss:$2 sm:$0xff]
      %s9004 = scalar_lea.vmem [#allocation2], 177
      %v9005 = vld [vmem:[%s9004] ss:$2 sm:$0xff]
      %s9006 = scalar_lea.vmem [#allocation2], 241
      %v9007 = vld [vmem:[%s9006] ss:$2 sm:$0xff]
      %s9008 = scalar_lea.vmem [#allocation2], 257
      %v9009 = vld [vmem:[%s9008] ss:$2 sm:$0xff]
      %s9010 = scalar_lea.vmem [#allocation2], 321
      %v9011 = vld [vmem:[%s9010] ss:$2 sm:$0xff]
      %s9012 = scalar_lea.vmem [#allocation2], 337
      %v9013 = vld [vmem:[%s9012] ss:$2 sm:$0xff]
      %s9014 = scalar_lea.vmem [#allocation2], 401
      %v9015 = vld [vmem:[%s9014] ss:$2 sm:$0xff]
      %s9016 = scalar_lea.vmem [#allocation2], 417
      %v9017 = vld [vmem:[%s9016] ss:$2 sm:$0xff]
      %s9018 = scalar_lea.vmem [#allocation2], 481
      %v9019 = vld [vmem:[%s9018] ss:$2 sm:$0xff]
      %s9020 = scalar_lea.vmem [#allocation2], 497
      %v9021 = vld [vmem:[%s9020] ss:$2 sm:$0xff]
      %s9022 = scalar_lea.vmem [#allocation2], 561
      %v9023 = vld [vmem:[%s9022] ss:$2 sm:$0xff]
      %s9024 = scalar_lea.vmem [#allocation2], 577
      %v9025 = vld [vmem:[%s9024] ss:$2 sm:$0xff]
      %s9026 = scalar_lea.vmem [#allocation2], 641
      %v9027 = vld [vmem:[%s9026] ss:$2 sm:$0xff]
      %s9028 = scalar_lea.vmem [#allocation2], 657
      %v9029 = vld [vmem:[%s9028] ss:$2 sm:$0xff]
      %s9030 = scalar_lea.vmem [#allocation2], 721
      %v9031 = vld [vmem:[%s9030] ss:$2 sm:$0xff]
      %s9032 = scalar_lea.vmem [#allocation2], 737
      %v9033 = vld [vmem:[%s9032] ss:$2 sm:$0xff]
      %s9034 = scalar_lea.vmem [#allocation2], 801
      %v9035 = vld [vmem:[%s9034] ss:$2 sm:$0xff]
      %s9036 = scalar_lea.vmem [#allocation2], 817
      %v9037 = vld [vmem:[%s9036] ss:$2 sm:$0xff]
      %s9038 = scalar_lea.vmem [#allocation2], 881
      %v9039 = vld [vmem:[%s9038] ss:$2 sm:$0xff]
      %s9040 = scalar_lea.vmem [#allocation2], 897
      %v9041 = vld [vmem:[%s9040] ss:$2 sm:$0xff]
      %s9042 = scalar_lea.vmem [#allocation2], 961
      %v9043 = vld [vmem:[%s9042] ss:$2 sm:$0xff]
      %s9044 = scalar_lea.vmem [#allocation2], 977
      %v9045 = vld [vmem:[%s9044] ss:$2 sm:$0xff]
      %s9046 = scalar_lea.vmem [#allocation2], 1041
      %v9047 = vld [vmem:[%s9046] ss:$2 sm:$0xff]
      %s9048 = scalar_lea.vmem [#allocation2], 1057
      %v9049 = vld [vmem:[%s9048] ss:$2 sm:$0xff]
      %s9050 = scalar_lea.vmem [#allocation2], 1121
      %v9051 = vld [vmem:[%s9050] ss:$2 sm:$0xff]
      %s9052 = scalar_lea.vmem [#allocation2], 1137
      %v9053 = vld [vmem:[%s9052] ss:$2 sm:$0xff]
      %s9054 = scalar_lea.vmem [#allocation2], 2
      %v9055 = vld [vmem:[%s9054] ss:$2 sm:$0xff]
      %s9056 = scalar_lea.vmem [#allocation2], 18
      %v9057 = vld [vmem:[%s9056] ss:$2 sm:$0xff]
      %s9058 = scalar_lea.vmem [#allocation2], 82
      %v9059 = vld [vmem:[%s9058] ss:$2 sm:$0xff]
      %s9060 = scalar_lea.vmem [#allocation2], 98
      %v9061 = vld [vmem:[%s9060] ss:$2 sm:$0xff]
      %s9062 = scalar_lea.vmem [#allocation2], 162
      %v9063 = vld [vmem:[%s9062] ss:$2 sm:$0xff]
      %s9064 = scalar_lea.vmem [#allocation2], 178
      %v9065 = vld [vmem:[%s9064] ss:$2 sm:$0xff]
      %s9066 = scalar_lea.vmem [#allocation2], 242
      %v9067 = vld [vmem:[%s9066] ss:$2 sm:$0xff]
      %s9068 = scalar_lea.vmem [#allocation2], 258
      %v9069 = vld [vmem:[%s9068] ss:$2 sm:$0xff]
      %s9070 = scalar_lea.vmem [#allocation2], 322
      %v9071 = vld [vmem:[%s9070] ss:$2 sm:$0xff]
      %s9072 = scalar_lea.vmem [#allocation2], 338
      %v9073 = vld [vmem:[%s9072] ss:$2 sm:$0xff]
      %s9074 = scalar_lea.vmem [#allocation2], 402
      %v9075 = vld [vmem:[%s9074] ss:$2 sm:$0xff]
      %s9076 = scalar_lea.vmem [#allocation2], 418
      %v9077 = vld [vmem:[%s9076] ss:$2 sm:$0xff]
      %s9078 = scalar_lea.vmem [#allocation2], 482
      %v9079 = vld [vmem:[%s9078] ss:$2 sm:$0xff]
      %s9080 = scalar_lea.vmem [#allocation2], 498
      %v9081 = vld [vmem:[%s9080] ss:$2 sm:$0xff]
      %s9082 = scalar_lea.vmem [#allocation2], 562
      %v9083 = vld [vmem:[%s9082] ss:$2 sm:$0xff]
      %s9084 = scalar_lea.vmem [#allocation2], 578
      %v9085 = vld [vmem:[%s9084] ss:$2 sm:$0xff]
      %s9086 = scalar_lea.vmem [#allocation2], 642
      %v9087 = vld [vmem:[%s9086] ss:$2 sm:$0xff]
      %s9088 = scalar_lea.vmem [#allocation2], 658
      %v9089 = vld [vmem:[%s9088] ss:$2 sm:$0xff]
      %s9090 = scalar_lea.vmem [#allocation2], 722
      %v9091 = vld [vmem:[%s9090] ss:$2 sm:$0xff]
      %s9092 = scalar_lea.vmem [#allocation2], 738
      %v9093 = vld [vmem:[%s9092] ss:$2 sm:$0xff]
      %s9094 = scalar_lea.vmem [#allocation2], 802
      %v9095 = vld [vmem:[%s9094] ss:$2 sm:$0xff]
      %s9096 = scalar_lea.vmem [#allocation2], 818
      %v9097 = vld [vmem:[%s9096] ss:$2 sm:$0xff]
      %s9098 = scalar_lea.vmem [#allocation2], 882
      %v9099 = vld [vmem:[%s9098] ss:$2 sm:$0xff]
      %s9100 = scalar_lea.vmem [#allocation2], 898
      %v9101 = vld [vmem:[%s9100] ss:$2 sm:$0xff]
      %s9102 = scalar_lea.vmem [#allocation2], 962
      %v9103 = vld [vmem:[%s9102] ss:$2 sm:$0xff]
      %s9104 = scalar_lea.vmem [#allocation2], 978
      %v9105 = vld [vmem:[%s9104] ss:$2 sm:$0xff]
      %s9106 = scalar_lea.vmem [#allocation2], 1042
      %v9107 = vld [vmem:[%s9106] ss:$2 sm:$0xff]
      %s9108 = scalar_lea.vmem [#allocation2], 1058
      %v9109 = vld [vmem:[%s9108] ss:$2 sm:$0xff]
      %s9110 = scalar_lea.vmem [#allocation2], 1122
      %v9111 = vld [vmem:[%s9110] ss:$2 sm:$0xff]
      %s9112 = scalar_lea.vmem [#allocation2], 1138
      %v9113 = vld [vmem:[%s9112] ss:$2 sm:$0xff]
      %s9114 = scalar_lea.vmem [#allocation2], 40
      %v9115 = vld [vmem:[%s9114] ss:$2 sm:$0xff]
      %s9116 = scalar_lea.vmem %s9114, 16 [#allocation2]
      %v9117 = vld [vmem:[%s9116] ss:$2 sm:$0xff]
      %s9118 = scalar_lea.vmem %s9114, 80 [#allocation2]
      %v9119 = vld [vmem:[%s9118] ss:$2 sm:$0xff]
      %s9120 = scalar_lea.vmem %s9114, 96 [#allocation2]
      %v9121 = vld [vmem:[%s9120] ss:$2 sm:$0xff]
      %s9122 = scalar_lea.vmem %s9114, 160 [#allocation2]
      %v9123 = vld [vmem:[%s9122] ss:$2 sm:$0xff]
      %s9124 = scalar_lea.vmem %s9114, 176 [#allocation2]
      %v9125 = vld [vmem:[%s9124] ss:$2 sm:$0xff]
      %s9126 = scalar_lea.vmem %s9114, 240 [#allocation2]
      %v9127 = vld [vmem:[%s9126] ss:$2 sm:$0xff]
      %s9128 = scalar_lea.vmem %s9114, 256 [#allocation2]
      %v9129 = vld [vmem:[%s9128] ss:$2 sm:$0xff]
      %s9130 = scalar_lea.vmem %s9114, 320 [#allocation2]
      %v9131 = vld [vmem:[%s9130] ss:$2 sm:$0xff]
      %s9132 = scalar_lea.vmem %s9114, 336 [#allocation2]
      %v9133 = vld [vmem:[%s9132] ss:$2 sm:$0xff]
      %s9134 = scalar_lea.vmem %s9114, 400 [#allocation2]
      %v9135 = vld [vmem:[%s9134] ss:$2 sm:$0xff]
      %s9136 = scalar_lea.vmem %s9114, 416 [#allocation2]
      %v9137 = vld [vmem:[%s9136] ss:$2 sm:$0xff]
      %s9138 = scalar_lea.vmem %s9114, 480 [#allocation2]
      %v9139 = vld [vmem:[%s9138] ss:$2 sm:$0xff]
      %s9140 = scalar_lea.vmem %s9114, 496 [#allocation2]
      %v9141 = vld [vmem:[%s9140] ss:$2 sm:$0xff]
      %s9142 = scalar_lea.vmem %s9114, 560 [#allocation2]
      %v9143 = vld [vmem:[%s9142] ss:$2 sm:$0xff]
      %s9144 = scalar_lea.vmem %s9114, 576 [#allocation2]
      %v9145 = vld [vmem:[%s9144] ss:$2 sm:$0xff]
      %s9146 = scalar_lea.vmem %s9114, 640 [#allocation2]
      %v9147 = vld [vmem:[%s9146] ss:$2 sm:$0xff]
      %s9148 = scalar_lea.vmem %s9114, 656 [#allocation2]
      %v9149 = vld [vmem:[%s9148] ss:$2 sm:$0xff]
      %s9150 = scalar_lea.vmem %s9114, 720 [#allocation2]
      %v9151 = vld [vmem:[%s9150] ss:$2 sm:$0xff]
      %s9152 = scalar_lea.vmem %s9114, 736 [#allocation2]
      %v9153 = vld [vmem:[%s9152] ss:$2 sm:$0xff]
      %s9154 = scalar_lea.vmem %s9114, 800 [#allocation2]
      %v9155 = vld [vmem:[%s9154] ss:$2 sm:$0xff]
      %s9156 = scalar_lea.vmem %s9114, 816 [#allocation2]
      %v9157 = vld [vmem:[%s9156] ss:$2 sm:$0xff]
      %s9158 = scalar_lea.vmem %s9114, 880 [#allocation2]
      %v9159 = vld [vmem:[%s9158] ss:$2 sm:$0xff]
      %s9160 = scalar_lea.vmem %s9114, 896 [#allocation2]
      %v9161 = vld [vmem:[%s9160] ss:$2 sm:$0xff]
      %s9162 = scalar_lea.vmem %s9114, 960 [#allocation2]
      %v9163 = vld [vmem:[%s9162] ss:$2 sm:$0xff]
      %s9164 = scalar_lea.vmem %s9114, 976 [#allocation2]
      %v9165 = vld [vmem:[%s9164] ss:$2 sm:$0xff]
      %s9166 = scalar_lea.vmem %s9114, 1040 [#allocation2]
      %v9167 = vld [vmem:[%s9166] ss:$2 sm:$0xff]
      %s9168 = scalar_lea.vmem %s9114, 1056 [#allocation2]
      %v9169 = vld [vmem:[%s9168] ss:$2 sm:$0xff]
      %s9170 = scalar_lea.vmem %s9114, 1120 [#allocation2]
      %v9171 = vld [vmem:[%s9170] ss:$2 sm:$0xff]
      %s9172 = scalar_lea.vmem %s9114, 1136 [#allocation2]
      %v9173 = vld [vmem:[%s9172] ss:$2 sm:$0xff]
      %s9174 = scalar_lea.vmem %s9114, 1 [#allocation2]
      %v9175 = vld [vmem:[%s9174] ss:$2 sm:$0xff]
      %s9176 = scalar_lea.vmem %s9114, 17 [#allocation2]
      %v9177 = vld [vmem:[%s9176] ss:$2 sm:$0xff]
      %s9178 = scalar_lea.vmem %s9114, 81 [#allocation2]
      %v9179 = vld [vmem:[%s9178] ss:$2 sm:$0xff]
      %s9180 = scalar_lea.vmem %s9114, 97 [#allocation2]
      %v9181 = vld [vmem:[%s9180] ss:$2 sm:$0xff]
      %s9182 = scalar_lea.vmem %s9114, 161 [#allocation2]
      %v9183 = vld [vmem:[%s9182] ss:$2 sm:$0xff]
      %s9184 = scalar_lea.vmem %s9114, 177 [#allocation2]
      %v9185 = vld [vmem:[%s9184] ss:$2 sm:$0xff]
      %s9186 = scalar_lea.vmem %s9114, 241 [#allocation2]
      %v9187 = vld [vmem:[%s9186] ss:$2 sm:$0xff]
      %s9188 = scalar_lea.vmem %s9114, 257 [#allocation2]
      %v9189 = vld [vmem:[%s9188] ss:$2 sm:$0xff]
      %s9190 = scalar_lea.vmem %s9114, 321 [#allocation2]
      %v9191 = vld [vmem:[%s9190] ss:$2 sm:$0xff]
      %s9192 = scalar_lea.vmem %s9114, 337 [#allocation2]
      %v9193 = vld [vmem:[%s9192] ss:$2 sm:$0xff]
      %s9194 = scalar_lea.vmem %s9114, 401 [#allocation2]
      %v9195 = vld [vmem:[%s9194] ss:$2 sm:$0xff]
      %s9196 = scalar_lea.vmem %s9114, 417 [#allocation2]
      %v9197 = vld [vmem:[%s9196] ss:$2 sm:$0xff]
      %s9198 = scalar_lea.vmem %s9114, 481 [#allocation2]
      %v9199 = vld [vmem:[%s9198] ss:$2 sm:$0xff]
      %s9200 = scalar_lea.vmem %s9114, 497 [#allocation2]
      %v9201 = vld [vmem:[%s9200] ss:$2 sm:$0xff]
      %s9202 = scalar_lea.vmem %s9114, 561 [#allocation2]
      %v9203 = vld [vmem:[%s9202] ss:$2 sm:$0xff]
      %s9204 = scalar_lea.vmem %s9114, 577 [#allocation2]
      %v9205 = vld [vmem:[%s9204] ss:$2 sm:$0xff]
      %s9206 = scalar_lea.vmem %s9114, 641 [#allocation2]
      %v9207 = vld [vmem:[%s9206] ss:$2 sm:$0xff]
      %s9208 = scalar_lea.vmem %s9114, 657 [#allocation2]
      %v9209 = vld [vmem:[%s9208] ss:$2 sm:$0xff]
      %s9210 = scalar_lea.vmem %s9114, 721 [#allocation2]
      %v9211 = vld [vmem:[%s9210] ss:$2 sm:$0xff]
      %s9212 = scalar_lea.vmem %s9114, 737 [#allocation2]
      %v9213 = vld [vmem:[%s9212] ss:$2 sm:$0xff]
      %s9214 = scalar_lea.vmem %s9114, 801 [#allocation2]
      %v9215 = vld [vmem:[%s9214] ss:$2 sm:$0xff]
      %s9216 = scalar_lea.vmem %s9114, 817 [#allocation2]
      %v9217 = vld [vmem:[%s9216] ss:$2 sm:$0xff]
      %s9218 = scalar_lea.vmem %s9114, 881 [#allocation2]
      %v9219 = vld [vmem:[%s9218] ss:$2 sm:$0xff]
      %s9220 = scalar_lea.vmem %s9114, 897 [#allocation2]
      %v9221 = vld [vmem:[%s9220] ss:$2 sm:$0xff]
      %s9222 = scalar_lea.vmem %s9114, 961 [#allocation2]
      %v9223 = vld [vmem:[%s9222] ss:$2 sm:$0xff]
      %s9224 = scalar_lea.vmem %s9114, 977 [#allocation2]
      %v9225 = vld [vmem:[%s9224] ss:$2 sm:$0xff]
      %s9226 = scalar_lea.vmem %s9114, 1041 [#allocation2]
      %v9227 = vld [vmem:[%s9226] ss:$2 sm:$0xff]
      %s9228 = scalar_lea.vmem %s9114, 1057 [#allocation2]
      %v9229 = vld [vmem:[%s9228] ss:$2 sm:$0xff]
      %s9230 = scalar_lea.vmem %s9114, 1121 [#allocation2]
      %v9231 = vld [vmem:[%s9230] ss:$2 sm:$0xff]
      %s9232 = scalar_lea.vmem %s9114, 1137 [#allocation2]
      %v9233 = vld [vmem:[%s9232] ss:$2 sm:$0xff]
      %s9234 = scalar_lea.vmem %s9114, 2 [#allocation2]
      %v9235 = vld [vmem:[%s9234] ss:$2 sm:$0xff]
      %s9236 = scalar_lea.vmem %s9114, 18 [#allocation2]
      %v9237 = vld [vmem:[%s9236] ss:$2 sm:$0xff]
      %s9238 = scalar_lea.vmem %s9114, 82 [#allocation2]
      %v9239 = vld [vmem:[%s9238] ss:$2 sm:$0xff]
      %s9240 = scalar_lea.vmem %s9114, 98 [#allocation2]
      %v9241 = vld [vmem:[%s9240] ss:$2 sm:$0xff]
      %s9242 = scalar_lea.vmem %s9114, 162 [#allocation2]
      %v9243 = vld [vmem:[%s9242] ss:$2 sm:$0xff]
      %s9244 = scalar_lea.vmem %s9114, 178 [#allocation2]
      %v9245 = vld [vmem:[%s9244] ss:$2 sm:$0xff]
      %s9246 = scalar_lea.vmem %s9114, 242 [#allocation2]
      %v9247 = vld [vmem:[%s9246] ss:$2 sm:$0xff]
      %s9248 = scalar_lea.vmem %s9114, 258 [#allocation2]
      %v9249 = vld [vmem:[%s9248] ss:$2 sm:$0xff]
      %s9250 = scalar_lea.vmem %s9114, 322 [#allocation2]
      %v9251 = vld [vmem:[%s9250] ss:$2 sm:$0xff]
      %s9252 = scalar_lea.vmem %s9114, 338 [#allocation2]
      %v9253 = vld [vmem:[%s9252] ss:$2 sm:$0xff]
      %s9254 = scalar_lea.vmem %s9114, 402 [#allocation2]
      %v9255 = vld [vmem:[%s9254] ss:$2 sm:$0xff]
      %s9256 = scalar_lea.vmem %s9114, 418 [#allocation2]
      %v9257 = vld [vmem:[%s9256] ss:$2 sm:$0xff]
      %s9258 = scalar_lea.vmem %s9114, 482 [#allocation2]
      %v9259 = vld [vmem:[%s9258] ss:$2 sm:$0xff]
      %s9260 = scalar_lea.vmem %s9114, 498 [#allocation2]
      %v9261 = vld [vmem:[%s9260] ss:$2 sm:$0xff]
      %s9262 = scalar_lea.vmem %s9114, 562 [#allocation2]
      %v9263 = vld [vmem:[%s9262] ss:$2 sm:$0xff]
      %s9264 = scalar_lea.vmem %s9114, 578 [#allocation2]
      %v9265 = vld [vmem:[%s9264] ss:$2 sm:$0xff]
      %s9266 = scalar_lea.vmem %s9114, 642 [#allocation2]
      %v9267 = vld [vmem:[%s9266] ss:$2 sm:$0xff]
      %s9268 = scalar_lea.vmem %s9114, 658 [#allocation2]
      %v9269 = vld [vmem:[%s9268] ss:$2 sm:$0xff]
      %s9270 = scalar_lea.vmem %s9114, 722 [#allocation2]
      %v9271 = vld [vmem:[%s9270] ss:$2 sm:$0xff]
      %s9272 = scalar_lea.vmem %s9114, 738 [#allocation2]
      %v9273 = vld [vmem:[%s9272] ss:$2 sm:$0xff]
      %s9274 = scalar_lea.vmem %s9114, 802 [#allocation2]
      %v9275 = vld [vmem:[%s9274] ss:$2 sm:$0xff]
      %s9276 = scalar_lea.vmem %s9114, 818 [#allocation2]
      %v9277 = vld [vmem:[%s9276] ss:$2 sm:$0xff]
      %s9278 = scalar_lea.vmem %s9114, 882 [#allocation2]
      %v9279 = vld [vmem:[%s9278] ss:$2 sm:$0xff]
      %s9280 = scalar_lea.vmem %s9114, 898 [#allocation2]
      %v9281 = vld [vmem:[%s9280] ss:$2 sm:$0xff]
      %s9282 = scalar_lea.vmem %s9114, 962 [#allocation2]
      %v9283 = vld [vmem:[%s9282] ss:$2 sm:$0xff]
      %s9284 = scalar_lea.vmem %s9114, 978 [#allocation2]
      %v9285 = vld [vmem:[%s9284] ss:$2 sm:$0xff]
      %s9286 = scalar_lea.vmem %s9114, 1042 [#allocation2]
      %v9287 = vld [vmem:[%s9286] ss:$2 sm:$0xff]
      %s9288 = scalar_lea.vmem %s9114, 1058 [#allocation2]
      %v9289 = vld [vmem:[%s9288] ss:$2 sm:$0xff]
      %s9290 = scalar_lea.vmem %s9114, 1122 [#allocation2]
      %v9291 = vld [vmem:[%s9290] ss:$2 sm:$0xff]
      %s9292 = scalar_lea.vmem %s9114, 1138 [#allocation2]
      %v9293 = vld [vmem:[%s9292] ss:$2 sm:$0xff]
      %s9294 = scalar_lea.vmem [#allocation2], 80
      %v9295 = vld [vmem:[%s9294] ss:$2 sm:$0xff]
      %s9296 = scalar_lea.vmem %s9294, 16 [#allocation2]
      %v9297 = vld [vmem:[%s9296] ss:$2 sm:$0xff]
      %s9298 = scalar_lea.vmem %s9294, 80 [#allocation2]
      %v9299 = vld [vmem:[%s9298] ss:$2 sm:$0xff]
      %s9300 = scalar_lea.vmem %s9294, 96 [#allocation2]
      %v9301 = vld [vmem:[%s9300] ss:$2 sm:$0xff]
      %s9302 = scalar_lea.vmem %s9294, 160 [#allocation2]
      %v9303 = vld [vmem:[%s9302] ss:$2 sm:$0xff]
      %s9304 = scalar_lea.vmem %s9294, 176 [#allocation2]
      %v9305 = vld [vmem:[%s9304] ss:$2 sm:$0xff]
      %s9306 = scalar_lea.vmem %s9294, 240 [#allocation2]
      %v9307 = vld [vmem:[%s9306] ss:$2 sm:$0xff]
      %s9308 = scalar_lea.vmem %s9294, 256 [#allocation2]
      %v9309 = vld [vmem:[%s9308] ss:$2 sm:$0xff]
      %s9310 = scalar_lea.vmem %s9294, 320 [#allocation2]
      %v9311 = vld [vmem:[%s9310] ss:$2 sm:$0xff]
      %s9312 = scalar_lea.vmem %s9294, 336 [#allocation2]
      %v9313 = vld [vmem:[%s9312] ss:$2 sm:$0xff]
      %s9314 = scalar_lea.vmem %s9294, 400 [#allocation2]
      %v9315 = vld [vmem:[%s9314] ss:$2 sm:$0xff]
      %s9316 = scalar_lea.vmem %s9294, 416 [#allocation2]
      %v9317 = vld [vmem:[%s9316] ss:$2 sm:$0xff]
      %s9318 = scalar_lea.vmem %s9294, 480 [#allocation2]
      %v9319 = vld [vmem:[%s9318] ss:$2 sm:$0xff]
      %s9320 = scalar_lea.vmem %s9294, 496 [#allocation2]
      %v9321 = vld [vmem:[%s9320] ss:$2 sm:$0xff]
      %s9322 = scalar_lea.vmem %s9294, 560 [#allocation2]
      %v9323 = vld [vmem:[%s9322] ss:$2 sm:$0xff]
      %s9324 = scalar_lea.vmem %s9294, 576 [#allocation2]
      %v9325 = vld [vmem:[%s9324] ss:$2 sm:$0xff]
      %s9326 = scalar_lea.vmem %s9294, 640 [#allocation2]
      %v9327 = vld [vmem:[%s9326] ss:$2 sm:$0xff]
      %s9328 = scalar_lea.vmem %s9294, 656 [#allocation2]
      %v9329 = vld [vmem:[%s9328] ss:$2 sm:$0xff]
      %s9330 = scalar_lea.vmem %s9294, 720 [#allocation2]
      %v9331 = vld [vmem:[%s9330] ss:$2 sm:$0xff]
      %s9332 = scalar_lea.vmem %s9294, 736 [#allocation2]
      %v9333 = vld [vmem:[%s9332] ss:$2 sm:$0xff]
      %s9334 = scalar_lea.vmem %s9294, 800 [#allocation2]
      %v9335 = vld [vmem:[%s9334] ss:$2 sm:$0xff]
      %s9336 = scalar_lea.vmem %s9294, 816 [#allocation2]
      %v9337 = vld [vmem:[%s9336] ss:$2 sm:$0xff]
      %s9338 = scalar_lea.vmem %s9294, 880 [#allocation2]
      %v9339 = vld [vmem:[%s9338] ss:$2 sm:$0xff]
      %s9340 = scalar_lea.vmem %s9294, 896 [#allocation2]
      %v9341 = vld [vmem:[%s9340] ss:$2 sm:$0xff]
      %s9342 = scalar_lea.vmem %s9294, 960 [#allocation2]
      %v9343 = vld [vmem:[%s9342] ss:$2 sm:$0xff]
      %s9344 = scalar_lea.vmem %s9294, 976 [#allocation2]
      %v9345 = vld [vmem:[%s9344] ss:$2 sm:$0xff]
      %s9346 = scalar_lea.vmem %s9294, 1040 [#allocation2]
      %v9347 = vld [vmem:[%s9346] ss:$2 sm:$0xff]
      %s9348 = scalar_lea.vmem %s9294, 1056 [#allocation2]
      %v9349 = vld [vmem:[%s9348] ss:$2 sm:$0xff]
      %s9350 = scalar_lea.vmem %s9294, 1120 [#allocation2]
      %v9351 = vld [vmem:[%s9350] ss:$2 sm:$0xff]
      %s9352 = scalar_lea.vmem %s9294, 1136 [#allocation2]
      %v9353 = vld [vmem:[%s9352] ss:$2 sm:$0xff]
      %s9354 = scalar_lea.vmem %s9294, 1 [#allocation2]
      %v9355 = vld [vmem:[%s9354] ss:$2 sm:$0xff]
      %s9356 = scalar_lea.vmem %s9294, 17 [#allocation2]
      %v9357 = vld [vmem:[%s9356] ss:$2 sm:$0xff]
      %s9358 = scalar_lea.vmem %s9294, 81 [#allocation2]
      %v9359 = vld [vmem:[%s9358] ss:$2 sm:$0xff]
      %s9360 = scalar_lea.vmem %s9294, 97 [#allocation2]
      %v9361 = vld [vmem:[%s9360] ss:$2 sm:$0xff]
      %s9362 = scalar_lea.vmem %s9294, 161 [#allocation2]
      %v9363 = vld [vmem:[%s9362] ss:$2 sm:$0xff]
      %s9364 = scalar_lea.vmem %s9294, 177 [#allocation2]
      %v9365 = vld [vmem:[%s9364] ss:$2 sm:$0xff]
      %s9366 = scalar_lea.vmem %s9294, 241 [#allocation2]
      %v9367 = vld [vmem:[%s9366] ss:$2 sm:$0xff]
      %s9368 = scalar_lea.vmem %s9294, 257 [#allocation2]
      %v9369 = vld [vmem:[%s9368] ss:$2 sm:$0xff]
      %s9370 = scalar_lea.vmem %s9294, 321 [#allocation2]
      %v9371 = vld [vmem:[%s9370] ss:$2 sm:$0xff]
      %s9372 = scalar_lea.vmem %s9294, 337 [#allocation2]
      %v9373 = vld [vmem:[%s9372] ss:$2 sm:$0xff]
      %s9374 = scalar_lea.vmem %s9294, 401 [#allocation2]
      %v9375 = vld [vmem:[%s9374] ss:$2 sm:$0xff]
      %s9376 = scalar_lea.vmem %s9294, 417 [#allocation2]
      %v9377 = vld [vmem:[%s9376] ss:$2 sm:$0xff]
      %s9378 = scalar_lea.vmem %s9294, 481 [#allocation2]
      %v9379 = vld [vmem:[%s9378] ss:$2 sm:$0xff]
      %s9380 = scalar_lea.vmem %s9294, 497 [#allocation2]
      %v9381 = vld [vmem:[%s9380] ss:$2 sm:$0xff]
      %s9382 = scalar_lea.vmem %s9294, 561 [#allocation2]
      %v9383 = vld [vmem:[%s9382] ss:$2 sm:$0xff]
      %s9384 = scalar_lea.vmem %s9294, 577 [#allocation2]
      %v9385 = vld [vmem:[%s9384] ss:$2 sm:$0xff]
      %s9386 = scalar_lea.vmem %s9294, 641 [#allocation2]
      %v9387 = vld [vmem:[%s9386] ss:$2 sm:$0xff]
      %s9388 = scalar_lea.vmem %s9294, 657 [#allocation2]
      %v9389 = vld [vmem:[%s9388] ss:$2 sm:$0xff]
      %s9390 = scalar_lea.vmem %s9294, 721 [#allocation2]
      %v9391 = vld [vmem:[%s9390] ss:$2 sm:$0xff]
      %s9392 = scalar_lea.vmem %s9294, 737 [#allocation2]
      %v9393 = vld [vmem:[%s9392] ss:$2 sm:$0xff]
      %s9394 = scalar_lea.vmem %s9294, 801 [#allocation2]
      %v9395 = vld [vmem:[%s9394] ss:$2 sm:$0xff]
      %s9396 = scalar_lea.vmem %s9294, 817 [#allocation2]
      %v9397 = vld [vmem:[%s9396] ss:$2 sm:$0xff]
      %s9398 = scalar_lea.vmem %s9294, 881 [#allocation2]
      %v9399 = vld [vmem:[%s9398] ss:$2 sm:$0xff]
      %s9400 = scalar_lea.vmem %s9294, 897 [#allocation2]
      %v9401 = vld [vmem:[%s9400] ss:$2 sm:$0xff]
      %s9402 = scalar_lea.vmem %s9294, 961 [#allocation2]
      %v9403 = vld [vmem:[%s9402] ss:$2 sm:$0xff]
      %s9404 = scalar_lea.vmem %s9294, 977 [#allocation2]
      %v9405 = vld [vmem:[%s9404] ss:$2 sm:$0xff]
      %s9406 = scalar_lea.vmem %s9294, 1041 [#allocation2]
      %v9407 = vld [vmem:[%s9406] ss:$2 sm:$0xff]
      %s9408 = scalar_lea.vmem %s9294, 1057 [#allocation2]
      %v9409 = vld [vmem:[%s9408] ss:$2 sm:$0xff]
      %s9410 = scalar_lea.vmem %s9294, 1121 [#allocation2]
      %v9411 = vld [vmem:[%s9410] ss:$2 sm:$0xff]
      %s9412 = scalar_lea.vmem %s9294, 1137 [#allocation2]
      %v9413 = vld [vmem:[%s9412] ss:$2 sm:$0xff]
      %s9414 = scalar_lea.vmem %s9294, 2 [#allocation2]
      %v9415 = vld [vmem:[%s9414] ss:$2 sm:$0xff]
      %s9416 = scalar_lea.vmem %s9294, 18 [#allocation2]
      %v9417 = vld [vmem:[%s9416] ss:$2 sm:$0xff]
      %s9418 = scalar_lea.vmem %s9294, 82 [#allocation2]
      %v9419 = vld [vmem:[%s9418] ss:$2 sm:$0xff]
      %s9420 = scalar_lea.vmem %s9294, 98 [#allocation2]
      %v9421 = vld [vmem:[%s9420] ss:$2 sm:$0xff]
      %s9422 = scalar_lea.vmem %s9294, 162 [#allocation2]
      %v9423 = vld [vmem:[%s9422] ss:$2 sm:$0xff]
      %s9424 = scalar_lea.vmem %s9294, 178 [#allocation2]
      %v9425 = vld [vmem:[%s9424] ss:$2 sm:$0xff]
      %s9426 = scalar_lea.vmem %s9294, 242 [#allocation2]
      %v9427 = vld [vmem:[%s9426] ss:$2 sm:$0xff]
      %s9428 = scalar_lea.vmem %s9294, 258 [#allocation2]
      %v9429 = vld [vmem:[%s9428] ss:$2 sm:$0xff]
      %s9430 = scalar_lea.vmem %s9294, 322 [#allocation2]
      %v9431 = vld [vmem:[%s9430] ss:$2 sm:$0xff]
      %s9432 = scalar_lea.vmem %s9294, 338 [#allocation2]
      %v9433 = vld [vmem:[%s9432] ss:$2 sm:$0xff]
      %s9434 = scalar_lea.vmem %s9294, 402 [#allocation2]
      %v9435 = vld [vmem:[%s9434] ss:$2 sm:$0xff]
      %s9436 = scalar_lea.vmem %s9294, 418 [#allocation2]
      %v9437 = vld [vmem:[%s9436] ss:$2 sm:$0xff]
      %s9438 = scalar_lea.vmem %s9294, 482 [#allocation2]
      %v9439 = vld [vmem:[%s9438] ss:$2 sm:$0xff]
      %s9440 = scalar_lea.vmem %s9294, 498 [#allocation2]
      %v9441 = vld [vmem:[%s9440] ss:$2 sm:$0xff]
      %s9442 = scalar_lea.vmem %s9294, 562 [#allocation2]
      %v9443 = vld [vmem:[%s9442] ss:$2 sm:$0xff]
      %s9444 = scalar_lea.vmem %s9294, 578 [#allocation2]
      %v9445 = vld [vmem:[%s9444] ss:$2 sm:$0xff]
      %s9446 = scalar_lea.vmem %s9294, 642 [#allocation2]
      %v9447 = vld [vmem:[%s9446] ss:$2 sm:$0xff]
      %s9448 = scalar_lea.vmem %s9294, 658 [#allocation2]
      %v9449 = vld [vmem:[%s9448] ss:$2 sm:$0xff]
      %s9450 = scalar_lea.vmem %s9294, 722 [#allocation2]
      %v9451 = vld [vmem:[%s9450] ss:$2 sm:$0xff]
      %s9452 = scalar_lea.vmem %s9294, 738 [#allocation2]
      %v9453 = vld [vmem:[%s9452] ss:$2 sm:$0xff]
      %s9454 = scalar_lea.vmem %s9294, 802 [#allocation2]
      %v9455 = vld [vmem:[%s9454] ss:$2 sm:$0xff]
      %s9456 = scalar_lea.vmem %s9294, 818 [#allocation2]
      %v9457 = vld [vmem:[%s9456] ss:$2 sm:$0xff]
      %s9458 = scalar_lea.vmem %s9294, 882 [#allocation2]
      %v9459 = vld [vmem:[%s9458] ss:$2 sm:$0xff]
      %s9460 = scalar_lea.vmem %s9294, 898 [#allocation2]
      %v9461 = vld [vmem:[%s9460] ss:$2 sm:$0xff]
      %s9462 = scalar_lea.vmem %s9294, 962 [#allocation2]
      %v9463 = vld [vmem:[%s9462] ss:$2 sm:$0xff]
      %s9464 = scalar_lea.vmem %s9294, 978 [#allocation2]
      %v9465 = vld [vmem:[%s9464] ss:$2 sm:$0xff]
      %s9466 = scalar_lea.vmem %s9294, 1042 [#allocation2]
      %v9467 = vld [vmem:[%s9466] ss:$2 sm:$0xff]
      %s9468 = scalar_lea.vmem %s9294, 1058 [#allocation2]
      %v9469 = vld [vmem:[%s9468] ss:$2 sm:$0xff]
      %s9470 = scalar_lea.vmem %s9294, 1122 [#allocation2]
      %v9471 = vld [vmem:[%s9470] ss:$2 sm:$0xff]
      %s9472 = scalar_lea.vmem %s9294, 1138 [#allocation2]
      %v9473 = vld [vmem:[%s9472] ss:$2 sm:$0xff]
      %9504 = vrot.lane.b32.xlu0 %v8995, 32
      %v9505 = vpop.permute.xlu0 %9504
      %9506 = vrot.lane.b32.xlu0 %v8997, 32
      %v9507 = vpop.permute.xlu0 %9506
      %9508 = vrot.lane.b32.xlu0 %v8999, 32
      %v9509 = vpop.permute.xlu0 %9508
      %9510 = vrot.lane.b32.xlu0 %v9001, 32
      %v9511 = vpop.permute.xlu0 %9510
      %9512 = vrot.lane.b32.xlu0 %v9003, 32
      %v9513 = vpop.permute.xlu0 %9512
      %9514 = vrot.lane.b32.xlu0 %v9005, 32
      %v9515 = vpop.permute.xlu0 %9514
      %9516 = vrot.lane.b32.xlu0 %v9007, 32
      %v9517 = vpop.permute.xlu0 %9516
      %9518 = vrot.lane.b32.xlu0 %v9009, 32
      %v9519 = vpop.permute.xlu0 %9518
      %9520 = vrot.lane.b32.xlu0 %v9011, 32
      %v9521 = vpop.permute.xlu0 %9520
      %9522 = vrot.lane.b32.xlu0 %v9013, 32
      %v9523 = vpop.permute.xlu0 %9522
      %9524 = vrot.lane.b32.xlu0 %v9015, 32
      %v9525 = vpop.permute.xlu0 %9524
      %9526 = vrot.lane.b32.xlu0 %v9017, 32
      %v9527 = vpop.permute.xlu0 %9526
      %9528 = vrot.lane.b32.xlu0 %v9019, 32
      %v9529 = vpop.permute.xlu0 %9528
      %9530 = vrot.lane.b32.xlu0 %v9021, 32
      %v9531 = vpop.permute.xlu0 %9530
      %9532 = vrot.lane.b32.xlu0 %v9023, 32
      %v9533 = vpop.permute.xlu0 %9532
      %9534 = vrot.lane.b32.xlu0 %v9025, 32
      %v9535 = vpop.permute.xlu0 %9534
      %9536 = vrot.lane.b32.xlu0 %v9027, 32
      %v9537 = vpop.permute.xlu0 %9536
      %9538 = vrot.lane.b32.xlu0 %v9029, 32
      %v9539 = vpop.permute.xlu0 %9538
      %9540 = vrot.lane.b32.xlu0 %v9031, 32
      %v9541 = vpop.permute.xlu0 %9540
      %9542 = vrot.lane.b32.xlu0 %v9033, 32
      %v9543 = vpop.permute.xlu0 %9542
      %9544 = vrot.lane.b32.xlu0 %v9035, 32
      %v9545 = vpop.permute.xlu0 %9544
      %9546 = vrot.lane.b32.xlu0 %v9037, 32
      %v9547 = vpop.permute.xlu0 %9546
      %9548 = vrot.lane.b32.xlu0 %v9039, 32
      %v9549 = vpop.permute.xlu0 %9548
      %9550 = vrot.lane.b32.xlu0 %v9041, 32
      %v9551 = vpop.permute.xlu0 %9550
      %9552 = vrot.lane.b32.xlu0 %v9043, 32
      %v9553 = vpop.permute.xlu0 %9552
      %9554 = vrot.lane.b32.xlu0 %v9045, 32
      %v9555 = vpop.permute.xlu0 %9554
      %9556 = vrot.lane.b32.xlu0 %v9047, 32
      %v9557 = vpop.permute.xlu0 %9556
      %9558 = vrot.lane.b32.xlu0 %v9049, 32
      %v9559 = vpop.permute.xlu0 %9558
      %9560 = vrot.lane.b32.xlu0 %v9051, 32
      %v9561 = vpop.permute.xlu0 %9560
      %9562 = vrot.lane.b32.xlu0 %v9053, 32
      %v9563 = vpop.permute.xlu0 %9562
      %9624 = vrot.lane.b32.xlu0 %v9055, 64
      %v9625 = vpop.permute.xlu0 %9624
      %9626 = vrot.lane.b32.xlu0 %v9057, 64
      %v9627 = vpop.permute.xlu0 %9626
      %9628 = vrot.lane.b32.xlu0 %v9059, 64
      %v9629 = vpop.permute.xlu0 %9628
      %9630 = vrot.lane.b32.xlu0 %v9061, 64
      %v9631 = vpop.permute.xlu0 %9630
      %9632 = vrot.lane.b32.xlu0 %v9063, 64
      %v9633 = vpop.permute.xlu0 %9632
      %9634 = vrot.lane.b32.xlu0 %v9065, 64
      %v9635 = vpop.permute.xlu0 %9634
      %9636 = vrot.lane.b32.xlu0 %v9067, 64
      %v9637 = vpop.permute.xlu0 %9636
      %9638 = vrot.lane.b32.xlu0 %v9069, 64
      %v9639 = vpop.permute.xlu0 %9638
      %9640 = vrot.lane.b32.xlu0 %v9071, 64
      %v9641 = vpop.permute.xlu0 %9640
      %9642 = vrot.lane.b32.xlu0 %v9073, 64
      %v9643 = vpop.permute.xlu0 %9642
      %9644 = vrot.lane.b32.xlu0 %v9075, 64
      %v9645 = vpop.permute.xlu0 %9644
      %9646 = vrot.lane.b32.xlu0 %v9077, 64
      %v9647 = vpop.permute.xlu0 %9646
      %9648 = vrot.lane.b32.xlu0 %v9079, 64
      %v9649 = vpop.permute.xlu0 %9648
      %9650 = vrot.lane.b32.xlu0 %v9081, 64
      %v9651 = vpop.permute.xlu0 %9650
      %9652 = vrot.lane.b32.xlu0 %v9083, 64
      %v9653 = vpop.permute.xlu0 %9652
      %9654 = vrot.lane.b32.xlu0 %v9085, 64
      %v9655 = vpop.permute.xlu0 %9654
      %9656 = vrot.lane.b32.xlu0 %v9087, 64
      %v9657 = vpop.permute.xlu0 %9656
      %9658 = vrot.lane.b32.xlu0 %v9089, 64
      %v9659 = vpop.permute.xlu0 %9658
      %9660 = vrot.lane.b32.xlu0 %v9091, 64
      %v9661 = vpop.permute.xlu0 %9660
      %9662 = vrot.lane.b32.xlu0 %v9093, 64
      %v9663 = vpop.permute.xlu0 %9662
      %9664 = vrot.lane.b32.xlu0 %v9095, 64
      %v9665 = vpop.permute.xlu0 %9664
      %9666 = vrot.lane.b32.xlu0 %v9097, 64
      %v9667 = vpop.permute.xlu0 %9666
      %9668 = vrot.lane.b32.xlu0 %v9099, 64
      %v9669 = vpop.permute.xlu0 %9668
      %9670 = vrot.lane.b32.xlu0 %v9101, 64
      %v9671 = vpop.permute.xlu0 %9670
      %9672 = vrot.lane.b32.xlu0 %v9103, 64
      %v9673 = vpop.permute.xlu0 %9672
      %9674 = vrot.lane.b32.xlu0 %v9105, 64
      %v9675 = vpop.permute.xlu0 %9674
      %9676 = vrot.lane.b32.xlu0 %v9107, 64
      %v9677 = vpop.permute.xlu0 %9676
      %9678 = vrot.lane.b32.xlu0 %v9109, 64
      %v9679 = vpop.permute.xlu0 %9678
      %9680 = vrot.lane.b32.xlu0 %v9111, 64
      %v9681 = vpop.permute.xlu0 %9680
      %9682 = vrot.lane.b32.xlu0 %v9113, 64
      %v9683 = vpop.permute.xlu0 %9682
      %9744 = vrot.lane.b32.xlu0 %v9115, 96
      %v9745 = vpop.permute.xlu0 %9744
      %9746 = vrot.lane.b32.xlu0 %v9117, 96
      %v9747 = vpop.permute.xlu0 %9746
      %9748 = vrot.lane.b32.xlu0 %v9119, 96
      %v9749 = vpop.permute.xlu0 %9748
      %9750 = vrot.lane.b32.xlu0 %v9121, 96
      %v9751 = vpop.permute.xlu0 %9750
      %9752 = vrot.lane.b32.xlu0 %v9123, 96
      %v9753 = vpop.permute.xlu0 %9752
      %9754 = vrot.lane.b32.xlu0 %v9125, 96
      %v9755 = vpop.permute.xlu0 %9754
      %9756 = vrot.lane.b32.xlu0 %v9127, 96
      %v9757 = vpop.permute.xlu0 %9756
      %9758 = vrot.lane.b32.xlu0 %v9129, 96
      %v9759 = vpop.permute.xlu0 %9758
      %9760 = vrot.lane.b32.xlu0 %v9131, 96
      %v9761 = vpop.permute.xlu0 %9760
      %9762 = vrot.lane.b32.xlu0 %v9133, 96
      %v9763 = vpop.permute.xlu0 %9762
      %9764 = vrot.lane.b32.xlu0 %v9135, 96
      %v9765 = vpop.permute.xlu0 %9764
      %9766 = vrot.lane.b32.xlu0 %v9137, 96
      %v9767 = vpop.permute.xlu0 %9766
      %9768 = vrot.lane.b32.xlu0 %v9139, 96
      %v9769 = vpop.permute.xlu0 %9768
      %9770 = vrot.lane.b32.xlu0 %v9141, 96
      %v9771 = vpop.permute.xlu0 %9770
      %9772 = vrot.lane.b32.xlu0 %v9143, 96
      %v9773 = vpop.permute.xlu0 %9772
      %9774 = vrot.lane.b32.xlu0 %v9145, 96
      %v9775 = vpop.permute.xlu0 %9774
      %9776 = vrot.lane.b32.xlu0 %v9147, 96
      %v9777 = vpop.permute.xlu0 %9776
      %9778 = vrot.lane.b32.xlu0 %v9149, 96
      %v9779 = vpop.permute.xlu0 %9778
      %9780 = vrot.lane.b32.xlu0 %v9151, 96
      %v9781 = vpop.permute.xlu0 %9780
      %9782 = vrot.lane.b32.xlu0 %v9153, 96
      %v9783 = vpop.permute.xlu0 %9782
      %9784 = vrot.lane.b32.xlu0 %v9155, 96
      %v9785 = vpop.permute.xlu0 %9784
      %9786 = vrot.lane.b32.xlu0 %v9157, 96
      %v9787 = vpop.permute.xlu0 %9786
      %9788 = vrot.lane.b32.xlu0 %v9159, 96
      %v9789 = vpop.permute.xlu0 %9788
      %9790 = vrot.lane.b32.xlu0 %v9161, 96
      %v9791 = vpop.permute.xlu0 %9790
      %9792 = vrot.lane.b32.xlu0 %v9163, 96
      %v9793 = vpop.permute.xlu0 %9792
      %9794 = vrot.lane.b32.xlu0 %v9165, 96
      %v9795 = vpop.permute.xlu0 %9794
      %9796 = vrot.lane.b32.xlu0 %v9167, 96
      %v9797 = vpop.permute.xlu0 %9796
      %9798 = vrot.lane.b32.xlu0 %v9169, 96
      %v9799 = vpop.permute.xlu0 %9798
      %9800 = vrot.lane.b32.xlu0 %v9171, 96
      %v9801 = vpop.permute.xlu0 %9800
      %9802 = vrot.lane.b32.xlu0 %v9173, 96
      %v9803 = vpop.permute.xlu0 %9802
      %9864 = vrot.lane.b32.xlu0 %v9235, 32
      %v9865 = vpop.permute.xlu0 %9864
      %9866 = vrot.lane.b32.xlu0 %v9237, 32
      %v9867 = vpop.permute.xlu0 %9866
      %9868 = vrot.lane.b32.xlu0 %v9239, 32
      %v9869 = vpop.permute.xlu0 %9868
      %9870 = vrot.lane.b32.xlu0 %v9241, 32
      %v9871 = vpop.permute.xlu0 %9870
      %9872 = vrot.lane.b32.xlu0 %v9243, 32
      %v9873 = vpop.permute.xlu0 %9872
      %9874 = vrot.lane.b32.xlu0 %v9245, 32
      %v9875 = vpop.permute.xlu0 %9874
      %9876 = vrot.lane.b32.xlu0 %v9247, 32
      %v9877 = vpop.permute.xlu0 %9876
      %9878 = vrot.lane.b32.xlu0 %v9249, 32
      %v9879 = vpop.permute.xlu0 %9878
      %9880 = vrot.lane.b32.xlu0 %v9251, 32
      %v9881 = vpop.permute.xlu0 %9880
      %9882 = vrot.lane.b32.xlu0 %v9253, 32
      %v9883 = vpop.permute.xlu0 %9882
      %9884 = vrot.lane.b32.xlu0 %v9255, 32
      %v9885 = vpop.permute.xlu0 %9884
      %9886 = vrot.lane.b32.xlu0 %v9257, 32
      %v9887 = vpop.permute.xlu0 %9886
      %9888 = vrot.lane.b32.xlu0 %v9259, 32
      %v9889 = vpop.permute.xlu0 %9888
      %9890 = vrot.lane.b32.xlu0 %v9261, 32
      %v9891 = vpop.permute.xlu0 %9890
      %9892 = vrot.lane.b32.xlu0 %v9263, 32
      %v9893 = vpop.permute.xlu0 %9892
      %9894 = vrot.lane.b32.xlu0 %v9265, 32
      %v9895 = vpop.permute.xlu0 %9894
      %9896 = vrot.lane.b32.xlu0 %v9267, 32
      %v9897 = vpop.permute.xlu0 %9896
      %9898 = vrot.lane.b32.xlu0 %v9269, 32
      %v9899 = vpop.permute.xlu0 %9898
      %9900 = vrot.lane.b32.xlu0 %v9271, 32
      %v9901 = vpop.permute.xlu0 %9900
      %9902 = vrot.lane.b32.xlu0 %v9273, 32
      %v9903 = vpop.permute.xlu0 %9902
      %9904 = vrot.lane.b32.xlu0 %v9275, 32
      %v9905 = vpop.permute.xlu0 %9904
      %9906 = vrot.lane.b32.xlu0 %v9277, 32
      %v9907 = vpop.permute.xlu0 %9906
      %9908 = vrot.lane.b32.xlu0 %v9279, 32
      %v9909 = vpop.permute.xlu0 %9908
      %9910 = vrot.lane.b32.xlu0 %v9281, 32
      %v9911 = vpop.permute.xlu0 %9910
      %9912 = vrot.lane.b32.xlu0 %v9283, 32
      %v9913 = vpop.permute.xlu0 %9912
      %9914 = vrot.lane.b32.xlu0 %v9285, 32
      %v9915 = vpop.permute.xlu0 %9914
      %9916 = vrot.lane.b32.xlu0 %v9287, 32
      %v9917 = vpop.permute.xlu0 %9916
      %9918 = vrot.lane.b32.xlu0 %v9289, 32
      %v9919 = vpop.permute.xlu0 %9918
      %9920 = vrot.lane.b32.xlu0 %v9291, 32
      %v9921 = vpop.permute.xlu0 %9920
      %9922 = vrot.lane.b32.xlu0 %v9293, 32
      %v9923 = vpop.permute.xlu0 %9922
      %9984 = vrot.lane.b32.xlu0 %v9295, 64
      %v9985 = vpop.permute.xlu0 %9984
      %9986 = vrot.lane.b32.xlu0 %v9297, 64
      %v9987 = vpop.permute.xlu0 %9986
      %9988 = vrot.lane.b32.xlu0 %v9299, 64
      %v9989 = vpop.permute.xlu0 %9988
      %9990 = vrot.lane.b32.xlu0 %v9301, 64
      %v9991 = vpop.permute.xlu0 %9990
      %9992 = vrot.lane.b32.xlu0 %v9303, 64
      %v9993 = vpop.permute.xlu0 %9992
      %9994 = vrot.lane.b32.xlu0 %v9305, 64
      %v9995 = vpop.permute.xlu0 %9994
      %9996 = vrot.lane.b32.xlu0 %v9307, 64
      %v9997 = vpop.permute.xlu0 %9996
      %9998 = vrot.lane.b32.xlu0 %v9309, 64
      %v9999 = vpop.permute.xlu0 %9998
      %10000 = vrot.lane.b32.xlu0 %v9311, 64
      %v10001 = vpop.permute.xlu0 %10000
      %10002 = vrot.lane.b32.xlu0 %v9313, 64
      %v10003 = vpop.permute.xlu0 %10002
      %10004 = vrot.lane.b32.xlu0 %v9315, 64
      %v10005 = vpop.permute.xlu0 %10004
      %10006 = vrot.lane.b32.xlu0 %v9317, 64
      %v10007 = vpop.permute.xlu0 %10006
      %10008 = vrot.lane.b32.xlu0 %v9319, 64
      %v10009 = vpop.permute.xlu0 %10008
      %10010 = vrot.lane.b32.xlu0 %v9321, 64
      %v10011 = vpop.permute.xlu0 %10010
      %10012 = vrot.lane.b32.xlu0 %v9323, 64
      %v10013 = vpop.permute.xlu0 %10012
      %10014 = vrot.lane.b32.xlu0 %v9325, 64
      %v10015 = vpop.permute.xlu0 %10014
      %10016 = vrot.lane.b32.xlu0 %v9327, 64
      %v10017 = vpop.permute.xlu0 %10016
      %10018 = vrot.lane.b32.xlu0 %v9329, 64
      %v10019 = vpop.permute.xlu0 %10018
      %10020 = vrot.lane.b32.xlu0 %v9331, 64
      %v10021 = vpop.permute.xlu0 %10020
      %10022 = vrot.lane.b32.xlu0 %v9333, 64
      %v10023 = vpop.permute.xlu0 %10022
      %10024 = vrot.lane.b32.xlu0 %v9335, 64
      %v10025 = vpop.permute.xlu0 %10024
      %10026 = vrot.lane.b32.xlu0 %v9337, 64
      %v10027 = vpop.permute.xlu0 %10026
      %10028 = vrot.lane.b32.xlu0 %v9339, 64
      %v10029 = vpop.permute.xlu0 %10028
      %10030 = vrot.lane.b32.xlu0 %v9341, 64
      %v10031 = vpop.permute.xlu0 %10030
      %10032 = vrot.lane.b32.xlu0 %v9343, 64
      %v10033 = vpop.permute.xlu0 %10032
      %10034 = vrot.lane.b32.xlu0 %v9345, 64
      %v10035 = vpop.permute.xlu0 %10034
      %10036 = vrot.lane.b32.xlu0 %v9347, 64
      %v10037 = vpop.permute.xlu0 %10036
      %10038 = vrot.lane.b32.xlu0 %v9349, 64
      %v10039 = vpop.permute.xlu0 %10038
      %10040 = vrot.lane.b32.xlu0 %v9351, 64
      %v10041 = vpop.permute.xlu0 %10040
      %10042 = vrot.lane.b32.xlu0 %v9353, 64
      %v10043 = vpop.permute.xlu0 %10042
      %10104 = vrot.lane.b32.xlu0 %v9355, 96
      %v10105 = vpop.permute.xlu0 %10104
      %10106 = vrot.lane.b32.xlu0 %v9357, 96
      %v10107 = vpop.permute.xlu0 %10106
      %10108 = vrot.lane.b32.xlu0 %v9359, 96
      %v10109 = vpop.permute.xlu0 %10108
      %10110 = vrot.lane.b32.xlu0 %v9361, 96
      %v10111 = vpop.permute.xlu0 %10110
      %10112 = vrot.lane.b32.xlu0 %v9363, 96
      %v10113 = vpop.permute.xlu0 %10112
      %10114 = vrot.lane.b32.xlu0 %v9365, 96
      %v10115 = vpop.permute.xlu0 %10114
      %10116 = vrot.lane.b32.xlu0 %v9367, 96
      %v10117 = vpop.permute.xlu0 %10116
      %10118 = vrot.lane.b32.xlu0 %v9369, 96
      %v10119 = vpop.permute.xlu0 %10118
      %10120 = vrot.lane.b32.xlu0 %v9371, 96
      %v10121 = vpop.permute.xlu0 %10120
      %10122 = vrot.lane.b32.xlu0 %v9373, 96
      %v10123 = vpop.permute.xlu0 %10122
      %10124 = vrot.lane.b32.xlu0 %v9375, 96
      %v10125 = vpop.permute.xlu0 %10124
      %10126 = vrot.lane.b32.xlu0 %v9377, 96
      %v10127 = vpop.permute.xlu0 %10126
      %10128 = vrot.lane.b32.xlu0 %v9379, 96
      %v10129 = vpop.permute.xlu0 %10128
      %10130 = vrot.lane.b32.xlu0 %v9381, 96
      %v10131 = vpop.permute.xlu0 %10130
      %10132 = vrot.lane.b32.xlu0 %v9383, 96
      %v10133 = vpop.permute.xlu0 %10132
      %10134 = vrot.lane.b32.xlu0 %v9385, 96
      %v10135 = vpop.permute.xlu0 %10134
      %10136 = vrot.lane.b32.xlu0 %v9387, 96
      %v10137 = vpop.permute.xlu0 %10136
      %10138 = vrot.lane.b32.xlu0 %v9389, 96
      %v10139 = vpop.permute.xlu0 %10138
      %10140 = vrot.lane.b32.xlu0 %v9391, 96
      %v10141 = vpop.permute.xlu0 %10140
      %10142 = vrot.lane.b32.xlu0 %v9393, 96
      %v10143 = vpop.permute.xlu0 %10142
      %10144 = vrot.lane.b32.xlu0 %v9395, 96
      %v10145 = vpop.permute.xlu0 %10144
      %10146 = vrot.lane.b32.xlu0 %v9397, 96
      %v10147 = vpop.permute.xlu0 %10146
      %10148 = vrot.lane.b32.xlu0 %v9399, 96
      %v10149 = vpop.permute.xlu0 %10148
      %10150 = vrot.lane.b32.xlu0 %v9401, 96
      %v10151 = vpop.permute.xlu0 %10150
      %10152 = vrot.lane.b32.xlu0 %v9403, 96
      %v10153 = vpop.permute.xlu0 %10152
      %10154 = vrot.lane.b32.xlu0 %v9405, 96
      %v10155 = vpop.permute.xlu0 %10154
      %10156 = vrot.lane.b32.xlu0 %v9407, 96
      %v10157 = vpop.permute.xlu0 %10156
      %10158 = vrot.lane.b32.xlu0 %v9409, 96
      %v10159 = vpop.permute.xlu0 %10158
      %10160 = vrot.lane.b32.xlu0 %v9411, 96
      %v10161 = vpop.permute.xlu0 %10160
      %10162 = vrot.lane.b32.xlu0 %v9413, 96
      %v10163 = vpop.permute.xlu0 %10162
      %v10194 = vsel %vm6957, %v8935, %v9505
      %v10195 = vsel %vm6957, %v8937, %v9507
      %v10196 = vsel %vm6957, %v8939, %v9509
      %v10197 = vsel %vm6957, %v8941, %v9511
      %v10198 = vsel %vm6957, %v8943, %v9513
      %v10199 = vsel %vm6957, %v8945, %v9515
      %v10200 = vsel %vm6957, %v8947, %v9517
      %v10201 = vsel %vm6957, %v8949, %v9519
      %v10202 = vsel %vm6957, %v8951, %v9521
      %v10203 = vsel %vm6957, %v8953, %v9523
      %v10204 = vsel %vm6957, %v8955, %v9525
      %v10205 = vsel %vm6957, %v8957, %v9527
      %v10206 = vsel %vm6957, %v8959, %v9529
      %v10207 = vsel %vm6957, %v8961, %v9531
      %v10208 = vsel %vm6957, %v8963, %v9533
      %v10209 = vsel %vm6957, %v8965, %v9535
      %v10210 = vsel %vm6957, %v8967, %v9537
      %v10211 = vsel %vm6957, %v8969, %v9539
      %v10212 = vsel %vm6957, %v8971, %v9541
      %v10213 = vsel %vm6957, %v8973, %v9543
      %v10214 = vsel %vm6957, %v8975, %v9545
      %v10215 = vsel %vm6957, %v8977, %v9547
      %v10216 = vsel %vm6957, %v8979, %v9549
      %v10217 = vsel %vm6957, %v8981, %v9551
      %v10218 = vsel %vm6957, %v8983, %v9553
      %v10219 = vsel %vm6957, %v8985, %v9555
      %v10220 = vsel %vm6957, %v8987, %v9557
      %v10221 = vsel %vm6957, %v8989, %v9559
      %v10222 = vsel %vm6957, %v8991, %v9561
      %v10223 = vsel %vm6957, %v8993, %v9563
      %v10224 = vsel %vm7457, %v10194, %v9625
      %v10225 = vsel %vm7457, %v10195, %v9627
      %v10226 = vsel %vm7457, %v10196, %v9629
      %v10227 = vsel %vm7457, %v10197, %v9631
      %v10228 = vsel %vm7457, %v10198, %v9633
      %v10229 = vsel %vm7457, %v10199, %v9635
      %v10230 = vsel %vm7457, %v10200, %v9637
      %v10231 = vsel %vm7457, %v10201, %v9639
      %v10232 = vsel %vm7457, %v10202, %v9641
      %v10233 = vsel %vm7457, %v10203, %v9643
      %v10234 = vsel %vm7457, %v10204, %v9645
      %v10235 = vsel %vm7457, %v10205, %v9647
      %v10236 = vsel %vm7457, %v10206, %v9649
      %v10237 = vsel %vm7457, %v10207, %v9651
      %v10238 = vsel %vm7457, %v10208, %v9653
      %v10239 = vsel %vm7457, %v10209, %v9655
      %v10240 = vsel %vm7457, %v10210, %v9657
      %v10241 = vsel %vm7457, %v10211, %v9659
      %v10242 = vsel %vm7457, %v10212, %v9661
      %v10243 = vsel %vm7457, %v10213, %v9663
      %v10244 = vsel %vm7457, %v10214, %v9665
      %v10245 = vsel %vm7457, %v10215, %v9667
      %v10246 = vsel %vm7457, %v10216, %v9669
      %v10247 = vsel %vm7457, %v10217, %v9671
      %v10248 = vsel %vm7457, %v10218, %v9673
      %v10249 = vsel %vm7457, %v10219, %v9675
      %v10250 = vsel %vm7457, %v10220, %v9677
      %v10251 = vsel %vm7457, %v10221, %v9679
      %v10252 = vsel %vm7457, %v10222, %v9681
      %v10253 = vsel %vm7457, %v10223, %v9683
      %vm10254 = vcmask 785408
      %v10255 = vsel %vm10254, %v10224, %v9745
      %v10256 = vsel %vm10254, %v10225, %v9747
      %v10257 = vsel %vm10254, %v10226, %v9749
      %v10258 = vsel %vm10254, %v10227, %v9751
      %v10259 = vsel %vm10254, %v10228, %v9753
      %v10260 = vsel %vm10254, %v10229, %v9755
      %v10261 = vsel %vm10254, %v10230, %v9757
      %v10262 = vsel %vm10254, %v10231, %v9759
      %v10263 = vsel %vm10254, %v10232, %v9761
      %v10264 = vsel %vm10254, %v10233, %v9763
      %v10265 = vsel %vm10254, %v10234, %v9765
      %v10266 = vsel %vm10254, %v10235, %v9767
      %v10267 = vsel %vm10254, %v10236, %v9769
      %v10268 = vsel %vm10254, %v10237, %v9771
      %v10269 = vsel %vm10254, %v10238, %v9773
      %v10270 = vsel %vm10254, %v10239, %v9775
      %v10271 = vsel %vm10254, %v10240, %v9777
      %v10272 = vsel %vm10254, %v10241, %v9779
      %v10273 = vsel %vm10254, %v10242, %v9781
      %v10274 = vsel %vm10254, %v10243, %v9783
      %v10275 = vsel %vm10254, %v10244, %v9785
      %v10276 = vsel %vm10254, %v10245, %v9787
      %v10277 = vsel %vm10254, %v10246, %v9789
      %v10278 = vsel %vm10254, %v10247, %v9791
      %v10279 = vsel %vm10254, %v10248, %v9793
      %v10280 = vsel %vm10254, %v10249, %v9795
      %v10281 = vsel %vm10254, %v10250, %v9797
      %v10282 = vsel %vm10254, %v10251, %v9799
      %v10283 = vsel %vm10254, %v10252, %v9801
      %v10284 = vsel %vm10254, %v10253, %v9803
      %v10285 = vsel %vm6957, %v9175, %v9865
      %v10286 = vsel %vm6957, %v9177, %v9867
      %v10287 = vsel %vm6957, %v9179, %v9869
      %v10288 = vsel %vm6957, %v9181, %v9871
      %v10289 = vsel %vm6957, %v9183, %v9873
      %v10290 = vsel %vm6957, %v9185, %v9875
      %v10291 = vsel %vm6957, %v9187, %v9877
      %v10292 = vsel %vm6957, %v9189, %v9879
      %v10293 = vsel %vm6957, %v9191, %v9881
      %v10294 = vsel %vm6957, %v9193, %v9883
      %v10295 = vsel %vm6957, %v9195, %v9885
      %v10296 = vsel %vm6957, %v9197, %v9887
      %v10297 = vsel %vm6957, %v9199, %v9889
      %v10298 = vsel %vm6957, %v9201, %v9891
      %v10299 = vsel %vm6957, %v9203, %v9893
      %v10300 = vsel %vm6957, %v9205, %v9895
      %v10301 = vsel %vm6957, %v9207, %v9897
      %v10302 = vsel %vm6957, %v9209, %v9899
      %v10303 = vsel %vm6957, %v9211, %v9901
      %v10304 = vsel %vm6957, %v9213, %v9903
      %v10305 = vsel %vm6957, %v9215, %v9905
      %v10306 = vsel %vm6957, %v9217, %v9907
      %v10307 = vsel %vm6957, %v9219, %v9909
      %v10308 = vsel %vm6957, %v9221, %v9911
      %v10309 = vsel %vm6957, %v9223, %v9913
      %v10310 = vsel %vm6957, %v9225, %v9915
      %v10311 = vsel %vm6957, %v9227, %v9917
      %v10312 = vsel %vm6957, %v9229, %v9919
      %v10313 = vsel %vm6957, %v9231, %v9921
      %v10314 = vsel %vm6957, %v9233, %v9923
      %v10315 = vsel %vm7457, %v10285, %v9985
      %v10316 = vsel %vm7457, %v10286, %v9987
      %v10317 = vsel %vm7457, %v10287, %v9989
      %v10318 = vsel %vm7457, %v10288, %v9991
      %v10319 = vsel %vm7457, %v10289, %v9993
      %v10320 = vsel %vm7457, %v10290, %v9995
      %v10321 = vsel %vm7457, %v10291, %v9997
      %v10322 = vsel %vm7457, %v10292, %v9999
      %v10323 = vsel %vm7457, %v10293, %v10001
      %v10324 = vsel %vm7457, %v10294, %v10003
      %v10325 = vsel %vm7457, %v10295, %v10005
      %v10326 = vsel %vm7457, %v10296, %v10007
      %v10327 = vsel %vm7457, %v10297, %v10009
      %v10328 = vsel %vm7457, %v10298, %v10011
      %v10329 = vsel %vm7457, %v10299, %v10013
      %v10330 = vsel %vm7457, %v10300, %v10015
      %v10331 = vsel %vm7457, %v10301, %v10017
      %v10332 = vsel %vm7457, %v10302, %v10019
      %v10333 = vsel %vm7457, %v10303, %v10021
      %v10334 = vsel %vm7457, %v10304, %v10023
      %v10335 = vsel %vm7457, %v10305, %v10025
      %v10336 = vsel %vm7457, %v10306, %v10027
      %v10337 = vsel %vm7457, %v10307, %v10029
      %v10338 = vsel %vm7457, %v10308, %v10031
      %v10339 = vsel %vm7457, %v10309, %v10033
      %v10340 = vsel %vm7457, %v10310, %v10035
      %v10341 = vsel %vm7457, %v10311, %v10037
      %v10342 = vsel %vm7457, %v10312, %v10039
      %v10343 = vsel %vm7457, %v10313, %v10041
      %v10344 = vsel %vm7457, %v10314, %v10043
      %v10345 = vsel %vm10254, %v10315, %v10105
      %v10346 = vsel %vm10254, %v10316, %v10107
      %v10347 = vsel %vm10254, %v10317, %v10109
      %v10348 = vsel %vm10254, %v10318, %v10111
      %v10349 = vsel %vm10254, %v10319, %v10113
      %v10350 = vsel %vm10254, %v10320, %v10115
      %v10351 = vsel %vm10254, %v10321, %v10117
      %v10352 = vsel %vm10254, %v10322, %v10119
      %v10353 = vsel %vm10254, %v10323, %v10121
      %v10354 = vsel %vm10254, %v10324, %v10123
      %v10355 = vsel %vm10254, %v10325, %v10125
      %v10356 = vsel %vm10254, %v10326, %v10127
      %v10357 = vsel %vm10254, %v10327, %v10129
      %v10358 = vsel %vm10254, %v10328, %v10131
      %v10359 = vsel %vm10254, %v10329, %v10133
      %v10360 = vsel %vm10254, %v10330, %v10135
      %v10361 = vsel %vm10254, %v10331, %v10137
      %v10362 = vsel %vm10254, %v10332, %v10139
      %v10363 = vsel %vm10254, %v10333, %v10141
      %v10364 = vsel %vm10254, %v10334, %v10143
      %v10365 = vsel %vm10254, %v10335, %v10145
      %v10366 = vsel %vm10254, %v10336, %v10147
      %v10367 = vsel %vm10254, %v10337, %v10149
      %v10368 = vsel %vm10254, %v10338, %v10151
      %v10369 = vsel %vm10254, %v10339, %v10153
      %v10370 = vsel %vm10254, %v10340, %v10155
      %v10371 = vsel %vm10254, %v10341, %v10157
      %v10372 = vsel %vm10254, %v10342, %v10159
      %v10373 = vsel %vm10254, %v10343, %v10161
      %v10374 = vsel %vm10254, %v10344, %v10163
      %v10375 = vld [vmem:[%s3] sm:$0xff]
      %v10376 = vld [vmem:[%s3 + $0x8] sm:$0xff]
      %v10377 = vld [vmem:[%s3 + $0x10] sm:$0xff]
      %v10378 = vld [vmem:[%s3 + $0x18] sm:$0xff]
      %v10379 = vld [vmem:[%s3 + $0x20] sm:$0xff]
      %v10380 = vld [vmem:[%s3 + $0x28] sm:$0xff]
      %v10381 = vld [vmem:[%s3 + $0x30] sm:$0xff]
      %v10382 = vld [vmem:[%s3 + $0x38] sm:$0xff]
      %v10383 = vld [vmem:[%s3 + $0x40] sm:$0xff]
      %v10384 = vld [vmem:[%s3 + $0x48] sm:$0xff]
      %v10385 = vld [vmem:[%s3 + $0x50] sm:$0xff]
      %v10386 = vld [vmem:[%s3 + $0x58] sm:$0xff]
      %v10387 = vld [vmem:[%s3 + $0x60] sm:$0xff]
      %v10388 = vld [vmem:[%s3 + $0x68] sm:$0xff]
      %v10389 = vld [vmem:[%s3 + $0x70] sm:$0xff]
      %v10390 = vld [vmem:[%s3 + $0x78] sm:$0xff]
      %v10391 = vld [vmem:[%s3 + $0x80] sm:$0xff]
      %v10392 = vld [vmem:[%s3 + $0x88] sm:$0xff]
      %v10393 = vld [vmem:[%s3 + $0x90] sm:$0xff]
      %v10394 = vld [vmem:[%s3 + $0x98] sm:$0xff]
      %v10395 = vld [vmem:[%s3 + $0xa0] sm:$0xff]
      %v10396 = vld [vmem:[%s3 + $0xa8] sm:$0xff]
      %v10397 = vld [vmem:[%s3 + $0xb0] sm:$0xff]
      %v10398 = vld [vmem:[%s3 + $0xb8] sm:$0xff]
      %v10399 = vld [vmem:[%s3 + $0xc0] sm:$0xff]
      %v10400 = vld [vmem:[%s3 + $0xc8] sm:$0xff]
      %v10401 = vld [vmem:[%s3 + $0xd0] sm:$0xff]
      %v10402 = vld [vmem:[%s3 + $0xd8] sm:$0xff]
      %v10403 = vld [vmem:[%s3 + $0xe0] sm:$0xff]
      %v10404 = vld [vmem:[%s3 + $0xe8] sm:$0xff]
      %v10405 = vld [vmem:[%s3 + $0xf0] sm:$0xff]
      %v10406 = vld [vmem:[%s3 + $0xf8] sm:$0xff]
      %v10407 = vld [vmem:[%s3 + $0x100] sm:$0xff]
      %v10408 = vld [vmem:[%s3 + $0x108] sm:$0xff]
      %v10409 = vld [vmem:[%s3 + $0x110] sm:$0xff]
      %v10410 = vld [vmem:[%s3 + $0x118] sm:$0xff]
      %v10411 = vld [vmem:[%s4] sm:$0x1]
      %v10413 = vlaneseq
      %v10414 = vshrl.u32 %v10413, 7
      %v10415 = vsub.s32 0, %v10414
      %v10416 = vrot.slane %v10411, %v10415
      %v10419 = vsel %vm6957, %v9415, 0
      %v10422 = vsel %vm6957, %v9417, 0
      %v10425 = vsel %vm6957, %v9419, 0
      %v10428 = vsel %vm6957, %v9421, 0
      %v10431 = vsel %vm6957, %v9423, 0
      %v10434 = vsel %vm6957, %v9425, 0
      %v10437 = vsel %vm6957, %v9427, 0
      %v10440 = vsel %vm6957, %v9429, 0
      %v10443 = vsel %vm6957, %v9431, 0
      %v10446 = vsel %vm6957, %v9433, 0
      %v10449 = vsel %vm6957, %v9435, 0
      %v10452 = vsel %vm6957, %v9437, 0
      %v10455 = vsel %vm6957, %v9439, 0
      %v10458 = vsel %vm6957, %v9441, 0
      %v10461 = vsel %vm6957, %v9443, 0
      %v10464 = vsel %vm6957, %v9445, 0
      %v10467 = vsel %vm6957, %v9447, 0
      %v10470 = vsel %vm6957, %v9449, 0
      %v10473 = vsel %vm6957, %v9451, 0
      %v10476 = vsel %vm6957, %v9453, 0
      %v10479 = vsel %vm6957, %v9455, 0
      %v10482 = vsel %vm6957, %v9457, 0
      %v10485 = vsel %vm6957, %v9459, 0
      %v10488 = vsel %vm6957, %v9461, 0
      %v10491 = vsel %vm6957, %v9463, 0
      %v10494 = vsel %vm6957, %v9465, 0
      %v10497 = vsel %vm6957, %v9467, 0
      %v10500 = vsel %vm6957, %v9469, 0
      %v10503 = vsel %vm6957, %v9471, 0
      %v10506 = vsel %vm6957, %v9473, 0
      %10508 = vmatprep.subr.mxu0 0.0
      %10509 = vmatpush1.msra.mxu0 %v10375
      %10510 = vmatprep.subr.mxu0 0.0
      %10511 = vmatpush1.msra.mxu0 %v10376
      %10512 = vmatprep.subr.mxu0 0.0
      %10513 = vmatpush1.msra.mxu0 %v10377
      %10514 = vmatprep.subr.mxu0 0.0
      %10515 = vmatpush1.msra.mxu0 %v10378
      %10516 = vmatprep.subr.mxu0 0.0
      %10517 = vmatpush1.msra.mxu0 %v10379
      %10518 = vmatprep.subr.mxu0 0.0
      %10519 = vmatpush1.msra.mxu0 %v10380
      %10520 = vmatprep.subr.mxu0 0.0
      %10521 = vmatpush1.msra.mxu0 %v10381
      %10522 = vmatprep.subr.mxu0 0.0
      %10523 = vmatpush1.msra.mxu0 %v10382
      %10524 = vmatprep.subr.mxu0 0.0
      %10525 = vmatpush1.msra.mxu0 %v10383
      %10526 = vmatprep.subr.mxu0 0.0
      %10527 = vmatpush1.msra.mxu0 %v10384
      %10528 = vmatprep.subr.mxu0 0.0
      %10529 = vmatpush1.msra.mxu0 %v10385
      %10530 = vmatprep.subr.mxu0 0.0
      %10531 = vmatpush1.msra.mxu0 %v10386
      %10532 = vmatprep.subr.mxu0 0.0
      %10533 = vmatpush1.msra.mxu0 %v10387
      %10534 = vmatprep.subr.mxu0 0.0
      %10535 = vmatpush1.msra.mxu0 %v10388
      %10536 = vmatprep.subr.mxu0 0.0
      %10537 = vmatpush1.msra.mxu0 %v10389
      %10538 = vmatprep.subr.mxu0 0.0
      %10539 = vmatpush1.msra.mxu0 %v10390
      %10540 = vmatprep.subr.mxu0 0.0
      %10541 = vmatpush1.msra.mxu0 %v10391
      %10542 = vmatprep.subr.mxu0 0.0
      %10543 = vmatpush1.msra.mxu0 %v10392
      %10544 = vmatprep.subr.mxu0 0.0
      %10545 = vmatpush1.msra.mxu0 %v10393
      %10546 = vmatprep.subr.mxu0 0.0
      %10547 = vmatpush1.msra.mxu0 %v10394
      %10548 = vmatprep.subr.mxu0 0.0
      %10549 = vmatpush1.msra.mxu0 %v10395
      %10550 = vmatprep.subr.mxu0 0.0
      %10551 = vmatpush1.msra.mxu0 %v10396
      %10552 = vmatprep.subr.mxu0 0.0
      %10553 = vmatpush1.msra.mxu0 %v10397
      %10554 = vmatprep.subr.mxu0 0.0
      %10555 = vmatpush1.msra.mxu0 %v10398
      %10556 = vmatprep.subr.mxu0 0.0
      %10557 = vmatpush1.msra.mxu0 %v10399
      %10558 = vmatprep.subr.mxu0 0.0
      %10559 = vmatpush1.msra.mxu0 %v10400
      %10560 = vmatprep.subr.mxu0 0.0
      %10561 = vmatpush1.msra.mxu0 %v10401
      %10562 = vmatprep.subr.mxu0 0.0
      %10563 = vmatpush1.msra.mxu0 %v10402
      %10564 = vmatprep.subr.mxu0 0.0
      %10565 = vmatpush1.msra.mxu0 %v10403
      %10566 = vmatprep.subr.mxu0 0.0
      %10567 = vmatpush1.msra.mxu0 %v10404
      %10568 = vmatprep.subr.mxu0 0.0
      %10569 = vmatpush1.msra.mxu0 %v10405
      %10570 = vmatprep.subr.mxu0 0.0
      %10571 = vmatpush1.msra.mxu0 %v10406
      %10572 = vmatprep.mubr.f32.mxu0 %v10345
      %10573 = vmatmul.mubr.f32.gmra.mrb[0].mxu0 %v10255
      %v10574 = vpop.f32.mrb[0].mxu0
      %v10575 = vadd.f32 %v10416, %v10574
      %v10576 = vpop.f32.mrb[0].mxu0
      %10577 = vmatprep.mubr.f32.mxu0 %v10346
      %10578 = vmatmul.mubr.f32.gmra.mrb[0].mxu0 %v10256
      %v10579 = vpop.f32.mrb[0].mxu0
      %v10580 = vadd.f32 %v10416, %v10579
      %v10581 = vpop.f32.mrb[0].mxu0
      %10582 = vmatprep.mubr.f32.mxu0 %v10347
      %10583 = vmatmul.mubr.f32.gmra.mrb[0].mxu0 %v10257
      %v10584 = vpop.f32.mrb[0].mxu0
      %v10585 = vadd.f32 %v10416, %v10584
      %v10586 = vpop.f32.mrb[0].mxu0
      %10587 = vmatprep.mubr.f32.mxu0 %v10348
      %10588 = vmatmul.mubr.f32.gmra.mrb[0].mxu0 %v10258
      %v10589 = vpop.f32.mrb[0].mxu0
      %v10590 = vadd.f32 %v10416, %v10589
      %v10591 = vpop.f32.mrb[0].mxu0
      %10592 = vmatprep.mubr.f32.mxu0 %v10349
      %10593 = vmatmul.mubr.f32.gmra.mrb[0].mxu0 %v10259
      %v10594 = vpop.f32.mrb[0].mxu0
      %v10595 = vadd.f32 %v10416, %v10594
      %v10596 = vpop.f32.mrb[0].mxu0
      %10597 = vmatprep.mubr.f32.mxu0 %v10350
      %10598 = vmatmul.mubr.f32.gmra.mrb[0].mxu0 %v10260
      %v10599 = vpop.f32.mrb[0].mxu0
      %v10600 = vadd.f32 %v10416, %v10599
      %v10601 = vpop.f32.mrb[0].mxu0
      %10602 = vmatprep.mubr.f32.mxu0 %v10351
      %10603 = vmatmul.mubr.f32.gmra.mrb[0].mxu0 %v10261
      %v10604 = vpop.f32.mrb[0].mxu0
      %v10605 = vadd.f32 %v10416, %v10604
      %v10606 = vpop.f32.mrb[0].mxu0
      %10607 = vmatprep.mubr.f32.mxu0 %v10352
      %10608 = vmatmul.mubr.f32.gmra.mrb[0].mxu0 %v10262
      %v10609 = vpop.f32.mrb[0].mxu0
      %v10610 = vadd.f32 %v10416, %v10609
      %v10611 = vpop.f32.mrb[0].mxu0
      %10612 = vmatprep.mubr.f32.mxu0 %v10353
      %10613 = vmatmul.mubr.f32.gmra.mrb[0].mxu0 %v10263
      %v10614 = vpop.f32.mrb[0].mxu0
      %v10615 = vadd.f32 %v10416, %v10614
      %v10616 = vpop.f32.mrb[0].mxu0
      %10617 = vmatprep.mubr.f32.mxu0 %v10354
      %10618 = vmatmul.mubr.f32.gmra.mrb[0].mxu0 %v10264
      %v10619 = vpop.f32.mrb[0].mxu0
      %v10620 = vadd.f32 %v10416, %v10619
      %v10621 = vpop.f32.mrb[0].mxu0
      %10622 = vmatprep.mubr.f32.mxu0 %v10355
      %10623 = vmatmul.mubr.f32.gmra.mrb[0].mxu0 %v10265
      %v10624 = vpop.f32.mrb[0].mxu0
      %v10625 = vadd.f32 %v10416, %v10624
      %v10626 = vpop.f32.mrb[0].mxu0
      %10627 = vmatprep.mubr.f32.mxu0 %v10356
      %10628 = vmatmul.mubr.f32.gmra.mrb[0].mxu0 %v10266
      %v10629 = vpop.f32.mrb[0].mxu0
      %v10630 = vadd.f32 %v10416, %v10629
      %v10631 = vpop.f32.mrb[0].mxu0
      %10632 = vmatprep.mubr.f32.mxu0 %v10357
      %10633 = vmatmul.mubr.f32.gmra.mrb[0].mxu0 %v10267
      %v10634 = vpop.f32.mrb[0].mxu0
      %v10635 = vadd.f32 %v10416, %v10634
      %v10636 = vpop.f32.mrb[0].mxu0
      %10637 = vmatprep.mubr.f32.mxu0 %v10358
      %10638 = vmatmul.mubr.f32.gmra.mrb[0].mxu0 %v10268
      %v10639 = vpop.f32.mrb[0].mxu0
      %v10640 = vadd.f32 %v10416, %v10639
      %v10641 = vpop.f32.mrb[0].mxu0
      %10642 = vmatprep.mubr.f32.mxu0 %v10359
      %10643 = vmatmul.mubr.f32.gmra.mrb[0].mxu0 %v10269
      %v10644 = vpop.f32.mrb[0].mxu0
      %v10645 = vadd.f32 %v10416, %v10644
      %v10646 = vpop.f32.mrb[0].mxu0
      %10647 = vmatprep.mubr.f32.mxu0 %v10360
      %10648 = vmatmul.mubr.f32.gmra.mrb[0].mxu0 %v10270
      %v10649 = vpop.f32.mrb[0].mxu0
      %v10650 = vadd.f32 %v10416, %v10649
      %v10651 = vpop.f32.mrb[0].mxu0
      %10652 = vmatprep.mubr.f32.mxu0 %v10361
      %10653 = vmatmul.mubr.f32.gmra.mrb[0].mxu0 %v10271
      %v10654 = vpop.f32.mrb[0].mxu0
      %v10655 = vadd.f32 %v10416, %v10654
      %v10656 = vpop.f32.mrb[0].mxu0
      %10657 = vmatprep.mubr.f32.mxu0 %v10362
      %10658 = vmatmul.mubr.f32.gmra.mrb[0].mxu0 %v10272
      %v10659 = vpop.f32.mrb[0].mxu0
      %v10660 = vadd.f32 %v10416, %v10659
      %v10661 = vpop.f32.mrb[0].mxu0
      %10662 = vmatprep.mubr.f32.mxu0 %v10363
      %10663 = vmatmul.mubr.f32.gmra.mrb[0].mxu0 %v10273
      %v10664 = vpop.f32.mrb[0].mxu0
      %v10665 = vadd.f32 %v10416, %v10664
      %v10666 = vpop.f32.mrb[0].mxu0
      %10667 = vmatprep.mubr.f32.mxu0 %v10364
      %10668 = vmatmul.mubr.f32.gmra.mrb[0].mxu0 %v10274
      %v10669 = vpop.f32.mrb[0].mxu0
      %v10670 = vadd.f32 %v10416, %v10669
      %v10671 = vpop.f32.mrb[0].mxu0
      %10672 = vmatprep.mubr.f32.mxu0 %v10365
      %10673 = vmatmul.mubr.f32.gmra.mrb[0].mxu0 %v10275
      %v10674 = vpop.f32.mrb[0].mxu0
      %v10675 = vadd.f32 %v10416, %v10674
      %v10676 = vpop.f32.mrb[0].mxu0
      %10677 = vmatprep.mubr.f32.mxu0 %v10366
      %10678 = vmatmul.mubr.f32.gmra.mrb[0].mxu0 %v10276
      %v10679 = vpop.f32.mrb[0].mxu0
      %v10680 = vadd.f32 %v10416, %v10679
      %v10681 = vpop.f32.mrb[0].mxu0
      %10682 = vmatprep.mubr.f32.mxu0 %v10367
      %10683 = vmatmul.mubr.f32.gmra.mrb[0].mxu0 %v10277
      %v10684 = vpop.f32.mrb[0].mxu0
      %v10685 = vadd.f32 %v10416, %v10684
      %v10686 = vpop.f32.mrb[0].mxu0
      %10687 = vmatprep.mubr.f32.mxu0 %v10368
      %10688 = vmatmul.mubr.f32.gmra.mrb[0].mxu0 %v10278
      %v10689 = vpop.f32.mrb[0].mxu0
      %v10690 = vadd.f32 %v10416, %v10689
      %v10691 = vpop.f32.mrb[0].mxu0
      %10692 = vmatprep.mubr.f32.mxu0 %v10369
      %10693 = vmatmul.mubr.f32.gmra.mrb[0].mxu0 %v10279
      %v10694 = vpop.f32.mrb[0].mxu0
      %v10695 = vadd.f32 %v10416, %v10694
      %v10696 = vpop.f32.mrb[0].mxu0
      %10697 = vmatprep.mubr.f32.mxu0 %v10370
      %10698 = vmatmul.mubr.f32.gmra.mrb[0].mxu0 %v10280
      %v10699 = vpop.f32.mrb[0].mxu0
      %v10700 = vadd.f32 %v10416, %v10699
      %v10701 = vpop.f32.mrb[0].mxu0
      %10702 = vmatprep.mubr.f32.mxu0 %v10371
      %10703 = vmatmul.mubr.f32.gmra.mrb[0].mxu0 %v10281
      %v10704 = vpop.f32.mrb[0].mxu0
      %v10705 = vadd.f32 %v10416, %v10704
      %v10706 = vpop.f32.mrb[0].mxu0
      %10707 = vmatprep.mubr.f32.mxu0 %v10372
      %10708 = vmatmul.mubr.f32.gmra.mrb[0].mxu0 %v10282
      %v10709 = vpop.f32.mrb[0].mxu0
      %v10710 = vadd.f32 %v10416, %v10709
      %v10711 = vpop.f32.mrb[0].mxu0
      %10712 = vmatprep.mubr.f32.mxu0 %v10373
      %10713 = vmatmul.mubr.f32.gmra.mrb[0].mxu0 %v10283
      %v10714 = vpop.f32.mrb[0].mxu0
      %v10715 = vadd.f32 %v10416, %v10714
      %v10716 = vpop.f32.mrb[0].mxu0
      %10717 = vmatprep.mubr.f32.mxu0 %v10374
      %10718 = vmatmul.mubr.f32.gmra.mrb[0].mxu0 %v10284
      %v10719 = vpop.f32.mrb[0].mxu0
      %v10720 = vadd.f32 %v10416, %v10719
      %v10721 = vpop.f32.mrb[0].mxu0
      %10722 = vdwg.mxu0
      %10723 = vmatprep.subr.mxu0 0.0
      %10724 = vmatpush1.msra.mxu0 %v10407
      %10725 = vmatprep.subr.mxu0 0.0
      %10726 = vmatpush1.msra.mxu0 %v10408
      %10727 = vmatprep.subr.mxu0 0.0
      %10728 = vmatpush1.msra.mxu0 %v10409
      %10729 = vmatprep.subr.mxu0 0.0
      %10730 = vmatpush1.msra.mxu0 %v10410
      %10731 = vmatprep.subr.mxu0 0.0
      %10732 = vmatpush1.msra.mxu0 0.0
      %10733 = vmatprep.subr.mxu0 0.0
      %10734 = vmatpush1.msra.mxu0 0.0
      %10735 = vmatprep.subr.mxu0 0.0
      %10736 = vmatpush1.msra.mxu0 0.0
      %10737 = vmatprep.subr.mxu0 0.0
      %10738 = vmatpush1.msra.mxu0 0.0
      %10739 = vmatprep.subr.mxu0 0.0
      %10740 = vmatpush1.msra.mxu0 0.0
      %10741 = vmatprep.subr.mxu0 0.0
      %10742 = vmatpush1.msra.mxu0 0.0
      %10743 = vmatprep.subr.mxu0 0.0
      %10744 = vmatpush1.msra.mxu0 0.0
      %10745 = vmatprep.subr.mxu0 0.0
      %10746 = vmatpush1.msra.mxu0 0.0
      %10747 = vmatprep.subr.mxu0 0.0
      %10748 = vmatpush1.msra.mxu0 0.0
      %10749 = vmatprep.subr.mxu0 0.0
      %10750 = vmatpush1.msra.mxu0 0.0
      %10751 = vmatprep.subr.mxu0 0.0
      %10752 = vmatpush1.msra.mxu0 0.0
      %10753 = vmatprep.subr.mxu0 0.0
      %10754 = vmatpush1.msra.mxu0 0.0
      %10755 = vmatprep.subr.mxu0 0.0
      %10756 = vmatpush1.msra.mxu0 0.0
      %10757 = vmatprep.subr.mxu0 0.0
      %10758 = vmatpush1.msra.mxu0 0.0
      %10759 = vmatprep.subr.mxu0 0.0
      %10760 = vmatpush1.msra.mxu0 0.0
      %10761 = vmatprep.subr.mxu0 0.0
      %10762 = vmatpush1.msra.mxu0 0.0
      %10763 = vmatprep.subr.mxu0 0.0
      %10764 = vmatpush1.msra.mxu0 0.0
      %10765 = vmatprep.subr.mxu0 0.0
      %10766 = vmatpush1.msra.mxu0 0.0
      %10767 = vmatprep.subr.mxu0 0.0
      %10768 = vmatpush1.msra.mxu0 0.0
      %10769 = vmatprep.subr.mxu0 0.0
      %10770 = vmatpush1.msra.mxu0 0.0
      %10771 = vmatprep.subr.mxu0 0.0
      %10772 = vmatpush1.msra.mxu0 0.0
      %10773 = vmatprep.subr.mxu0 0.0
      %10774 = vmatpush1.msra.mxu0 0.0
      %10775 = vmatprep.subr.mxu0 0.0
      %10776 = vmatpush1.msra.mxu0 0.0
      %10777 = vmatprep.subr.mxu0 0.0
      %10778 = vmatpush1.msra.mxu0 0.0
      %10779 = vmatprep.subr.mxu0 0.0
      %10780 = vmatpush1.msra.mxu0 0.0
      %10781 = vmatprep.subr.mxu0 0.0
      %10782 = vmatpush1.msra.mxu0 0.0
      %10783 = vmatprep.subr.mxu0 0.0
      %10784 = vmatpush1.msra.mxu0 0.0
      %10785 = vmatprep.subr.mxu0 0.0
      %10786 = vmatpush1.msra.mxu0 0.0
      %10787 = vmatprep.mubr.f32.mxu0 0.0
      %10788 = vmatmul.mubr.f32.gmra.mrb[0].mxu0 %v10419
      %v10789 = vpop.f32.mrb[0].mxu0
      %v10790 = vadd.f32 %v10575, %v10789
      %v10791 = vpop.f32.mrb[0].mxu0
      %10792 = vmatprep.mubr.f32.mxu0 0.0
      %10793 = vmatmul.mubr.f32.gmra.mrb[0].mxu0 %v10422
      %v10794 = vpop.f32.mrb[0].mxu0
      %v10795 = vadd.f32 %v10580, %v10794
      %v10796 = vpop.f32.mrb[0].mxu0
      %10797 = vmatprep.mubr.f32.mxu0 0.0
      %10798 = vmatmul.mubr.f32.gmra.mrb[0].mxu0 %v10425
      %v10799 = vpop.f32.mrb[0].mxu0
      %v10800 = vadd.f32 %v10585, %v10799
      %v10801 = vpop.f32.mrb[0].mxu0
      %10802 = vmatprep.mubr.f32.mxu0 0.0
      %10803 = vmatmul.mubr.f32.gmra.mrb[0].mxu0 %v10428
      %v10804 = vpop.f32.mrb[0].mxu0
      %v10805 = vadd.f32 %v10590, %v10804
      %v10806 = vpop.f32.mrb[0].mxu0
      %10807 = vmatprep.mubr.f32.mxu0 0.0
      %10808 = vmatmul.mubr.f32.gmra.mrb[0].mxu0 %v10431
      %v10809 = vpop.f32.mrb[0].mxu0
      %v10810 = vadd.f32 %v10595, %v10809
      %v10811 = vpop.f32.mrb[0].mxu0
      %10812 = vmatprep.mubr.f32.mxu0 0.0
      %10813 = vmatmul.mubr.f32.gmra.mrb[0].mxu0 %v10434
      %v10814 = vpop.f32.mrb[0].mxu0
      %v10815 = vadd.f32 %v10600, %v10814
      %v10816 = vpop.f32.mrb[0].mxu0
      %10817 = vmatprep.mubr.f32.mxu0 0.0
      %10818 = vmatmul.mubr.f32.gmra.mrb[0].mxu0 %v10437
      %v10819 = vpop.f32.mrb[0].mxu0
      %v10820 = vadd.f32 %v10605, %v10819
      %v10821 = vpop.f32.mrb[0].mxu0
      %10822 = vmatprep.mubr.f32.mxu0 0.0
      %10823 = vmatmul.mubr.f32.gmra.mrb[0].mxu0 %v10440
      %v10824 = vpop.f32.mrb[0].mxu0
      %v10825 = vadd.f32 %v10610, %v10824
      %v10826 = vpop.f32.mrb[0].mxu0
      %10827 = vmatprep.mubr.f32.mxu0 0.0
      %10828 = vmatmul.mubr.f32.gmra.mrb[0].mxu0 %v10443
      %v10829 = vpop.f32.mrb[0].mxu0
      %v10830 = vadd.f32 %v10615, %v10829
      %v10831 = vpop.f32.mrb[0].mxu0
      %10832 = vmatprep.mubr.f32.mxu0 0.0
      %10833 = vmatmul.mubr.f32.gmra.mrb[0].mxu0 %v10446
      %v10834 = vpop.f32.mrb[0].mxu0
      %v10835 = vadd.f32 %v10620, %v10834
      %v10836 = vpop.f32.mrb[0].mxu0
      %10837 = vmatprep.mubr.f32.mxu0 0.0
      %10838 = vmatmul.mubr.f32.gmra.mrb[0].mxu0 %v10449
      %v10839 = vpop.f32.mrb[0].mxu0
      %v10840 = vadd.f32 %v10625, %v10839
      %v10841 = vpop.f32.mrb[0].mxu0
      %10842 = vmatprep.mubr.f32.mxu0 0.0
      %10843 = vmatmul.mubr.f32.gmra.mrb[0].mxu0 %v10452
      %v10844 = vpop.f32.mrb[0].mxu0
      %v10845 = vadd.f32 %v10630, %v10844
      %v10846 = vpop.f32.mrb[0].mxu0
      %10847 = vmatprep.mubr.f32.mxu0 0.0
      %10848 = vmatmul.mubr.f32.gmra.mrb[0].mxu0 %v10455
      %v10849 = vpop.f32.mrb[0].mxu0
      %v10850 = vadd.f32 %v10635, %v10849
      %v10851 = vpop.f32.mrb[0].mxu0
      %10852 = vmatprep.mubr.f32.mxu0 0.0
      %10853 = vmatmul.mubr.f32.gmra.mrb[0].mxu0 %v10458
      %v10854 = vpop.f32.mrb[0].mxu0
      %v10855 = vadd.f32 %v10640, %v10854
      %v10856 = vpop.f32.mrb[0].mxu0
      %10857 = vmatprep.mubr.f32.mxu0 0.0
      %10858 = vmatmul.mubr.f32.gmra.mrb[0].mxu0 %v10461
      %v10859 = vpop.f32.mrb[0].mxu0
      %v10860 = vadd.f32 %v10645, %v10859
      %v10861 = vpop.f32.mrb[0].mxu0
      %10862 = vmatprep.mubr.f32.mxu0 0.0
      %10863 = vmatmul.mubr.f32.gmra.mrb[0].mxu0 %v10464
      %v10864 = vpop.f32.mrb[0].mxu0
      %v10865 = vadd.f32 %v10650, %v10864
      %v10866 = vpop.f32.mrb[0].mxu0
      %10867 = vmatprep.mubr.f32.mxu0 0.0
      %10868 = vmatmul.mubr.f32.gmra.mrb[0].mxu0 %v10467
      %v10869 = vpop.f32.mrb[0].mxu0
      %v10870 = vadd.f32 %v10655, %v10869
      %v10871 = vpop.f32.mrb[0].mxu0
      %10872 = vmatprep.mubr.f32.mxu0 0.0
      %10873 = vmatmul.mubr.f32.gmra.mrb[0].mxu0 %v10470
      %v10874 = vpop.f32.mrb[0].mxu0
      %v10875 = vadd.f32 %v10660, %v10874
      %v10876 = vpop.f32.mrb[0].mxu0
      %10877 = vmatprep.mubr.f32.mxu0 0.0
      %10878 = vmatmul.mubr.f32.gmra.mrb[0].mxu0 %v10473
      %v10879 = vpop.f32.mrb[0].mxu0
      %v10880 = vadd.f32 %v10665, %v10879
      %v10881 = vpop.f32.mrb[0].mxu0
      %10882 = vmatprep.mubr.f32.mxu0 0.0
      %10883 = vmatmul.mubr.f32.gmra.mrb[0].mxu0 %v10476
      %v10884 = vpop.f32.mrb[0].mxu0
      %v10885 = vadd.f32 %v10670, %v10884
      %v10886 = vpop.f32.mrb[0].mxu0
      %10887 = vmatprep.mubr.f32.mxu0 0.0
      %10888 = vmatmul.mubr.f32.gmra.mrb[0].mxu0 %v10479
      %v10889 = vpop.f32.mrb[0].mxu0
      %v10890 = vadd.f32 %v10675, %v10889
      %v10891 = vpop.f32.mrb[0].mxu0
      %10892 = vmatprep.mubr.f32.mxu0 0.0
      %10893 = vmatmul.mubr.f32.gmra.mrb[0].mxu0 %v10482
      %v10894 = vpop.f32.mrb[0].mxu0
      %v10895 = vadd.f32 %v10680, %v10894
      %v10896 = vpop.f32.mrb[0].mxu0
      %10897 = vmatprep.mubr.f32.mxu0 0.0
      %10898 = vmatmul.mubr.f32.gmra.mrb[0].mxu0 %v10485
      %v10899 = vpop.f32.mrb[0].mxu0
      %v10900 = vadd.f32 %v10685, %v10899
      %v10901 = vpop.f32.mrb[0].mxu0
      %10902 = vmatprep.mubr.f32.mxu0 0.0
      %10903 = vmatmul.mubr.f32.gmra.mrb[0].mxu0 %v10488
      %v10904 = vpop.f32.mrb[0].mxu0
      %v10905 = vadd.f32 %v10690, %v10904
      %v10906 = vpop.f32.mrb[0].mxu0
      %10907 = vmatprep.mubr.f32.mxu0 0.0
      %10908 = vmatmul.mubr.f32.gmra.mrb[0].mxu0 %v10491
      %v10909 = vpop.f32.mrb[0].mxu0
      %v10910 = vadd.f32 %v10695, %v10909
      %v10911 = vpop.f32.mrb[0].mxu0
      %10912 = vmatprep.mubr.f32.mxu0 0.0
      %10913 = vmatmul.mubr.f32.gmra.mrb[0].mxu0 %v10494
      %v10914 = vpop.f32.mrb[0].mxu0
      %v10915 = vadd.f32 %v10700, %v10914
      %v10916 = vpop.f32.mrb[0].mxu0
      %10917 = vmatprep.mubr.f32.mxu0 0.0
      %10918 = vmatmul.mubr.f32.gmra.mrb[0].mxu0 %v10497
      %v10919 = vpop.f32.mrb[0].mxu0
      %v10920 = vadd.f32 %v10705, %v10919
      %v10921 = vpop.f32.mrb[0].mxu0
      %10922 = vmatprep.mubr.f32.mxu0 0.0
      %10923 = vmatmul.mubr.f32.gmra.mrb[0].mxu0 %v10500
      %v10924 = vpop.f32.mrb[0].mxu0
      %v10925 = vadd.f32 %v10710, %v10924
      %v10926 = vpop.f32.mrb[0].mxu0
      %10927 = vmatprep.mubr.f32.mxu0 0.0
      %10928 = vmatmul.mubr.f32.gmra.mrb[0].mxu0 %v10503
      %v10929 = vpop.f32.mrb[0].mxu0
      %v10930 = vadd.f32 %v10715, %v10929
      %v10931 = vpop.f32.mrb[0].mxu0
      %10932 = vmatprep.mubr.f32.mxu0 0.0
      %10933 = vmatmul.mubr.f32.gmra.mrb[0].mxu0 %v10506
      %v10934 = vpop.f32.mrb[0].mxu0
      %v10935 = vadd.f32 %v10720, %v10934
      %v10936 = vpop.f32.mrb[0].mxu0
      %10937 = vdwg.mxu0
      %v10938 = vmax.f32 %v10790, 0.0
      %v10939 = vmax.f32 %v10795, 0.0
      %v10940 = vmax.f32 %v10800, 0.0
      %v10941 = vmax.f32 %v10805, 0.0
      %v10942 = vmax.f32 %v10810, 0.0
      %v10943 = vmax.f32 %v10815, 0.0
      %v10944 = vmax.f32 %v10820, 0.0
      %v10945 = vmax.f32 %v10825, 0.0
      %v10946 = vmax.f32 %v10830, 0.0
      %v10947 = vmax.f32 %v10835, 0.0
      %v10948 = vmax.f32 %v10840, 0.0
      %v10949 = vmax.f32 %v10845, 0.0
      %v10950 = vmax.f32 %v10850, 0.0
      %v10951 = vmax.f32 %v10855, 0.0
      %v10952 = vmax.f32 %v10860, 0.0
      %v10953 = vmax.f32 %v10865, 0.0
      %v10954 = vmax.f32 %v10870, 0.0
      %v10955 = vmax.f32 %v10875, 0.0
      %v10956 = vmax.f32 %v10880, 0.0
      %v10957 = vmax.f32 %v10885, 0.0
      %v10958 = vmax.f32 %v10890, 0.0
      %v10959 = vmax.f32 %v10895, 0.0
      %v10960 = vmax.f32 %v10900, 0.0
      %v10961 = vmax.f32 %v10905, 0.0
      %v10962 = vmax.f32 %v10910, 0.0
      %v10963 = vmax.f32 %v10915, 0.0
      %v10964 = vmax.f32 %v10920, 0.0
      %v10965 = vmax.f32 %v10925, 0.0
      %v10966 = vmax.f32 %v10930, 0.0
      %v10967 = vmax.f32 %v10935, 0.0
      %10968 = vst.msk [vmem:[#allocation3] sm:$0xff] %vm6957, %v10938
      %10969 = vst.msk [vmem:[#allocation3 + $0x8] sm:$0xff] %vm6957, %v10939
      %10970 = vst.msk [vmem:[#allocation3 + $0x18] sm:$0xff] %vm6957, %v10940
      %10971 = vst.msk [vmem:[#allocation3 + $0x20] sm:$0xff] %vm6957, %v10941
      %10972 = vst.msk [vmem:[#allocation3 + $0x30] sm:$0xff] %vm6957, %v10942
      %10973 = vst.msk [vmem:[#allocation3 + $0x38] sm:$0xff] %vm6957, %v10943
      %10974 = vst.msk [vmem:[#allocation3 + $0x48] sm:$0xff] %vm6957, %v10944
      %10975 = vst.msk [vmem:[#allocation3 + $0x50] sm:$0xff] %vm6957, %v10945
      %10976 = vst.msk [vmem:[#allocation3 + $0x60] sm:$0xff] %vm6957, %v10946
      %10977 = vst.msk [vmem:[#allocation3 + $0x68] sm:$0xff] %vm6957, %v10947
      %10978 = vst.msk [vmem:[#allocation3 + $0x78] sm:$0xff] %vm6957, %v10948
      %10979 = vst.msk [vmem:[#allocation3 + $0x80] sm:$0xff] %vm6957, %v10949
      %10980 = vst.msk [vmem:[#allocation3 + $0x90] sm:$0xff] %vm6957, %v10950
      %10981 = vst.msk [vmem:[#allocation3 + $0x98] sm:$0xff] %vm6957, %v10951
      %10982 = vst.msk [vmem:[#allocation3 + $0xa8] sm:$0xff] %vm6957, %v10952
      %10983 = vst.msk [vmem:[#allocation3 + $0xb0] sm:$0xff] %vm6957, %v10953
      %10984 = vst.msk [vmem:[#allocation3 + $0xc0] sm:$0xff] %vm6957, %v10954
      %10985 = vst.msk [vmem:[#allocation3 + $0xc8] sm:$0xff] %vm6957, %v10955
      %10986 = vst.msk [vmem:[#allocation3 + $0xd8] sm:$0xff] %vm6957, %v10956
      %10987 = vst.msk [vmem:[#allocation3 + $0xe0] sm:$0xff] %vm6957, %v10957
      %10988 = vst.msk [vmem:[#allocation3 + $0xf0] sm:$0xff] %vm6957, %v10958
      %10989 = vst.msk [vmem:[#allocation3 + $0xf8] sm:$0xff] %vm6957, %v10959
      %10990 = vst.msk [vmem:[#allocation3 + $0x108] sm:$0xff] %vm6957, %v10960
      %10991 = vst.msk [vmem:[#allocation3 + $0x110] sm:$0xff] %vm6957, %v10961
      %10992 = vst.msk [vmem:[#allocation3 + $0x120] sm:$0xff] %vm6957, %v10962
      %10993 = vst.msk [vmem:[#allocation3 + $0x128] sm:$0xff] %vm6957, %v10963
      %10994 = vst.msk [vmem:[#allocation3 + $0x138] sm:$0xff] %vm6957, %v10964
      %10995 = vst.msk [vmem:[#allocation3 + $0x140] sm:$0xff] %vm6957, %v10965
      %10996 = vst.msk [vmem:[#allocation3 + $0x150] sm:$0xff] %vm6957, %v10966
      %10997 = vst.msk [vmem:[#allocation3 + $0x158] sm:$0xff] %vm6957, %v10967
      %10998 = vst.msk [vmem:[#allocation3 + $0x10] sm:$0xff] %vm6957, 0.0
      %10999 = vst.msk [vmem:[#allocation3 + $0x28] sm:$0xff] %vm6957, 0.0
      %11000 = vst.msk [vmem:[#allocation3 + $0x40] sm:$0xff] %vm6957, 0.0
      %11001 = vst.msk [vmem:[#allocation3 + $0x58] sm:$0xff] %vm6957, 0.0
      %11002 = vst.msk [vmem:[#allocation3 + $0x70] sm:$0xff] %vm6957, 0.0
      %11003 = vst.msk [vmem:[#allocation3 + $0x88] sm:$0xff] %vm6957, 0.0
      %11004 = vst.msk [vmem:[#allocation3 + $0xa0] sm:$0xff] %vm6957, 0.0
      %11005 = vst.msk [vmem:[#allocation3 + $0xb8] sm:$0xff] %vm6957, 0.0
      %11006 = vst.msk [vmem:[#allocation3 + $0xd0] sm:$0xff] %vm6957, 0.0
      %11007 = vst.msk [vmem:[#allocation3 + $0xe8] sm:$0xff] %vm6957, 0.0
      %11008 = vst.msk [vmem:[#allocation3 + $0x100] sm:$0xff] %vm6957, 0.0
      %11009 = vst.msk [vmem:[#allocation3 + $0x118] sm:$0xff] %vm6957, 0.0
      %11010 = vst.msk [vmem:[#allocation3 + $0x130] sm:$0xff] %vm6957, 0.0
      %11011 = vst.msk [vmem:[#allocation3 + $0x148] sm:$0xff] %vm6957, 0.0
      %11012 = vst.msk [vmem:[#allocation3 + $0x160] sm:$0xff] %vm6957, 0.0
      %v11013 = vld [vmem:[#allocation3] ss:$2 sm:$0xff]
      %s11014 = scalar_lea.vmem [#allocation3], 48
      %v11015 = vld [vmem:[%s11014] ss:$2 sm:$0xff]
      %s11016 = scalar_lea.vmem [#allocation3], 96
      %v11017 = vld [vmem:[%s11016] ss:$2 sm:$0xff]
      %s11018 = scalar_lea.vmem [#allocation3], 144
      %v11019 = vld [vmem:[%s11018] ss:$2 sm:$0xff]
      %s11020 = scalar_lea.vmem [#allocation3], 192
      %v11021 = vld [vmem:[%s11020] ss:$2 sm:$0xff]
      %s11022 = scalar_lea.vmem [#allocation3], 240
      %v11023 = vld [vmem:[%s11022] ss:$2 sm:$0xff]
      %s11024 = scalar_lea.vmem [#allocation3], 288
      %v11025 = vld [vmem:[%s11024] ss:$2 sm:$0xff]
      %s11026 = scalar_lea.vmem [#allocation3], 1
      %v11027 = vld [vmem:[%s11026] ss:$2 sm:$0xff]
      %s11028 = scalar_lea.vmem [#allocation3], 49
      %v11029 = vld [vmem:[%s11028] ss:$2 sm:$0xff]
      %s11030 = scalar_lea.vmem [#allocation3], 97
      %v11031 = vld [vmem:[%s11030] ss:$2 sm:$0xff]
      %s11032 = scalar_lea.vmem [#allocation3], 145
      %v11033 = vld [vmem:[%s11032] ss:$2 sm:$0xff]
      %s11034 = scalar_lea.vmem [#allocation3], 193
      %v11035 = vld [vmem:[%s11034] ss:$2 sm:$0xff]
      %s11036 = scalar_lea.vmem [#allocation3], 241
      %v11037 = vld [vmem:[%s11036] ss:$2 sm:$0xff]
      %s11038 = scalar_lea.vmem [#allocation3], 289
      %v11039 = vld [vmem:[%s11038] ss:$2 sm:$0xff]
      %s11040 = scalar_lea.vmem [#allocation3], 2
      %v11041 = vld [vmem:[%s11040] ss:$2 sm:$0xff]
      %s11042 = scalar_lea.vmem [#allocation3], 50
      %v11043 = vld [vmem:[%s11042] ss:$2 sm:$0xff]
      %s11044 = scalar_lea.vmem [#allocation3], 98
      %v11045 = vld [vmem:[%s11044] ss:$2 sm:$0xff]
      %s11046 = scalar_lea.vmem [#allocation3], 146
      %v11047 = vld [vmem:[%s11046] ss:$2 sm:$0xff]
      %s11048 = scalar_lea.vmem [#allocation3], 194
      %v11049 = vld [vmem:[%s11048] ss:$2 sm:$0xff]
      %s11050 = scalar_lea.vmem [#allocation3], 242
      %v11051 = vld [vmem:[%s11050] ss:$2 sm:$0xff]
      %s11052 = scalar_lea.vmem [#allocation3], 290
      %v11053 = vld [vmem:[%s11052] ss:$2 sm:$0xff]
      %s11054 = scalar_lea.vmem [#allocation3], 24
      %v11055 = vld [vmem:[%s11054] ss:$2 sm:$0xff]
      %s11056 = scalar_lea.vmem %s11054, 48 [#allocation3]
      %v11057 = vld [vmem:[%s11056] ss:$2 sm:$0xff]
      %s11058 = scalar_lea.vmem %s11054, 96 [#allocation3]
      %v11059 = vld [vmem:[%s11058] ss:$2 sm:$0xff]
      %s11060 = scalar_lea.vmem %s11054, 144 [#allocation3]
      %v11061 = vld [vmem:[%s11060] ss:$2 sm:$0xff]
      %s11062 = scalar_lea.vmem %s11054, 192 [#allocation3]
      %v11063 = vld [vmem:[%s11062] ss:$2 sm:$0xff]
      %s11064 = scalar_lea.vmem %s11054, 240 [#allocation3]
      %v11065 = vld [vmem:[%s11064] ss:$2 sm:$0xff]
      %s11066 = scalar_lea.vmem %s11054, 288 [#allocation3]
      %v11067 = vld [vmem:[%s11066] ss:$2 sm:$0xff]
      %s11068 = scalar_lea.vmem %s11054, 1 [#allocation3]
      %v11069 = vld [vmem:[%s11068] ss:$2 sm:$0xff]
      %s11070 = scalar_lea.vmem %s11054, 49 [#allocation3]
      %v11071 = vld [vmem:[%s11070] ss:$2 sm:$0xff]
      %s11072 = scalar_lea.vmem %s11054, 97 [#allocation3]
      %v11073 = vld [vmem:[%s11072] ss:$2 sm:$0xff]
      %s11074 = scalar_lea.vmem %s11054, 145 [#allocation3]
      %v11075 = vld [vmem:[%s11074] ss:$2 sm:$0xff]
      %s11076 = scalar_lea.vmem %s11054, 193 [#allocation3]
      %v11077 = vld [vmem:[%s11076] ss:$2 sm:$0xff]
      %s11078 = scalar_lea.vmem %s11054, 241 [#allocation3]
      %v11079 = vld [vmem:[%s11078] ss:$2 sm:$0xff]
      %s11080 = scalar_lea.vmem %s11054, 289 [#allocation3]
      %v11081 = vld [vmem:[%s11080] ss:$2 sm:$0xff]
      %s11082 = scalar_lea.vmem %s11054, 2 [#allocation3]
      %v11083 = vld [vmem:[%s11082] ss:$2 sm:$0xff]
      %s11084 = scalar_lea.vmem %s11054, 50 [#allocation3]
      %v11085 = vld [vmem:[%s11084] ss:$2 sm:$0xff]
      %s11086 = scalar_lea.vmem %s11054, 98 [#allocation3]
      %v11087 = vld [vmem:[%s11086] ss:$2 sm:$0xff]
      %s11088 = scalar_lea.vmem %s11054, 146 [#allocation3]
      %v11089 = vld [vmem:[%s11088] ss:$2 sm:$0xff]
      %s11090 = scalar_lea.vmem %s11054, 194 [#allocation3]
      %v11091 = vld [vmem:[%s11090] ss:$2 sm:$0xff]
      %s11092 = scalar_lea.vmem %s11054, 242 [#allocation3]
      %v11093 = vld [vmem:[%s11092] ss:$2 sm:$0xff]
      %s11094 = scalar_lea.vmem %s11054, 290 [#allocation3]
      %v11095 = vld [vmem:[%s11094] ss:$2 sm:$0xff]
      %s11096 = scalar_lea.vmem [#allocation3], 48
      %v11097 = vld [vmem:[%s11096] ss:$2 sm:$0xff]
      %s11098 = scalar_lea.vmem %s11096, 48 [#allocation3]
      %v11099 = vld [vmem:[%s11098] ss:$2 sm:$0xff]
      %s11100 = scalar_lea.vmem %s11096, 96 [#allocation3]
      %v11101 = vld [vmem:[%s11100] ss:$2 sm:$0xff]
      %s11102 = scalar_lea.vmem %s11096, 144 [#allocation3]
      %v11103 = vld [vmem:[%s11102] ss:$2 sm:$0xff]
      %s11104 = scalar_lea.vmem %s11096, 192 [#allocation3]
      %v11105 = vld [vmem:[%s11104] ss:$2 sm:$0xff]
      %s11106 = scalar_lea.vmem %s11096, 240 [#allocation3]
      %v11107 = vld [vmem:[%s11106] ss:$2 sm:$0xff]
      %s11108 = scalar_lea.vmem %s11096, 288 [#allocation3]
      %v11109 = vld [vmem:[%s11108] ss:$2 sm:$0xff]
      %s11110 = scalar_lea.vmem %s11096, 1 [#allocation3]
      %v11111 = vld [vmem:[%s11110] ss:$2 sm:$0xff]
      %s11112 = scalar_lea.vmem %s11096, 49 [#allocation3]
      %v11113 = vld [vmem:[%s11112] ss:$2 sm:$0xff]
      %s11114 = scalar_lea.vmem %s11096, 97 [#allocation3]
      %v11115 = vld [vmem:[%s11114] ss:$2 sm:$0xff]
      %s11116 = scalar_lea.vmem %s11096, 145 [#allocation3]
      %v11117 = vld [vmem:[%s11116] ss:$2 sm:$0xff]
      %s11118 = scalar_lea.vmem %s11096, 193 [#allocation3]
      %v11119 = vld [vmem:[%s11118] ss:$2 sm:$0xff]
      %s11120 = scalar_lea.vmem %s11096, 241 [#allocation3]
      %v11121 = vld [vmem:[%s11120] ss:$2 sm:$0xff]
      %s11122 = scalar_lea.vmem %s11096, 289 [#allocation3]
      %v11123 = vld [vmem:[%s11122] ss:$2 sm:$0xff]
      %s11124 = scalar_lea.vmem %s11096, 2 [#allocation3]
      %v11125 = vld [vmem:[%s11124] ss:$2 sm:$0xff]
      %s11126 = scalar_lea.vmem %s11096, 50 [#allocation3]
      %v11127 = vld [vmem:[%s11126] ss:$2 sm:$0xff]
      %s11128 = scalar_lea.vmem %s11096, 98 [#allocation3]
      %v11129 = vld [vmem:[%s11128] ss:$2 sm:$0xff]
      %s11130 = scalar_lea.vmem %s11096, 146 [#allocation3]
      %v11131 = vld [vmem:[%s11130] ss:$2 sm:$0xff]
      %s11132 = scalar_lea.vmem %s11096, 194 [#allocation3]
      %v11133 = vld [vmem:[%s11132] ss:$2 sm:$0xff]
      %s11134 = scalar_lea.vmem %s11096, 242 [#allocation3]
      %v11135 = vld [vmem:[%s11134] ss:$2 sm:$0xff]
      %s11136 = scalar_lea.vmem %s11096, 290 [#allocation3]
      %v11137 = vld [vmem:[%s11136] ss:$2 sm:$0xff]
      %11145 = vrot.lane.b32.xlu0 %v11027, 32
      %v11146 = vpop.permute.xlu0 %11145
      %11147 = vrot.lane.b32.xlu0 %v11029, 32
      %v11148 = vpop.permute.xlu0 %11147
      %11149 = vrot.lane.b32.xlu0 %v11031, 32
      %v11150 = vpop.permute.xlu0 %11149
      %11151 = vrot.lane.b32.xlu0 %v11033, 32
      %v11152 = vpop.permute.xlu0 %11151
      %11153 = vrot.lane.b32.xlu0 %v11035, 32
      %v11154 = vpop.permute.xlu0 %11153
      %11155 = vrot.lane.b32.xlu0 %v11037, 32
      %v11156 = vpop.permute.xlu0 %11155
      %11157 = vrot.lane.b32.xlu0 %v11039, 32
      %v11158 = vpop.permute.xlu0 %11157
      %11173 = vrot.lane.b32.xlu0 %v11041, 64
      %v11174 = vpop.permute.xlu0 %11173
      %11175 = vrot.lane.b32.xlu0 %v11043, 64
      %v11176 = vpop.permute.xlu0 %11175
      %11177 = vrot.lane.b32.xlu0 %v11045, 64
      %v11178 = vpop.permute.xlu0 %11177
      %11179 = vrot.lane.b32.xlu0 %v11047, 64
      %v11180 = vpop.permute.xlu0 %11179
      %11181 = vrot.lane.b32.xlu0 %v11049, 64
      %v11182 = vpop.permute.xlu0 %11181
      %11183 = vrot.lane.b32.xlu0 %v11051, 64
      %v11184 = vpop.permute.xlu0 %11183
      %11185 = vrot.lane.b32.xlu0 %v11053, 64
      %v11186 = vpop.permute.xlu0 %11185
      %11201 = vrot.lane.b32.xlu0 %v11055, 96
      %v11202 = vpop.permute.xlu0 %11201
      %11203 = vrot.lane.b32.xlu0 %v11057, 96
      %v11204 = vpop.permute.xlu0 %11203
      %11205 = vrot.lane.b32.xlu0 %v11059, 96
      %v11206 = vpop.permute.xlu0 %11205
      %11207 = vrot.lane.b32.xlu0 %v11061, 96
      %v11208 = vpop.permute.xlu0 %11207
      %11209 = vrot.lane.b32.xlu0 %v11063, 96
      %v11210 = vpop.permute.xlu0 %11209
      %11211 = vrot.lane.b32.xlu0 %v11065, 96
      %v11212 = vpop.permute.xlu0 %11211
      %11213 = vrot.lane.b32.xlu0 %v11067, 96
      %v11214 = vpop.permute.xlu0 %11213
      %11229 = vrot.lane.b32.xlu0 %v11083, 32
      %v11230 = vpop.permute.xlu0 %11229
      %11231 = vrot.lane.b32.xlu0 %v11085, 32
      %v11232 = vpop.permute.xlu0 %11231
      %11233 = vrot.lane.b32.xlu0 %v11087, 32
      %v11234 = vpop.permute.xlu0 %11233
      %11235 = vrot.lane.b32.xlu0 %v11089, 32
      %v11236 = vpop.permute.xlu0 %11235
      %11237 = vrot.lane.b32.xlu0 %v11091, 32
      %v11238 = vpop.permute.xlu0 %11237
      %11239 = vrot.lane.b32.xlu0 %v11093, 32
      %v11240 = vpop.permute.xlu0 %11239
      %11241 = vrot.lane.b32.xlu0 %v11095, 32
      %v11242 = vpop.permute.xlu0 %11241
      %11257 = vrot.lane.b32.xlu0 %v11097, 64
      %v11258 = vpop.permute.xlu0 %11257
      %11259 = vrot.lane.b32.xlu0 %v11099, 64
      %v11260 = vpop.permute.xlu0 %11259
      %11261 = vrot.lane.b32.xlu0 %v11101, 64
      %v11262 = vpop.permute.xlu0 %11261
      %11263 = vrot.lane.b32.xlu0 %v11103, 64
      %v11264 = vpop.permute.xlu0 %11263
      %11265 = vrot.lane.b32.xlu0 %v11105, 64
      %v11266 = vpop.permute.xlu0 %11265
      %11267 = vrot.lane.b32.xlu0 %v11107, 64
      %v11268 = vpop.permute.xlu0 %11267
      %11269 = vrot.lane.b32.xlu0 %v11109, 64
      %v11270 = vpop.permute.xlu0 %11269
      %11285 = vrot.lane.b32.xlu0 %v11111, 96
      %v11286 = vpop.permute.xlu0 %11285
      %11287 = vrot.lane.b32.xlu0 %v11113, 96
      %v11288 = vpop.permute.xlu0 %11287
      %11289 = vrot.lane.b32.xlu0 %v11115, 96
      %v11290 = vpop.permute.xlu0 %11289
      %11291 = vrot.lane.b32.xlu0 %v11117, 96
      %v11292 = vpop.permute.xlu0 %11291
      %11293 = vrot.lane.b32.xlu0 %v11119, 96
      %v11294 = vpop.permute.xlu0 %11293
      %11295 = vrot.lane.b32.xlu0 %v11121, 96
      %v11296 = vpop.permute.xlu0 %11295
      %11297 = vrot.lane.b32.xlu0 %v11123, 96
      %v11298 = vpop.permute.xlu0 %11297
      %v11306 = vsel %vm6957, %v11013, %v11146
      %v11307 = vsel %vm6957, %v11015, %v11148
      %v11308 = vsel %vm6957, %v11017, %v11150
      %v11309 = vsel %vm6957, %v11019, %v11152
      %v11310 = vsel %vm6957, %v11021, %v11154
      %v11311 = vsel %vm6957, %v11023, %v11156
      %v11312 = vsel %vm6957, %v11025, %v11158
      %v11313 = vsel %vm7457, %v11306, %v11174
      %v11314 = vsel %vm7457, %v11307, %v11176
      %v11315 = vsel %vm7457, %v11308, %v11178
      %v11316 = vsel %vm7457, %v11309, %v11180
      %v11317 = vsel %vm7457, %v11310, %v11182
      %v11318 = vsel %vm7457, %v11311, %v11184
      %v11319 = vsel %vm7457, %v11312, %v11186
      %v11320 = vsel %vm10254, %v11313, %v11202
      %v11321 = vsel %vm10254, %v11314, %v11204
      %v11322 = vsel %vm10254, %v11315, %v11206
      %v11323 = vsel %vm10254, %v11316, %v11208
      %v11324 = vsel %vm10254, %v11317, %v11210
      %v11325 = vsel %vm10254, %v11318, %v11212
      %v11326 = vsel %vm10254, %v11319, %v11214
      %v11327 = vsel %vm6957, %v11069, %v11230
      %v11328 = vsel %vm6957, %v11071, %v11232
      %v11329 = vsel %vm6957, %v11073, %v11234
      %v11330 = vsel %vm6957, %v11075, %v11236
      %v11331 = vsel %vm6957, %v11077, %v11238
      %v11332 = vsel %vm6957, %v11079, %v11240
      %v11333 = vsel %vm6957, %v11081, %v11242
      %v11334 = vsel %vm7457, %v11327, %v11258
      %v11335 = vsel %vm7457, %v11328, %v11260
      %v11336 = vsel %vm7457, %v11329, %v11262
      %v11337 = vsel %vm7457, %v11330, %v11264
      %v11338 = vsel %vm7457, %v11331, %v11266
      %v11339 = vsel %vm7457, %v11332, %v11268
      %v11340 = vsel %vm7457, %v11333, %v11270
      %v11341 = vsel %vm10254, %v11334, %v11286
      %v11342 = vsel %vm10254, %v11335, %v11288
      %v11343 = vsel %vm10254, %v11336, %v11290
      %v11344 = vsel %vm10254, %v11337, %v11292
      %v11345 = vsel %vm10254, %v11338, %v11294
      %v11346 = vsel %vm10254, %v11339, %v11296
      %v11347 = vsel %vm10254, %v11340, %v11298
      %v11348 = vld [vmem:[%s5] sm:$0xff]
      %v11349 = vld [vmem:[%s5 + $0x8] sm:$0xff]
      %v11350 = vld [vmem:[%s5 + $0x10] sm:$0xff]
      %v11351 = vld [vmem:[%s5 + $0x18] sm:$0xff]
      %v11352 = vld [vmem:[%s5 + $0x20] sm:$0xff]
      %v11353 = vld [vmem:[%s5 + $0x28] sm:$0xff]
      %v11354 = vld [vmem:[%s5 + $0x30] sm:$0xff]
      %v11355 = vld [vmem:[%s5 + $0x38] sm:$0xff]
      %v11356 = vld [vmem:[%s5 + $0x40] sm:$0xff]
      %v11357 = vld [vmem:[%s5 + $0x48] sm:$0xff]
      %v11358 = vld [vmem:[%s5 + $0x50] sm:$0xff]
      %v11359 = vld [vmem:[%s5 + $0x58] sm:$0xff]
      %v11360 = vld [vmem:[%s5 + $0x60] sm:$0xff]
      %v11361 = vld [vmem:[%s5 + $0x68] sm:$0xff]
      %v11362 = vld [vmem:[%s5 + $0x70] sm:$0xff]
      %v11363 = vld [vmem:[%s5 + $0x78] sm:$0xff]
      %v11364 = vld [vmem:[%s5 + $0x80] sm:$0xff]
      %v11365 = vld [vmem:[%s5 + $0x88] sm:$0xff]
      %v11366 = vld [vmem:[%s5 + $0x90] sm:$0xff]
      %v11367 = vld [vmem:[%s5 + $0x98] sm:$0xff]
      %v11368 = vld [vmem:[%s5 + $0xa0] sm:$0xff]
      %v11369 = vld [vmem:[%s5 + $0xa8] sm:$0xff]
      %v11370 = vld [vmem:[%s5 + $0xb0] sm:$0xff]
      %v11371 = vld [vmem:[%s5 + $0xb8] sm:$0xff]
      %v11372 = vld [vmem:[%s5 + $0xc0] sm:$0xff]
      %v11373 = vld [vmem:[%s5 + $0xc8] sm:$0xff]
      %v11374 = vld [vmem:[%s5 + $0xd0] sm:$0xff]
      %v11375 = vld [vmem:[%s5 + $0xd8] sm:$0xff]
      %v11376 = vld [vmem:[%s5 + $0xe0] sm:$0xff]
      %v11377 = vld [vmem:[%s5 + $0xe8] sm:$0xff]
      %v11378 = vld [vmem:[%s5 + $0xf0] sm:$0xff]
      %v11379 = vld [vmem:[%s5 + $0xf8] sm:$0xff]
      %v11380 = vld [vmem:[%s5 + $0x100] sm:$0xff]
      %v11381 = vld [vmem:[%s5 + $0x108] sm:$0xff]
      %v11382 = vld [vmem:[%s5 + $0x110] sm:$0xff]
      %v11383 = vld [vmem:[%s5 + $0x118] sm:$0xff]
      %v11384 = vld [vmem:[%s6] sm:$0x1]
      %v11386 = vlaneseq
      %v11387 = vshrl.u32 %v11386, 7
      %v11388 = vsub.s32 0, %v11387
      %v11389 = vrot.slane %v11384, %v11388
      %v11392 = vsel %vm6957, %v11125, 0
      %v11395 = vsel %vm6957, %v11127, 0
      %v11398 = vsel %vm6957, %v11129, 0
      %v11401 = vsel %vm6957, %v11131, 0
      %v11404 = vsel %vm6957, %v11133, 0
      %v11407 = vsel %vm6957, %v11135, 0
      %v11410 = vsel %vm6957, %v11137, 0
      %11412 = vmatprep.subr.mxu0 0.0
      %11413 = vmatpush1.msra.mxu0 %v11348
      %11414 = vmatprep.subr.mxu0 0.0
      %11415 = vmatpush1.msra.mxu0 %v11349
      %11416 = vmatprep.subr.mxu0 0.0
      %11417 = vmatpush1.msra.mxu0 %v11350
      %11418 = vmatprep.subr.mxu0 0.0
      %11419 = vmatpush1.msra.mxu0 %v11351
      %11420 = vmatprep.subr.mxu0 0.0
      %11421 = vmatpush1.msra.mxu0 %v11352
      %11422 = vmatprep.subr.mxu0 0.0
      %11423 = vmatpush1.msra.mxu0 %v11353
      %11424 = vmatprep.subr.mxu0 0.0
      %11425 = vmatpush1.msra.mxu0 %v11354
      %11426 = vmatprep.subr.mxu0 0.0
      %11427 = vmatpush1.msra.mxu0 %v11355
      %11428 = vmatprep.subr.mxu0 0.0
      %11429 = vmatpush1.msra.mxu0 %v11356
      %11430 = vmatprep.subr.mxu0 0.0
      %11431 = vmatpush1.msra.mxu0 %v11357
      %11432 = vmatprep.subr.mxu0 0.0
      %11433 = vmatpush1.msra.mxu0 %v11358
      %11434 = vmatprep.subr.mxu0 0.0
      %11435 = vmatpush1.msra.mxu0 %v11359
      %11436 = vmatprep.subr.mxu0 0.0
      %11437 = vmatpush1.msra.mxu0 %v11360
      %11438 = vmatprep.subr.mxu0 0.0
      %11439 = vmatpush1.msra.mxu0 %v11361
      %11440 = vmatprep.subr.mxu0 0.0
      %11441 = vmatpush1.msra.mxu0 %v11362
      %11442 = vmatprep.subr.mxu0 0.0
      %11443 = vmatpush1.msra.mxu0 %v11363
      %11444 = vmatprep.subr.mxu0 0.0
      %11445 = vmatpush1.msra.mxu0 %v11364
      %11446 = vmatprep.subr.mxu0 0.0
      %11447 = vmatpush1.msra.mxu0 %v11365
      %11448 = vmatprep.subr.mxu0 0.0
      %11449 = vmatpush1.msra.mxu0 %v11366
      %11450 = vmatprep.subr.mxu0 0.0
      %11451 = vmatpush1.msra.mxu0 %v11367
      %11452 = vmatprep.subr.mxu0 0.0
      %11453 = vmatpush1.msra.mxu0 %v11368
      %11454 = vmatprep.subr.mxu0 0.0
      %11455 = vmatpush1.msra.mxu0 %v11369
      %11456 = vmatprep.subr.mxu0 0.0
      %11457 = vmatpush1.msra.mxu0 %v11370
      %11458 = vmatprep.subr.mxu0 0.0
      %11459 = vmatpush1.msra.mxu0 %v11371
      %11460 = vmatprep.subr.mxu0 0.0
      %11461 = vmatpush1.msra.mxu0 %v11372
      %11462 = vmatprep.subr.mxu0 0.0
      %11463 = vmatpush1.msra.mxu0 %v11373
      %11464 = vmatprep.subr.mxu0 0.0
      %11465 = vmatpush1.msra.mxu0 %v11374
      %11466 = vmatprep.subr.mxu0 0.0
      %11467 = vmatpush1.msra.mxu0 %v11375
      %11468 = vmatprep.subr.mxu0 0.0
      %11469 = vmatpush1.msra.mxu0 %v11376
      %11470 = vmatprep.subr.mxu0 0.0
      %11471 = vmatpush1.msra.mxu0 %v11377
      %11472 = vmatprep.subr.mxu0 0.0
      %11473 = vmatpush1.msra.mxu0 %v11378
      %11474 = vmatprep.subr.mxu0 0.0
      %11475 = vmatpush1.msra.mxu0 %v11379
      %11476 = vmatprep.mubr.f32.mxu0 %v11341
      %11477 = vmatmul.mubr.f32.gmra.mrb[0].mxu0 %v11320
      %v11478 = vpop.f32.mrb[0].mxu0
      %v11479 = vadd.f32 %v11389, %v11478
      %v11480 = vpop.f32.mrb[0].mxu0
      %11481 = vmatprep.mubr.f32.mxu0 %v11342
      %11482 = vmatmul.mubr.f32.gmra.mrb[0].mxu0 %v11321
      %v11483 = vpop.f32.mrb[0].mxu0
      %v11484 = vadd.f32 %v11389, %v11483
      %v11485 = vpop.f32.mrb[0].mxu0
      %11486 = vmatprep.mubr.f32.mxu0 %v11343
      %11487 = vmatmul.mubr.f32.gmra.mrb[0].mxu0 %v11322
      %v11488 = vpop.f32.mrb[0].mxu0
      %v11489 = vadd.f32 %v11389, %v11488
      %v11490 = vpop.f32.mrb[0].mxu0
      %11491 = vmatprep.mubr.f32.mxu0 %v11344
      %11492 = vmatmul.mubr.f32.gmra.mrb[0].mxu0 %v11323
      %v11493 = vpop.f32.mrb[0].mxu0
      %v11494 = vadd.f32 %v11389, %v11493
      %v11495 = vpop.f32.mrb[0].mxu0
      %11496 = vmatprep.mubr.f32.mxu0 %v11345
      %11497 = vmatmul.mubr.f32.gmra.mrb[0].mxu0 %v11324
      %v11498 = vpop.f32.mrb[0].mxu0
      %v11499 = vadd.f32 %v11389, %v11498
      %v11500 = vpop.f32.mrb[0].mxu0
      %11501 = vmatprep.mubr.f32.mxu0 %v11346
      %11502 = vmatmul.mubr.f32.gmra.mrb[0].mxu0 %v11325
      %v11503 = vpop.f32.mrb[0].mxu0
      %v11504 = vadd.f32 %v11389, %v11503
      %v11505 = vpop.f32.mrb[0].mxu0
      %11506 = vmatprep.mubr.f32.mxu0 %v11347
      %11507 = vmatmul.mubr.f32.gmra.mrb[0].mxu0 %v11326
      %v11508 = vpop.f32.mrb[0].mxu0
      %v11509 = vadd.f32 %v11389, %v11508
      %v11510 = vpop.f32.mrb[0].mxu0
      %11511 = vdwg.mxu0
      %11512 = vmatprep.subr.mxu0 0.0
      %11513 = vmatpush1.msra.mxu0 %v11380
      %11514 = vmatprep.subr.mxu0 0.0
      %11515 = vmatpush1.msra.mxu0 %v11381
      %11516 = vmatprep.subr.mxu0 0.0
      %11517 = vmatpush1.msra.mxu0 %v11382
      %11518 = vmatprep.subr.mxu0 0.0
      %11519 = vmatpush1.msra.mxu0 %v11383
      %11520 = vmatprep.subr.mxu0 0.0
      %11521 = vmatpush1.msra.mxu0 0.0
      %11522 = vmatprep.subr.mxu0 0.0
      %11523 = vmatpush1.msra.mxu0 0.0
      %11524 = vmatprep.subr.mxu0 0.0
      %11525 = vmatpush1.msra.mxu0 0.0
      %11526 = vmatprep.subr.mxu0 0.0
      %11527 = vmatpush1.msra.mxu0 0.0
      %11528 = vmatprep.subr.mxu0 0.0
      %11529 = vmatpush1.msra.mxu0 0.0
      %11530 = vmatprep.subr.mxu0 0.0
      %11531 = vmatpush1.msra.mxu0 0.0
      %11532 = vmatprep.subr.mxu0 0.0
      %11533 = vmatpush1.msra.mxu0 0.0
      %11534 = vmatprep.subr.mxu0 0.0
      %11535 = vmatpush1.msra.mxu0 0.0
      %11536 = vmatprep.subr.mxu0 0.0
      %11537 = vmatpush1.msra.mxu0 0.0
      %11538 = vmatprep.subr.mxu0 0.0
      %11539 = vmatpush1.msra.mxu0 0.0
      %11540 = vmatprep.subr.mxu0 0.0
      %11541 = vmatpush1.msra.mxu0 0.0
      %11542 = vmatprep.subr.mxu0 0.0
      %11543 = vmatpush1.msra.mxu0 0.0
      %11544 = vmatprep.subr.mxu0 0.0
      %11545 = vmatpush1.msra.mxu0 0.0
      %11546 = vmatprep.subr.mxu0 0.0
      %11547 = vmatpush1.msra.mxu0 0.0
      %11548 = vmatprep.subr.mxu0 0.0
      %11549 = vmatpush1.msra.mxu0 0.0
      %11550 = vmatprep.subr.mxu0 0.0
      %11551 = vmatpush1.msra.mxu0 0.0
      %11552 = vmatprep.subr.mxu0 0.0
      %11553 = vmatpush1.msra.mxu0 0.0
      %11554 = vmatprep.subr.mxu0 0.0
      %11555 = vmatpush1.msra.mxu0 0.0
      %11556 = vmatprep.subr.mxu0 0.0
      %11557 = vmatpush1.msra.mxu0 0.0
      %11558 = vmatprep.subr.mxu0 0.0
      %11559 = vmatpush1.msra.mxu0 0.0
      %11560 = vmatprep.subr.mxu0 0.0
      %11561 = vmatpush1.msra.mxu0 0.0
      %11562 = vmatprep.subr.mxu0 0.0
      %11563 = vmatpush1.msra.mxu0 0.0
      %11564 = vmatprep.subr.mxu0 0.0
      %11565 = vmatpush1.msra.mxu0 0.0
      %11566 = vmatprep.subr.mxu0 0.0
      %11567 = vmatpush1.msra.mxu0 0.0
      %11568 = vmatprep.subr.mxu0 0.0
      %11569 = vmatpush1.msra.mxu0 0.0
      %11570 = vmatprep.subr.mxu0 0.0
      %11571 = vmatpush1.msra.mxu0 0.0
      %11572 = vmatprep.subr.mxu0 0.0
      %11573 = vmatpush1.msra.mxu0 0.0
      %11574 = vmatprep.subr.mxu0 0.0
      %11575 = vmatpush1.msra.mxu0 0.0
      %11576 = vmatprep.mubr.f32.mxu0 0.0
      %11577 = vmatmul.mubr.f32.gmra.mrb[0].mxu0 %v11392
      %v11578 = vpop.f32.mrb[0].mxu0
      %v11579 = vadd.f32 %v11479, %v11578
      %v11580 = vpop.f32.mrb[0].mxu0
      %11581 = vmatprep.mubr.f32.mxu0 0.0
      %11582 = vmatmul.mubr.f32.gmra.mrb[0].mxu0 %v11395
      %v11583 = vpop.f32.mrb[0].mxu0
      %v11584 = vadd.f32 %v11484, %v11583
      %v11585 = vpop.f32.mrb[0].mxu0
      %11586 = vmatprep.mubr.f32.mxu0 0.0
      %11587 = vmatmul.mubr.f32.gmra.mrb[0].mxu0 %v11398
      %v11588 = vpop.f32.mrb[0].mxu0
      %v11589 = vadd.f32 %v11489, %v11588
      %v11590 = vpop.f32.mrb[0].mxu0
      %11591 = vmatprep.mubr.f32.mxu0 0.0
      %11592 = vmatmul.mubr.f32.gmra.mrb[0].mxu0 %v11401
      %v11593 = vpop.f32.mrb[0].mxu0
      %v11594 = vadd.f32 %v11494, %v11593
      %v11595 = vpop.f32.mrb[0].mxu0
      %11596 = vmatprep.mubr.f32.mxu0 0.0
      %11597 = vmatmul.mubr.f32.gmra.mrb[0].mxu0 %v11404
      %v11598 = vpop.f32.mrb[0].mxu0
      %v11599 = vadd.f32 %v11499, %v11598
      %v11600 = vpop.f32.mrb[0].mxu0
      %11601 = vmatprep.mubr.f32.mxu0 0.0
      %11602 = vmatmul.mubr.f32.gmra.mrb[0].mxu0 %v11407
      %v11603 = vpop.f32.mrb[0].mxu0
      %v11604 = vadd.f32 %v11504, %v11603
      %v11605 = vpop.f32.mrb[0].mxu0
      %11606 = vmatprep.mubr.f32.mxu0 0.0
      %11607 = vmatmul.mubr.f32.gmra.mrb[0].mxu0 %v11410
      %v11608 = vpop.f32.mrb[0].mxu0
      %v11609 = vadd.f32 %v11509, %v11608
      %v11610 = vpop.f32.mrb[0].mxu0
      %11611 = vdwg.mxu0
      %v11612 = vmax.f32 %v11579, 0.0
      %v11613 = vmax.f32 %v11584, 0.0
      %v11614 = vmax.f32 %v11589, 0.0
      %v11615 = vmax.f32 %v11594, 0.0
      %v11616 = vmax.f32 %v11599, 0.0
      %v11617 = vmax.f32 %v11604, 0.0
      %v11618 = vmax.f32 %v11609, 0.0
      %v11620 = vrot.slane %v11612, 1
      %11621 = vrot.lane.b32.xlu0 %v11620, 32
      %v11622 = vpop.permute.xlu0 %11621
      %v11624 = vrot.slane %v11612, 2
      %11625 = vrot.lane.b32.xlu0 %v11624, 64
      %v11626 = vpop.permute.xlu0 %11625
      %v11628 = vrot.slane %v11612, 3
      %11629 = vrot.lane.b32.xlu0 %v11628, 96
      %v11630 = vpop.permute.xlu0 %11629
      %v11632 = vrot.slane %v11612, 4
      %v11634 = vrot.slane %v11612, 5
      %11635 = vrot.lane.b32.xlu0 %v11634, 32
      %v11636 = vpop.permute.xlu0 %11635
      %v11638 = vrot.slane %v11612, 6
      %11639 = vrot.lane.b32.xlu0 %v11638, 64
      %v11640 = vpop.permute.xlu0 %11639
      %v11642 = vrot.slane %v11612, 7
      %11643 = vrot.lane.b32.xlu0 %v11642, 96
      %v11644 = vpop.permute.xlu0 %11643
      %v11647 = vrot.slane %v11613, 1
      %11648 = vrot.lane.b32.xlu0 %v11647, 32
      %v11649 = vpop.permute.xlu0 %11648
      %v11651 = vrot.slane %v11613, 2
      %11652 = vrot.lane.b32.xlu0 %v11651, 64
      %v11653 = vpop.permute.xlu0 %11652
      %v11655 = vrot.slane %v11613, 3
      %11656 = vrot.lane.b32.xlu0 %v11655, 96
      %v11657 = vpop.permute.xlu0 %11656
      %v11659 = vrot.slane %v11613, 4
      %v11661 = vrot.slane %v11613, 5
      %11662 = vrot.lane.b32.xlu0 %v11661, 32
      %v11663 = vpop.permute.xlu0 %11662
      %v11665 = vrot.slane %v11613, 6
      %11666 = vrot.lane.b32.xlu0 %v11665, 64
      %v11667 = vpop.permute.xlu0 %11666
      %v11669 = vrot.slane %v11613, 7
      %11670 = vrot.lane.b32.xlu0 %v11669, 96
      %v11671 = vpop.permute.xlu0 %11670
      %v11673 = vsel %vm6957, %v11612, %v11622
      %v11674 = vsel %vm7457, %v11673, %v11626
      %v11675 = vsel %vm10254, %v11674, %v11630
      %v11676 = vsel %vm6957, %v11632, %v11636
      %v11677 = vsel %vm7457, %v11676, %v11640
      %v11678 = vsel %vm10254, %v11677, %v11644
      %v11679 = vsel %vm6957, %v11613, %v11649
      %v11680 = vsel %vm7457, %v11679, %v11653
      %v11681 = vsel %vm10254, %v11680, %v11657
      %v11682 = vsel %vm6957, %v11659, %v11663
      %v11683 = vsel %vm7457, %v11682, %v11667
      %v11684 = vsel %vm10254, %v11683, %v11671
      %v11686 = vrot.slane %v11614, 1
      %11687 = vrot.lane.b32.xlu0 %v11686, 32
      %v11688 = vpop.permute.xlu0 %11687
      %v11690 = vrot.slane %v11614, 2
      %11691 = vrot.lane.b32.xlu0 %v11690, 64
      %v11692 = vpop.permute.xlu0 %11691
      %v11694 = vrot.slane %v11614, 3
      %11695 = vrot.lane.b32.xlu0 %v11694, 96
      %v11696 = vpop.permute.xlu0 %11695
      %v11698 = vrot.slane %v11614, 4
      %v11700 = vrot.slane %v11614, 5
      %11701 = vrot.lane.b32.xlu0 %v11700, 32
      %v11702 = vpop.permute.xlu0 %11701
      %v11704 = vrot.slane %v11614, 6
      %11705 = vrot.lane.b32.xlu0 %v11704, 64
      %v11706 = vpop.permute.xlu0 %11705
      %v11708 = vrot.slane %v11614, 7
      %11709 = vrot.lane.b32.xlu0 %v11708, 96
      %v11710 = vpop.permute.xlu0 %11709
      %v11713 = vrot.slane %v11615, 1
      %11714 = vrot.lane.b32.xlu0 %v11713, 32
      %v11715 = vpop.permute.xlu0 %11714
      %v11717 = vrot.slane %v11615, 2
      %11718 = vrot.lane.b32.xlu0 %v11717, 64
      %v11719 = vpop.permute.xlu0 %11718
      %v11721 = vrot.slane %v11615, 3
      %11722 = vrot.lane.b32.xlu0 %v11721, 96
      %v11723 = vpop.permute.xlu0 %11722
      %v11725 = vrot.slane %v11615, 4
      %v11727 = vrot.slane %v11615, 5
      %11728 = vrot.lane.b32.xlu0 %v11727, 32
      %v11729 = vpop.permute.xlu0 %11728
      %v11731 = vrot.slane %v11615, 6
      %11732 = vrot.lane.b32.xlu0 %v11731, 64
      %v11733 = vpop.permute.xlu0 %11732
      %v11735 = vrot.slane %v11615, 7
      %11736 = vrot.lane.b32.xlu0 %v11735, 96
      %v11737 = vpop.permute.xlu0 %11736
      %v11739 = vsel %vm6957, %v11614, %v11688
      %v11740 = vsel %vm7457, %v11739, %v11692
      %v11741 = vsel %vm10254, %v11740, %v11696
      %v11742 = vsel %vm6957, %v11698, %v11702
      %v11743 = vsel %vm7457, %v11742, %v11706
      %v11744 = vsel %vm10254, %v11743, %v11710
      %v11745 = vsel %vm6957, %v11615, %v11715
      %v11746 = vsel %vm7457, %v11745, %v11719
      %v11747 = vsel %vm10254, %v11746, %v11723
      %v11748 = vsel %vm6957, %v11725, %v11729
      %v11749 = vsel %vm7457, %v11748, %v11733
      %v11750 = vsel %vm10254, %v11749, %v11737
      %v11752 = vrot.slane %v11616, 1
      %11753 = vrot.lane.b32.xlu0 %v11752, 32
      %v11754 = vpop.permute.xlu0 %11753
      %v11756 = vrot.slane %v11616, 2
      %11757 = vrot.lane.b32.xlu0 %v11756, 64
      %v11758 = vpop.permute.xlu0 %11757
      %v11760 = vrot.slane %v11616, 3
      %11761 = vrot.lane.b32.xlu0 %v11760, 96
      %v11762 = vpop.permute.xlu0 %11761
      %v11764 = vrot.slane %v11616, 4
      %v11766 = vrot.slane %v11616, 5
      %11767 = vrot.lane.b32.xlu0 %v11766, 32
      %v11768 = vpop.permute.xlu0 %11767
      %v11770 = vrot.slane %v11616, 6
      %11771 = vrot.lane.b32.xlu0 %v11770, 64
      %v11772 = vpop.permute.xlu0 %11771
      %v11774 = vrot.slane %v11616, 7
      %11775 = vrot.lane.b32.xlu0 %v11774, 96
      %v11776 = vpop.permute.xlu0 %11775
      %v11779 = vrot.slane %v11617, 1
      %11780 = vrot.lane.b32.xlu0 %v11779, 32
      %v11781 = vpop.permute.xlu0 %11780
      %v11783 = vrot.slane %v11617, 2
      %11784 = vrot.lane.b32.xlu0 %v11783, 64
      %v11785 = vpop.permute.xlu0 %11784
      %v11787 = vrot.slane %v11617, 3
      %11788 = vrot.lane.b32.xlu0 %v11787, 96
      %v11789 = vpop.permute.xlu0 %11788
      %v11791 = vrot.slane %v11617, 4
      %v11793 = vrot.slane %v11617, 5
      %11794 = vrot.lane.b32.xlu0 %v11793, 32
      %v11795 = vpop.permute.xlu0 %11794
      %v11797 = vrot.slane %v11617, 6
      %11798 = vrot.lane.b32.xlu0 %v11797, 64
      %v11799 = vpop.permute.xlu0 %11798
      %v11801 = vrot.slane %v11617, 7
      %11802 = vrot.lane.b32.xlu0 %v11801, 96
      %v11803 = vpop.permute.xlu0 %11802
      %v11805 = vsel %vm6957, %v11616, %v11754
      %v11806 = vsel %vm7457, %v11805, %v11758
      %v11807 = vsel %vm10254, %v11806, %v11762
      %v11808 = vsel %vm6957, %v11764, %v11768
      %v11809 = vsel %vm7457, %v11808, %v11772
      %v11810 = vsel %vm10254, %v11809, %v11776
      %v11811 = vsel %vm6957, %v11617, %v11781
      %v11812 = vsel %vm7457, %v11811, %v11785
      %v11813 = vsel %vm10254, %v11812, %v11789
      %v11814 = vsel %vm6957, %v11791, %v11795
      %v11815 = vsel %vm7457, %v11814, %v11799
      %v11816 = vsel %vm10254, %v11815, %v11803
      %v11818 = vrot.slane %v11618, 1
      %11819 = vrot.lane.b32.xlu0 %v11818, 32
      %v11820 = vpop.permute.xlu0 %11819
      %v11822 = vrot.slane %v11618, 2
      %11823 = vrot.lane.b32.xlu0 %v11822, 64
      %v11824 = vpop.permute.xlu0 %11823
      %v11826 = vrot.slane %v11618, 3
      %11827 = vrot.lane.b32.xlu0 %v11826, 96
      %v11828 = vpop.permute.xlu0 %11827
      %v11830 = vrot.slane %v11618, 4
      %v11832 = vrot.slane %v11618, 5
      %11833 = vrot.lane.b32.xlu0 %v11832, 32
      %v11834 = vpop.permute.xlu0 %11833
      %v11836 = vrot.slane %v11618, 6
      %11837 = vrot.lane.b32.xlu0 %v11836, 64
      %v11838 = vpop.permute.xlu0 %11837
      %v11840 = vrot.slane %v11618, 7
      %11841 = vrot.lane.b32.xlu0 %v11840, 96
      %v11842 = vpop.permute.xlu0 %11841
      %v11844 = vsel %vm6957, %v11618, %v11820
      %v11845 = vsel %vm7457, %v11844, %v11824
      %v11846 = vsel %vm10254, %v11845, %v11828
      %v11847 = vsel %vm6957, %v11830, %v11834
      %v11848 = vsel %vm7457, %v11847, %v11838
      %v11849 = vsel %vm10254, %v11848, %v11842
      %v11850 = vld [vmem:[%s7] sm:$0xff]
      %v11851 = vld [vmem:[%s7 + $0x8] sm:$0xff]
      %v11852 = vld [vmem:[%s7 + $0x10] sm:$0xff]
      %v11853 = vld [vmem:[%s7 + $0x18] sm:$0xff]
      %v11854 = vld [vmem:[%s7 + $0x20] sm:$0xff]
      %v11855 = vld [vmem:[%s7 + $0x28] sm:$0xff]
      %v11856 = vld [vmem:[%s7 + $0x30] sm:$0xff]
      %v11857 = vld [vmem:[%s7 + $0x38] sm:$0xff]
      %v11858 = vld [vmem:[%s7 + $0x40] sm:$0xff]
      %v11859 = vld [vmem:[%s7 + $0x48] sm:$0xff]
      %v11860 = vld [vmem:[%s7 + $0x50] sm:$0xff]
      %v11861 = vld [vmem:[%s7 + $0x58] sm:$0xff]
      %v11862 = vld [vmem:[%s7 + $0x60] sm:$0xff]
      %v11863 = vld [vmem:[%s7 + $0x68] sm:$0xff]
      %v11864 = vld [vmem:[%s7 + $0x70] sm:$0xff]
      %v11865 = vld [vmem:[%s7 + $0x78] sm:$0xff]
      %v11866 = vld [vmem:[%s7 + $0x80] sm:$0xff]
      %v11867 = vld [vmem:[%s7 + $0x88] sm:$0xff]
      %v11868 = vld [vmem:[%s7 + $0x90] sm:$0xff]
      %v11869 = vld [vmem:[%s7 + $0x98] sm:$0xff]
      %v11870 = vld [vmem:[%s7 + $0xa0] sm:$0xff]
      %v11871 = vld [vmem:[%s7 + $0xa8] sm:$0xff]
      %v11872 = vld [vmem:[%s7 + $0xb0] sm:$0xff]
      %v11873 = vld [vmem:[%s7 + $0xb8] sm:$0xff]
      %v11874 = vld [vmem:[%s7 + $0xc0] sm:$0xff]
      %v11875 = vld [vmem:[%s7 + $0xc8] sm:$0xff]
      %v11876 = vld [vmem:[%s7 + $0xd0] sm:$0xff]
      %v11877 = vld [vmem:[%s7 + $0xd8] sm:$0xff]
      %v11878 = vld [vmem:[%s7 + $0xe0] sm:$0xff]
      %v11879 = vld [vmem:[%s7 + $0xe8] sm:$0xff]
      %v11880 = vld [vmem:[%s7 + $0xf0] sm:$0xff]
      %v11881 = vld [vmem:[%s7 + $0xf8] sm:$0xff]
      %v11882 = vld [vmem:[%s7 + $0x100] sm:$0xff]
      %v11883 = vld [vmem:[%s7 + $0x108] sm:$0xff]
      %v11884 = vld [vmem:[%s7 + $0x110] sm:$0xff]
      %v11885 = vld [vmem:[%s7 + $0x118] sm:$0xff]
      %v11886 = vld [vmem:[%s7 + $0x120] sm:$0xff]
      %v11887 = vld [vmem:[%s7 + $0x128] sm:$0xff]
      %v11888 = vld [vmem:[%s7 + $0x130] sm:$0xff]
      %v11889 = vld [vmem:[%s7 + $0x138] sm:$0xff]
      %v11890 = vld [vmem:[%s7 + $0x140] sm:$0xff]
      %v11891 = vld [vmem:[%s7 + $0x148] sm:$0xff]
      %v11892 = vld [vmem:[%s7 + $0x150] sm:$0xff]
      %v11893 = vld [vmem:[%s7 + $0x158] sm:$0xff]
      %v11894 = vld [vmem:[%s7 + $0x160] sm:$0xff]
      %v11895 = vld [vmem:[%s7 + $0x168] sm:$0xff]
      %v11896 = vld [vmem:[%s7 + $0x170] sm:$0xff]
      %v11897 = vld [vmem:[%s7 + $0x178] sm:$0xff]
      %v11898 = vld [vmem:[%s7 + $0x180] sm:$0xff]
      %v11899 = vld [vmem:[%s7 + $0x188] sm:$0xff]
      %v11900 = vld [vmem:[%s7 + $0x190] sm:$0xff]
      %v11901 = vld [vmem:[%s7 + $0x198] sm:$0xff]
      %v11902 = vld [vmem:[%s7 + $0x1a0] sm:$0xff]
      %v11903 = vld [vmem:[%s7 + $0x1a8] sm:$0xff]
      %v11904 = vld [vmem:[%s7 + $0x1b0] sm:$0xff]
      %v11905 = vld [vmem:[%s7 + $0x1b8] sm:$0xff]
      %v11906 = vld [vmem:[%s7 + $0x1c0] sm:$0xff]
      %v11907 = vld [vmem:[%s7 + $0x1c8] sm:$0xff]
      %v11908 = vld [vmem:[%s7 + $0x1d0] sm:$0xff]
      %v11909 = vld [vmem:[%s7 + $0x1d8] sm:$0xff]
      %v11910 = vld [vmem:[%s7 + $0x1e0] sm:$0xff]
      %v11911 = vld [vmem:[%s7 + $0x1e8] sm:$0xff]
      %v11912 = vld [vmem:[%s7 + $0x1f0] sm:$0xff]
      %v11913 = vld [vmem:[%s7 + $0x1f8] sm:$0xff]
      %v11914 = vld [vmem:[%s7 + $0x200] sm:$0xff]
      %v11915 = vld [vmem:[%s7 + $0x208] sm:$0xff]
      %v11916 = vld [vmem:[%s7 + $0x210] sm:$0xff]
      %v11917 = vld [vmem:[%s7 + $0x218] sm:$0xff]
      %v11918 = vld [vmem:[%s7 + $0x220] sm:$0xff]
      %v11919 = vld [vmem:[%s7 + $0x228] sm:$0xff]
      %v11920 = vld [vmem:[%s7 + $0x230] sm:$0xff]
      %v11921 = vld [vmem:[%s7 + $0x238] sm:$0xff]
      %v11922 = vld [vmem:[%s7 + $0x240] sm:$0xff]
      %v11923 = vld [vmem:[%s7 + $0x248] sm:$0xff]
      %v11924 = vld [vmem:[%s7 + $0x250] sm:$0xff]
      %v11925 = vld [vmem:[%s7 + $0x258] sm:$0xff]
      %v11926 = vld [vmem:[%s7 + $0x260] sm:$0xff]
      %v11927 = vld [vmem:[%s7 + $0x268] sm:$0xff]
      %v11928 = vld [vmem:[%s7 + $0x270] sm:$0xff]
      %v11929 = vld [vmem:[%s7 + $0x278] sm:$0xff]
      %v11930 = vld [vmem:[%s7 + $0x280] sm:$0xff]
      %v11931 = vld [vmem:[%s7 + $0x288] sm:$0xff]
      %v11932 = vld [vmem:[%s7 + $0x290] sm:$0xff]
      %v11933 = vld [vmem:[%s7 + $0x298] sm:$0xff]
      %v11934 = vld [vmem:[%s7 + $0x2a0] sm:$0xff]
      %v11935 = vld [vmem:[%s7 + $0x2a8] sm:$0xff]
      %v11936 = vld [vmem:[%s7 + $0x2b0] sm:$0xff]
      %v11937 = vld [vmem:[%s7 + $0x2b8] sm:$0xff]
      %v11938 = vld [vmem:[%s7 + $0x2c0] sm:$0xff]
      %v11939 = vld [vmem:[%s7 + $0x2c8] sm:$0xff]
      %v11940 = vld [vmem:[%s7 + $0x2d0] sm:$0xff]
      %v11941 = vld [vmem:[%s7 + $0x2d8] sm:$0xff]
      %v11942 = vld [vmem:[%s7 + $0x2e0] sm:$0xff]
      %v11943 = vld [vmem:[%s7 + $0x2e8] sm:$0xff]
      %v11944 = vld [vmem:[%s7 + $0x2f0] sm:$0xff]
      %v11945 = vld [vmem:[%s7 + $0x2f8] sm:$0xff]
      %v11946 = vld [vmem:[%s7 + $0x300] sm:$0xff]
      %v11947 = vld [vmem:[%s7 + $0x308] sm:$0xff]
      %v11948 = vld [vmem:[%s7 + $0x310] sm:$0xff]
      %v11949 = vld [vmem:[%s7 + $0x318] sm:$0xff]
      %v11950 = vld [vmem:[%s7 + $0x320] sm:$0xff]
      %v11951 = vld [vmem:[%s7 + $0x328] sm:$0xff]
      %v11952 = vld [vmem:[%s7 + $0x330] sm:$0xff]
      %v11953 = vld [vmem:[%s7 + $0x338] sm:$0xff]
      %v11954 = vld [vmem:[%s7 + $0x340] sm:$0xff]
      %v11955 = vld [vmem:[%s7 + $0x348] sm:$0xff]
      %v11956 = vld [vmem:[%s7 + $0x350] sm:$0xff]
      %v11957 = vld [vmem:[%s7 + $0x358] sm:$0xff]
      %v11958 = vld [vmem:[%s7 + $0x360] sm:$0xff]
      %v11959 = vld [vmem:[%s7 + $0x368] sm:$0xff]
      %v11960 = vld [vmem:[%s7 + $0x370] sm:$0xff]
      %v11961 = vld [vmem:[%s7 + $0x378] sm:$0xff]
      %v11962 = vld [vmem:[%s7 + $0x380] sm:$0xff]
      %v11963 = vld [vmem:[%s7 + $0x388] sm:$0xff]
      %v11964 = vld [vmem:[%s7 + $0x390] sm:$0xff]
      %v11965 = vld [vmem:[%s7 + $0x398] sm:$0xff]
      %v11966 = vld [vmem:[%s7 + $0x3a0] sm:$0xff]
      %v11967 = vld [vmem:[%s7 + $0x3a8] sm:$0xff]
      %v11968 = vld [vmem:[%s7 + $0x3b0] sm:$0xff]
      %v11969 = vld [vmem:[%s7 + $0x3b8] sm:$0xff]
      %v11970 = vld [vmem:[%s7 + $0x3c0] sm:$0xff]
      %v11971 = vld [vmem:[%s7 + $0x3c8] sm:$0xff]
      %v11972 = vld [vmem:[%s7 + $0x3d0] sm:$0xff]
      %v11973 = vld [vmem:[%s7 + $0x3d8] sm:$0xff]
      %v11974 = vld [vmem:[%s7 + $0x3e0] sm:$0xff]
      %v11975 = vld [vmem:[%s7 + $0x3e8] sm:$0xff]
      %v11976 = vld [vmem:[%s7 + $0x3f0] sm:$0xff]
      %v11977 = vld [vmem:[%s7 + $0x3f8] sm:$0xff]
      %v11978 = vld [vmem:[%s7 + $0x400] sm:$0xff]
      %v11979 = vld [vmem:[%s7 + $0x408] sm:$0xff]
      %v11980 = vld [vmem:[%s7 + $0x410] sm:$0xff]
      %v11981 = vld [vmem:[%s7 + $0x418] sm:$0xff]
      %v11982 = vld [vmem:[%s7 + $0x420] sm:$0xff]
      %v11983 = vld [vmem:[%s7 + $0x428] sm:$0xff]
      %v11984 = vld [vmem:[%s7 + $0x430] sm:$0xff]
      %v11985 = vld [vmem:[%s7 + $0x438] sm:$0xff]
      %v11986 = vld [vmem:[%s7 + $0x440] sm:$0xff]
      %v11987 = vld [vmem:[%s7 + $0x448] sm:$0xff]
      %v11988 = vld [vmem:[%s7 + $0x450] sm:$0xff]
      %v11989 = vld [vmem:[%s7 + $0x458] sm:$0xff]
      %v11990 = vld [vmem:[%s7 + $0x460] sm:$0xff]
      %v11991 = vld [vmem:[%s7 + $0x468] sm:$0xff]
      %v11992 = vld [vmem:[%s7 + $0x470] sm:$0xff]
      %v11993 = vld [vmem:[%s7 + $0x478] sm:$0xff]
      %v11994 = vld [vmem:[%s7 + $0x480] sm:$0xff]
      %v11995 = vld [vmem:[%s7 + $0x488] sm:$0xff]
      %v11996 = vld [vmem:[%s7 + $0x490] sm:$0xff]
      %v11997 = vld [vmem:[%s7 + $0x498] sm:$0xff]
      %v11998 = vld [vmem:[%s7 + $0x4a0] sm:$0xff]
      %v11999 = vld [vmem:[%s7 + $0x4a8] sm:$0xff]
      %v12000 = vld [vmem:[%s7 + $0x4b0] sm:$0xff]
      %v12001 = vld [vmem:[%s7 + $0x4b8] sm:$0xff]
      %v12002 = vld [vmem:[%s7 + $0x4c0] sm:$0xff]
      %v12003 = vld [vmem:[%s7 + $0x4c8] sm:$0xff]
      %v12004 = vld [vmem:[%s7 + $0x4d0] sm:$0xff]
      %v12005 = vld [vmem:[%s7 + $0x4d8] sm:$0xff]
      %v12006 = vld [vmem:[%s7 + $0x4e0] sm:$0xff]
      %v12007 = vld [vmem:[%s7 + $0x4e8] sm:$0xff]
      %v12008 = vld [vmem:[%s7 + $0x4f0] sm:$0xff]
      %v12009 = vld [vmem:[%s7 + $0x4f8] sm:$0xff]
      %v12010 = vld [vmem:[%s7 + $0x500] sm:$0xff]
      %v12011 = vld [vmem:[%s7 + $0x508] sm:$0xff]
      %v12012 = vld [vmem:[%s7 + $0x510] sm:$0xff]
      %v12013 = vld [vmem:[%s7 + $0x518] sm:$0xff]
      %v12014 = vld [vmem:[%s7 + $0x520] sm:$0xff]
      %v12015 = vld [vmem:[%s7 + $0x528] sm:$0xff]
      %v12016 = vld [vmem:[%s7 + $0x530] sm:$0xff]
      %v12017 = vld [vmem:[%s7 + $0x538] sm:$0xff]
      %v12018 = vld [vmem:[%s7 + $0x540] sm:$0xff]
      %v12019 = vld [vmem:[%s7 + $0x548] sm:$0xff]
      %v12020 = vld [vmem:[%s7 + $0x550] sm:$0xff]
      %v12021 = vld [vmem:[%s7 + $0x558] sm:$0xff]
      %v12022 = vld [vmem:[%s7 + $0x560] sm:$0xff]
      %v12023 = vld [vmem:[%s7 + $0x568] sm:$0xff]
      %v12024 = vld [vmem:[%s7 + $0x570] sm:$0xff]
      %v12025 = vld [vmem:[%s7 + $0x578] sm:$0xff]
      %v12026 = vld [vmem:[%s7 + $0x580] sm:$0xff]
      %v12027 = vld [vmem:[%s7 + $0x588] sm:$0xff]
      %v12028 = vld [vmem:[%s7 + $0x590] sm:$0xff]
      %v12029 = vld [vmem:[%s7 + $0x598] sm:$0xff]
      %v12030 = vld [vmem:[%s7 + $0x5a0] sm:$0xff]
      %v12031 = vld [vmem:[%s7 + $0x5a8] sm:$0xff]
      %v12032 = vld [vmem:[%s7 + $0x5b0] sm:$0xff]
      %v12033 = vld [vmem:[%s7 + $0x5b8] sm:$0xff]
      %v12034 = vld [vmem:[%s7 + $0x5c0] sm:$0xff]
      %v12035 = vld [vmem:[%s7 + $0x5c8] sm:$0xff]
      %v12036 = vld [vmem:[%s7 + $0x5d0] sm:$0xff]
      %v12037 = vld [vmem:[%s7 + $0x5d8] sm:$0xff]
      %v12038 = vld [vmem:[%s7 + $0x5e0] sm:$0xff]
      %v12039 = vld [vmem:[%s7 + $0x5e8] sm:$0xff]
      %v12040 = vld [vmem:[%s7 + $0x5f0] sm:$0xff]
      %v12041 = vld [vmem:[%s7 + $0x5f8] sm:$0xff]
      %v12042 = vld [vmem:[%s7 + $0x600] sm:$0xff]
      %v12043 = vld [vmem:[%s7 + $0x608] sm:$0xff]
      %v12044 = vld [vmem:[%s7 + $0x610] sm:$0xff]
      %v12045 = vld [vmem:[%s7 + $0x618] sm:$0xff]
      %v12046 = vld [vmem:[%s7 + $0x620] sm:$0xff]
      %v12047 = vld [vmem:[%s7 + $0x628] sm:$0xff]
      %v12048 = vld [vmem:[%s7 + $0x630] sm:$0xff]
      %v12049 = vld [vmem:[%s7 + $0x638] sm:$0xff]
      %v12050 = vld [vmem:[%s7 + $0x640] sm:$0xff]
      %v12051 = vld [vmem:[%s7 + $0x648] sm:$0xff]
      %v12052 = vld [vmem:[%s7 + $0x650] sm:$0xff]
      %v12053 = vld [vmem:[%s7 + $0x658] sm:$0xff]
      %v12054 = vld [vmem:[%s7 + $0x660] sm:$0xff]
      %v12055 = vld [vmem:[%s7 + $0x668] sm:$0xff]
      %v12056 = vld [vmem:[%s7 + $0x670] sm:$0xff]
      %v12057 = vld [vmem:[%s7 + $0x678] sm:$0xff]
      %v12058 = vld [vmem:[%s7 + $0x680] sm:$0xff]
      %v12059 = vld [vmem:[%s7 + $0x688] sm:$0xff]
      %v12060 = vld [vmem:[%s7 + $0x690] sm:$0xff]
      %v12061 = vld [vmem:[%s7 + $0x698] sm:$0xff]
      %v12062 = vld [vmem:[%s7 + $0x6a0] sm:$0xff]
      %v12063 = vld [vmem:[%s7 + $0x6a8] sm:$0xff]
      %v12064 = vld [vmem:[%s7 + $0x6b0] sm:$0xff]
      %v12065 = vld [vmem:[%s7 + $0x6b8] sm:$0xff]
      %v12066 = vld [vmem:[%s7 + $0x6c0] sm:$0xff]
      %v12067 = vld [vmem:[%s7 + $0x6c8] sm:$0xff]
      %v12068 = vld [vmem:[%s7 + $0x6d0] sm:$0xff]
      %v12069 = vld [vmem:[%s7 + $0x6d8] sm:$0xff]
      %v12070 = vld [vmem:[%s7 + $0x6e0] sm:$0xff]
      %v12071 = vld [vmem:[%s7 + $0x6e8] sm:$0xff]
      %v12072 = vld [vmem:[%s7 + $0x6f0] sm:$0xff]
      %v12073 = vld [vmem:[%s7 + $0x6f8] sm:$0xff]
      %v12074 = vld [vmem:[%s8] sm:$0x1]
      %12075 = vmatprep.subr.mxu0 0.0
      %12076 = vmatpush1.msra.mxu0 %v11850
      %12077 = vmatprep.subr.mxu0 0.0
      %12078 = vmatpush1.msra.mxu0 %v11851
      %12079 = vmatprep.subr.mxu0 0.0
      %12080 = vmatpush1.msra.mxu0 %v11852
      %12081 = vmatprep.subr.mxu0 0.0
      %12082 = vmatpush1.msra.mxu0 %v11853
      %12083 = vmatprep.subr.mxu0 0.0
      %12084 = vmatpush1.msra.mxu0 %v11854
      %12085 = vmatprep.subr.mxu0 0.0
      %12086 = vmatpush1.msra.mxu0 %v11855
      %12087 = vmatprep.subr.mxu0 0.0
      %12088 = vmatpush1.msra.mxu0 %v11856
      %12089 = vmatprep.subr.mxu0 0.0
      %12090 = vmatpush1.msra.mxu0 %v11857
      %12091 = vmatprep.subr.mxu0 0.0
      %12092 = vmatpush1.msra.mxu0 %v11858
      %12093 = vmatprep.subr.mxu0 0.0
      %12094 = vmatpush1.msra.mxu0 %v11859
      %12095 = vmatprep.subr.mxu0 0.0
      %12096 = vmatpush1.msra.mxu0 %v11860
      %12097 = vmatprep.subr.mxu0 0.0
      %12098 = vmatpush1.msra.mxu0 %v11861
      %12099 = vmatprep.subr.mxu0 0.0
      %12100 = vmatpush1.msra.mxu0 %v11862
      %12101 = vmatprep.subr.mxu0 0.0
      %12102 = vmatpush1.msra.mxu0 %v11863
      %12103 = vmatprep.subr.mxu0 0.0
      %12104 = vmatpush1.msra.mxu0 %v11864
      %12105 = vmatprep.subr.mxu0 0.0
      %12106 = vmatpush1.msra.mxu0 %v11865
      %12107 = vmatprep.subr.mxu0 0.0
      %12108 = vmatpush1.msra.mxu0 %v11866
      %12109 = vmatprep.subr.mxu0 0.0
      %12110 = vmatpush1.msra.mxu0 %v11867
      %12111 = vmatprep.subr.mxu0 0.0
      %12112 = vmatpush1.msra.mxu0 %v11868
      %12113 = vmatprep.subr.mxu0 0.0
      %12114 = vmatpush1.msra.mxu0 %v11869
      %12115 = vmatprep.subr.mxu0 0.0
      %12116 = vmatpush1.msra.mxu0 %v11870
      %12117 = vmatprep.subr.mxu0 0.0
      %12118 = vmatpush1.msra.mxu0 %v11871
      %12119 = vmatprep.subr.mxu0 0.0
      %12120 = vmatpush1.msra.mxu0 %v11872
      %12121 = vmatprep.subr.mxu0 0.0
      %12122 = vmatpush1.msra.mxu0 %v11873
      %12123 = vmatprep.subr.mxu0 0.0
      %12124 = vmatpush1.msra.mxu0 %v11874
      %12125 = vmatprep.subr.mxu0 0.0
      %12126 = vmatpush1.msra.mxu0 %v11875
      %12127 = vmatprep.subr.mxu0 0.0
      %12128 = vmatpush1.msra.mxu0 %v11876
      %12129 = vmatprep.subr.mxu0 0.0
      %12130 = vmatpush1.msra.mxu0 %v11877
      %12131 = vmatprep.subr.mxu0 0.0
      %12132 = vmatpush1.msra.mxu0 %v11878
      %12133 = vmatprep.subr.mxu0 0.0
      %12134 = vmatpush1.msra.mxu0 %v11879
      %12135 = vmatprep.subr.mxu0 0.0
      %12136 = vmatpush1.msra.mxu0 %v11880
      %12137 = vmatprep.subr.mxu0 0.0
      %12138 = vmatpush1.msra.mxu0 %v11881
      %12139 = vmatprep.mubr.f32.mxu0 %v11678
      %12140 = vmatmul.mubr.f32.gmra.mrb[0].mxu0 %v11675
      %v12141 = vpop.f32.mrb[0].mxu0
      %v12142 = vadd.f32 %v12074, %v12141
      %v12143 = vpop.f32.mrb[0].mxu0
      %12144 = vdwg.mxu0
      %12145 = vmatprep.subr.mxu0 0.0
      %12146 = vmatpush1.msra.mxu0 %v11882
      %12147 = vmatprep.subr.mxu0 0.0
      %12148 = vmatpush1.msra.mxu0 %v11883
      %12149 = vmatprep.subr.mxu0 0.0
      %12150 = vmatpush1.msra.mxu0 %v11884
      %12151 = vmatprep.subr.mxu0 0.0
      %12152 = vmatpush1.msra.mxu0 %v11885
      %12153 = vmatprep.subr.mxu0 0.0
      %12154 = vmatpush1.msra.mxu0 %v11886
      %12155 = vmatprep.subr.mxu0 0.0
      %12156 = vmatpush1.msra.mxu0 %v11887
      %12157 = vmatprep.subr.mxu0 0.0
      %12158 = vmatpush1.msra.mxu0 %v11888
      %12159 = vmatprep.subr.mxu0 0.0
      %12160 = vmatpush1.msra.mxu0 %v11889
      %12161 = vmatprep.subr.mxu0 0.0
      %12162 = vmatpush1.msra.mxu0 %v11890
      %12163 = vmatprep.subr.mxu0 0.0
      %12164 = vmatpush1.msra.mxu0 %v11891
      %12165 = vmatprep.subr.mxu0 0.0
      %12166 = vmatpush1.msra.mxu0 %v11892
      %12167 = vmatprep.subr.mxu0 0.0
      %12168 = vmatpush1.msra.mxu0 %v11893
      %12169 = vmatprep.subr.mxu0 0.0
      %12170 = vmatpush1.msra.mxu0 %v11894
      %12171 = vmatprep.subr.mxu0 0.0
      %12172 = vmatpush1.msra.mxu0 %v11895
      %12173 = vmatprep.subr.mxu0 0.0
      %12174 = vmatpush1.msra.mxu0 %v11896
      %12175 = vmatprep.subr.mxu0 0.0
      %12176 = vmatpush1.msra.mxu0 %v11897
      %12177 = vmatprep.subr.mxu0 0.0
      %12178 = vmatpush1.msra.mxu0 %v11898
      %12179 = vmatprep.subr.mxu0 0.0
      %12180 = vmatpush1.msra.mxu0 %v11899
      %12181 = vmatprep.subr.mxu0 0.0
      %12182 = vmatpush1.msra.mxu0 %v11900
      %12183 = vmatprep.subr.mxu0 0.0
      %12184 = vmatpush1.msra.mxu0 %v11901
      %12185 = vmatprep.subr.mxu0 0.0
      %12186 = vmatpush1.msra.mxu0 %v11902
      %12187 = vmatprep.subr.mxu0 0.0
      %12188 = vmatpush1.msra.mxu0 %v11903
      %12189 = vmatprep.subr.mxu0 0.0
      %12190 = vmatpush1.msra.mxu0 %v11904
      %12191 = vmatprep.subr.mxu0 0.0
      %12192 = vmatpush1.msra.mxu0 %v11905
      %12193 = vmatprep.subr.mxu0 0.0
      %12194 = vmatpush1.msra.mxu0 %v11906
      %12195 = vmatprep.subr.mxu0 0.0
      %12196 = vmatpush1.msra.mxu0 %v11907
      %12197 = vmatprep.subr.mxu0 0.0
      %12198 = vmatpush1.msra.mxu0 %v11908
      %12199 = vmatprep.subr.mxu0 0.0
      %12200 = vmatpush1.msra.mxu0 %v11909
      %12201 = vmatprep.subr.mxu0 0.0
      %12202 = vmatpush1.msra.mxu0 %v11910
      %12203 = vmatprep.subr.mxu0 0.0
      %12204 = vmatpush1.msra.mxu0 %v11911
      %12205 = vmatprep.subr.mxu0 0.0
      %12206 = vmatpush1.msra.mxu0 %v11912
      %12207 = vmatprep.subr.mxu0 0.0
      %12208 = vmatpush1.msra.mxu0 %v11913
      %12209 = vmatprep.mubr.f32.mxu0 %v11684
      %12210 = vmatmul.mubr.f32.gmra.mrb[0].mxu0 %v11681
      %v12211 = vpop.f32.mrb[0].mxu0
      %v12212 = vadd.f32 %v12142, %v12211
      %v12213 = vpop.f32.mrb[0].mxu0
      %12214 = vdwg.mxu0
      %12215 = vmatprep.subr.mxu0 0.0
      %12216 = vmatpush1.msra.mxu0 %v11914
      %12217 = vmatprep.subr.mxu0 0.0
      %12218 = vmatpush1.msra.mxu0 %v11915
      %12219 = vmatprep.subr.mxu0 0.0
      %12220 = vmatpush1.msra.mxu0 %v11916
      %12221 = vmatprep.subr.mxu0 0.0
      %12222 = vmatpush1.msra.mxu0 %v11917
      %12223 = vmatprep.subr.mxu0 0.0
      %12224 = vmatpush1.msra.mxu0 %v11918
      %12225 = vmatprep.subr.mxu0 0.0
      %12226 = vmatpush1.msra.mxu0 %v11919
      %12227 = vmatprep.subr.mxu0 0.0
      %12228 = vmatpush1.msra.mxu0 %v11920
      %12229 = vmatprep.subr.mxu0 0.0
      %12230 = vmatpush1.msra.mxu0 %v11921
      %12231 = vmatprep.subr.mxu0 0.0
      %12232 = vmatpush1.msra.mxu0 %v11922
      %12233 = vmatprep.subr.mxu0 0.0
      %12234 = vmatpush1.msra.mxu0 %v11923
      %12235 = vmatprep.subr.mxu0 0.0
      %12236 = vmatpush1.msra.mxu0 %v11924
      %12237 = vmatprep.subr.mxu0 0.0
      %12238 = vmatpush1.msra.mxu0 %v11925
      %12239 = vmatprep.subr.mxu0 0.0
      %12240 = vmatpush1.msra.mxu0 %v11926
      %12241 = vmatprep.subr.mxu0 0.0
      %12242 = vmatpush1.msra.mxu0 %v11927
      %12243 = vmatprep.subr.mxu0 0.0
      %12244 = vmatpush1.msra.mxu0 %v11928
      %12245 = vmatprep.subr.mxu0 0.0
      %12246 = vmatpush1.msra.mxu0 %v11929
      %12247 = vmatprep.subr.mxu0 0.0
      %12248 = vmatpush1.msra.mxu0 %v11930
      %12249 = vmatprep.subr.mxu0 0.0
      %12250 = vmatpush1.msra.mxu0 %v11931
      %12251 = vmatprep.subr.mxu0 0.0
      %12252 = vmatpush1.msra.mxu0 %v11932
      %12253 = vmatprep.subr.mxu0 0.0
      %12254 = vmatpush1.msra.mxu0 %v11933
      %12255 = vmatprep.subr.mxu0 0.0
      %12256 = vmatpush1.msra.mxu0 %v11934
      %12257 = vmatprep.subr.mxu0 0.0
      %12258 = vmatpush1.msra.mxu0 %v11935
      %12259 = vmatprep.subr.mxu0 0.0
      %12260 = vmatpush1.msra.mxu0 %v11936
      %12261 = vmatprep.subr.mxu0 0.0
      %12262 = vmatpush1.msra.mxu0 %v11937
      %12263 = vmatprep.subr.mxu0 0.0
      %12264 = vmatpush1.msra.mxu0 %v11938
      %12265 = vmatprep.subr.mxu0 0.0
      %12266 = vmatpush1.msra.mxu0 %v11939
      %12267 = vmatprep.subr.mxu0 0.0
      %12268 = vmatpush1.msra.mxu0 %v11940
      %12269 = vmatprep.subr.mxu0 0.0
      %12270 = vmatpush1.msra.mxu0 %v11941
      %12271 = vmatprep.subr.mxu0 0.0
      %12272 = vmatpush1.msra.mxu0 %v11942
      %12273 = vmatprep.subr.mxu0 0.0
      %12274 = vmatpush1.msra.mxu0 %v11943
      %12275 = vmatprep.subr.mxu0 0.0
      %12276 = vmatpush1.msra.mxu0 %v11944
      %12277 = vmatprep.subr.mxu0 0.0
      %12278 = vmatpush1.msra.mxu0 %v11945
      %12279 = vmatprep.mubr.f32.mxu0 %v11744
      %12280 = vmatmul.mubr.f32.gmra.mrb[0].mxu0 %v11741
      %v12281 = vpop.f32.mrb[0].mxu0
      %v12282 = vadd.f32 %v12212, %v12281
      %v12283 = vpop.f32.mrb[0].mxu0
      %12284 = vdwg.mxu0
      %12285 = vmatprep.subr.mxu0 0.0
      %12286 = vmatpush1.msra.mxu0 %v11946
      %12287 = vmatprep.subr.mxu0 0.0
      %12288 = vmatpush1.msra.mxu0 %v11947
      %12289 = vmatprep.subr.mxu0 0.0
      %12290 = vmatpush1.msra.mxu0 %v11948
      %12291 = vmatprep.subr.mxu0 0.0
      %12292 = vmatpush1.msra.mxu0 %v11949
      %12293 = vmatprep.subr.mxu0 0.0
      %12294 = vmatpush1.msra.mxu0 %v11950
      %12295 = vmatprep.subr.mxu0 0.0
      %12296 = vmatpush1.msra.mxu0 %v11951
      %12297 = vmatprep.subr.mxu0 0.0
      %12298 = vmatpush1.msra.mxu0 %v11952
      %12299 = vmatprep.subr.mxu0 0.0
      %12300 = vmatpush1.msra.mxu0 %v11953
      %12301 = vmatprep.subr.mxu0 0.0
      %12302 = vmatpush1.msra.mxu0 %v11954
      %12303 = vmatprep.subr.mxu0 0.0
      %12304 = vmatpush1.msra.mxu0 %v11955
      %12305 = vmatprep.subr.mxu0 0.0
      %12306 = vmatpush1.msra.mxu0 %v11956
      %12307 = vmatprep.subr.mxu0 0.0
      %12308 = vmatpush1.msra.mxu0 %v11957
      %12309 = vmatprep.subr.mxu0 0.0
      %12310 = vmatpush1.msra.mxu0 %v11958
      %12311 = vmatprep.subr.mxu0 0.0
      %12312 = vmatpush1.msra.mxu0 %v11959
      %12313 = vmatprep.subr.mxu0 0.0
      %12314 = vmatpush1.msra.mxu0 %v11960
      %12315 = vmatprep.subr.mxu0 0.0
      %12316 = vmatpush1.msra.mxu0 %v11961
      %12317 = vmatprep.subr.mxu0 0.0
      %12318 = vmatpush1.msra.mxu0 %v11962
      %12319 = vmatprep.subr.mxu0 0.0
      %12320 = vmatpush1.msra.mxu0 %v11963
      %12321 = vmatprep.subr.mxu0 0.0
      %12322 = vmatpush1.msra.mxu0 %v11964
      %12323 = vmatprep.subr.mxu0 0.0
      %12324 = vmatpush1.msra.mxu0 %v11965
      %12325 = vmatprep.subr.mxu0 0.0
      %12326 = vmatpush1.msra.mxu0 %v11966
      %12327 = vmatprep.subr.mxu0 0.0
      %12328 = vmatpush1.msra.mxu0 %v11967
      %12329 = vmatprep.subr.mxu0 0.0
      %12330 = vmatpush1.msra.mxu0 %v11968
      %12331 = vmatprep.subr.mxu0 0.0
      %12332 = vmatpush1.msra.mxu0 %v11969
      %12333 = vmatprep.subr.mxu0 0.0
      %12334 = vmatpush1.msra.mxu0 %v11970
      %12335 = vmatprep.subr.mxu0 0.0
      %12336 = vmatpush1.msra.mxu0 %v11971
      %12337 = vmatprep.subr.mxu0 0.0
      %12338 = vmatpush1.msra.mxu0 %v11972
      %12339 = vmatprep.subr.mxu0 0.0
      %12340 = vmatpush1.msra.mxu0 %v11973
      %12341 = vmatprep.subr.mxu0 0.0
      %12342 = vmatpush1.msra.mxu0 %v11974
      %12343 = vmatprep.subr.mxu0 0.0
      %12344 = vmatpush1.msra.mxu0 %v11975
      %12345 = vmatprep.subr.mxu0 0.0
      %12346 = vmatpush1.msra.mxu0 %v11976
      %12347 = vmatprep.subr.mxu0 0.0
      %12348 = vmatpush1.msra.mxu0 %v11977
      %12349 = vmatprep.mubr.f32.mxu0 %v11750
      %12350 = vmatmul.mubr.f32.gmra.mrb[0].mxu0 %v11747
      %v12351 = vpop.f32.mrb[0].mxu0
      %v12352 = vadd.f32 %v12282, %v12351
      %v12353 = vpop.f32.mrb[0].mxu0
      %12354 = vdwg.mxu0
      %12355 = vmatprep.subr.mxu0 0.0
      %12356 = vmatpush1.msra.mxu0 %v11978
      %12357 = vmatprep.subr.mxu0 0.0
      %12358 = vmatpush1.msra.mxu0 %v11979
      %12359 = vmatprep.subr.mxu0 0.0
      %12360 = vmatpush1.msra.mxu0 %v11980
      %12361 = vmatprep.subr.mxu0 0.0
      %12362 = vmatpush1.msra.mxu0 %v11981
      %12363 = vmatprep.subr.mxu0 0.0
      %12364 = vmatpush1.msra.mxu0 %v11982
      %12365 = vmatprep.subr.mxu0 0.0
      %12366 = vmatpush1.msra.mxu0 %v11983
      %12367 = vmatprep.subr.mxu0 0.0
      %12368 = vmatpush1.msra.mxu0 %v11984
      %12369 = vmatprep.subr.mxu0 0.0
      %12370 = vmatpush1.msra.mxu0 %v11985
      %12371 = vmatprep.subr.mxu0 0.0
      %12372 = vmatpush1.msra.mxu0 %v11986
      %12373 = vmatprep.subr.mxu0 0.0
      %12374 = vmatpush1.msra.mxu0 %v11987
      %12375 = vmatprep.subr.mxu0 0.0
      %12376 = vmatpush1.msra.mxu0 %v11988
      %12377 = vmatprep.subr.mxu0 0.0
      %12378 = vmatpush1.msra.mxu0 %v11989
      %12379 = vmatprep.subr.mxu0 0.0
      %12380 = vmatpush1.msra.mxu0 %v11990
      %12381 = vmatprep.subr.mxu0 0.0
      %12382 = vmatpush1.msra.mxu0 %v11991
      %12383 = vmatprep.subr.mxu0 0.0
      %12384 = vmatpush1.msra.mxu0 %v11992
      %12385 = vmatprep.subr.mxu0 0.0
      %12386 = vmatpush1.msra.mxu0 %v11993
      %12387 = vmatprep.subr.mxu0 0.0
      %12388 = vmatpush1.msra.mxu0 %v11994
      %12389 = vmatprep.subr.mxu0 0.0
      %12390 = vmatpush1.msra.mxu0 %v11995
      %12391 = vmatprep.subr.mxu0 0.0
      %12392 = vmatpush1.msra.mxu0 %v11996
      %12393 = vmatprep.subr.mxu0 0.0
      %12394 = vmatpush1.msra.mxu0 %v11997
      %12395 = vmatprep.subr.mxu0 0.0
      %12396 = vmatpush1.msra.mxu0 %v11998
      %12397 = vmatprep.subr.mxu0 0.0
      %12398 = vmatpush1.msra.mxu0 %v11999
      %12399 = vmatprep.subr.mxu0 0.0
      %12400 = vmatpush1.msra.mxu0 %v12000
      %12401 = vmatprep.subr.mxu0 0.0
      %12402 = vmatpush1.msra.mxu0 %v12001
      %12403 = vmatprep.subr.mxu0 0.0
      %12404 = vmatpush1.msra.mxu0 %v12002
      %12405 = vmatprep.subr.mxu0 0.0
      %12406 = vmatpush1.msra.mxu0 %v12003
      %12407 = vmatprep.subr.mxu0 0.0
      %12408 = vmatpush1.msra.mxu0 %v12004
      %12409 = vmatprep.subr.mxu0 0.0
      %12410 = vmatpush1.msra.mxu0 %v12005
      %12411 = vmatprep.subr.mxu0 0.0
      %12412 = vmatpush1.msra.mxu0 %v12006
      %12413 = vmatprep.subr.mxu0 0.0
      %12414 = vmatpush1.msra.mxu0 %v12007
      %12415 = vmatprep.subr.mxu0 0.0
      %12416 = vmatpush1.msra.mxu0 %v12008
      %12417 = vmatprep.subr.mxu0 0.0
      %12418 = vmatpush1.msra.mxu0 %v12009
      %12419 = vmatprep.mubr.f32.mxu0 %v11810
      %12420 = vmatmul.mubr.f32.gmra.mrb[0].mxu0 %v11807
      %v12421 = vpop.f32.mrb[0].mxu0
      %v12422 = vadd.f32 %v12352, %v12421
      %v12423 = vpop.f32.mrb[0].mxu0
      %12424 = vdwg.mxu0
      %12425 = vmatprep.subr.mxu0 0.0
      %12426 = vmatpush1.msra.mxu0 %v12010
      %12427 = vmatprep.subr.mxu0 0.0
      %12428 = vmatpush1.msra.mxu0 %v12011
      %12429 = vmatprep.subr.mxu0 0.0
      %12430 = vmatpush1.msra.mxu0 %v12012
      %12431 = vmatprep.subr.mxu0 0.0
      %12432 = vmatpush1.msra.mxu0 %v12013
      %12433 = vmatprep.subr.mxu0 0.0
      %12434 = vmatpush1.msra.mxu0 %v12014
      %12435 = vmatprep.subr.mxu0 0.0
      %12436 = vmatpush1.msra.mxu0 %v12015
      %12437 = vmatprep.subr.mxu0 0.0
      %12438 = vmatpush1.msra.mxu0 %v12016
      %12439 = vmatprep.subr.mxu0 0.0
      %12440 = vmatpush1.msra.mxu0 %v12017
      %12441 = vmatprep.subr.mxu0 0.0
      %12442 = vmatpush1.msra.mxu0 %v12018
      %12443 = vmatprep.subr.mxu0 0.0
      %12444 = vmatpush1.msra.mxu0 %v12019
      %12445 = vmatprep.subr.mxu0 0.0
      %12446 = vmatpush1.msra.mxu0 %v12020
      %12447 = vmatprep.subr.mxu0 0.0
      %12448 = vmatpush1.msra.mxu0 %v12021
      %12449 = vmatprep.subr.mxu0 0.0
      %12450 = vmatpush1.msra.mxu0 %v12022
      %12451 = vmatprep.subr.mxu0 0.0
      %12452 = vmatpush1.msra.mxu0 %v12023
      %12453 = vmatprep.subr.mxu0 0.0
      %12454 = vmatpush1.msra.mxu0 %v12024
      %12455 = vmatprep.subr.mxu0 0.0
      %12456 = vmatpush1.msra.mxu0 %v12025
      %12457 = vmatprep.subr.mxu0 0.0
      %12458 = vmatpush1.msra.mxu0 %v12026
      %12459 = vmatprep.subr.mxu0 0.0
      %12460 = vmatpush1.msra.mxu0 %v12027
      %12461 = vmatprep.subr.mxu0 0.0
      %12462 = vmatpush1.msra.mxu0 %v12028
      %12463 = vmatprep.subr.mxu0 0.0
      %12464 = vmatpush1.msra.mxu0 %v12029
      %12465 = vmatprep.subr.mxu0 0.0
      %12466 = vmatpush1.msra.mxu0 %v12030
      %12467 = vmatprep.subr.mxu0 0.0
      %12468 = vmatpush1.msra.mxu0 %v12031
      %12469 = vmatprep.subr.mxu0 0.0
      %12470 = vmatpush1.msra.mxu0 %v12032
      %12471 = vmatprep.subr.mxu0 0.0
      %12472 = vmatpush1.msra.mxu0 %v12033
      %12473 = vmatprep.subr.mxu0 0.0
      %12474 = vmatpush1.msra.mxu0 %v12034
      %12475 = vmatprep.subr.mxu0 0.0
      %12476 = vmatpush1.msra.mxu0 %v12035
      %12477 = vmatprep.subr.mxu0 0.0
      %12478 = vmatpush1.msra.mxu0 %v12036
      %12479 = vmatprep.subr.mxu0 0.0
      %12480 = vmatpush1.msra.mxu0 %v12037
      %12481 = vmatprep.subr.mxu0 0.0
      %12482 = vmatpush1.msra.mxu0 %v12038
      %12483 = vmatprep.subr.mxu0 0.0
      %12484 = vmatpush1.msra.mxu0 %v12039
      %12485 = vmatprep.subr.mxu0 0.0
      %12486 = vmatpush1.msra.mxu0 %v12040
      %12487 = vmatprep.subr.mxu0 0.0
      %12488 = vmatpush1.msra.mxu0 %v12041
      %12489 = vmatprep.mubr.f32.mxu0 %v11816
      %12490 = vmatmul.mubr.f32.gmra.mrb[0].mxu0 %v11813
      %v12491 = vpop.f32.mrb[0].mxu0
      %v12492 = vadd.f32 %v12422, %v12491
      %v12493 = vpop.f32.mrb[0].mxu0
      %12494 = vdwg.mxu0
      %12495 = vmatprep.subr.mxu0 0.0
      %12496 = vmatpush1.msra.mxu0 %v12042
      %12497 = vmatprep.subr.mxu0 0.0
      %12498 = vmatpush1.msra.mxu0 %v12043
      %12499 = vmatprep.subr.mxu0 0.0
      %12500 = vmatpush1.msra.mxu0 %v12044
      %12501 = vmatprep.subr.mxu0 0.0
      %12502 = vmatpush1.msra.mxu0 %v12045
      %12503 = vmatprep.subr.mxu0 0.0
      %12504 = vmatpush1.msra.mxu0 %v12046
      %12505 = vmatprep.subr.mxu0 0.0
      %12506 = vmatpush1.msra.mxu0 %v12047
      %12507 = vmatprep.subr.mxu0 0.0
      %12508 = vmatpush1.msra.mxu0 %v12048
      %12509 = vmatprep.subr.mxu0 0.0
      %12510 = vmatpush1.msra.mxu0 %v12049
      %12511 = vmatprep.subr.mxu0 0.0
      %12512 = vmatpush1.msra.mxu0 %v12050
      %12513 = vmatprep.subr.mxu0 0.0
      %12514 = vmatpush1.msra.mxu0 %v12051
      %12515 = vmatprep.subr.mxu0 0.0
      %12516 = vmatpush1.msra.mxu0 %v12052
      %12517 = vmatprep.subr.mxu0 0.0
      %12518 = vmatpush1.msra.mxu0 %v12053
      %12519 = vmatprep.subr.mxu0 0.0
      %12520 = vmatpush1.msra.mxu0 %v12054
      %12521 = vmatprep.subr.mxu0 0.0
      %12522 = vmatpush1.msra.mxu0 %v12055
      %12523 = vmatprep.subr.mxu0 0.0
      %12524 = vmatpush1.msra.mxu0 %v12056
      %12525 = vmatprep.subr.mxu0 0.0
      %12526 = vmatpush1.msra.mxu0 %v12057
      %12527 = vmatprep.subr.mxu0 0.0
      %12528 = vmatpush1.msra.mxu0 %v12058
      %12529 = vmatprep.subr.mxu0 0.0
      %12530 = vmatpush1.msra.mxu0 %v12059
      %12531 = vmatprep.subr.mxu0 0.0
      %12532 = vmatpush1.msra.mxu0 %v12060
      %12533 = vmatprep.subr.mxu0 0.0
      %12534 = vmatpush1.msra.mxu0 %v12061
      %12535 = vmatprep.subr.mxu0 0.0
      %12536 = vmatpush1.msra.mxu0 %v12062
      %12537 = vmatprep.subr.mxu0 0.0
      %12538 = vmatpush1.msra.mxu0 %v12063
      %12539 = vmatprep.subr.mxu0 0.0
      %12540 = vmatpush1.msra.mxu0 %v12064
      %12541 = vmatprep.subr.mxu0 0.0
      %12542 = vmatpush1.msra.mxu0 %v12065
      %12543 = vmatprep.subr.mxu0 0.0
      %12544 = vmatpush1.msra.mxu0 %v12066
      %12545 = vmatprep.subr.mxu0 0.0
      %12546 = vmatpush1.msra.mxu0 %v12067
      %12547 = vmatprep.subr.mxu0 0.0
      %12548 = vmatpush1.msra.mxu0 %v12068
      %12549 = vmatprep.subr.mxu0 0.0
      %12550 = vmatpush1.msra.mxu0 %v12069
      %12551 = vmatprep.subr.mxu0 0.0
      %12552 = vmatpush1.msra.mxu0 %v12070
      %12553 = vmatprep.subr.mxu0 0.0
      %12554 = vmatpush1.msra.mxu0 %v12071
      %12555 = vmatprep.subr.mxu0 0.0
      %12556 = vmatpush1.msra.mxu0 %v12072
      %12557 = vmatprep.subr.mxu0 0.0
      %12558 = vmatpush1.msra.mxu0 %v12073
      %12559 = vmatprep.mubr.f32.mxu0 %v11849
      %12560 = vmatmul.mubr.f32.gmra.mrb[0].mxu0 %v11846
      %v12561 = vpop.f32.mrb[0].mxu0
      %v12562 = vadd.f32 %v12492, %v12561
      %v12563 = vpop.f32.mrb[0].mxu0
      %12564 = vdwg.mxu0
      %v12565 = vmax.f32 %v12562, 0.0
      %v12566 = vld [vmem:[%s9] sm:$0xff]
      %v12567 = vld [vmem:[%s9 + $0x8] sm:$0xff]
      %v12568 = vld [vmem:[%s9 + $0x10] sm:$0xff]
      %v12569 = vld [vmem:[%s9 + $0x18] sm:$0xff]
      %v12570 = vld [vmem:[%s9 + $0x20] sm:$0xff]
      %v12571 = vld [vmem:[%s9 + $0x28] sm:$0xff]
      %v12572 = vld [vmem:[%s9 + $0x30] sm:$0xff]
      %v12573 = vld [vmem:[%s9 + $0x38] sm:$0xff]
      %v12574 = vld [vmem:[%s9 + $0x40] sm:$0xff]
      %v12575 = vld [vmem:[%s9 + $0x48] sm:$0xff]
      %v12576 = vld [vmem:[%s9 + $0x50] sm:$0xff]
      %v12577 = vld [vmem:[%s9 + $0x58] sm:$0xff]
      %v12578 = vld [vmem:[%s9 + $0x60] sm:$0xff]
      %v12579 = vld [vmem:[%s9 + $0x68] sm:$0xff]
      %v12580 = vld [vmem:[%s9 + $0x70] sm:$0xff]
      %v12581 = vld [vmem:[%s9 + $0x78] sm:$0xff]
      %v12582 = vld [vmem:[%s10] sm:$0x1]
      %12583 = vmatprep.subr.mxu0 0.0
      %12584 = vmatpush1.msra.mxu0 %v12566
      %12585 = vmatprep.subr.mxu0 0.0
      %12586 = vmatpush1.msra.mxu0 %v12567
      %12587 = vmatprep.subr.mxu0 0.0
      %12588 = vmatpush1.msra.mxu0 %v12568
      %12589 = vmatprep.subr.mxu0 0.0
      %12590 = vmatpush1.msra.mxu0 %v12569
      %12591 = vmatprep.subr.mxu0 0.0
      %12592 = vmatpush1.msra.mxu0 %v12570
      %12593 = vmatprep.subr.mxu0 0.0
      %12594 = vmatpush1.msra.mxu0 %v12571
      %12595 = vmatprep.subr.mxu0 0.0
      %12596 = vmatpush1.msra.mxu0 %v12572
      %12597 = vmatprep.subr.mxu0 0.0
      %12598 = vmatpush1.msra.mxu0 %v12573
      %12599 = vmatprep.subr.mxu0 0.0
      %12600 = vmatpush1.msra.mxu0 %v12574
      %12601 = vmatprep.subr.mxu0 0.0
      %12602 = vmatpush1.msra.mxu0 %v12575
      %12603 = vmatprep.subr.mxu0 0.0
      %12604 = vmatpush1.msra.mxu0 %v12576
      %12605 = vmatprep.subr.mxu0 0.0
      %12606 = vmatpush1.msra.mxu0 %v12577
      %12607 = vmatprep.subr.mxu0 0.0
      %12608 = vmatpush1.msra.mxu0 %v12578
      %12609 = vmatprep.subr.mxu0 0.0
      %12610 = vmatpush1.msra.mxu0 %v12579
      %12611 = vmatprep.subr.mxu0 0.0
      %12612 = vmatpush1.msra.mxu0 %v12580
      %12613 = vmatprep.subr.mxu0 0.0
      %12614 = vmatpush1.msra.mxu0 %v12581
      %12615 = vmatprep.subr.mxu0 0.0
      %12616 = vmatpush1.msra.mxu0 0.0
      %12617 = vmatprep.subr.mxu0 0.0
      %12618 = vmatpush1.msra.mxu0 0.0
      %12619 = vmatprep.subr.mxu0 0.0
      %12620 = vmatpush1.msra.mxu0 0.0
      %12621 = vmatprep.subr.mxu0 0.0
      %12622 = vmatpush1.msra.mxu0 0.0
      %12623 = vmatprep.subr.mxu0 0.0
      %12624 = vmatpush1.msra.mxu0 0.0
      %12625 = vmatprep.subr.mxu0 0.0
      %12626 = vmatpush1.msra.mxu0 0.0
      %12627 = vmatprep.subr.mxu0 0.0
      %12628 = vmatpush1.msra.mxu0 0.0
      %12629 = vmatprep.subr.mxu0 0.0
      %12630 = vmatpush1.msra.mxu0 0.0
      %12631 = vmatprep.subr.mxu0 0.0
      %12632 = vmatpush1.msra.mxu0 0.0
      %12633 = vmatprep.subr.mxu0 0.0
      %12634 = vmatpush1.msra.mxu0 0.0
      %12635 = vmatprep.subr.mxu0 0.0
      %12636 = vmatpush1.msra.mxu0 0.0
      %12637 = vmatprep.subr.mxu0 0.0
      %12638 = vmatpush1.msra.mxu0 0.0
      %12639 = vmatprep.subr.mxu0 0.0
      %12640 = vmatpush1.msra.mxu0 0.0
      %12641 = vmatprep.subr.mxu0 0.0
      %12642 = vmatpush1.msra.mxu0 0.0
      %12643 = vmatprep.subr.mxu0 0.0
      %12644 = vmatpush1.msra.mxu0 0.0
      %12645 = vmatprep.subr.mxu0 0.0
      %12646 = vmatpush1.msra.mxu0 0.0
      %12647 = vmatprep.mubr.f32.mxu0 0.0
      %12648 = vmatmul.mubr.f32.gmra.mrb[0].mxu0 %v12565
      %v12649 = vpop.f32.mrb[0].mxu0
      %v12650 = vadd.f32 %v12582, %v12649
      %v12651 = vpop.f32.mrb[0].mxu0
      %12652 = vdwg.mxu0
      %12653 = vst [vmem:[%s382] sm:$0x1] %v12650
      %p12654 = scmp.lt.s32.totalorder %s22, 1
      %s12655 = scalar_select %p12654, %s22, 1
      %s12656 = scalar_lea.vmem %s11, %s12655
      // Predicated region
      $region65: #{network_forward.1} parent=63 // pred_check
        %p12657 = pneg %p276
      $region66: #{network_forward.1} parent=63 // pred_check_branch
        %12659 = sbr.rel (%p12657) target = $region68
      $region67: #{network_forward.1} parent=63 // pred_region
        _
      $region68: #{network_forward.1} parent=63 // pred_fallthru
        _
    $region64: #{network_forward.1} parent=5 // pred_fallthru
      _
    %p12660 = scmp.le.s32.totalorder 2, %s17
    // Predicated region
    $region69: #{network_forward.1} parent=5 // pred_check
      %p12661 = pneg %p12660
    $region70: #{network_forward.1} parent=5 // pred_check_branch
      %12663 = sbr.rel (%p12661) target = $region72
    $region71: #{network_forward.1} parent=5 // pred_region
      %s12664 = ssub.s32 %s17, 2
      // Predicated region
      $region73: #{network_forward.1} parent=71 // pred_check
        %p12665 = pneg %p282
      $region74: #{network_forward.1} parent=71 // pred_check_branch
        %12667 = sbr.rel (%p12665) target = $region76
      $region75: #{network_forward.1} parent=71 // pred_region
        %p12668 = scmp.lt.s32.totalorder %s23, 1
        %s12669 = scalar_select %p12668, %s23, 1
        %s12670 = scalar_lea.vmem %s11, %s12669
      $region76: #{network_forward.1} parent=71 // pred_fallthru
        _
    $region72: #{network_forward.1} parent=5 // pred_fallthru
      _
  $region6: #{network_forward.1} parent=0 // loop_footer
    %s21 = sadd.s32 1, %s17
  $region7: #{network_forward.1} parent=0 // loop_footer_branch
    %16 = sbr.rel target = $region3
  $region8: #{network_forward.1} parent=0 // loop_exit
    _

</llo_original>
